<compile_context>
chip_gen: v6e
topology: v6e:2x2x1
jax: 0.10.0
libtpu: 0.0.40
codegen_flags: <defaults>
</compile_context>

<pallas_src>
import jax
import jax.numpy as jnp
from jax.experimental import pallas as pl
from jax.experimental.pallas import tpu as pltpu


def _swap_leading(t):
    """(A, B, C) -> (B, A, C) relayout inside VMEM (XLU work, no HBM traffic)."""
    if hasattr(pltpu, "einshape"):
        return pltpu.einshape("abc->bac", t)
    return jnp.transpose(t, (1, 0, 2))


# ----------------------------------------------------------------------------
# Fused kernel: per-batch (grid over B)
#   x_ref : (1, H, W, C) f32
#   wq/wk : (C, Cq) bf16, wv : (C, C) bf16  -- resident in VMEM
#   bq/bk : (1, Cq) f32,  bv : (1, C) f32
#   gamma : (1,) f32 scalar in SMEM
#   out   : (1, H, W, C) f32  = gamma * (out_H + out_W) + x
# ----------------------------------------------------------------------------
def _ccnet_fused_kernel(x_ref, wq_ref, bq_ref, wk_ref, bk_ref, wv_ref, bv_ref,
                        gamma_ref, out_ref):
    _, H, W, C = x_ref.shape
    Cq = wq_ref.shape[1]

    x = x_ref[0]                                           # (H, W, C) f32
    xb = x.reshape(H * W, C).astype(jnp.bfloat16)

    # ---- fused 1x1 convs (weights resident, bf16 MXU + f32 acc + f32 bias)
    q = (jnp.dot(xb, wq_ref[...], preferred_element_type=jnp.float32)
         + bq_ref[...]).reshape(H, W, Cq)
    k = (jnp.dot(xb, wk_ref[...], preferred_element_type=jnp.float32)
         + bk_ref[...]).reshape(H, W, Cq)
    v = (jnp.dot(xb, wv_ref[...], preferred_element_type=jnp.float32)
         + bv_ref[...]).reshape(H, W, C)

    # ---- column ("H") branch operands: batch axis w leading (in-VMEM relayout)
    qH = _swap_leading(q)                                  # (W, H, Cq)
    kH = _swap_leading(k)                                  # (W, H, Cq)
    vH = _swap_leading(v)                                  # (W, H, C)

    # ---- energies (batched MXU matmuls, bf16 operands, f32 accumulation)
    eH = jnp.einsum('whc,wjc->whj',
                    qH.astype(jnp.bfloat16), kH.astype(jnp.bfloat16),
                    preferred_element_type=jnp.float32)    # (W, H, H)
    eW = jnp.einsum('hwc,hjc->hwj',
                    q.astype(jnp.bfloat16), k.astype(jnp.bfloat16),
                    preferred_element_type=jnp.float32)    # (H, W, W)

    # -inf (large finite negative) on the (h == j) diagonal -- the INF() term.
    hh = jax.lax.broadcasted_iota(jnp.int32, eH.shape, 1)
    jj = jax.lax.broadcasted_iota(jnp.int32, eH.shape, 2)
    eH = jnp.where(hh == jj, -1e30, eH)

    # ---- joint softmax over the concatenated (H + W) axis: shared running max
    # and shared denominator, concat never materialized.
    mH = jnp.max(eH, axis=-1)                              # (W, H)
    mW = jnp.max(eW, axis=-1)                              # (H, W)
    m_wh = jnp.maximum(mH, mW.T)                           # (W, H)
    m_hw = m_wh.T                                          # (H, W)

    pH = jnp.exp(eH - m_wh[:, :, None])                    # (W, H, H)
    pW = jnp.exp(eW - m_hw[:, :, None])                    # (H, W, W)

    d_wh = jnp.sum(pH, axis=-1) + jnp.sum(pW, axis=-1).T   # (W, H)
    inv_wh = pl.reciprocal(d_wh, approx=True)              # EUP slot
    inv_hw = inv_wh.T                                      # (H, W)

    # ---- value aggregation with un-normalized probabilities; normalize the
    # C-wide matmul outputs afterwards (deferred normalization).
    oHt = jnp.einsum('whj,wjc->whc',
                     pH.astype(jnp.bfloat16), vH.astype(jnp.bfloat16),
                     preferred_element_type=jnp.float32)   # (W, H, C)
    oWr = jnp.einsum('hwj,hjc->hwc',
                     pW.astype(jnp.bfloat16), v.astype(jnp.bfloat16),
                     preferred_element_type=jnp.float32)   # (H, W, C)

    oH = _swap_leading(oHt * inv_wh[:, :, None])           # (H, W, C)
    oW = oWr * inv_hw[:, :, None]                          # (H, W, C)

    # ---- fused epilogue: single lane-dense store of the final result.
    gamma = gamma_ref[0]
    out_ref[0] = gamma * (oH + oW) + x


# ----------------------------------------------------------------------------
# Wrapper (NCHW in / NCHW out, matching the PyTorch module)
# ----------------------------------------------------------------------------
def criss_cross_attention(x_nchw, params):
    wq, bq = params['wq'], params['bq']
    wk, bk = params['wk'], params['bk']
    wv, bv = params['wv'], params['bv']
    gamma = params['gamma']

    B, C, H, W = x_nchw.shape
    Cq = wq.shape[1]

    # Boundary layout change only (channels -> TPU lanes).
    x_nhwc = jnp.transpose(x_nchw, (0, 2, 3, 1))           # (B, H, W, C)

    const = lambda *_: (0, 0)                              # weights stay resident

    # NOTE: at production CCNet sizes (C~512, H=W~96) the per-batch block plus
    # the (W,H,H)/(H,W,W) intermediates would need a spatial grid axis /
    # streamed softmax to fit v7x's 64 MiB VMEM and to give >B pipeline steps;
    # at these test sizes one block per batch is well within budget.
    out_nhwc = pl.pallas_call(
        _ccnet_fused_kernel,
        grid=(B,),
        in_specs=[
            pl.BlockSpec((1, H, W, C), lambda b: (b, 0, 0, 0)),
            pl.BlockSpec((C, Cq), const), pl.BlockSpec((1, Cq), const),
            pl.BlockSpec((C, Cq), const), pl.BlockSpec((1, Cq), const),
            pl.BlockSpec((C, C), const), pl.BlockSpec((1, C), const),
            pl.BlockSpec(memory_space=pltpu.MemorySpace.SMEM),   # gamma scalar
        ],
        out_specs=pl.BlockSpec((1, H, W, C), lambda b: (b, 0, 0, 0)),
        out_shape=jax.ShapeDtypeStruct((B, H, W, C), jnp.float32),
        compiler_params=pltpu.CompilerParams(
            dimension_semantics=("parallel",),
            vmem_limit_bytes=48 * 1024 * 1024),
    )(x_nhwc,
      wq.astype(jnp.bfloat16), bq.reshape(1, Cq).astype(jnp.float32),
      wk.astype(jnp.bfloat16), bk.reshape(1, Cq).astype(jnp.float32),
      wv.astype(jnp.bfloat16), bv.reshape(1, C).astype(jnp.float32),
      gamma.reshape(1).astype(jnp.float32))

    return jnp.transpose(out_nhwc, (0, 3, 1, 2))           # back to NCHW


# ----------------------------------------------------------------------------
# Pure-JAX reference (mirrors the PyTorch forward exactly, f32 highest precision)
# ----------------------------------------------------------------------------
def reference(x_nchw, params):
    with jax.default_matmul_precision("highest"):
        wq, bq = params['wq'], params['bq']
        wk, bk = params['wk'], params['bk']
        wv, bv = params['wv'], params['bv']
        gamma = params['gamma']

        x = jnp.transpose(x_nchw, (0, 2, 3, 1))            # NHWC
        B, H, W, C = x.shape
        q = x @ wq + bq
        k = x @ wk + bk
        v = x @ wv + bv

        eH = jnp.einsum('bhwc,bjwc->bhwj', q, k)           # (B,H,W,H)
        diag = jnp.eye(H, dtype=bool)[None, :, None, :]
        eH = jnp.where(diag, -jnp.inf, eH)
        eW = jnp.einsum('bhwc,bhjc->bhwj', q, k)           # (B,H,W,W)

        att = jax.nn.softmax(jnp.concatenate([eH, eW], axis=-1), axis=-1)
        attH = att[..., :H]
        attW = att[..., H:]

        oH = jnp.einsum('bhwj,bjwc->bhwc', attH, v)
        oW = jnp.einsum('bhwj,bhjc->bhwc', attW, v)
        out = gamma * (oH + oW) + x
        return jnp.transpose(out, (0, 3, 1, 2))


if __name__ == "__main__":
    B, C, H, W = 2, 16, 16, 16
    Cq = C // 8

    key = jax.random.PRNGKey(0)
    ks = jax.random.split(key, 8)
    params = dict(
        wq=0.1 * jax.random.normal(ks[0], (C, Cq), jnp.float32),
        bq=0.1 * jax.random.normal(ks[1], (Cq,), jnp.float32),
        wk=0.1 * jax.random.normal(ks[2], (C, Cq), jnp.float32),
        bk=0.1 * jax.random.normal(ks[3], (Cq,), jnp.float32),
        wv=0.1 * jax.random.normal(ks[4], (C, C), jnp.float32),
        bv=0.1 * jax.random.normal(ks[5], (C,), jnp.float32),
        # nn.Parameter(torch.zeros(1)) in __init__; nonzero value used here so
        # the attention path actually contributes to the output.
        gamma=jnp.full((1,), 0.5, jnp.float32),
    )
    x = jax.random.normal(ks[6], (B, C, H, W), jnp.float32)

    out = jax.jit(criss_cross_attention)(x, params)
    out = jax.block_until_ready(out)

    ref = reference(x, params)
    assert out.shape == x.shape
    err = float(jnp.max(jnp.abs(out - ref)))
    # Tolerance relaxed vs. the f32 "highest" reference because the kernel uses
    # bf16 MXU operands (f32 accumulation) and an approx EUP reciprocal.
    assert jnp.allclose(out, ref, atol=5e-2, rtol=5e-2), err
    print("KERNEL_OK")
</pallas_src>

<mosaic_0001>
module attributes {stable_mosaic.version = 11 : i64} {
  func.func @_ccnet_fused_kernel(%arg0: i32, %arg1: memref<1x16x16x16xf32, #tpu.memory_space<vmem>>, %arg2: memref<16x2xbf16, #tpu.memory_space<vmem>>, %arg3: memref<1x2xf32, #tpu.memory_space<vmem>>, %arg4: memref<16x2xbf16, #tpu.memory_space<vmem>>, %arg5: memref<1x2xf32, #tpu.memory_space<vmem>>, %arg6: memref<16x16xbf16, #tpu.memory_space<vmem>>, %arg7: memref<1x16xf32, #tpu.memory_space<vmem>>, %arg8: memref<1xf32, #tpu.memory_space<smem>>, %arg9: memref<1x16x16x16xf32, #tpu.memory_space<vmem>>) attributes {dimension_semantics = [#tpu.dimension_semantics<parallel>], iteration_bounds = array<i64: 2>, scalar_prefetch = 0 : i64, scratch_operands = 0 : i64, tpu.core_type = #tpu.core_type<tc>, window_params = [{transform_indices = @transform_0, window_bounds = array<i64: 1, 16, 16, 16>}, {pipeline_mode = #tpu.pipeline_mode<synchronous>, transform_indices = @transform_1, window_bounds = array<i64: 16, 2>}, {pipeline_mode = #tpu.pipeline_mode<synchronous>, transform_indices = @transform_2, window_bounds = array<i64: 1, 2>}, {pipeline_mode = #tpu.pipeline_mode<synchronous>, transform_indices = @transform_3, window_bounds = array<i64: 16, 2>}, {pipeline_mode = #tpu.pipeline_mode<synchronous>, transform_indices = @transform_4, window_bounds = array<i64: 1, 2>}, {pipeline_mode = #tpu.pipeline_mode<synchronous>, transform_indices = @transform_5, window_bounds = array<i64: 16, 16>}, {pipeline_mode = #tpu.pipeline_mode<synchronous>, transform_indices = @transform_6, window_bounds = array<i64: 1, 16>}, {transform_indices = @transform_7, window_bounds = array<i64: 1>}, {transform_indices = @transform_8, window_bounds = array<i64: 1, 16, 16, 16>}]} {
    %c0 = arith.constant 0 : index
    %c0_0 = arith.constant 0 : index
    %c0_1 = arith.constant 0 : index
    %c0_2 = arith.constant 0 : index
    %0 = vector.load %arg1[%c0, %c0_0, %c0_1, %c0_2] : memref<1x16x16x16xf32, #tpu.memory_space<vmem>>, vector<1x16x16x16xf32>
    %1 = vector.shape_cast %0 : vector<1x16x16x16xf32> to vector<16x16x16xf32>
    %2 = vector.shape_cast %1 : vector<16x16x16xf32> to vector<256x16xf32>
    %3 = arith.truncf %2 : vector<256x16xf32> to vector<256x16xbf16>
    %c0_3 = arith.constant 0 : index
    %c0_4 = arith.constant 0 : index
    %4 = vector.load %arg2[%c0_3, %c0_4] : memref<16x2xbf16, #tpu.memory_space<vmem>>, vector<16x2xbf16>
    %cst = arith.constant dense<0.000000e+00> : vector<256x2xf32>
    %5 = tpu.matmul %3, %4, %cst {dimension_numbers = #tpu.dot_dimension_numbers<[1], [0], [0], [1], [0, 0, 1, 1], [], []>} : vector<256x16xbf16>, vector<16x2xbf16>, vector<256x2xf32> -> vector<256x2xf32>
    %c0_5 = arith.constant 0 : index
    %c0_6 = arith.constant 0 : index
    %6 = vector.load %arg3[%c0_5, %c0_6] : memref<1x2xf32, #tpu.memory_space<vmem>>, vector<1x2xf32>
    %7 = vector.broadcast %6 : vector<1x2xf32> to vector<256x2xf32>
    %8 = arith.addf %5, %7 : vector<256x2xf32>
    %9 = vector.shape_cast %8 : vector<256x2xf32> to vector<16x16x2xf32>
    %c0_7 = arith.constant 0 : index
    %c0_8 = arith.constant 0 : index
    %10 = vector.load %arg4[%c0_7, %c0_8] : memref<16x2xbf16, #tpu.memory_space<vmem>>, vector<16x2xbf16>
    %cst_9 = arith.constant dense<0.000000e+00> : vector<256x2xf32>
    %11 = tpu.matmul %3, %10, %cst_9 {dimension_numbers = #tpu.dot_dimension_numbers<[1], [0], [0], [1], [0, 0, 1, 1], [], []>} : vector<256x16xbf16>, vector<16x2xbf16>, vector<256x2xf32> -> vector<256x2xf32>
    %c0_10 = arith.constant 0 : index
    %c0_11 = arith.constant 0 : index
    %12 = vector.load %arg5[%c0_10, %c0_11] : memref<1x2xf32, #tpu.memory_space<vmem>>, vector<1x2xf32>
    %13 = vector.broadcast %12 : vector<1x2xf32> to vector<256x2xf32>
    %14 = arith.addf %11, %13 : vector<256x2xf32>
    %15 = vector.shape_cast %14 : vector<256x2xf32> to vector<16x16x2xf32>
    %c0_12 = arith.constant 0 : index
    %c0_13 = arith.constant 0 : index
    %16 = vector.load %arg6[%c0_12, %c0_13] : memref<16x16xbf16, #tpu.memory_space<vmem>>, vector<16x16xbf16>
    %cst_14 = arith.constant dense<0.000000e+00> : vector<256x16xf32>
    %17 = tpu.matmul %3, %16, %cst_14 {dimension_numbers = #tpu.dot_dimension_numbers<[1], [0], [0], [1], [0, 0, 1, 1], [], []>} : vector<256x16xbf16>, vector<16x16xbf16>, vector<256x16xf32> -> vector<256x16xf32>
    %c0_15 = arith.constant 0 : index
    %c0_16 = arith.constant 0 : index
    %18 = vector.load %arg7[%c0_15, %c0_16] : memref<1x16xf32, #tpu.memory_space<vmem>>, vector<1x16xf32>
    %19 = vector.broadcast %18 : vector<1x16xf32> to vector<256x16xf32>
    %20 = arith.addf %17, %19 : vector<256x16xf32>
    %21 = vector.shape_cast %20 : vector<256x16xf32> to vector<16x16x16xf32>
    %22 = tpu.transpose %9, [1, 0, 2] : vector<16x16x2xf32> -> vector<16x16x2xf32>
    %23 = tpu.transpose %15, [1, 0, 2] : vector<16x16x2xf32> -> vector<16x16x2xf32>
    %24 = tpu.transpose %21, [1, 0, 2] : vector<16x16x16xf32> -> vector<16x16x16xf32>
    %25 = arith.truncf %22 : vector<16x16x2xf32> to vector<16x16x2xbf16>
    %26 = arith.truncf %23 : vector<16x16x2xf32> to vector<16x16x2xbf16>
    "tpu.trace_start"() <{level = 10 : i32, message = "whc,wjc->whj"}> : () -> ()
    %cst_17 = arith.constant dense<0.000000e+00> : vector<16x16x16xf32>
    %27 = tpu.matmul %25, %26, %cst_17 {dimension_numbers = #tpu.dot_dimension_numbers<[2], [2], [1], [1], [0, 0, 0, 1, 1, 1], [0], [0]>} : vector<16x16x2xbf16>, vector<16x16x2xbf16>, vector<16x16x16xf32> -> vector<16x16x16xf32>
    "tpu.trace_stop"() : () -> ()
    %28 = arith.truncf %9 : vector<16x16x2xf32> to vector<16x16x2xbf16>
    %29 = arith.truncf %15 : vector<16x16x2xf32> to vector<16x16x2xbf16>
    "tpu.trace_start"() <{level = 10 : i32, message = "hwc,hjc->hwj"}> : () -> ()
    %cst_18 = arith.constant dense<0.000000e+00> : vector<16x16x16xf32>
    %30 = tpu.matmul %28, %29, %cst_18 {dimension_numbers = #tpu.dot_dimension_numbers<[2], [2], [1], [1], [0, 0, 0, 1, 1, 1], [0], [0]>} : vector<16x16x2xbf16>, vector<16x16x2xbf16>, vector<16x16x16xf32> -> vector<16x16x16xf32>
    "tpu.trace_stop"() : () -> ()
    %31 = tpu.iota {dimensions = array<i32: 1>} : vector<16x16x16xi32>
    %32 = tpu.iota {dimensions = array<i32: 2>} : vector<16x16x16xi32>
    %33 = arith.cmpi eq, %31, %32 : vector<16x16x16xi32>
    %cst_19 = arith.constant -1.000000e+30 : f32
    %34 = vector.broadcast %cst_19 : f32 to vector<16x16x16xf32>
    %35 = arith.select %33, %34, %27 : vector<16x16x16xi1>, vector<16x16x16xf32>
    %cst_20 = arith.constant dense<0xFF800000> : vector<16x16xf32>
    %36 = vector.multi_reduction <maximumf>, %35, %cst_20 [2] : vector<16x16x16xf32> to vector<16x16xf32>
    %cst_21 = arith.constant dense<0xFF800000> : vector<16x16xf32>
    %37 = vector.multi_reduction <maximumf>, %30, %cst_21 [2] : vector<16x16x16xf32> to vector<16x16xf32>
    %38 = tpu.transpose %37, [1, 0] : vector<16x16xf32> -> vector<16x16xf32>
    %39 = arith.maximumf %36, %38 : vector<16x16xf32>
    %40 = tpu.transpose %39, [1, 0] : vector<16x16xf32> -> vector<16x16xf32>
    %41 = vector.shape_cast %39 : vector<16x16xf32> to vector<16x16x1xf32>
    %42 = vector.broadcast %41 : vector<16x16x1xf32> to vector<16x16x16xf32>
    %43 = arith.subf %35, %42 : vector<16x16x16xf32>
    %44 = math.exp %43 : vector<16x16x16xf32>
    %45 = vector.shape_cast %40 : vector<16x16xf32> to vector<16x16x1xf32>
    %46 = vector.broadcast %45 : vector<16x16x1xf32> to vector<16x16x16xf32>
    %47 = arith.subf %30, %46 : vector<16x16x16xf32>
    %48 = math.exp %47 : vector<16x16x16xf32>
    %cst_22 = arith.constant dense<0.000000e+00> : vector<16x16xf32>
    %49 = vector.multi_reduction <add>, %44, %cst_22 [2] : vector<16x16x16xf32> to vector<16x16xf32>
    %cst_23 = arith.constant dense<0.000000e+00> : vector<16x16xf32>
    %50 = vector.multi_reduction <add>, %48, %cst_23 [2] : vector<16x16x16xf32> to vector<16x16xf32>
    %51 = tpu.transpose %50, [1, 0] : vector<16x16xf32> -> vector<16x16xf32>
    %52 = arith.addf %49, %51 : vector<16x16xf32>
    %53 = tpu.reciprocal %52 {approx = true} : vector<16x16xf32> -> vector<16x16xf32>
    %54 = tpu.transpose %53, [1, 0] : vector<16x16xf32> -> vector<16x16xf32>
    %55 = arith.truncf %44 : vector<16x16x16xf32> to vector<16x16x16xbf16>
    %56 = arith.truncf %24 : vector<16x16x16xf32> to vector<16x16x16xbf16>
    "tpu.trace_start"() <{level = 10 : i32, message = "whj,wjc->whc"}> : () -> ()
    %cst_24 = arith.constant dense<0.000000e+00> : vector<16x16x16xf32>
    %57 = tpu.matmul %55, %56, %cst_24 {dimension_numbers = #tpu.dot_dimension_numbers<[2], [1], [1], [2], [0, 0, 0, 1, 1, 2], [0], [0]>} : vector<16x16x16xbf16>, vector<16x16x16xbf16>, vector<16x16x16xf32> -> vector<16x16x16xf32>
    "tpu.trace_stop"() : () -> ()
    %58 = arith.truncf %48 : vector<16x16x16xf32> to vector<16x16x16xbf16>
    %59 = arith.truncf %21 : vector<16x16x16xf32> to vector<16x16x16xbf16>
    "tpu.trace_start"() <{level = 10 : i32, message = "hwj,hjc->hwc"}> : () -> ()
    %cst_25 = arith.constant dense<0.000000e+00> : vector<16x16x16xf32>
    %60 = tpu.matmul %58, %59, %cst_25 {dimension_numbers = #tpu.dot_dimension_numbers<[2], [1], [1], [2], [0, 0, 0, 1, 1, 2], [0], [0]>} : vector<16x16x16xbf16>, vector<16x16x16xbf16>, vector<16x16x16xf32> -> vector<16x16x16xf32>
    "tpu.trace_stop"() : () -> ()
    %61 = vector.shape_cast %53 : vector<16x16xf32> to vector<16x16x1xf32>
    %62 = vector.broadcast %61 : vector<16x16x1xf32> to vector<16x16x16xf32>
    %63 = arith.mulf %57, %62 : vector<16x16x16xf32>
    %64 = tpu.transpose %63, [1, 0, 2] : vector<16x16x16xf32> -> vector<16x16x16xf32>
    %65 = vector.shape_cast %54 : vector<16x16xf32> to vector<16x16x1xf32>
    %66 = vector.broadcast %65 : vector<16x16x1xf32> to vector<16x16x16xf32>
    %67 = arith.mulf %60, %66 : vector<16x16x16xf32>
    %c0_26 = arith.constant 0 : index
    %68 = memref.load %arg8[%c0_26] : memref<1xf32, #tpu.memory_space<smem>>
    %69 = arith.addf %64, %67 : vector<16x16x16xf32>
    %70 = vector.broadcast %68 : f32 to vector<16x16x16xf32>
    %71 = arith.mulf %70, %69 : vector<16x16x16xf32>
    %72 = arith.addf %71, %1 : vector<16x16x16xf32>
    %c0_27 = arith.constant 0 : index
    %c0_28 = arith.constant 0 : index
    %c0_29 = arith.constant 0 : index
    %c0_30 = arith.constant 0 : index
    %73 = vector.load %arg9[%c0_27, %c0_28, %c0_29, %c0_30] : memref<1x16x16x16xf32, #tpu.memory_space<vmem>>, vector<1x16x16x16xf32>
    %74 = vector.shape_cast %73 : vector<1x16x16x16xf32> to vector<16x16x16xf32>
    %75 = vector.shape_cast %72 : vector<16x16x16xf32> to vector<1x16x16x16xf32>
    tpu.vector_store %arg9[%c0_27, %c0_28, %c0_29, %c0_30], %75 {strides = array<i32>} : memref<1x16x16x16xf32, #tpu.memory_space<vmem>>, vector<1x16x16x16xf32>,
    return
  }
  func.func @transform_0(%arg0: i32) -> (i32, i32, i32, i32) {
    %c0_i32 = arith.constant 0 : i32
    %c0_i32_0 = arith.constant 0 : i32
    %c0_i32_1 = arith.constant 0 : i32
    %c0_i32_2 = arith.constant 0 : i32
    return %arg0, %c0_i32, %c0_i32_0, %c0_i32_1 : i32, i32, i32, i32
  }
  func.func @transform_1(%arg0: i32) -> (i32, i32) {
    %c0_i32 = arith.constant 0 : i32
    %c0_i32_0 = arith.constant 0 : i32
    %c0_i32_1 = arith.constant 0 : i32
    return %c0_i32, %c0_i32_0 : i32, i32
  }
  func.func @transform_2(%arg0: i32) -> (i32, i32) {
    %c0_i32 = arith.constant 0 : i32
    %c0_i32_0 = arith.constant 0 : i32
    %c0_i32_1 = arith.constant 0 : i32
    return %c0_i32, %c0_i32_0 : i32, i32
  }
  func.func @transform_3(%arg0: i32) -> (i32, i32) {
    %c0_i32 = arith.constant 0 : i32
    %c0_i32_0 = arith.constant 0 : i32
    %c0_i32_1 = arith.constant 0 : i32
    return %c0_i32, %c0_i32_0 : i32, i32
  }
  func.func @transform_4(%arg0: i32) -> (i32, i32) {
    %c0_i32 = arith.constant 0 : i32
    %c0_i32_0 = arith.constant 0 : i32
    %c0_i32_1 = arith.constant 0 : i32
    return %c0_i32, %c0_i32_0 : i32, i32
  }
  func.func @transform_5(%arg0: i32) -> (i32, i32) {
    %c0_i32 = arith.constant 0 : i32
    %c0_i32_0 = arith.constant 0 : i32
    %c0_i32_1 = arith.constant 0 : i32
    return %c0_i32, %c0_i32_0 : i32, i32
  }
  func.func @transform_6(%arg0: i32) -> (i32, i32) {
    %c0_i32 = arith.constant 0 : i32
    %c0_i32_0 = arith.constant 0 : i32
    %c0_i32_1 = arith.constant 0 : i32
    return %c0_i32, %c0_i32_0 : i32, i32
  }
  func.func @transform_7(%arg0: i32) -> i32 {
    %c0_i32 = arith.constant 0 : i32
    %c0_i32_0 = arith.constant 0 : i32
    return %c0_i32 : i32
  }
  func.func @transform_8(%arg0: i32) -> (i32, i32, i32, i32) {
    %c0_i32 = arith.constant 0 : i32
    %c0_i32_0 = arith.constant 0 : i32
    %c0_i32_1 = arith.constant 0 : i32
    %c0_i32_2 = arith.constant 0 : i32
    return %arg0, %c0_i32, %c0_i32_0, %c0_i32_1 : i32, i32, i32, i32
  }
}

</mosaic_0001>

<llo_original>
// kernel: criss_cross_attention.1
$region0: #{criss_cross_attention.1}
  #allocation0 [shape = 'u32[]', space=smem, size = 0x4, offset = 0x4, fixed_abs, tag = 'smem constant byte address 0x4 - core index']
  #allocation1 [shape = 'u32[144,128]{1,0:T(1,128)}', space=vmem, size = 0x12000, scoped, tag = 'internal scratch']
  #allocation2 [shape = 'f32[1]{0:T(128)S(6)}', space=smem, size = 0x200, scoped, tag = 'scoped memory for criss_cross_attention.1']
  %s0 = inlined_call_operand.vmem [shape: f32[2,16,16,16], index: 0, kind: input, shape index: {}]
  %s1 = inlined_call_operand.vmem [shape: bf16[16,2], index: 1, kind: input, shape index: {}]
  %s2 = inlined_call_operand.vmem [shape: f32[1,2], index: 2, kind: input, shape index: {}]
  %s3 = inlined_call_operand.vmem [shape: bf16[16,2], index: 3, kind: input, shape index: {}]
  %s4 = inlined_call_operand.vmem [shape: f32[1,2], index: 4, kind: input, shape index: {}]
  %s5 = inlined_call_operand.vmem [shape: bf16[16,16], index: 5, kind: input, shape index: {}]
  %s6 = inlined_call_operand.vmem [shape: f32[1,16], index: 6, kind: input, shape index: {}]
  %s7 = inlined_call_operand.<no memory space> [shape: f32[1], index: 7, kind: input, shape index: {}]
  %s8 = inlined_call_operand.vmem [shape: f32[2,16,16,16], index: 8, kind: output, shape index: {}]
  %s9 = sld [smem:[#allocation0]]
  $region65: #{criss_cross_attention.1} parent=0
    _
  %s11 = ssub.s32 1, %s9
  %s12 = scalar_select 0, %s11, %s9
  %13 = sst [smem:[#allocation2]] %s7
  loop: start=0, step=1, limit=4
  $region2: #{criss_cross_attention.1} parent=0 // loop_pre_header
    _
  $region3: #{criss_cross_attention.1} parent=0 // loop_header
    %s15 = sphi 0, %s19
    %p16 = scmp.ge.s32.totalorder %s15, 4
    %s25 = sphi 0, %s27
    %s28 = sphi 0, %s25
    %s29 = sphi 0, %s28
    %s45 = sphi 0, %s29
    %s49 = sphi 0, %s49
    %s51 = sphi 0, %s49
    %s52 = sphi 0, %s51
    %s66 = sphi 0, %s52
    %s70 = sphi 0, %s70
    %s72 = sphi 0, %s70
    %s73 = sphi 0, %s72
    %s87 = sphi 0, %s73
    %s91 = sphi 0, %s91
    %s93 = sphi 0, %s91
    %s94 = sphi 0, %s93
    %s108 = sphi 0, %s94
    %s112 = sphi 0, %s112
    %s114 = sphi 0, %s112
    %s115 = sphi 0, %s114
    %s129 = sphi 0, %s115
    %s133 = sphi 0, %s133
    %s135 = sphi 0, %s133
    %s136 = sphi 0, %s135
    %s150 = sphi 0, %s136
    %s154 = sphi 0, %s154
    %s156 = sphi 0, %s154
    %s157 = sphi 0, %s156
    %s171 = sphi 0, %s157
    %s175 = sphi 0, %s175
    %s177 = sphi 0, %s175
    %s178 = sphi 0, %s177
    %s192 = sphi 0, %s178
    %s198 = sphi 0, %s200
    %s201 = sphi 0, %s198
    %s202 = sphi 0, %s201
    %s218 = sphi 0, %s202
  $region4: #{criss_cross_attention.1} parent=0 // loop_header_branch
    %18 = sbr.rel (%p16) target = $region8
  $region5: #{criss_cross_attention.1} parent=0 // loop_body
    %s20 = ssub.s32 %s15, 1
    %s21 = ssub.s32 %s15, 2
    %s22 = sadd.s32 %s15, 1
    %s23 = ssub.s32 %s15, %s22
    %p24 = scmp.eq.s32.totalorder %s23, 0
    %s26 = sadd.s32 %s25, 1
    %s27 = scalar_select %p24, %s25, %s26
    %p30 = pneg %p24
    %p31 = scmp.eq.s32.totalorder %s15, 1
    %p32 = por %p30, %p31
    %p33 = scmp.ne.s32.totalorder %s25, %s28
    %p34 = scmp.eq.s32.totalorder %s15, 0
    %p35 = por %p33, %p34
    %p36 = scmp.ne.s32.totalorder %s25, %s28
    %p37 = scmp.eq.s32.totalorder %s20, 1
    %p38 = por %p36, %p37
    %p39 = scmp.ne.s32.totalorder %s28, %s29
    %p40 = scmp.eq.s32.totalorder %s20, 0
    %p41 = por %p39, %p40
    %p42 = scmp.ne.s32.totalorder %s28, %s29
    %p43 = scmp.eq.s32.totalorder %s21, 1
    %p44 = por %p42, %p43
    %p46 = scmp.ne.s32.totalorder %s29, %s45
    %p47 = scmp.eq.s32.totalorder %s21, 0
    %p48 = por %p46, %p47
    %s50 = sadd.s32 %s49, 1
    %p53 = scmp.eq.s32.totalorder %s15, 1
    %p54 = scmp.ne.s32.totalorder %s49, %s51
    %p55 = scmp.eq.s32.totalorder %s15, 0
    %p56 = por %p54, %p55
    %p57 = scmp.ne.s32.totalorder %s49, %s51
    %p58 = scmp.eq.s32.totalorder %s20, 1
    %p59 = por %p57, %p58
    %p60 = scmp.ne.s32.totalorder %s51, %s52
    %p61 = scmp.eq.s32.totalorder %s20, 0
    %p62 = por %p60, %p61
    %p63 = scmp.ne.s32.totalorder %s51, %s52
    %p64 = scmp.eq.s32.totalorder %s21, 1
    %p65 = por %p63, %p64
    %p67 = scmp.ne.s32.totalorder %s52, %s66
    %p68 = scmp.eq.s32.totalorder %s21, 0
    %p69 = por %p67, %p68
    %s71 = sadd.s32 %s70, 1
    %p74 = scmp.eq.s32.totalorder %s15, 1
    %p75 = scmp.ne.s32.totalorder %s70, %s72
    %p76 = scmp.eq.s32.totalorder %s15, 0
    %p77 = por %p75, %p76
    %p78 = scmp.ne.s32.totalorder %s70, %s72
    %p79 = scmp.eq.s32.totalorder %s20, 1
    %p80 = por %p78, %p79
    %p81 = scmp.ne.s32.totalorder %s72, %s73
    %p82 = scmp.eq.s32.totalorder %s20, 0
    %p83 = por %p81, %p82
    %p84 = scmp.ne.s32.totalorder %s72, %s73
    %p85 = scmp.eq.s32.totalorder %s21, 1
    %p86 = por %p84, %p85
    %p88 = scmp.ne.s32.totalorder %s73, %s87
    %p89 = scmp.eq.s32.totalorder %s21, 0
    %p90 = por %p88, %p89
    %s92 = sadd.s32 %s91, 1
    %p95 = scmp.eq.s32.totalorder %s15, 1
    %p96 = scmp.ne.s32.totalorder %s91, %s93
    %p97 = scmp.eq.s32.totalorder %s15, 0
    %p98 = por %p96, %p97
    %p99 = scmp.ne.s32.totalorder %s91, %s93
    %p100 = scmp.eq.s32.totalorder %s20, 1
    %p101 = por %p99, %p100
    %p102 = scmp.ne.s32.totalorder %s93, %s94
    %p103 = scmp.eq.s32.totalorder %s20, 0
    %p104 = por %p102, %p103
    %p105 = scmp.ne.s32.totalorder %s93, %s94
    %p106 = scmp.eq.s32.totalorder %s21, 1
    %p107 = por %p105, %p106
    %p109 = scmp.ne.s32.totalorder %s94, %s108
    %p110 = scmp.eq.s32.totalorder %s21, 0
    %p111 = por %p109, %p110
    %s113 = sadd.s32 %s112, 1
    %p116 = scmp.eq.s32.totalorder %s15, 1
    %p117 = scmp.ne.s32.totalorder %s112, %s114
    %p118 = scmp.eq.s32.totalorder %s15, 0
    %p119 = por %p117, %p118
    %p120 = scmp.ne.s32.totalorder %s112, %s114
    %p121 = scmp.eq.s32.totalorder %s20, 1
    %p122 = por %p120, %p121
    %p123 = scmp.ne.s32.totalorder %s114, %s115
    %p124 = scmp.eq.s32.totalorder %s20, 0
    %p125 = por %p123, %p124
    %p126 = scmp.ne.s32.totalorder %s114, %s115
    %p127 = scmp.eq.s32.totalorder %s21, 1
    %p128 = por %p126, %p127
    %p130 = scmp.ne.s32.totalorder %s115, %s129
    %p131 = scmp.eq.s32.totalorder %s21, 0
    %p132 = por %p130, %p131
    %s134 = sadd.s32 %s133, 1
    %p137 = scmp.eq.s32.totalorder %s15, 1
    %p138 = scmp.ne.s32.totalorder %s133, %s135
    %p139 = scmp.eq.s32.totalorder %s15, 0
    %p140 = por %p138, %p139
    %p141 = scmp.ne.s32.totalorder %s133, %s135
    %p142 = scmp.eq.s32.totalorder %s20, 1
    %p143 = por %p141, %p142
    %p144 = scmp.ne.s32.totalorder %s135, %s136
    %p145 = scmp.eq.s32.totalorder %s20, 0
    %p146 = por %p144, %p145
    %p147 = scmp.ne.s32.totalorder %s135, %s136
    %p148 = scmp.eq.s32.totalorder %s21, 1
    %p149 = por %p147, %p148
    %p151 = scmp.ne.s32.totalorder %s136, %s150
    %p152 = scmp.eq.s32.totalorder %s21, 0
    %p153 = por %p151, %p152
    %s155 = sadd.s32 %s154, 1
    %p158 = scmp.eq.s32.totalorder %s15, 1
    %p159 = scmp.ne.s32.totalorder %s154, %s156
    %p160 = scmp.eq.s32.totalorder %s15, 0
    %p161 = por %p159, %p160
    %p162 = scmp.ne.s32.totalorder %s154, %s156
    %p163 = scmp.eq.s32.totalorder %s20, 1
    %p164 = por %p162, %p163
    %p165 = scmp.ne.s32.totalorder %s156, %s157
    %p166 = scmp.eq.s32.totalorder %s20, 0
    %p167 = por %p165, %p166
    %p168 = scmp.ne.s32.totalorder %s156, %s157
    %p169 = scmp.eq.s32.totalorder %s21, 1
    %p170 = por %p168, %p169
    %p172 = scmp.ne.s32.totalorder %s157, %s171
    %p173 = scmp.eq.s32.totalorder %s21, 0
    %p174 = por %p172, %p173
    %s176 = sadd.s32 %s175, 1
    %p179 = scmp.eq.s32.totalorder %s15, 1
    %p180 = scmp.ne.s32.totalorder %s175, %s177
    %p181 = scmp.eq.s32.totalorder %s15, 0
    %p182 = por %p180, %p181
    %p183 = scmp.ne.s32.totalorder %s175, %s177
    %p184 = scmp.eq.s32.totalorder %s20, 1
    %p185 = por %p183, %p184
    %p186 = scmp.ne.s32.totalorder %s177, %s178
    %p187 = scmp.eq.s32.totalorder %s20, 0
    %p188 = por %p186, %p187
    %p189 = scmp.ne.s32.totalorder %s177, %s178
    %p190 = scmp.eq.s32.totalorder %s21, 1
    %p191 = por %p189, %p190
    %p193 = scmp.ne.s32.totalorder %s178, %s192
    %p194 = scmp.eq.s32.totalorder %s21, 0
    %p195 = por %p193, %p194
    %s196 = ssub.s32 %s15, %s22
    %p197 = scmp.eq.s32.totalorder %s196, 0
    %s199 = sadd.s32 %s198, 1
    %s200 = scalar_select %p197, %s198, %s199
    %p203 = pneg %p197
    %p204 = scmp.eq.s32.totalorder %s15, 1
    %p205 = por %p203, %p204
    %p206 = scmp.ne.s32.totalorder %s198, %s201
    %p207 = scmp.eq.s32.totalorder %s15, 0
    %p208 = por %p206, %p207
    %p209 = scmp.ne.s32.totalorder %s198, %s201
    %p210 = scmp.eq.s32.totalorder %s20, 1
    %p211 = por %p209, %p210
    %p212 = scmp.ne.s32.totalorder %s201, %s202
    %p213 = scmp.eq.s32.totalorder %s20, 0
    %p214 = por %p212, %p213
    %p215 = scmp.ne.s32.totalorder %s201, %s202
    %p216 = scmp.eq.s32.totalorder %s21, 1
    %p217 = por %p215, %p216
    %p219 = scmp.ne.s32.totalorder %s202, %s218
    %p220 = scmp.eq.s32.totalorder %s21, 0
    %p221 = por %p219, %p220
    %p222 = scmp.le.s32.totalorder 1, %s15
    %p223 = scmp.lt.s32.totalorder %s15, 3
    %p224 = pnand %p222, %p223
    %p225 = pneg %p224
    // Predicated region
    $region9: #{criss_cross_attention.1} parent=5 // pred_check
      _
    $region10: #{criss_cross_attention.1} parent=5 // pred_check_branch
      %227 = sbr.rel (%p224) target = $region12
    $region11: #{criss_cross_attention.1} parent=5 // pred_region
      %s228 = ssub.s32 %s15, 1
      // Predicated region
      $region13: #{criss_cross_attention.1} parent=11 // pred_check
        %p229 = pneg %p62
      $region14: #{criss_cross_attention.1} parent=11 // pred_check_branch
        %231 = sbr.rel (%p229) target = $region16
      $region15: #{criss_cross_attention.1} parent=11 // pred_region
        _
      $region16: #{criss_cross_attention.1} parent=11 // pred_fallthru
        _
      // Predicated region
      $region17: #{criss_cross_attention.1} parent=11 // pred_check
        %p232 = pneg %p83
      $region18: #{criss_cross_attention.1} parent=11 // pred_check_branch
        %234 = sbr.rel (%p232) target = $region20
      $region19: #{criss_cross_attention.1} parent=11 // pred_region
        _
      $region20: #{criss_cross_attention.1} parent=11 // pred_fallthru
        _
      // Predicated region
      $region21: #{criss_cross_attention.1} parent=11 // pred_check
        %p235 = pneg %p104
      $region22: #{criss_cross_attention.1} parent=11 // pred_check_branch
        %237 = sbr.rel (%p235) target = $region24
      $region23: #{criss_cross_attention.1} parent=11 // pred_region
        _
      $region24: #{criss_cross_attention.1} parent=11 // pred_fallthru
        _
      // Predicated region
      $region25: #{criss_cross_attention.1} parent=11 // pred_check
        %p238 = pneg %p125
      $region26: #{criss_cross_attention.1} parent=11 // pred_check_branch
        %240 = sbr.rel (%p238) target = $region28
      $region27: #{criss_cross_attention.1} parent=11 // pred_region
        _
      $region28: #{criss_cross_attention.1} parent=11 // pred_fallthru
        _
      // Predicated region
      $region29: #{criss_cross_attention.1} parent=11 // pred_check
        %p241 = pneg %p146
      $region30: #{criss_cross_attention.1} parent=11 // pred_check_branch
        %243 = sbr.rel (%p241) target = $region32
      $region31: #{criss_cross_attention.1} parent=11 // pred_region
        _
      $region32: #{criss_cross_attention.1} parent=11 // pred_fallthru
        _
      // Predicated region
      $region33: #{criss_cross_attention.1} parent=11 // pred_check
        %p244 = pneg %p167
      $region34: #{criss_cross_attention.1} parent=11 // pred_check_branch
        %246 = sbr.rel (%p244) target = $region36
      $region35: #{criss_cross_attention.1} parent=11 // pred_region
        _
      $region36: #{criss_cross_attention.1} parent=11 // pred_fallthru
        _
      // Predicated region
      $region37: #{criss_cross_attention.1} parent=11 // pred_check
        %p247 = pneg %p188
      $region38: #{criss_cross_attention.1} parent=11 // pred_check_branch
        %249 = sbr.rel (%p247) target = $region40
      $region39: #{criss_cross_attention.1} parent=11 // pred_region
        _
      $region40: #{criss_cross_attention.1} parent=11 // pred_fallthru
        _
    $region12: #{criss_cross_attention.1} parent=5 // pred_fallthru
      _
    %p250 = scmp.lt.s32.totalorder %s15, 2
    // Predicated region
    $region41: #{criss_cross_attention.1} parent=5 // pred_check
      %p251 = pneg %p250
    $region42: #{criss_cross_attention.1} parent=5 // pred_check_branch
      %253 = sbr.rel (%p251) target = $region44
    $region43: #{criss_cross_attention.1} parent=5 // pred_region
      // Predicated region
      $region45: #{criss_cross_attention.1} parent=43 // pred_check
        %p254 = pneg %p35
      $region46: #{criss_cross_attention.1} parent=43 // pred_check_branch
        %256 = sbr.rel (%p254) target = $region48
      $region47: #{criss_cross_attention.1} parent=43 // pred_region
        %p257 = scmp.lt.s32.totalorder %s15, 1
        %s258 = scalar_select %p257, %s15, 1
        %s259 = smul.addr %s258, 32
        %s260 = smul.addr %s259, 8
        %s261 = scalar_lea.vmem %s0, %s260
      $region48: #{criss_cross_attention.1} parent=43 // pred_fallthru
        _
    $region44: #{criss_cross_attention.1} parent=5 // pred_fallthru
      _
    %p262 = scmp.le.s32.totalorder 1, %s15
    %p263 = scmp.lt.s32.totalorder %s15, 3
    %p264 = pnand %p262, %p263
    %p265 = pneg %p264
    // Predicated region
    $region49: #{criss_cross_attention.1} parent=5 // pred_check
      _
    $region50: #{criss_cross_attention.1} parent=5 // pred_check_branch
      %267 = sbr.rel (%p264) target = $region52
    $region51: #{criss_cross_attention.1} parent=5 // pred_region
      %s268 = ssub.s32 %s15, 1
      %p269 = scmp.lt.s32.totalorder %s20, 1
      %s270 = scalar_select %p269, %s20, 1
      %s271 = smul.addr %s270, 32
      %s272 = smul.addr %s271, 8
      %s273 = scalar_lea.vmem %s0, %s272
      %p274 = pneg %p41
      %p275 = pneg %p38
      %p276 = pneg %p62
      %p277 = pneg %p59
      %p278 = pneg %p83
      %p279 = pneg %p80
      %p280 = pneg %p104
      %p281 = pneg %p101
      %p282 = pneg %p125
      %p283 = pneg %p122
      %p284 = pneg %p146
      %p285 = pneg %p143
      %p286 = pneg %p167
      %p287 = pneg %p164
      %p288 = pneg %p188
      %p289 = pneg %p185
      %p290 = pneg %p214
      %p291 = pneg %p211
      %p292 = scmp.lt.s32.totalorder %s20, 1
      %s293 = scalar_select %p292, %s20, 1
      %s294 = smul.addr %s293, 32
      %s295 = smul.addr %s294, 8
      %s296 = scalar_lea.vmem %s8, %s295
      %p297 = scmp.lt.s32.totalorder %s20, 1
      %s298 = scalar_select %p297, %s20, 1
      %s299 = smul.addr %s298, 32
      %s300 = smul.addr %s299, 8
      %s301 = scalar_lea.vmem %s0, %s300
      %p302 = scmp.lt.s32.totalorder %s20, 1
      %s303 = scalar_select %p302, %s20, 1
      %s304 = smul.addr %s303, 32
      %s305 = smul.addr %s304, 8
      %s306 = scalar_lea.vmem %s8, %s305
      %v308 = vld [vmem:[%s301] sm:$0xff]
      %v309 = vld [vmem:[%s301 + $0x8] sm:$0xff]
      %v310 = vld [vmem:[%s301 + $0x10] sm:$0xff]
      %v311 = vld [vmem:[%s301 + $0x18] sm:$0xff]
      %v312 = vld [vmem:[%s301 + $0x20] sm:$0xff]
      %v313 = vld [vmem:[%s301 + $0x28] sm:$0xff]
      %v314 = vld [vmem:[%s301 + $0x30] sm:$0xff]
      %v315 = vld [vmem:[%s301 + $0x38] sm:$0xff]
      %v316 = vld [vmem:[%s301 + $0x40] sm:$0xff]
      %v317 = vld [vmem:[%s301 + $0x48] sm:$0xff]
      %v318 = vld [vmem:[%s301 + $0x50] sm:$0xff]
      %v319 = vld [vmem:[%s301 + $0x58] sm:$0xff]
      %v320 = vld [vmem:[%s301 + $0x60] sm:$0xff]
      %v321 = vld [vmem:[%s301 + $0x68] sm:$0xff]
      %v322 = vld [vmem:[%s301 + $0x70] sm:$0xff]
      %v323 = vld [vmem:[%s301 + $0x78] sm:$0xff]
      %v324 = vld [vmem:[%s301 + $0x80] sm:$0xff]
      %v325 = vld [vmem:[%s301 + $0x88] sm:$0xff]
      %v326 = vld [vmem:[%s301 + $0x90] sm:$0xff]
      %v327 = vld [vmem:[%s301 + $0x98] sm:$0xff]
      %v328 = vld [vmem:[%s301 + $0xa0] sm:$0xff]
      %v329 = vld [vmem:[%s301 + $0xa8] sm:$0xff]
      %v330 = vld [vmem:[%s301 + $0xb0] sm:$0xff]
      %v331 = vld [vmem:[%s301 + $0xb8] sm:$0xff]
      %v332 = vld [vmem:[%s301 + $0xc0] sm:$0xff]
      %v333 = vld [vmem:[%s301 + $0xc8] sm:$0xff]
      %v334 = vld [vmem:[%s301 + $0xd0] sm:$0xff]
      %v335 = vld [vmem:[%s301 + $0xd8] sm:$0xff]
      %v336 = vld [vmem:[%s301 + $0xe0] sm:$0xff]
      %v337 = vld [vmem:[%s301 + $0xe8] sm:$0xff]
      %v338 = vld [vmem:[%s301 + $0xf0] sm:$0xff]
      %v339 = vld [vmem:[%s301 + $0xf8] sm:$0xff]
      %v340 = vpack.c.bf16 %v309, %v308
      %v341 = vpack.c.bf16 %v311, %v310
      %v342 = vpack.c.bf16 %v313, %v312
      %v343 = vpack.c.bf16 %v315, %v314
      %v344 = vpack.c.bf16 %v317, %v316
      %v345 = vpack.c.bf16 %v319, %v318
      %v346 = vpack.c.bf16 %v321, %v320
      %v347 = vpack.c.bf16 %v323, %v322
      %v348 = vpack.c.bf16 %v325, %v324
      %v349 = vpack.c.bf16 %v327, %v326
      %v350 = vpack.c.bf16 %v329, %v328
      %v351 = vpack.c.bf16 %v331, %v330
      %v352 = vpack.c.bf16 %v333, %v332
      %v353 = vpack.c.bf16 %v335, %v334
      %v354 = vpack.c.bf16 %v337, %v336
      %v355 = vpack.c.bf16 %v339, %v338
      %v356 = vld [vmem:[%s1] sm:$0xf]
      %v357 = vld [vmem:[%s1 + $0x4] sm:$0xf]
      %v358 = vld [vmem:[%s2] sm:$0x1]
      %v360 = vlaneseq
      %v361 = vshrl.u32 %v360, 7
      %v362 = vsub.s32 0, %v361
      %v363 = vrot.slane %v358, %v362
      %v367 = vunpack.c.l.b16 %v356
      %v368 = vunpack.c.l.b16 %v357
      %v369 = vpack.c.b16 %v368, %v367
      %vm371 = vcmask 130048
      %v373 = vsel %vm371, %v340, 0
      %v376 = vsel %vm371, %v341, 0
      %v379 = vsel %vm371, %v342, 0
      %v382 = vsel %vm371, %v343, 0
      %v385 = vsel %vm371, %v344, 0
      %v388 = vsel %vm371, %v345, 0
      %v391 = vsel %vm371, %v346, 0
      %v394 = vsel %vm371, %v347, 0
      %v397 = vsel %vm371, %v348, 0
      %v400 = vsel %vm371, %v349, 0
      %v403 = vsel %vm371, %v350, 0
      %v406 = vsel %vm371, %v351, 0
      %v409 = vsel %vm371, %v352, 0
      %v412 = vsel %vm371, %v353, 0
      %v415 = vsel %vm371, %v354, 0
      %v418 = vsel %vm371, %v355, 0
      %420 = vmatprep.subr.bf16.mxu0 0
      %421 = vmatpush1.bf16.msra.mxu0 0
      %422 = vmatprep.subr.bf16.mxu0 0
      %423 = vmatpush1.bf16.msra.mxu0 0
      %424 = vmatprep.subr.bf16.mxu0 0
      %425 = vmatpush1.bf16.msra.mxu0 0
      %426 = vmatprep.subr.bf16.mxu0 0
      %427 = vmatpush1.bf16.msra.mxu0 0
      %428 = vmatprep.subr.bf16.mxu0 0
      %429 = vmatpush1.bf16.msra.mxu0 0
      %430 = vmatprep.subr.bf16.mxu0 0
      %431 = vmatpush1.bf16.msra.mxu0 0
      %432 = vmatprep.subr.bf16.mxu0 0
      %433 = vmatpush1.bf16.msra.mxu0 0
      %434 = vmatprep.subr.bf16.mxu0 0
      %435 = vmatpush1.bf16.msra.mxu0 %v369
      %436 = vmatprep.subr.bf16.mxu0 0
      %437 = vmatpush2.bf16.msra.mxu0 0
      %438 = vmatprep.subr.bf16.mxu0 0
      %439 = vmatpush2.bf16.msra.mxu0 0
      %440 = vmatprep.subr.bf16.mxu0 0
      %441 = vmatpush2.bf16.msra.mxu0 0
      %442 = vmatprep.subr.bf16.mxu0 0
      %443 = vmatpush2.bf16.msra.mxu0 0
      %444 = vmatprep.subr.bf16.mxu0 0
      %445 = vmatpush2.bf16.msra.mxu0 0
      %446 = vmatprep.subr.bf16.mxu0 0
      %447 = vmatpush2.bf16.msra.mxu0 0
      %448 = vmatprep.subr.bf16.mxu0 0
      %449 = vmatpush2.bf16.msra.mxu0 0
      %450 = vmatprep.subr.bf16.mxu0 0
      %451 = vmatpush2.bf16.msra.mxu0 0
      %452 = vmatprep.mubr.bf16.mxu0 0
      %453 = vmatmul.mubr.bf16.gmra.mxu0 %v373
      %v454 = vpop.f32.mrf.mxu0
      %v455 = vadd.f32 %v363, %v454
      %v456 = vpop.f32.mrf.mxu0
      %v457 = vpop.f32.mrf.mxu0
      %v458 = vadd.f32 %v363, %v457
      %v459 = vpop.f32.mrf.mxu0
      %460 = vmatprep.mubr.bf16.mxu0 0
      %461 = vmatmul.mubr.bf16.gmra.mxu0 %v376
      %v462 = vpop.f32.mrf.mxu0
      %v463 = vadd.f32 %v363, %v462
      %v464 = vpop.f32.mrf.mxu0
      %v465 = vpop.f32.mrf.mxu0
      %v466 = vadd.f32 %v363, %v465
      %v467 = vpop.f32.mrf.mxu0
      %468 = vmatprep.mubr.bf16.mxu0 0
      %469 = vmatmul.mubr.bf16.gmra.mxu0 %v379
      %v470 = vpop.f32.mrf.mxu0
      %v471 = vadd.f32 %v363, %v470
      %v472 = vpop.f32.mrf.mxu0
      %v473 = vpop.f32.mrf.mxu0
      %v474 = vadd.f32 %v363, %v473
      %v475 = vpop.f32.mrf.mxu0
      %476 = vmatprep.mubr.bf16.mxu0 0
      %477 = vmatmul.mubr.bf16.gmra.mxu0 %v382
      %v478 = vpop.f32.mrf.mxu0
      %v479 = vadd.f32 %v363, %v478
      %v480 = vpop.f32.mrf.mxu0
      %v481 = vpop.f32.mrf.mxu0
      %v482 = vadd.f32 %v363, %v481
      %v483 = vpop.f32.mrf.mxu0
      %484 = vmatprep.mubr.bf16.mxu0 0
      %485 = vmatmul.mubr.bf16.gmra.mxu0 %v385
      %v486 = vpop.f32.mrf.mxu0
      %v487 = vadd.f32 %v363, %v486
      %v488 = vpop.f32.mrf.mxu0
      %v489 = vpop.f32.mrf.mxu0
      %v490 = vadd.f32 %v363, %v489
      %v491 = vpop.f32.mrf.mxu0
      %492 = vmatprep.mubr.bf16.mxu0 0
      %493 = vmatmul.mubr.bf16.gmra.mxu0 %v388
      %v494 = vpop.f32.mrf.mxu0
      %v495 = vadd.f32 %v363, %v494
      %v496 = vpop.f32.mrf.mxu0
      %v497 = vpop.f32.mrf.mxu0
      %v498 = vadd.f32 %v363, %v497
      %v499 = vpop.f32.mrf.mxu0
      %500 = vmatprep.mubr.bf16.mxu0 0
      %501 = vmatmul.mubr.bf16.gmra.mxu0 %v391
      %v502 = vpop.f32.mrf.mxu0
      %v503 = vadd.f32 %v363, %v502
      %v504 = vpop.f32.mrf.mxu0
      %v505 = vpop.f32.mrf.mxu0
      %v506 = vadd.f32 %v363, %v505
      %v507 = vpop.f32.mrf.mxu0
      %508 = vmatprep.mubr.bf16.mxu0 0
      %509 = vmatmul.mubr.bf16.gmra.mxu0 %v394
      %v510 = vpop.f32.mrf.mxu0
      %v511 = vadd.f32 %v363, %v510
      %v512 = vpop.f32.mrf.mxu0
      %v513 = vpop.f32.mrf.mxu0
      %v514 = vadd.f32 %v363, %v513
      %v515 = vpop.f32.mrf.mxu0
      %516 = vmatprep.mubr.bf16.mxu0 0
      %517 = vmatmul.mubr.bf16.gmra.mxu0 %v397
      %v518 = vpop.f32.mrf.mxu0
      %v519 = vadd.f32 %v363, %v518
      %v520 = vpop.f32.mrf.mxu0
      %v521 = vpop.f32.mrf.mxu0
      %v522 = vadd.f32 %v363, %v521
      %v523 = vpop.f32.mrf.mxu0
      %524 = vmatprep.mubr.bf16.mxu0 0
      %525 = vmatmul.mubr.bf16.gmra.mxu0 %v400
      %v526 = vpop.f32.mrf.mxu0
      %v527 = vadd.f32 %v363, %v526
      %v528 = vpop.f32.mrf.mxu0
      %v529 = vpop.f32.mrf.mxu0
      %v530 = vadd.f32 %v363, %v529
      %v531 = vpop.f32.mrf.mxu0
      %532 = vmatprep.mubr.bf16.mxu0 0
      %533 = vmatmul.mubr.bf16.gmra.mxu0 %v403
      %v534 = vpop.f32.mrf.mxu0
      %v535 = vadd.f32 %v363, %v534
      %v536 = vpop.f32.mrf.mxu0
      %v537 = vpop.f32.mrf.mxu0
      %v538 = vadd.f32 %v363, %v537
      %v539 = vpop.f32.mrf.mxu0
      %540 = vmatprep.mubr.bf16.mxu0 0
      %541 = vmatmul.mubr.bf16.gmra.mxu0 %v406
      %v542 = vpop.f32.mrf.mxu0
      %v543 = vadd.f32 %v363, %v542
      %v544 = vpop.f32.mrf.mxu0
      %v545 = vpop.f32.mrf.mxu0
      %v546 = vadd.f32 %v363, %v545
      %v547 = vpop.f32.mrf.mxu0
      %548 = vmatprep.mubr.bf16.mxu0 0
      %549 = vmatmul.mubr.bf16.gmra.mxu0 %v409
      %v550 = vpop.f32.mrf.mxu0
      %v551 = vadd.f32 %v363, %v550
      %v552 = vpop.f32.mrf.mxu0
      %v553 = vpop.f32.mrf.mxu0
      %v554 = vadd.f32 %v363, %v553
      %v555 = vpop.f32.mrf.mxu0
      %556 = vmatprep.mubr.bf16.mxu0 0
      %557 = vmatmul.mubr.bf16.gmra.mxu0 %v412
      %v558 = vpop.f32.mrf.mxu0
      %v559 = vadd.f32 %v363, %v558
      %v560 = vpop.f32.mrf.mxu0
      %v561 = vpop.f32.mrf.mxu0
      %v562 = vadd.f32 %v363, %v561
      %v563 = vpop.f32.mrf.mxu0
      %564 = vmatprep.mubr.bf16.mxu0 0
      %565 = vmatmul.mubr.bf16.gmra.mxu0 %v415
      %v566 = vpop.f32.mrf.mxu0
      %v567 = vadd.f32 %v363, %v566
      %v568 = vpop.f32.mrf.mxu0
      %v569 = vpop.f32.mrf.mxu0
      %v570 = vadd.f32 %v363, %v569
      %v571 = vpop.f32.mrf.mxu0
      %572 = vmatprep.mubr.bf16.mxu0 0
      %573 = vmatmul.mubr.bf16.gmra.mxu0 %v418
      %v574 = vpop.f32.mrf.mxu0
      %v575 = vadd.f32 %v363, %v574
      %v576 = vpop.f32.mrf.mxu0
      %v577 = vpop.f32.mrf.mxu0
      %v578 = vadd.f32 %v363, %v577
      %v579 = vpop.f32.mrf.mxu0
      %580 = vdwg.mxu0
      %v581 = vld [vmem:[%s3] sm:$0xf]
      %v582 = vld [vmem:[%s3 + $0x4] sm:$0xf]
      %v583 = vld [vmem:[%s4] sm:$0x1]
      %v585 = vlaneseq
      %v586 = vshrl.u32 %v585, 7
      %v587 = vsub.s32 0, %v586
      %v588 = vrot.slane %v583, %v587
      %v592 = vunpack.c.l.b16 %v581
      %v593 = vunpack.c.l.b16 %v582
      %v594 = vpack.c.b16 %v593, %v592
      %596 = vmatprep.subr.bf16.mxu0 0
      %597 = vmatpush1.bf16.msra.mxu0 0
      %598 = vmatprep.subr.bf16.mxu0 0
      %599 = vmatpush1.bf16.msra.mxu0 0
      %600 = vmatprep.subr.bf16.mxu0 0
      %601 = vmatpush1.bf16.msra.mxu0 0
      %602 = vmatprep.subr.bf16.mxu0 0
      %603 = vmatpush1.bf16.msra.mxu0 0
      %604 = vmatprep.subr.bf16.mxu0 0
      %605 = vmatpush1.bf16.msra.mxu0 0
      %606 = vmatprep.subr.bf16.mxu0 0
      %607 = vmatpush1.bf16.msra.mxu0 0
      %608 = vmatprep.subr.bf16.mxu0 0
      %609 = vmatpush1.bf16.msra.mxu0 0
      %610 = vmatprep.subr.bf16.mxu0 0
      %611 = vmatpush1.bf16.msra.mxu0 %v594
      %612 = vmatprep.subr.bf16.mxu0 0
      %613 = vmatpush2.bf16.msra.mxu0 0
      %614 = vmatprep.subr.bf16.mxu0 0
      %615 = vmatpush2.bf16.msra.mxu0 0
      %616 = vmatprep.subr.bf16.mxu0 0
      %617 = vmatpush2.bf16.msra.mxu0 0
      %618 = vmatprep.subr.bf16.mxu0 0
      %619 = vmatpush2.bf16.msra.mxu0 0
      %620 = vmatprep.subr.bf16.mxu0 0
      %621 = vmatpush2.bf16.msra.mxu0 0
      %622 = vmatprep.subr.bf16.mxu0 0
      %623 = vmatpush2.bf16.msra.mxu0 0
      %624 = vmatprep.subr.bf16.mxu0 0
      %625 = vmatpush2.bf16.msra.mxu0 0
      %626 = vmatprep.subr.bf16.mxu0 0
      %627 = vmatpush2.bf16.msra.mxu0 0
      %628 = vmatprep.mubr.bf16.mxu0 0
      %629 = vmatmul.mubr.bf16.gmra.mxu0 %v373
      %v630 = vpop.f32.mrf.mxu0
      %v631 = vadd.f32 %v588, %v630
      %v632 = vpop.f32.mrf.mxu0
      %v633 = vpop.f32.mrf.mxu0
      %v634 = vadd.f32 %v588, %v633
      %v635 = vpop.f32.mrf.mxu0
      %636 = vmatprep.mubr.bf16.mxu0 0
      %637 = vmatmul.mubr.bf16.gmra.mxu0 %v376
      %v638 = vpop.f32.mrf.mxu0
      %v639 = vadd.f32 %v588, %v638
      %v640 = vpop.f32.mrf.mxu0
      %v641 = vpop.f32.mrf.mxu0
      %v642 = vadd.f32 %v588, %v641
      %v643 = vpop.f32.mrf.mxu0
      %644 = vmatprep.mubr.bf16.mxu0 0
      %645 = vmatmul.mubr.bf16.gmra.mxu0 %v379
      %v646 = vpop.f32.mrf.mxu0
      %v647 = vadd.f32 %v588, %v646
      %v648 = vpop.f32.mrf.mxu0
      %v649 = vpop.f32.mrf.mxu0
      %v650 = vadd.f32 %v588, %v649
      %v651 = vpop.f32.mrf.mxu0
      %652 = vmatprep.mubr.bf16.mxu0 0
      %653 = vmatmul.mubr.bf16.gmra.mxu0 %v382
      %v654 = vpop.f32.mrf.mxu0
      %v655 = vadd.f32 %v588, %v654
      %v656 = vpop.f32.mrf.mxu0
      %v657 = vpop.f32.mrf.mxu0
      %v658 = vadd.f32 %v588, %v657
      %v659 = vpop.f32.mrf.mxu0
      %660 = vmatprep.mubr.bf16.mxu0 0
      %661 = vmatmul.mubr.bf16.gmra.mxu0 %v385
      %v662 = vpop.f32.mrf.mxu0
      %v663 = vadd.f32 %v588, %v662
      %v664 = vpop.f32.mrf.mxu0
      %v665 = vpop.f32.mrf.mxu0
      %v666 = vadd.f32 %v588, %v665
      %v667 = vpop.f32.mrf.mxu0
      %668 = vmatprep.mubr.bf16.mxu0 0
      %669 = vmatmul.mubr.bf16.gmra.mxu0 %v388
      %v670 = vpop.f32.mrf.mxu0
      %v671 = vadd.f32 %v588, %v670
      %v672 = vpop.f32.mrf.mxu0
      %v673 = vpop.f32.mrf.mxu0
      %v674 = vadd.f32 %v588, %v673
      %v675 = vpop.f32.mrf.mxu0
      %676 = vmatprep.mubr.bf16.mxu0 0
      %677 = vmatmul.mubr.bf16.gmra.mxu0 %v391
      %v678 = vpop.f32.mrf.mxu0
      %v679 = vadd.f32 %v588, %v678
      %v680 = vpop.f32.mrf.mxu0
      %v681 = vpop.f32.mrf.mxu0
      %v682 = vadd.f32 %v588, %v681
      %v683 = vpop.f32.mrf.mxu0
      %684 = vmatprep.mubr.bf16.mxu0 0
      %685 = vmatmul.mubr.bf16.gmra.mxu0 %v394
      %v686 = vpop.f32.mrf.mxu0
      %v687 = vadd.f32 %v588, %v686
      %v688 = vpop.f32.mrf.mxu0
      %v689 = vpop.f32.mrf.mxu0
      %v690 = vadd.f32 %v588, %v689
      %v691 = vpop.f32.mrf.mxu0
      %692 = vmatprep.mubr.bf16.mxu0 0
      %693 = vmatmul.mubr.bf16.gmra.mxu0 %v397
      %v694 = vpop.f32.mrf.mxu0
      %v695 = vadd.f32 %v588, %v694
      %v696 = vpop.f32.mrf.mxu0
      %v697 = vpop.f32.mrf.mxu0
      %v698 = vadd.f32 %v588, %v697
      %v699 = vpop.f32.mrf.mxu0
      %700 = vmatprep.mubr.bf16.mxu0 0
      %701 = vmatmul.mubr.bf16.gmra.mxu0 %v400
      %v702 = vpop.f32.mrf.mxu0
      %v703 = vadd.f32 %v588, %v702
      %v704 = vpop.f32.mrf.mxu0
      %v705 = vpop.f32.mrf.mxu0
      %v706 = vadd.f32 %v588, %v705
      %v707 = vpop.f32.mrf.mxu0
      %708 = vmatprep.mubr.bf16.mxu0 0
      %709 = vmatmul.mubr.bf16.gmra.mxu0 %v403
      %v710 = vpop.f32.mrf.mxu0
      %v711 = vadd.f32 %v588, %v710
      %v712 = vpop.f32.mrf.mxu0
      %v713 = vpop.f32.mrf.mxu0
      %v714 = vadd.f32 %v588, %v713
      %v715 = vpop.f32.mrf.mxu0
      %716 = vmatprep.mubr.bf16.mxu0 0
      %717 = vmatmul.mubr.bf16.gmra.mxu0 %v406
      %v718 = vpop.f32.mrf.mxu0
      %v719 = vadd.f32 %v588, %v718
      %v720 = vpop.f32.mrf.mxu0
      %v721 = vpop.f32.mrf.mxu0
      %v722 = vadd.f32 %v588, %v721
      %v723 = vpop.f32.mrf.mxu0
      %724 = vmatprep.mubr.bf16.mxu0 0
      %725 = vmatmul.mubr.bf16.gmra.mxu0 %v409
      %v726 = vpop.f32.mrf.mxu0
      %v727 = vadd.f32 %v588, %v726
      %v728 = vpop.f32.mrf.mxu0
      %v729 = vpop.f32.mrf.mxu0
      %v730 = vadd.f32 %v588, %v729
      %v731 = vpop.f32.mrf.mxu0
      %732 = vmatprep.mubr.bf16.mxu0 0
      %733 = vmatmul.mubr.bf16.gmra.mxu0 %v412
      %v734 = vpop.f32.mrf.mxu0
      %v735 = vadd.f32 %v588, %v734
      %v736 = vpop.f32.mrf.mxu0
      %v737 = vpop.f32.mrf.mxu0
      %v738 = vadd.f32 %v588, %v737
      %v739 = vpop.f32.mrf.mxu0
      %740 = vmatprep.mubr.bf16.mxu0 0
      %741 = vmatmul.mubr.bf16.gmra.mxu0 %v415
      %v742 = vpop.f32.mrf.mxu0
      %v743 = vadd.f32 %v588, %v742
      %v744 = vpop.f32.mrf.mxu0
      %v745 = vpop.f32.mrf.mxu0
      %v746 = vadd.f32 %v588, %v745
      %v747 = vpop.f32.mrf.mxu0
      %748 = vmatprep.mubr.bf16.mxu0 0
      %749 = vmatmul.mubr.bf16.gmra.mxu0 %v418
      %v750 = vpop.f32.mrf.mxu0
      %v751 = vadd.f32 %v588, %v750
      %v752 = vpop.f32.mrf.mxu0
      %v753 = vpop.f32.mrf.mxu0
      %v754 = vadd.f32 %v588, %v753
      %v755 = vpop.f32.mrf.mxu0
      %756 = vdwg.mxu0
      %v757 = vld [vmem:[%s5] sm:$0xf]
      %v758 = vld [vmem:[%s5 + $0x4] sm:$0xf]
      %v759 = vld [vmem:[%s6] sm:$0x1]
      %v761 = vlaneseq
      %v762 = vshrl.u32 %v761, 7
      %v763 = vsub.s32 0, %v762
      %v764 = vrot.slane %v759, %v763
      %v768 = vunpack.c.l.b16 %v757
      %v769 = vunpack.c.l.b16 %v758
      %v770 = vpack.c.b16 %v769, %v768
      %772 = vmatprep.subr.bf16.mxu0 0
      %773 = vmatpush1.bf16.msra.mxu0 0
      %774 = vmatprep.subr.bf16.mxu0 0
      %775 = vmatpush1.bf16.msra.mxu0 0
      %776 = vmatprep.subr.bf16.mxu0 0
      %777 = vmatpush1.bf16.msra.mxu0 0
      %778 = vmatprep.subr.bf16.mxu0 0
      %779 = vmatpush1.bf16.msra.mxu0 0
      %780 = vmatprep.subr.bf16.mxu0 0
      %781 = vmatpush1.bf16.msra.mxu0 0
      %782 = vmatprep.subr.bf16.mxu0 0
      %783 = vmatpush1.bf16.msra.mxu0 0
      %784 = vmatprep.subr.bf16.mxu0 0
      %785 = vmatpush1.bf16.msra.mxu0 0
      %786 = vmatprep.subr.bf16.mxu0 0
      %787 = vmatpush1.bf16.msra.mxu0 %v770
      %788 = vmatprep.subr.bf16.mxu0 0
      %789 = vmatpush2.bf16.msra.mxu0 0
      %790 = vmatprep.subr.bf16.mxu0 0
      %791 = vmatpush2.bf16.msra.mxu0 0
      %792 = vmatprep.subr.bf16.mxu0 0
      %793 = vmatpush2.bf16.msra.mxu0 0
      %794 = vmatprep.subr.bf16.mxu0 0
      %795 = vmatpush2.bf16.msra.mxu0 0
      %796 = vmatprep.subr.bf16.mxu0 0
      %797 = vmatpush2.bf16.msra.mxu0 0
      %798 = vmatprep.subr.bf16.mxu0 0
      %799 = vmatpush2.bf16.msra.mxu0 0
      %800 = vmatprep.subr.bf16.mxu0 0
      %801 = vmatpush2.bf16.msra.mxu0 0
      %802 = vmatprep.subr.bf16.mxu0 0
      %803 = vmatpush2.bf16.msra.mxu0 0
      %804 = vmatprep.mubr.bf16.mxu0 0
      %805 = vmatmul.mubr.bf16.gmra.mxu0 %v373
      %v806 = vpop.f32.mrf.mxu0
      %v807 = vadd.f32 %v764, %v806
      %v808 = vpop.f32.mrf.mxu0
      %v809 = vpop.f32.mrf.mxu0
      %v810 = vadd.f32 %v764, %v809
      %v811 = vpop.f32.mrf.mxu0
      %812 = vmatprep.mubr.bf16.mxu0 0
      %813 = vmatmul.mubr.bf16.gmra.mxu0 %v376
      %v814 = vpop.f32.mrf.mxu0
      %v815 = vadd.f32 %v764, %v814
      %v816 = vpop.f32.mrf.mxu0
      %v817 = vpop.f32.mrf.mxu0
      %v818 = vadd.f32 %v764, %v817
      %v819 = vpop.f32.mrf.mxu0
      %820 = vmatprep.mubr.bf16.mxu0 0
      %821 = vmatmul.mubr.bf16.gmra.mxu0 %v379
      %v822 = vpop.f32.mrf.mxu0
      %v823 = vadd.f32 %v764, %v822
      %v824 = vpop.f32.mrf.mxu0
      %v825 = vpop.f32.mrf.mxu0
      %v826 = vadd.f32 %v764, %v825
      %v827 = vpop.f32.mrf.mxu0
      %828 = vmatprep.mubr.bf16.mxu0 0
      %829 = vmatmul.mubr.bf16.gmra.mxu0 %v382
      %v830 = vpop.f32.mrf.mxu0
      %v831 = vadd.f32 %v764, %v830
      %v832 = vpop.f32.mrf.mxu0
      %v833 = vpop.f32.mrf.mxu0
      %v834 = vadd.f32 %v764, %v833
      %v835 = vpop.f32.mrf.mxu0
      %836 = vmatprep.mubr.bf16.mxu0 0
      %837 = vmatmul.mubr.bf16.gmra.mxu0 %v385
      %v838 = vpop.f32.mrf.mxu0
      %v839 = vadd.f32 %v764, %v838
      %v840 = vpop.f32.mrf.mxu0
      %v841 = vpop.f32.mrf.mxu0
      %v842 = vadd.f32 %v764, %v841
      %v843 = vpop.f32.mrf.mxu0
      %844 = vmatprep.mubr.bf16.mxu0 0
      %845 = vmatmul.mubr.bf16.gmra.mxu0 %v388
      %v846 = vpop.f32.mrf.mxu0
      %v847 = vadd.f32 %v764, %v846
      %v848 = vpop.f32.mrf.mxu0
      %v849 = vpop.f32.mrf.mxu0
      %v850 = vadd.f32 %v764, %v849
      %v851 = vpop.f32.mrf.mxu0
      %852 = vmatprep.mubr.bf16.mxu0 0
      %853 = vmatmul.mubr.bf16.gmra.mxu0 %v391
      %v854 = vpop.f32.mrf.mxu0
      %v855 = vadd.f32 %v764, %v854
      %v856 = vpop.f32.mrf.mxu0
      %v857 = vpop.f32.mrf.mxu0
      %v858 = vadd.f32 %v764, %v857
      %v859 = vpop.f32.mrf.mxu0
      %860 = vmatprep.mubr.bf16.mxu0 0
      %861 = vmatmul.mubr.bf16.gmra.mxu0 %v394
      %v862 = vpop.f32.mrf.mxu0
      %v863 = vadd.f32 %v764, %v862
      %v864 = vpop.f32.mrf.mxu0
      %v865 = vpop.f32.mrf.mxu0
      %v866 = vadd.f32 %v764, %v865
      %v867 = vpop.f32.mrf.mxu0
      %868 = vmatprep.mubr.bf16.mxu0 0
      %869 = vmatmul.mubr.bf16.gmra.mxu0 %v397
      %v870 = vpop.f32.mrf.mxu0
      %v871 = vadd.f32 %v764, %v870
      %v872 = vpop.f32.mrf.mxu0
      %v873 = vpop.f32.mrf.mxu0
      %v874 = vadd.f32 %v764, %v873
      %v875 = vpop.f32.mrf.mxu0
      %876 = vmatprep.mubr.bf16.mxu0 0
      %877 = vmatmul.mubr.bf16.gmra.mxu0 %v400
      %v878 = vpop.f32.mrf.mxu0
      %v879 = vadd.f32 %v764, %v878
      %v880 = vpop.f32.mrf.mxu0
      %v881 = vpop.f32.mrf.mxu0
      %v882 = vadd.f32 %v764, %v881
      %v883 = vpop.f32.mrf.mxu0
      %884 = vmatprep.mubr.bf16.mxu0 0
      %885 = vmatmul.mubr.bf16.gmra.mxu0 %v403
      %v886 = vpop.f32.mrf.mxu0
      %v887 = vadd.f32 %v764, %v886
      %v888 = vpop.f32.mrf.mxu0
      %v889 = vpop.f32.mrf.mxu0
      %v890 = vadd.f32 %v764, %v889
      %v891 = vpop.f32.mrf.mxu0
      %892 = vmatprep.mubr.bf16.mxu0 0
      %893 = vmatmul.mubr.bf16.gmra.mxu0 %v406
      %v894 = vpop.f32.mrf.mxu0
      %v895 = vadd.f32 %v764, %v894
      %v896 = vpop.f32.mrf.mxu0
      %v897 = vpop.f32.mrf.mxu0
      %v898 = vadd.f32 %v764, %v897
      %v899 = vpop.f32.mrf.mxu0
      %900 = vmatprep.mubr.bf16.mxu0 0
      %901 = vmatmul.mubr.bf16.gmra.mxu0 %v409
      %v902 = vpop.f32.mrf.mxu0
      %v903 = vadd.f32 %v764, %v902
      %v904 = vpop.f32.mrf.mxu0
      %v905 = vpop.f32.mrf.mxu0
      %v906 = vadd.f32 %v764, %v905
      %v907 = vpop.f32.mrf.mxu0
      %908 = vmatprep.mubr.bf16.mxu0 0
      %909 = vmatmul.mubr.bf16.gmra.mxu0 %v412
      %v910 = vpop.f32.mrf.mxu0
      %v911 = vadd.f32 %v764, %v910
      %v912 = vpop.f32.mrf.mxu0
      %v913 = vpop.f32.mrf.mxu0
      %v914 = vadd.f32 %v764, %v913
      %v915 = vpop.f32.mrf.mxu0
      %916 = vmatprep.mubr.bf16.mxu0 0
      %917 = vmatmul.mubr.bf16.gmra.mxu0 %v415
      %v918 = vpop.f32.mrf.mxu0
      %v919 = vadd.f32 %v764, %v918
      %v920 = vpop.f32.mrf.mxu0
      %v921 = vpop.f32.mrf.mxu0
      %v922 = vadd.f32 %v764, %v921
      %v923 = vpop.f32.mrf.mxu0
      %924 = vmatprep.mubr.bf16.mxu0 0
      %925 = vmatmul.mubr.bf16.gmra.mxu0 %v418
      %v926 = vpop.f32.mrf.mxu0
      %v927 = vadd.f32 %v764, %v926
      %v928 = vpop.f32.mrf.mxu0
      %v929 = vpop.f32.mrf.mxu0
      %v930 = vadd.f32 %v764, %v929
      %v931 = vpop.f32.mrf.mxu0
      %932 = vdwg.mxu0
      %v933 = vcombine.low %v455, %v471
      %v934 = vcombine.high %v455, %v471
      %v936 = vunpack.c.l.s4 1983009808
      %v937 = vunpack.c.0.s8 %v936
      %v938 = vlaneseq
      %v939 = vshrl.u32 %v938, 7
      %v940 = vsub.s32 %v937, %v939
      %v941 = vrot.slane %v933, %v940
      %v943 = vunpack.c.l.s4 1983009808
      %v944 = vunpack.c.0.s8 %v943
      %v945 = vlaneseq
      %v946 = vshrl.u32 %v945, 7
      %v947 = vsub.s32 %v944, %v946
      %v948 = vrot.slane %v934, %v947
      %v949 = vcombine.low %v463, %v479
      %v950 = vcombine.high %v463, %v479
      %v952 = vunpack.c.l.s4 1983009808
      %v953 = vunpack.c.0.s8 %v952
      %v954 = vlaneseq
      %v955 = vshrl.u32 %v954, 7
      %v956 = vsub.s32 %v953, %v955
      %v957 = vrot.slane %v949, %v956
      %v959 = vunpack.c.l.s4 1983009808
      %v960 = vunpack.c.0.s8 %v959
      %v961 = vlaneseq
      %v962 = vshrl.u32 %v961, 7
      %v963 = vsub.s32 %v960, %v962
      %v964 = vrot.slane %v950, %v963
      %v965 = vcombine.low %v487, %v503
      %v966 = vcombine.high %v487, %v503
      %v968 = vunpack.c.l.s4 1983009808
      %v969 = vunpack.c.0.s8 %v968
      %v970 = vlaneseq
      %v971 = vshrl.u32 %v970, 7
      %v972 = vsub.s32 %v969, %v971
      %v973 = vrot.slane %v965, %v972
      %v975 = vunpack.c.l.s4 1983009808
      %v976 = vunpack.c.0.s8 %v975
      %v977 = vlaneseq
      %v978 = vshrl.u32 %v977, 7
      %v979 = vsub.s32 %v976, %v978
      %v980 = vrot.slane %v966, %v979
      %v981 = vcombine.low %v495, %v511
      %v982 = vcombine.high %v495, %v511
      %v984 = vunpack.c.l.s4 1983009808
      %v985 = vunpack.c.0.s8 %v984
      %v986 = vlaneseq
      %v987 = vshrl.u32 %v986, 7
      %v988 = vsub.s32 %v985, %v987
      %v989 = vrot.slane %v981, %v988
      %v991 = vunpack.c.l.s4 1983009808
      %v992 = vunpack.c.0.s8 %v991
      %v993 = vlaneseq
      %v994 = vshrl.u32 %v993, 7
      %v995 = vsub.s32 %v992, %v994
      %v996 = vrot.slane %v982, %v995
      %v997 = vcombine.low %v941, %v957
      %v998 = vcombine.high %v941, %v957
      %v1000 = vunpack.c.l.s4 1934713408
      %v1001 = vunpack.c.0.s8 %v1000
      %v1002 = vlaneseq
      %v1003 = vshrl.u32 %v1002, 7
      %v1004 = vsub.s32 %v1001, %v1003
      %v1005 = vrot.slane %v997, %v1004
      %v1007 = vunpack.c.l.s4 1934713408
      %v1008 = vunpack.c.0.s8 %v1007
      %v1009 = vlaneseq
      %v1010 = vshrl.u32 %v1009, 7
      %v1011 = vsub.s32 %v1008, %v1010
      %v1012 = vrot.slane %v998, %v1011
      %v1013 = vcombine.low %v948, %v964
      %v1014 = vcombine.high %v948, %v964
      %v1016 = vunpack.c.l.s4 1934713408
      %v1017 = vunpack.c.0.s8 %v1016
      %v1018 = vlaneseq
      %v1019 = vshrl.u32 %v1018, 7
      %v1020 = vsub.s32 %v1017, %v1019
      %v1021 = vrot.slane %v1013, %v1020
      %v1023 = vunpack.c.l.s4 1934713408
      %v1024 = vunpack.c.0.s8 %v1023
      %v1025 = vlaneseq
      %v1026 = vshrl.u32 %v1025, 7
      %v1027 = vsub.s32 %v1024, %v1026
      %v1028 = vrot.slane %v1014, %v1027
      %v1029 = vcombine.low %v973, %v989
      %v1030 = vcombine.high %v973, %v989
      %v1032 = vunpack.c.l.s4 1934713408
      %v1033 = vunpack.c.0.s8 %v1032
      %v1034 = vlaneseq
      %v1035 = vshrl.u32 %v1034, 7
      %v1036 = vsub.s32 %v1033, %v1035
      %v1037 = vrot.slane %v1029, %v1036
      %v1039 = vunpack.c.l.s4 1934713408
      %v1040 = vunpack.c.0.s8 %v1039
      %v1041 = vlaneseq
      %v1042 = vshrl.u32 %v1041, 7
      %v1043 = vsub.s32 %v1040, %v1042
      %v1044 = vrot.slane %v1030, %v1043
      %v1045 = vcombine.low %v980, %v996
      %v1046 = vcombine.high %v980, %v996
      %v1048 = vunpack.c.l.s4 1934713408
      %v1049 = vunpack.c.0.s8 %v1048
      %v1050 = vlaneseq
      %v1051 = vshrl.u32 %v1050, 7
      %v1052 = vsub.s32 %v1049, %v1051
      %v1053 = vrot.slane %v1045, %v1052
      %v1055 = vunpack.c.l.s4 1934713408
      %v1056 = vunpack.c.0.s8 %v1055
      %v1057 = vlaneseq
      %v1058 = vshrl.u32 %v1057, 7
      %v1059 = vsub.s32 %v1056, %v1058
      %v1060 = vrot.slane %v1046, %v1059
      %v1061 = vcombine.low %v1005, %v1037
      %v1062 = vcombine.high %v1005, %v1037
      %v1063 = vcombine.low %v1012, %v1044
      %v1064 = vcombine.high %v1012, %v1044
      %v1065 = vcombine.low %v1021, %v1053
      %v1066 = vcombine.high %v1021, %v1053
      %v1067 = vcombine.low %v1028, %v1060
      %v1068 = vcombine.high %v1028, %v1060
      %v1069 = vcombine.low %v519, %v535
      %v1070 = vcombine.high %v519, %v535
      %v1072 = vunpack.c.l.s4 1983009808
      %v1073 = vunpack.c.0.s8 %v1072
      %v1074 = vlaneseq
      %v1075 = vshrl.u32 %v1074, 7
      %v1076 = vsub.s32 %v1073, %v1075
      %v1077 = vrot.slane %v1069, %v1076
      %v1079 = vunpack.c.l.s4 1983009808
      %v1080 = vunpack.c.0.s8 %v1079
      %v1081 = vlaneseq
      %v1082 = vshrl.u32 %v1081, 7
      %v1083 = vsub.s32 %v1080, %v1082
      %v1084 = vrot.slane %v1070, %v1083
      %v1085 = vcombine.low %v527, %v543
      %v1086 = vcombine.high %v527, %v543
      %v1088 = vunpack.c.l.s4 1983009808
      %v1089 = vunpack.c.0.s8 %v1088
      %v1090 = vlaneseq
      %v1091 = vshrl.u32 %v1090, 7
      %v1092 = vsub.s32 %v1089, %v1091
      %v1093 = vrot.slane %v1085, %v1092
      %v1095 = vunpack.c.l.s4 1983009808
      %v1096 = vunpack.c.0.s8 %v1095
      %v1097 = vlaneseq
      %v1098 = vshrl.u32 %v1097, 7
      %v1099 = vsub.s32 %v1096, %v1098
      %v1100 = vrot.slane %v1086, %v1099
      %v1101 = vcombine.low %v551, %v567
      %v1102 = vcombine.high %v551, %v567
      %v1104 = vunpack.c.l.s4 1983009808
      %v1105 = vunpack.c.0.s8 %v1104
      %v1106 = vlaneseq
      %v1107 = vshrl.u32 %v1106, 7
      %v1108 = vsub.s32 %v1105, %v1107
      %v1109 = vrot.slane %v1101, %v1108
      %v1111 = vunpack.c.l.s4 1983009808
      %v1112 = vunpack.c.0.s8 %v1111
      %v1113 = vlaneseq
      %v1114 = vshrl.u32 %v1113, 7
      %v1115 = vsub.s32 %v1112, %v1114
      %v1116 = vrot.slane %v1102, %v1115
      %v1117 = vcombine.low %v559, %v575
      %v1118 = vcombine.high %v559, %v575
      %v1120 = vunpack.c.l.s4 1983009808
      %v1121 = vunpack.c.0.s8 %v1120
      %v1122 = vlaneseq
      %v1123 = vshrl.u32 %v1122, 7
      %v1124 = vsub.s32 %v1121, %v1123
      %v1125 = vrot.slane %v1117, %v1124
      %v1127 = vunpack.c.l.s4 1983009808
      %v1128 = vunpack.c.0.s8 %v1127
      %v1129 = vlaneseq
      %v1130 = vshrl.u32 %v1129, 7
      %v1131 = vsub.s32 %v1128, %v1130
      %v1132 = vrot.slane %v1118, %v1131
      %v1133 = vcombine.low %v1077, %v1093
      %v1134 = vcombine.high %v1077, %v1093
      %v1136 = vunpack.c.l.s4 1934713408
      %v1137 = vunpack.c.0.s8 %v1136
      %v1138 = vlaneseq
      %v1139 = vshrl.u32 %v1138, 7
      %v1140 = vsub.s32 %v1137, %v1139
      %v1141 = vrot.slane %v1133, %v1140
      %v1143 = vunpack.c.l.s4 1934713408
      %v1144 = vunpack.c.0.s8 %v1143
      %v1145 = vlaneseq
      %v1146 = vshrl.u32 %v1145, 7
      %v1147 = vsub.s32 %v1144, %v1146
      %v1148 = vrot.slane %v1134, %v1147
      %v1149 = vcombine.low %v1084, %v1100
      %v1150 = vcombine.high %v1084, %v1100
      %v1152 = vunpack.c.l.s4 1934713408
      %v1153 = vunpack.c.0.s8 %v1152
      %v1154 = vlaneseq
      %v1155 = vshrl.u32 %v1154, 7
      %v1156 = vsub.s32 %v1153, %v1155
      %v1157 = vrot.slane %v1149, %v1156
      %v1159 = vunpack.c.l.s4 1934713408
      %v1160 = vunpack.c.0.s8 %v1159
      %v1161 = vlaneseq
      %v1162 = vshrl.u32 %v1161, 7
      %v1163 = vsub.s32 %v1160, %v1162
      %v1164 = vrot.slane %v1150, %v1163
      %v1165 = vcombine.low %v1109, %v1125
      %v1166 = vcombine.high %v1109, %v1125
      %v1168 = vunpack.c.l.s4 1934713408
      %v1169 = vunpack.c.0.s8 %v1168
      %v1170 = vlaneseq
      %v1171 = vshrl.u32 %v1170, 7
      %v1172 = vsub.s32 %v1169, %v1171
      %v1173 = vrot.slane %v1165, %v1172
      %v1175 = vunpack.c.l.s4 1934713408
      %v1176 = vunpack.c.0.s8 %v1175
      %v1177 = vlaneseq
      %v1178 = vshrl.u32 %v1177, 7
      %v1179 = vsub.s32 %v1176, %v1178
      %v1180 = vrot.slane %v1166, %v1179
      %v1181 = vcombine.low %v1116, %v1132
      %v1182 = vcombine.high %v1116, %v1132
      %v1184 = vunpack.c.l.s4 1934713408
      %v1185 = vunpack.c.0.s8 %v1184
      %v1186 = vlaneseq
      %v1187 = vshrl.u32 %v1186, 7
      %v1188 = vsub.s32 %v1185, %v1187
      %v1189 = vrot.slane %v1181, %v1188
      %v1191 = vunpack.c.l.s4 1934713408
      %v1192 = vunpack.c.0.s8 %v1191
      %v1193 = vlaneseq
      %v1194 = vshrl.u32 %v1193, 7
      %v1195 = vsub.s32 %v1192, %v1194
      %v1196 = vrot.slane %v1182, %v1195
      %v1197 = vcombine.low %v1141, %v1173
      %v1198 = vcombine.high %v1141, %v1173
      %v1199 = vcombine.low %v1148, %v1180
      %v1200 = vcombine.high %v1148, %v1180
      %v1201 = vcombine.low %v1157, %v1189
      %v1202 = vcombine.high %v1157, %v1189
      %v1203 = vcombine.low %v1164, %v1196
      %v1204 = vcombine.high %v1164, %v1196
      %v1205 = vcombine.low %v458, %v474
      %v1206 = vcombine.high %v458, %v474
      %v1208 = vunpack.c.l.s4 1983009808
      %v1209 = vunpack.c.0.s8 %v1208
      %v1210 = vlaneseq
      %v1211 = vshrl.u32 %v1210, 7
      %v1212 = vsub.s32 %v1209, %v1211
      %v1213 = vrot.slane %v1205, %v1212
      %v1215 = vunpack.c.l.s4 1983009808
      %v1216 = vunpack.c.0.s8 %v1215
      %v1217 = vlaneseq
      %v1218 = vshrl.u32 %v1217, 7
      %v1219 = vsub.s32 %v1216, %v1218
      %v1220 = vrot.slane %v1206, %v1219
      %v1221 = vcombine.low %v466, %v482
      %v1222 = vcombine.high %v466, %v482
      %v1224 = vunpack.c.l.s4 1983009808
      %v1225 = vunpack.c.0.s8 %v1224
      %v1226 = vlaneseq
      %v1227 = vshrl.u32 %v1226, 7
      %v1228 = vsub.s32 %v1225, %v1227
      %v1229 = vrot.slane %v1221, %v1228
      %v1231 = vunpack.c.l.s4 1983009808
      %v1232 = vunpack.c.0.s8 %v1231
      %v1233 = vlaneseq
      %v1234 = vshrl.u32 %v1233, 7
      %v1235 = vsub.s32 %v1232, %v1234
      %v1236 = vrot.slane %v1222, %v1235
      %v1237 = vcombine.low %v490, %v506
      %v1238 = vcombine.high %v490, %v506
      %v1240 = vunpack.c.l.s4 1983009808
      %v1241 = vunpack.c.0.s8 %v1240
      %v1242 = vlaneseq
      %v1243 = vshrl.u32 %v1242, 7
      %v1244 = vsub.s32 %v1241, %v1243
      %v1245 = vrot.slane %v1237, %v1244
      %v1247 = vunpack.c.l.s4 1983009808
      %v1248 = vunpack.c.0.s8 %v1247
      %v1249 = vlaneseq
      %v1250 = vshrl.u32 %v1249, 7
      %v1251 = vsub.s32 %v1248, %v1250
      %v1252 = vrot.slane %v1238, %v1251
      %v1253 = vcombine.low %v498, %v514
      %v1254 = vcombine.high %v498, %v514
      %v1256 = vunpack.c.l.s4 1983009808
      %v1257 = vunpack.c.0.s8 %v1256
      %v1258 = vlaneseq
      %v1259 = vshrl.u32 %v1258, 7
      %v1260 = vsub.s32 %v1257, %v1259
      %v1261 = vrot.slane %v1253, %v1260
      %v1263 = vunpack.c.l.s4 1983009808
      %v1264 = vunpack.c.0.s8 %v1263
      %v1265 = vlaneseq
      %v1266 = vshrl.u32 %v1265, 7
      %v1267 = vsub.s32 %v1264, %v1266
      %v1268 = vrot.slane %v1254, %v1267
      %v1269 = vcombine.low %v1213, %v1229
      %v1270 = vcombine.high %v1213, %v1229
      %v1272 = vunpack.c.l.s4 1934713408
      %v1273 = vunpack.c.0.s8 %v1272
      %v1274 = vlaneseq
      %v1275 = vshrl.u32 %v1274, 7
      %v1276 = vsub.s32 %v1273, %v1275
      %v1277 = vrot.slane %v1269, %v1276
      %v1279 = vunpack.c.l.s4 1934713408
      %v1280 = vunpack.c.0.s8 %v1279
      %v1281 = vlaneseq
      %v1282 = vshrl.u32 %v1281, 7
      %v1283 = vsub.s32 %v1280, %v1282
      %v1284 = vrot.slane %v1270, %v1283
      %v1285 = vcombine.low %v1220, %v1236
      %v1286 = vcombine.high %v1220, %v1236
      %v1288 = vunpack.c.l.s4 1934713408
      %v1289 = vunpack.c.0.s8 %v1288
      %v1290 = vlaneseq
      %v1291 = vshrl.u32 %v1290, 7
      %v1292 = vsub.s32 %v1289, %v1291
      %v1293 = vrot.slane %v1285, %v1292
      %v1295 = vunpack.c.l.s4 1934713408
      %v1296 = vunpack.c.0.s8 %v1295
      %v1297 = vlaneseq
      %v1298 = vshrl.u32 %v1297, 7
      %v1299 = vsub.s32 %v1296, %v1298
      %v1300 = vrot.slane %v1286, %v1299
      %v1301 = vcombine.low %v1245, %v1261
      %v1302 = vcombine.high %v1245, %v1261
      %v1304 = vunpack.c.l.s4 1934713408
      %v1305 = vunpack.c.0.s8 %v1304
      %v1306 = vlaneseq
      %v1307 = vshrl.u32 %v1306, 7
      %v1308 = vsub.s32 %v1305, %v1307
      %v1309 = vrot.slane %v1301, %v1308
      %v1311 = vunpack.c.l.s4 1934713408
      %v1312 = vunpack.c.0.s8 %v1311
      %v1313 = vlaneseq
      %v1314 = vshrl.u32 %v1313, 7
      %v1315 = vsub.s32 %v1312, %v1314
      %v1316 = vrot.slane %v1302, %v1315
      %v1317 = vcombine.low %v1252, %v1268
      %v1318 = vcombine.high %v1252, %v1268
      %v1320 = vunpack.c.l.s4 1934713408
      %v1321 = vunpack.c.0.s8 %v1320
      %v1322 = vlaneseq
      %v1323 = vshrl.u32 %v1322, 7
      %v1324 = vsub.s32 %v1321, %v1323
      %v1325 = vrot.slane %v1317, %v1324
      %v1327 = vunpack.c.l.s4 1934713408
      %v1328 = vunpack.c.0.s8 %v1327
      %v1329 = vlaneseq
      %v1330 = vshrl.u32 %v1329, 7
      %v1331 = vsub.s32 %v1328, %v1330
      %v1332 = vrot.slane %v1318, %v1331
      %v1333 = vcombine.low %v1277, %v1309
      %v1334 = vcombine.high %v1277, %v1309
      %v1335 = vcombine.low %v1284, %v1316
      %v1336 = vcombine.high %v1284, %v1316
      %v1337 = vcombine.low %v1293, %v1325
      %v1338 = vcombine.high %v1293, %v1325
      %v1339 = vcombine.low %v1300, %v1332
      %v1340 = vcombine.high %v1300, %v1332
      %v1341 = vcombine.low %v522, %v538
      %v1342 = vcombine.high %v522, %v538
      %v1344 = vunpack.c.l.s4 1983009808
      %v1345 = vunpack.c.0.s8 %v1344
      %v1346 = vlaneseq
      %v1347 = vshrl.u32 %v1346, 7
      %v1348 = vsub.s32 %v1345, %v1347
      %v1349 = vrot.slane %v1341, %v1348
      %v1351 = vunpack.c.l.s4 1983009808
      %v1352 = vunpack.c.0.s8 %v1351
      %v1353 = vlaneseq
      %v1354 = vshrl.u32 %v1353, 7
      %v1355 = vsub.s32 %v1352, %v1354
      %v1356 = vrot.slane %v1342, %v1355
      %v1357 = vcombine.low %v530, %v546
      %v1358 = vcombine.high %v530, %v546
      %v1360 = vunpack.c.l.s4 1983009808
      %v1361 = vunpack.c.0.s8 %v1360
      %v1362 = vlaneseq
      %v1363 = vshrl.u32 %v1362, 7
      %v1364 = vsub.s32 %v1361, %v1363
      %v1365 = vrot.slane %v1357, %v1364
      %v1367 = vunpack.c.l.s4 1983009808
      %v1368 = vunpack.c.0.s8 %v1367
      %v1369 = vlaneseq
      %v1370 = vshrl.u32 %v1369, 7
      %v1371 = vsub.s32 %v1368, %v1370
      %v1372 = vrot.slane %v1358, %v1371
      %v1373 = vcombine.low %v554, %v570
      %v1374 = vcombine.high %v554, %v570
      %v1376 = vunpack.c.l.s4 1983009808
      %v1377 = vunpack.c.0.s8 %v1376
      %v1378 = vlaneseq
      %v1379 = vshrl.u32 %v1378, 7
      %v1380 = vsub.s32 %v1377, %v1379
      %v1381 = vrot.slane %v1373, %v1380
      %v1383 = vunpack.c.l.s4 1983009808
      %v1384 = vunpack.c.0.s8 %v1383
      %v1385 = vlaneseq
      %v1386 = vshrl.u32 %v1385, 7
      %v1387 = vsub.s32 %v1384, %v1386
      %v1388 = vrot.slane %v1374, %v1387
      %v1389 = vcombine.low %v562, %v578
      %v1390 = vcombine.high %v562, %v578
      %v1392 = vunpack.c.l.s4 1983009808
      %v1393 = vunpack.c.0.s8 %v1392
      %v1394 = vlaneseq
      %v1395 = vshrl.u32 %v1394, 7
      %v1396 = vsub.s32 %v1393, %v1395
      %v1397 = vrot.slane %v1389, %v1396
      %v1399 = vunpack.c.l.s4 1983009808
      %v1400 = vunpack.c.0.s8 %v1399
      %v1401 = vlaneseq
      %v1402 = vshrl.u32 %v1401, 7
      %v1403 = vsub.s32 %v1400, %v1402
      %v1404 = vrot.slane %v1390, %v1403
      %v1405 = vcombine.low %v1349, %v1365
      %v1406 = vcombine.high %v1349, %v1365
      %v1408 = vunpack.c.l.s4 1934713408
      %v1409 = vunpack.c.0.s8 %v1408
      %v1410 = vlaneseq
      %v1411 = vshrl.u32 %v1410, 7
      %v1412 = vsub.s32 %v1409, %v1411
      %v1413 = vrot.slane %v1405, %v1412
      %v1415 = vunpack.c.l.s4 1934713408
      %v1416 = vunpack.c.0.s8 %v1415
      %v1417 = vlaneseq
      %v1418 = vshrl.u32 %v1417, 7
      %v1419 = vsub.s32 %v1416, %v1418
      %v1420 = vrot.slane %v1406, %v1419
      %v1421 = vcombine.low %v1356, %v1372
      %v1422 = vcombine.high %v1356, %v1372
      %v1424 = vunpack.c.l.s4 1934713408
      %v1425 = vunpack.c.0.s8 %v1424
      %v1426 = vlaneseq
      %v1427 = vshrl.u32 %v1426, 7
      %v1428 = vsub.s32 %v1425, %v1427
      %v1429 = vrot.slane %v1421, %v1428
      %v1431 = vunpack.c.l.s4 1934713408
      %v1432 = vunpack.c.0.s8 %v1431
      %v1433 = vlaneseq
      %v1434 = vshrl.u32 %v1433, 7
      %v1435 = vsub.s32 %v1432, %v1434
      %v1436 = vrot.slane %v1422, %v1435
      %v1437 = vcombine.low %v1381, %v1397
      %v1438 = vcombine.high %v1381, %v1397
      %v1440 = vunpack.c.l.s4 1934713408
      %v1441 = vunpack.c.0.s8 %v1440
      %v1442 = vlaneseq
      %v1443 = vshrl.u32 %v1442, 7
      %v1444 = vsub.s32 %v1441, %v1443
      %v1445 = vrot.slane %v1437, %v1444
      %v1447 = vunpack.c.l.s4 1934713408
      %v1448 = vunpack.c.0.s8 %v1447
      %v1449 = vlaneseq
      %v1450 = vshrl.u32 %v1449, 7
      %v1451 = vsub.s32 %v1448, %v1450
      %v1452 = vrot.slane %v1438, %v1451
      %v1453 = vcombine.low %v1388, %v1404
      %v1454 = vcombine.high %v1388, %v1404
      %v1456 = vunpack.c.l.s4 1934713408
      %v1457 = vunpack.c.0.s8 %v1456
      %v1458 = vlaneseq
      %v1459 = vshrl.u32 %v1458, 7
      %v1460 = vsub.s32 %v1457, %v1459
      %v1461 = vrot.slane %v1453, %v1460
      %v1463 = vunpack.c.l.s4 1934713408
      %v1464 = vunpack.c.0.s8 %v1463
      %v1465 = vlaneseq
      %v1466 = vshrl.u32 %v1465, 7
      %v1467 = vsub.s32 %v1464, %v1466
      %v1468 = vrot.slane %v1454, %v1467
      %v1469 = vcombine.low %v1413, %v1445
      %v1470 = vcombine.high %v1413, %v1445
      %v1471 = vcombine.low %v1420, %v1452
      %v1472 = vcombine.high %v1420, %v1452
      %v1473 = vcombine.low %v1429, %v1461
      %v1474 = vcombine.high %v1429, %v1461
      %v1475 = vcombine.low %v1436, %v1468
      %v1476 = vcombine.high %v1436, %v1468
      %v1477 = vcombine.low %v631, %v647
      %v1478 = vcombine.high %v631, %v647
      %v1480 = vunpack.c.l.s4 1983009808
      %v1481 = vunpack.c.0.s8 %v1480
      %v1482 = vlaneseq
      %v1483 = vshrl.u32 %v1482, 7
      %v1484 = vsub.s32 %v1481, %v1483
      %v1485 = vrot.slane %v1477, %v1484
      %v1487 = vunpack.c.l.s4 1983009808
      %v1488 = vunpack.c.0.s8 %v1487
      %v1489 = vlaneseq
      %v1490 = vshrl.u32 %v1489, 7
      %v1491 = vsub.s32 %v1488, %v1490
      %v1492 = vrot.slane %v1478, %v1491
      %v1493 = vcombine.low %v639, %v655
      %v1494 = vcombine.high %v639, %v655
      %v1496 = vunpack.c.l.s4 1983009808
      %v1497 = vunpack.c.0.s8 %v1496
      %v1498 = vlaneseq
      %v1499 = vshrl.u32 %v1498, 7
      %v1500 = vsub.s32 %v1497, %v1499
      %v1501 = vrot.slane %v1493, %v1500
      %v1503 = vunpack.c.l.s4 1983009808
      %v1504 = vunpack.c.0.s8 %v1503
      %v1505 = vlaneseq
      %v1506 = vshrl.u32 %v1505, 7
      %v1507 = vsub.s32 %v1504, %v1506
      %v1508 = vrot.slane %v1494, %v1507
      %v1509 = vcombine.low %v663, %v679
      %v1510 = vcombine.high %v663, %v679
      %v1512 = vunpack.c.l.s4 1983009808
      %v1513 = vunpack.c.0.s8 %v1512
      %v1514 = vlaneseq
      %v1515 = vshrl.u32 %v1514, 7
      %v1516 = vsub.s32 %v1513, %v1515
      %v1517 = vrot.slane %v1509, %v1516
      %v1519 = vunpack.c.l.s4 1983009808
      %v1520 = vunpack.c.0.s8 %v1519
      %v1521 = vlaneseq
      %v1522 = vshrl.u32 %v1521, 7
      %v1523 = vsub.s32 %v1520, %v1522
      %v1524 = vrot.slane %v1510, %v1523
      %v1525 = vcombine.low %v671, %v687
      %v1526 = vcombine.high %v671, %v687
      %v1528 = vunpack.c.l.s4 1983009808
      %v1529 = vunpack.c.0.s8 %v1528
      %v1530 = vlaneseq
      %v1531 = vshrl.u32 %v1530, 7
      %v1532 = vsub.s32 %v1529, %v1531
      %v1533 = vrot.slane %v1525, %v1532
      %v1535 = vunpack.c.l.s4 1983009808
      %v1536 = vunpack.c.0.s8 %v1535
      %v1537 = vlaneseq
      %v1538 = vshrl.u32 %v1537, 7
      %v1539 = vsub.s32 %v1536, %v1538
      %v1540 = vrot.slane %v1526, %v1539
      %v1541 = vcombine.low %v1485, %v1501
      %v1542 = vcombine.high %v1485, %v1501
      %v1544 = vunpack.c.l.s4 1934713408
      %v1545 = vunpack.c.0.s8 %v1544
      %v1546 = vlaneseq
      %v1547 = vshrl.u32 %v1546, 7
      %v1548 = vsub.s32 %v1545, %v1547
      %v1549 = vrot.slane %v1541, %v1548
      %v1551 = vunpack.c.l.s4 1934713408
      %v1552 = vunpack.c.0.s8 %v1551
      %v1553 = vlaneseq
      %v1554 = vshrl.u32 %v1553, 7
      %v1555 = vsub.s32 %v1552, %v1554
      %v1556 = vrot.slane %v1542, %v1555
      %v1557 = vcombine.low %v1492, %v1508
      %v1558 = vcombine.high %v1492, %v1508
      %v1560 = vunpack.c.l.s4 1934713408
      %v1561 = vunpack.c.0.s8 %v1560
      %v1562 = vlaneseq
      %v1563 = vshrl.u32 %v1562, 7
      %v1564 = vsub.s32 %v1561, %v1563
      %v1565 = vrot.slane %v1557, %v1564
      %v1567 = vunpack.c.l.s4 1934713408
      %v1568 = vunpack.c.0.s8 %v1567
      %v1569 = vlaneseq
      %v1570 = vshrl.u32 %v1569, 7
      %v1571 = vsub.s32 %v1568, %v1570
      %v1572 = vrot.slane %v1558, %v1571
      %v1573 = vcombine.low %v1517, %v1533
      %v1574 = vcombine.high %v1517, %v1533
      %v1576 = vunpack.c.l.s4 1934713408
      %v1577 = vunpack.c.0.s8 %v1576
      %v1578 = vlaneseq
      %v1579 = vshrl.u32 %v1578, 7
      %v1580 = vsub.s32 %v1577, %v1579
      %v1581 = vrot.slane %v1573, %v1580
      %v1583 = vunpack.c.l.s4 1934713408
      %v1584 = vunpack.c.0.s8 %v1583
      %v1585 = vlaneseq
      %v1586 = vshrl.u32 %v1585, 7
      %v1587 = vsub.s32 %v1584, %v1586
      %v1588 = vrot.slane %v1574, %v1587
      %v1589 = vcombine.low %v1524, %v1540
      %v1590 = vcombine.high %v1524, %v1540
      %v1592 = vunpack.c.l.s4 1934713408
      %v1593 = vunpack.c.0.s8 %v1592
      %v1594 = vlaneseq
      %v1595 = vshrl.u32 %v1594, 7
      %v1596 = vsub.s32 %v1593, %v1595
      %v1597 = vrot.slane %v1589, %v1596
      %v1599 = vunpack.c.l.s4 1934713408
      %v1600 = vunpack.c.0.s8 %v1599
      %v1601 = vlaneseq
      %v1602 = vshrl.u32 %v1601, 7
      %v1603 = vsub.s32 %v1600, %v1602
      %v1604 = vrot.slane %v1590, %v1603
      %v1605 = vcombine.low %v1549, %v1581
      %v1606 = vcombine.high %v1549, %v1581
      %v1607 = vcombine.low %v1556, %v1588
      %v1608 = vcombine.high %v1556, %v1588
      %v1609 = vcombine.low %v1565, %v1597
      %v1610 = vcombine.high %v1565, %v1597
      %v1611 = vcombine.low %v1572, %v1604
      %v1612 = vcombine.high %v1572, %v1604
      %v1613 = vcombine.low %v695, %v711
      %v1614 = vcombine.high %v695, %v711
      %v1616 = vunpack.c.l.s4 1983009808
      %v1617 = vunpack.c.0.s8 %v1616
      %v1618 = vlaneseq
      %v1619 = vshrl.u32 %v1618, 7
      %v1620 = vsub.s32 %v1617, %v1619
      %v1621 = vrot.slane %v1613, %v1620
      %v1623 = vunpack.c.l.s4 1983009808
      %v1624 = vunpack.c.0.s8 %v1623
      %v1625 = vlaneseq
      %v1626 = vshrl.u32 %v1625, 7
      %v1627 = vsub.s32 %v1624, %v1626
      %v1628 = vrot.slane %v1614, %v1627
      %v1629 = vcombine.low %v703, %v719
      %v1630 = vcombine.high %v703, %v719
      %v1632 = vunpack.c.l.s4 1983009808
      %v1633 = vunpack.c.0.s8 %v1632
      %v1634 = vlaneseq
      %v1635 = vshrl.u32 %v1634, 7
      %v1636 = vsub.s32 %v1633, %v1635
      %v1637 = vrot.slane %v1629, %v1636
      %v1639 = vunpack.c.l.s4 1983009808
      %v1640 = vunpack.c.0.s8 %v1639
      %v1641 = vlaneseq
      %v1642 = vshrl.u32 %v1641, 7
      %v1643 = vsub.s32 %v1640, %v1642
      %v1644 = vrot.slane %v1630, %v1643
      %v1645 = vcombine.low %v727, %v743
      %v1646 = vcombine.high %v727, %v743
      %v1648 = vunpack.c.l.s4 1983009808
      %v1649 = vunpack.c.0.s8 %v1648
      %v1650 = vlaneseq
      %v1651 = vshrl.u32 %v1650, 7
      %v1652 = vsub.s32 %v1649, %v1651
      %v1653 = vrot.slane %v1645, %v1652
      %v1655 = vunpack.c.l.s4 1983009808
      %v1656 = vunpack.c.0.s8 %v1655
      %v1657 = vlaneseq
      %v1658 = vshrl.u32 %v1657, 7
      %v1659 = vsub.s32 %v1656, %v1658
      %v1660 = vrot.slane %v1646, %v1659
      %v1661 = vcombine.low %v735, %v751
      %v1662 = vcombine.high %v735, %v751
      %v1664 = vunpack.c.l.s4 1983009808
      %v1665 = vunpack.c.0.s8 %v1664
      %v1666 = vlaneseq
      %v1667 = vshrl.u32 %v1666, 7
      %v1668 = vsub.s32 %v1665, %v1667
      %v1669 = vrot.slane %v1661, %v1668
      %v1671 = vunpack.c.l.s4 1983009808
      %v1672 = vunpack.c.0.s8 %v1671
      %v1673 = vlaneseq
      %v1674 = vshrl.u32 %v1673, 7
      %v1675 = vsub.s32 %v1672, %v1674
      %v1676 = vrot.slane %v1662, %v1675
      %v1677 = vcombine.low %v1621, %v1637
      %v1678 = vcombine.high %v1621, %v1637
      %v1680 = vunpack.c.l.s4 1934713408
      %v1681 = vunpack.c.0.s8 %v1680
      %v1682 = vlaneseq
      %v1683 = vshrl.u32 %v1682, 7
      %v1684 = vsub.s32 %v1681, %v1683
      %v1685 = vrot.slane %v1677, %v1684
      %v1687 = vunpack.c.l.s4 1934713408
      %v1688 = vunpack.c.0.s8 %v1687
      %v1689 = vlaneseq
      %v1690 = vshrl.u32 %v1689, 7
      %v1691 = vsub.s32 %v1688, %v1690
      %v1692 = vrot.slane %v1678, %v1691
      %v1693 = vcombine.low %v1628, %v1644
      %v1694 = vcombine.high %v1628, %v1644
      %v1696 = vunpack.c.l.s4 1934713408
      %v1697 = vunpack.c.0.s8 %v1696
      %v1698 = vlaneseq
      %v1699 = vshrl.u32 %v1698, 7
      %v1700 = vsub.s32 %v1697, %v1699
      %v1701 = vrot.slane %v1693, %v1700
      %v1703 = vunpack.c.l.s4 1934713408
      %v1704 = vunpack.c.0.s8 %v1703
      %v1705 = vlaneseq
      %v1706 = vshrl.u32 %v1705, 7
      %v1707 = vsub.s32 %v1704, %v1706
      %v1708 = vrot.slane %v1694, %v1707
      %v1709 = vcombine.low %v1653, %v1669
      %v1710 = vcombine.high %v1653, %v1669
      %v1712 = vunpack.c.l.s4 1934713408
      %v1713 = vunpack.c.0.s8 %v1712
      %v1714 = vlaneseq
      %v1715 = vshrl.u32 %v1714, 7
      %v1716 = vsub.s32 %v1713, %v1715
      %v1717 = vrot.slane %v1709, %v1716
      %v1719 = vunpack.c.l.s4 1934713408
      %v1720 = vunpack.c.0.s8 %v1719
      %v1721 = vlaneseq
      %v1722 = vshrl.u32 %v1721, 7
      %v1723 = vsub.s32 %v1720, %v1722
      %v1724 = vrot.slane %v1710, %v1723
      %v1725 = vcombine.low %v1660, %v1676
      %v1726 = vcombine.high %v1660, %v1676
      %v1728 = vunpack.c.l.s4 1934713408
      %v1729 = vunpack.c.0.s8 %v1728
      %v1730 = vlaneseq
      %v1731 = vshrl.u32 %v1730, 7
      %v1732 = vsub.s32 %v1729, %v1731
      %v1733 = vrot.slane %v1725, %v1732
      %v1735 = vunpack.c.l.s4 1934713408
      %v1736 = vunpack.c.0.s8 %v1735
      %v1737 = vlaneseq
      %v1738 = vshrl.u32 %v1737, 7
      %v1739 = vsub.s32 %v1736, %v1738
      %v1740 = vrot.slane %v1726, %v1739
      %v1741 = vcombine.low %v1685, %v1717
      %v1742 = vcombine.high %v1685, %v1717
      %v1743 = vcombine.low %v1692, %v1724
      %v1744 = vcombine.high %v1692, %v1724
      %v1745 = vcombine.low %v1701, %v1733
      %v1746 = vcombine.high %v1701, %v1733
      %v1747 = vcombine.low %v1708, %v1740
      %v1748 = vcombine.high %v1708, %v1740
      %v1749 = vcombine.low %v634, %v650
      %v1750 = vcombine.high %v634, %v650
      %v1752 = vunpack.c.l.s4 1983009808
      %v1753 = vunpack.c.0.s8 %v1752
      %v1754 = vlaneseq
      %v1755 = vshrl.u32 %v1754, 7
      %v1756 = vsub.s32 %v1753, %v1755
      %v1757 = vrot.slane %v1749, %v1756
      %v1759 = vunpack.c.l.s4 1983009808
      %v1760 = vunpack.c.0.s8 %v1759
      %v1761 = vlaneseq
      %v1762 = vshrl.u32 %v1761, 7
      %v1763 = vsub.s32 %v1760, %v1762
      %v1764 = vrot.slane %v1750, %v1763
      %v1765 = vcombine.low %v642, %v658
      %v1766 = vcombine.high %v642, %v658
      %v1768 = vunpack.c.l.s4 1983009808
      %v1769 = vunpack.c.0.s8 %v1768
      %v1770 = vlaneseq
      %v1771 = vshrl.u32 %v1770, 7
      %v1772 = vsub.s32 %v1769, %v1771
      %v1773 = vrot.slane %v1765, %v1772
      %v1775 = vunpack.c.l.s4 1983009808
      %v1776 = vunpack.c.0.s8 %v1775
      %v1777 = vlaneseq
      %v1778 = vshrl.u32 %v1777, 7
      %v1779 = vsub.s32 %v1776, %v1778
      %v1780 = vrot.slane %v1766, %v1779
      %v1781 = vcombine.low %v666, %v682
      %v1782 = vcombine.high %v666, %v682
      %v1784 = vunpack.c.l.s4 1983009808
      %v1785 = vunpack.c.0.s8 %v1784
      %v1786 = vlaneseq
      %v1787 = vshrl.u32 %v1786, 7
      %v1788 = vsub.s32 %v1785, %v1787
      %v1789 = vrot.slane %v1781, %v1788
      %v1791 = vunpack.c.l.s4 1983009808
      %v1792 = vunpack.c.0.s8 %v1791
      %v1793 = vlaneseq
      %v1794 = vshrl.u32 %v1793, 7
      %v1795 = vsub.s32 %v1792, %v1794
      %v1796 = vrot.slane %v1782, %v1795
      %v1797 = vcombine.low %v674, %v690
      %v1798 = vcombine.high %v674, %v690
      %v1800 = vunpack.c.l.s4 1983009808
      %v1801 = vunpack.c.0.s8 %v1800
      %v1802 = vlaneseq
      %v1803 = vshrl.u32 %v1802, 7
      %v1804 = vsub.s32 %v1801, %v1803
      %v1805 = vrot.slane %v1797, %v1804
      %v1807 = vunpack.c.l.s4 1983009808
      %v1808 = vunpack.c.0.s8 %v1807
      %v1809 = vlaneseq
      %v1810 = vshrl.u32 %v1809, 7
      %v1811 = vsub.s32 %v1808, %v1810
      %v1812 = vrot.slane %v1798, %v1811
      %v1813 = vcombine.low %v1757, %v1773
      %v1814 = vcombine.high %v1757, %v1773
      %v1816 = vunpack.c.l.s4 1934713408
      %v1817 = vunpack.c.0.s8 %v1816
      %v1818 = vlaneseq
      %v1819 = vshrl.u32 %v1818, 7
      %v1820 = vsub.s32 %v1817, %v1819
      %v1821 = vrot.slane %v1813, %v1820
      %v1823 = vunpack.c.l.s4 1934713408
      %v1824 = vunpack.c.0.s8 %v1823
      %v1825 = vlaneseq
      %v1826 = vshrl.u32 %v1825, 7
      %v1827 = vsub.s32 %v1824, %v1826
      %v1828 = vrot.slane %v1814, %v1827
      %v1829 = vcombine.low %v1764, %v1780
      %v1830 = vcombine.high %v1764, %v1780
      %v1832 = vunpack.c.l.s4 1934713408
      %v1833 = vunpack.c.0.s8 %v1832
      %v1834 = vlaneseq
      %v1835 = vshrl.u32 %v1834, 7
      %v1836 = vsub.s32 %v1833, %v1835
      %v1837 = vrot.slane %v1829, %v1836
      %v1839 = vunpack.c.l.s4 1934713408
      %v1840 = vunpack.c.0.s8 %v1839
      %v1841 = vlaneseq
      %v1842 = vshrl.u32 %v1841, 7
      %v1843 = vsub.s32 %v1840, %v1842
      %v1844 = vrot.slane %v1830, %v1843
      %v1845 = vcombine.low %v1789, %v1805
      %v1846 = vcombine.high %v1789, %v1805
      %v1848 = vunpack.c.l.s4 1934713408
      %v1849 = vunpack.c.0.s8 %v1848
      %v1850 = vlaneseq
      %v1851 = vshrl.u32 %v1850, 7
      %v1852 = vsub.s32 %v1849, %v1851
      %v1853 = vrot.slane %v1845, %v1852
      %v1855 = vunpack.c.l.s4 1934713408
      %v1856 = vunpack.c.0.s8 %v1855
      %v1857 = vlaneseq
      %v1858 = vshrl.u32 %v1857, 7
      %v1859 = vsub.s32 %v1856, %v1858
      %v1860 = vrot.slane %v1846, %v1859
      %v1861 = vcombine.low %v1796, %v1812
      %v1862 = vcombine.high %v1796, %v1812
      %v1864 = vunpack.c.l.s4 1934713408
      %v1865 = vunpack.c.0.s8 %v1864
      %v1866 = vlaneseq
      %v1867 = vshrl.u32 %v1866, 7
      %v1868 = vsub.s32 %v1865, %v1867
      %v1869 = vrot.slane %v1861, %v1868
      %v1871 = vunpack.c.l.s4 1934713408
      %v1872 = vunpack.c.0.s8 %v1871
      %v1873 = vlaneseq
      %v1874 = vshrl.u32 %v1873, 7
      %v1875 = vsub.s32 %v1872, %v1874
      %v1876 = vrot.slane %v1862, %v1875
      %v1877 = vcombine.low %v1821, %v1853
      %v1878 = vcombine.high %v1821, %v1853
      %v1879 = vcombine.low %v1828, %v1860
      %v1880 = vcombine.high %v1828, %v1860
      %v1881 = vcombine.low %v1837, %v1869
      %v1882 = vcombine.high %v1837, %v1869
      %v1883 = vcombine.low %v1844, %v1876
      %v1884 = vcombine.high %v1844, %v1876
      %v1885 = vcombine.low %v698, %v714
      %v1886 = vcombine.high %v698, %v714
      %v1888 = vunpack.c.l.s4 1983009808
      %v1889 = vunpack.c.0.s8 %v1888
      %v1890 = vlaneseq
      %v1891 = vshrl.u32 %v1890, 7
      %v1892 = vsub.s32 %v1889, %v1891
      %v1893 = vrot.slane %v1885, %v1892
      %v1895 = vunpack.c.l.s4 1983009808
      %v1896 = vunpack.c.0.s8 %v1895
      %v1897 = vlaneseq
      %v1898 = vshrl.u32 %v1897, 7
      %v1899 = vsub.s32 %v1896, %v1898
      %v1900 = vrot.slane %v1886, %v1899
      %v1901 = vcombine.low %v706, %v722
      %v1902 = vcombine.high %v706, %v722
      %v1904 = vunpack.c.l.s4 1983009808
      %v1905 = vunpack.c.0.s8 %v1904
      %v1906 = vlaneseq
      %v1907 = vshrl.u32 %v1906, 7
      %v1908 = vsub.s32 %v1905, %v1907
      %v1909 = vrot.slane %v1901, %v1908
      %v1911 = vunpack.c.l.s4 1983009808
      %v1912 = vunpack.c.0.s8 %v1911
      %v1913 = vlaneseq
      %v1914 = vshrl.u32 %v1913, 7
      %v1915 = vsub.s32 %v1912, %v1914
      %v1916 = vrot.slane %v1902, %v1915
      %v1917 = vcombine.low %v730, %v746
      %v1918 = vcombine.high %v730, %v746
      %v1920 = vunpack.c.l.s4 1983009808
      %v1921 = vunpack.c.0.s8 %v1920
      %v1922 = vlaneseq
      %v1923 = vshrl.u32 %v1922, 7
      %v1924 = vsub.s32 %v1921, %v1923
      %v1925 = vrot.slane %v1917, %v1924
      %v1927 = vunpack.c.l.s4 1983009808
      %v1928 = vunpack.c.0.s8 %v1927
      %v1929 = vlaneseq
      %v1930 = vshrl.u32 %v1929, 7
      %v1931 = vsub.s32 %v1928, %v1930
      %v1932 = vrot.slane %v1918, %v1931
      %v1933 = vcombine.low %v738, %v754
      %v1934 = vcombine.high %v738, %v754
      %v1936 = vunpack.c.l.s4 1983009808
      %v1937 = vunpack.c.0.s8 %v1936
      %v1938 = vlaneseq
      %v1939 = vshrl.u32 %v1938, 7
      %v1940 = vsub.s32 %v1937, %v1939
      %v1941 = vrot.slane %v1933, %v1940
      %v1943 = vunpack.c.l.s4 1983009808
      %v1944 = vunpack.c.0.s8 %v1943
      %v1945 = vlaneseq
      %v1946 = vshrl.u32 %v1945, 7
      %v1947 = vsub.s32 %v1944, %v1946
      %v1948 = vrot.slane %v1934, %v1947
      %v1949 = vcombine.low %v1893, %v1909
      %v1950 = vcombine.high %v1893, %v1909
      %v1952 = vunpack.c.l.s4 1934713408
      %v1953 = vunpack.c.0.s8 %v1952
      %v1954 = vlaneseq
      %v1955 = vshrl.u32 %v1954, 7
      %v1956 = vsub.s32 %v1953, %v1955
      %v1957 = vrot.slane %v1949, %v1956
      %v1959 = vunpack.c.l.s4 1934713408
      %v1960 = vunpack.c.0.s8 %v1959
      %v1961 = vlaneseq
      %v1962 = vshrl.u32 %v1961, 7
      %v1963 = vsub.s32 %v1960, %v1962
      %v1964 = vrot.slane %v1950, %v1963
      %v1965 = vcombine.low %v1900, %v1916
      %v1966 = vcombine.high %v1900, %v1916
      %v1968 = vunpack.c.l.s4 1934713408
      %v1969 = vunpack.c.0.s8 %v1968
      %v1970 = vlaneseq
      %v1971 = vshrl.u32 %v1970, 7
      %v1972 = vsub.s32 %v1969, %v1971
      %v1973 = vrot.slane %v1965, %v1972
      %v1975 = vunpack.c.l.s4 1934713408
      %v1976 = vunpack.c.0.s8 %v1975
      %v1977 = vlaneseq
      %v1978 = vshrl.u32 %v1977, 7
      %v1979 = vsub.s32 %v1976, %v1978
      %v1980 = vrot.slane %v1966, %v1979
      %v1981 = vcombine.low %v1925, %v1941
      %v1982 = vcombine.high %v1925, %v1941
      %v1984 = vunpack.c.l.s4 1934713408
      %v1985 = vunpack.c.0.s8 %v1984
      %v1986 = vlaneseq
      %v1987 = vshrl.u32 %v1986, 7
      %v1988 = vsub.s32 %v1985, %v1987
      %v1989 = vrot.slane %v1981, %v1988
      %v1991 = vunpack.c.l.s4 1934713408
      %v1992 = vunpack.c.0.s8 %v1991
      %v1993 = vlaneseq
      %v1994 = vshrl.u32 %v1993, 7
      %v1995 = vsub.s32 %v1992, %v1994
      %v1996 = vrot.slane %v1982, %v1995
      %v1997 = vcombine.low %v1932, %v1948
      %v1998 = vcombine.high %v1932, %v1948
      %v2000 = vunpack.c.l.s4 1934713408
      %v2001 = vunpack.c.0.s8 %v2000
      %v2002 = vlaneseq
      %v2003 = vshrl.u32 %v2002, 7
      %v2004 = vsub.s32 %v2001, %v2003
      %v2005 = vrot.slane %v1997, %v2004
      %v2007 = vunpack.c.l.s4 1934713408
      %v2008 = vunpack.c.0.s8 %v2007
      %v2009 = vlaneseq
      %v2010 = vshrl.u32 %v2009, 7
      %v2011 = vsub.s32 %v2008, %v2010
      %v2012 = vrot.slane %v1998, %v2011
      %v2013 = vcombine.low %v1957, %v1989
      %v2014 = vcombine.high %v1957, %v1989
      %v2015 = vcombine.low %v1964, %v1996
      %v2016 = vcombine.high %v1964, %v1996
      %v2017 = vcombine.low %v1973, %v2005
      %v2018 = vcombine.high %v1973, %v2005
      %v2019 = vcombine.low %v1980, %v2012
      %v2020 = vcombine.high %v1980, %v2012
      %v2021 = vcombine.low %v807, %v823
      %v2022 = vcombine.high %v807, %v823
      %v2024 = vunpack.c.l.s4 1983009808
      %v2025 = vunpack.c.0.s8 %v2024
      %v2026 = vlaneseq
      %v2027 = vshrl.u32 %v2026, 7
      %v2028 = vsub.s32 %v2025, %v2027
      %v2029 = vrot.slane %v2021, %v2028
      %v2031 = vunpack.c.l.s4 1983009808
      %v2032 = vunpack.c.0.s8 %v2031
      %v2033 = vlaneseq
      %v2034 = vshrl.u32 %v2033, 7
      %v2035 = vsub.s32 %v2032, %v2034
      %v2036 = vrot.slane %v2022, %v2035
      %v2037 = vcombine.low %v815, %v831
      %v2038 = vcombine.high %v815, %v831
      %v2040 = vunpack.c.l.s4 1983009808
      %v2041 = vunpack.c.0.s8 %v2040
      %v2042 = vlaneseq
      %v2043 = vshrl.u32 %v2042, 7
      %v2044 = vsub.s32 %v2041, %v2043
      %v2045 = vrot.slane %v2037, %v2044
      %v2047 = vunpack.c.l.s4 1983009808
      %v2048 = vunpack.c.0.s8 %v2047
      %v2049 = vlaneseq
      %v2050 = vshrl.u32 %v2049, 7
      %v2051 = vsub.s32 %v2048, %v2050
      %v2052 = vrot.slane %v2038, %v2051
      %v2053 = vcombine.low %v839, %v855
      %v2054 = vcombine.high %v839, %v855
      %v2056 = vunpack.c.l.s4 1983009808
      %v2057 = vunpack.c.0.s8 %v2056
      %v2058 = vlaneseq
      %v2059 = vshrl.u32 %v2058, 7
      %v2060 = vsub.s32 %v2057, %v2059
      %v2061 = vrot.slane %v2053, %v2060
      %v2063 = vunpack.c.l.s4 1983009808
      %v2064 = vunpack.c.0.s8 %v2063
      %v2065 = vlaneseq
      %v2066 = vshrl.u32 %v2065, 7
      %v2067 = vsub.s32 %v2064, %v2066
      %v2068 = vrot.slane %v2054, %v2067
      %v2069 = vcombine.low %v847, %v863
      %v2070 = vcombine.high %v847, %v863
      %v2072 = vunpack.c.l.s4 1983009808
      %v2073 = vunpack.c.0.s8 %v2072
      %v2074 = vlaneseq
      %v2075 = vshrl.u32 %v2074, 7
      %v2076 = vsub.s32 %v2073, %v2075
      %v2077 = vrot.slane %v2069, %v2076
      %v2079 = vunpack.c.l.s4 1983009808
      %v2080 = vunpack.c.0.s8 %v2079
      %v2081 = vlaneseq
      %v2082 = vshrl.u32 %v2081, 7
      %v2083 = vsub.s32 %v2080, %v2082
      %v2084 = vrot.slane %v2070, %v2083
      %v2085 = vcombine.low %v2029, %v2045
      %v2086 = vcombine.high %v2029, %v2045
      %v2088 = vunpack.c.l.s4 1934713408
      %v2089 = vunpack.c.0.s8 %v2088
      %v2090 = vlaneseq
      %v2091 = vshrl.u32 %v2090, 7
      %v2092 = vsub.s32 %v2089, %v2091
      %v2093 = vrot.slane %v2085, %v2092
      %v2095 = vunpack.c.l.s4 1934713408
      %v2096 = vunpack.c.0.s8 %v2095
      %v2097 = vlaneseq
      %v2098 = vshrl.u32 %v2097, 7
      %v2099 = vsub.s32 %v2096, %v2098
      %v2100 = vrot.slane %v2086, %v2099
      %v2101 = vcombine.low %v2036, %v2052
      %v2102 = vcombine.high %v2036, %v2052
      %v2104 = vunpack.c.l.s4 1934713408
      %v2105 = vunpack.c.0.s8 %v2104
      %v2106 = vlaneseq
      %v2107 = vshrl.u32 %v2106, 7
      %v2108 = vsub.s32 %v2105, %v2107
      %v2109 = vrot.slane %v2101, %v2108
      %v2111 = vunpack.c.l.s4 1934713408
      %v2112 = vunpack.c.0.s8 %v2111
      %v2113 = vlaneseq
      %v2114 = vshrl.u32 %v2113, 7
      %v2115 = vsub.s32 %v2112, %v2114
      %v2116 = vrot.slane %v2102, %v2115
      %v2117 = vcombine.low %v2061, %v2077
      %v2118 = vcombine.high %v2061, %v2077
      %v2120 = vunpack.c.l.s4 1934713408
      %v2121 = vunpack.c.0.s8 %v2120
      %v2122 = vlaneseq
      %v2123 = vshrl.u32 %v2122, 7
      %v2124 = vsub.s32 %v2121, %v2123
      %v2125 = vrot.slane %v2117, %v2124
      %v2127 = vunpack.c.l.s4 1934713408
      %v2128 = vunpack.c.0.s8 %v2127
      %v2129 = vlaneseq
      %v2130 = vshrl.u32 %v2129, 7
      %v2131 = vsub.s32 %v2128, %v2130
      %v2132 = vrot.slane %v2118, %v2131
      %v2133 = vcombine.low %v2068, %v2084
      %v2134 = vcombine.high %v2068, %v2084
      %v2136 = vunpack.c.l.s4 1934713408
      %v2137 = vunpack.c.0.s8 %v2136
      %v2138 = vlaneseq
      %v2139 = vshrl.u32 %v2138, 7
      %v2140 = vsub.s32 %v2137, %v2139
      %v2141 = vrot.slane %v2133, %v2140
      %v2143 = vunpack.c.l.s4 1934713408
      %v2144 = vunpack.c.0.s8 %v2143
      %v2145 = vlaneseq
      %v2146 = vshrl.u32 %v2145, 7
      %v2147 = vsub.s32 %v2144, %v2146
      %v2148 = vrot.slane %v2134, %v2147
      %v2149 = vcombine.low %v2093, %v2125
      %v2150 = vcombine.high %v2093, %v2125
      %v2151 = vcombine.low %v2100, %v2132
      %v2152 = vcombine.high %v2100, %v2132
      %v2153 = vcombine.low %v2109, %v2141
      %v2154 = vcombine.high %v2109, %v2141
      %v2155 = vcombine.low %v2116, %v2148
      %v2156 = vcombine.high %v2116, %v2148
      %v2157 = vcombine.low %v871, %v887
      %v2158 = vcombine.high %v871, %v887
      %v2160 = vunpack.c.l.s4 1983009808
      %v2161 = vunpack.c.0.s8 %v2160
      %v2162 = vlaneseq
      %v2163 = vshrl.u32 %v2162, 7
      %v2164 = vsub.s32 %v2161, %v2163
      %v2165 = vrot.slane %v2157, %v2164
      %v2167 = vunpack.c.l.s4 1983009808
      %v2168 = vunpack.c.0.s8 %v2167
      %v2169 = vlaneseq
      %v2170 = vshrl.u32 %v2169, 7
      %v2171 = vsub.s32 %v2168, %v2170
      %v2172 = vrot.slane %v2158, %v2171
      %v2173 = vcombine.low %v879, %v895
      %v2174 = vcombine.high %v879, %v895
      %v2176 = vunpack.c.l.s4 1983009808
      %v2177 = vunpack.c.0.s8 %v2176
      %v2178 = vlaneseq
      %v2179 = vshrl.u32 %v2178, 7
      %v2180 = vsub.s32 %v2177, %v2179
      %v2181 = vrot.slane %v2173, %v2180
      %v2183 = vunpack.c.l.s4 1983009808
      %v2184 = vunpack.c.0.s8 %v2183
      %v2185 = vlaneseq
      %v2186 = vshrl.u32 %v2185, 7
      %v2187 = vsub.s32 %v2184, %v2186
      %v2188 = vrot.slane %v2174, %v2187
      %v2189 = vcombine.low %v903, %v919
      %v2190 = vcombine.high %v903, %v919
      %v2192 = vunpack.c.l.s4 1983009808
      %v2193 = vunpack.c.0.s8 %v2192
      %v2194 = vlaneseq
      %v2195 = vshrl.u32 %v2194, 7
      %v2196 = vsub.s32 %v2193, %v2195
      %v2197 = vrot.slane %v2189, %v2196
      %v2199 = vunpack.c.l.s4 1983009808
      %v2200 = vunpack.c.0.s8 %v2199
      %v2201 = vlaneseq
      %v2202 = vshrl.u32 %v2201, 7
      %v2203 = vsub.s32 %v2200, %v2202
      %v2204 = vrot.slane %v2190, %v2203
      %v2205 = vcombine.low %v911, %v927
      %v2206 = vcombine.high %v911, %v927
      %v2208 = vunpack.c.l.s4 1983009808
      %v2209 = vunpack.c.0.s8 %v2208
      %v2210 = vlaneseq
      %v2211 = vshrl.u32 %v2210, 7
      %v2212 = vsub.s32 %v2209, %v2211
      %v2213 = vrot.slane %v2205, %v2212
      %v2215 = vunpack.c.l.s4 1983009808
      %v2216 = vunpack.c.0.s8 %v2215
      %v2217 = vlaneseq
      %v2218 = vshrl.u32 %v2217, 7
      %v2219 = vsub.s32 %v2216, %v2218
      %v2220 = vrot.slane %v2206, %v2219
      %v2221 = vcombine.low %v2165, %v2181
      %v2222 = vcombine.high %v2165, %v2181
      %v2224 = vunpack.c.l.s4 1934713408
      %v2225 = vunpack.c.0.s8 %v2224
      %v2226 = vlaneseq
      %v2227 = vshrl.u32 %v2226, 7
      %v2228 = vsub.s32 %v2225, %v2227
      %v2229 = vrot.slane %v2221, %v2228
      %v2231 = vunpack.c.l.s4 1934713408
      %v2232 = vunpack.c.0.s8 %v2231
      %v2233 = vlaneseq
      %v2234 = vshrl.u32 %v2233, 7
      %v2235 = vsub.s32 %v2232, %v2234
      %v2236 = vrot.slane %v2222, %v2235
      %v2237 = vcombine.low %v2172, %v2188
      %v2238 = vcombine.high %v2172, %v2188
      %v2240 = vunpack.c.l.s4 1934713408
      %v2241 = vunpack.c.0.s8 %v2240
      %v2242 = vlaneseq
      %v2243 = vshrl.u32 %v2242, 7
      %v2244 = vsub.s32 %v2241, %v2243
      %v2245 = vrot.slane %v2237, %v2244
      %v2247 = vunpack.c.l.s4 1934713408
      %v2248 = vunpack.c.0.s8 %v2247
      %v2249 = vlaneseq
      %v2250 = vshrl.u32 %v2249, 7
      %v2251 = vsub.s32 %v2248, %v2250
      %v2252 = vrot.slane %v2238, %v2251
      %v2253 = vcombine.low %v2197, %v2213
      %v2254 = vcombine.high %v2197, %v2213
      %v2256 = vunpack.c.l.s4 1934713408
      %v2257 = vunpack.c.0.s8 %v2256
      %v2258 = vlaneseq
      %v2259 = vshrl.u32 %v2258, 7
      %v2260 = vsub.s32 %v2257, %v2259
      %v2261 = vrot.slane %v2253, %v2260
      %v2263 = vunpack.c.l.s4 1934713408
      %v2264 = vunpack.c.0.s8 %v2263
      %v2265 = vlaneseq
      %v2266 = vshrl.u32 %v2265, 7
      %v2267 = vsub.s32 %v2264, %v2266
      %v2268 = vrot.slane %v2254, %v2267
      %v2269 = vcombine.low %v2204, %v2220
      %v2270 = vcombine.high %v2204, %v2220
      %v2272 = vunpack.c.l.s4 1934713408
      %v2273 = vunpack.c.0.s8 %v2272
      %v2274 = vlaneseq
      %v2275 = vshrl.u32 %v2274, 7
      %v2276 = vsub.s32 %v2273, %v2275
      %v2277 = vrot.slane %v2269, %v2276
      %v2279 = vunpack.c.l.s4 1934713408
      %v2280 = vunpack.c.0.s8 %v2279
      %v2281 = vlaneseq
      %v2282 = vshrl.u32 %v2281, 7
      %v2283 = vsub.s32 %v2280, %v2282
      %v2284 = vrot.slane %v2270, %v2283
      %v2285 = vcombine.low %v2229, %v2261
      %v2286 = vcombine.high %v2229, %v2261
      %v2287 = vcombine.low %v2236, %v2268
      %v2288 = vcombine.high %v2236, %v2268
      %v2289 = vcombine.low %v2245, %v2277
      %v2290 = vcombine.high %v2245, %v2277
      %v2291 = vcombine.low %v2252, %v2284
      %v2292 = vcombine.high %v2252, %v2284
      %v2293 = vcombine.low %v810, %v826
      %v2294 = vcombine.high %v810, %v826
      %v2296 = vunpack.c.l.s4 1983009808
      %v2297 = vunpack.c.0.s8 %v2296
      %v2298 = vlaneseq
      %v2299 = vshrl.u32 %v2298, 7
      %v2300 = vsub.s32 %v2297, %v2299
      %v2301 = vrot.slane %v2293, %v2300
      %v2303 = vunpack.c.l.s4 1983009808
      %v2304 = vunpack.c.0.s8 %v2303
      %v2305 = vlaneseq
      %v2306 = vshrl.u32 %v2305, 7
      %v2307 = vsub.s32 %v2304, %v2306
      %v2308 = vrot.slane %v2294, %v2307
      %v2309 = vcombine.low %v818, %v834
      %v2310 = vcombine.high %v818, %v834
      %v2312 = vunpack.c.l.s4 1983009808
      %v2313 = vunpack.c.0.s8 %v2312
      %v2314 = vlaneseq
      %v2315 = vshrl.u32 %v2314, 7
      %v2316 = vsub.s32 %v2313, %v2315
      %v2317 = vrot.slane %v2309, %v2316
      %v2319 = vunpack.c.l.s4 1983009808
      %v2320 = vunpack.c.0.s8 %v2319
      %v2321 = vlaneseq
      %v2322 = vshrl.u32 %v2321, 7
      %v2323 = vsub.s32 %v2320, %v2322
      %v2324 = vrot.slane %v2310, %v2323
      %v2325 = vcombine.low %v842, %v858
      %v2326 = vcombine.high %v842, %v858
      %v2328 = vunpack.c.l.s4 1983009808
      %v2329 = vunpack.c.0.s8 %v2328
      %v2330 = vlaneseq
      %v2331 = vshrl.u32 %v2330, 7
      %v2332 = vsub.s32 %v2329, %v2331
      %v2333 = vrot.slane %v2325, %v2332
      %v2335 = vunpack.c.l.s4 1983009808
      %v2336 = vunpack.c.0.s8 %v2335
      %v2337 = vlaneseq
      %v2338 = vshrl.u32 %v2337, 7
      %v2339 = vsub.s32 %v2336, %v2338
      %v2340 = vrot.slane %v2326, %v2339
      %v2341 = vcombine.low %v850, %v866
      %v2342 = vcombine.high %v850, %v866
      %v2344 = vunpack.c.l.s4 1983009808
      %v2345 = vunpack.c.0.s8 %v2344
      %v2346 = vlaneseq
      %v2347 = vshrl.u32 %v2346, 7
      %v2348 = vsub.s32 %v2345, %v2347
      %v2349 = vrot.slane %v2341, %v2348
      %v2351 = vunpack.c.l.s4 1983009808
      %v2352 = vunpack.c.0.s8 %v2351
      %v2353 = vlaneseq
      %v2354 = vshrl.u32 %v2353, 7
      %v2355 = vsub.s32 %v2352, %v2354
      %v2356 = vrot.slane %v2342, %v2355
      %v2357 = vcombine.low %v2301, %v2317
      %v2358 = vcombine.high %v2301, %v2317
      %v2360 = vunpack.c.l.s4 1934713408
      %v2361 = vunpack.c.0.s8 %v2360
      %v2362 = vlaneseq
      %v2363 = vshrl.u32 %v2362, 7
      %v2364 = vsub.s32 %v2361, %v2363
      %v2365 = vrot.slane %v2357, %v2364
      %v2367 = vunpack.c.l.s4 1934713408
      %v2368 = vunpack.c.0.s8 %v2367
      %v2369 = vlaneseq
      %v2370 = vshrl.u32 %v2369, 7
      %v2371 = vsub.s32 %v2368, %v2370
      %v2372 = vrot.slane %v2358, %v2371
      %v2373 = vcombine.low %v2308, %v2324
      %v2374 = vcombine.high %v2308, %v2324
      %v2376 = vunpack.c.l.s4 1934713408
      %v2377 = vunpack.c.0.s8 %v2376
      %v2378 = vlaneseq
      %v2379 = vshrl.u32 %v2378, 7
      %v2380 = vsub.s32 %v2377, %v2379
      %v2381 = vrot.slane %v2373, %v2380
      %v2383 = vunpack.c.l.s4 1934713408
      %v2384 = vunpack.c.0.s8 %v2383
      %v2385 = vlaneseq
      %v2386 = vshrl.u32 %v2385, 7
      %v2387 = vsub.s32 %v2384, %v2386
      %v2388 = vrot.slane %v2374, %v2387
      %v2389 = vcombine.low %v2333, %v2349
      %v2390 = vcombine.high %v2333, %v2349
      %v2392 = vunpack.c.l.s4 1934713408
      %v2393 = vunpack.c.0.s8 %v2392
      %v2394 = vlaneseq
      %v2395 = vshrl.u32 %v2394, 7
      %v2396 = vsub.s32 %v2393, %v2395
      %v2397 = vrot.slane %v2389, %v2396
      %v2399 = vunpack.c.l.s4 1934713408
      %v2400 = vunpack.c.0.s8 %v2399
      %v2401 = vlaneseq
      %v2402 = vshrl.u32 %v2401, 7
      %v2403 = vsub.s32 %v2400, %v2402
      %v2404 = vrot.slane %v2390, %v2403
      %v2405 = vcombine.low %v2340, %v2356
      %v2406 = vcombine.high %v2340, %v2356
      %v2408 = vunpack.c.l.s4 1934713408
      %v2409 = vunpack.c.0.s8 %v2408
      %v2410 = vlaneseq
      %v2411 = vshrl.u32 %v2410, 7
      %v2412 = vsub.s32 %v2409, %v2411
      %v2413 = vrot.slane %v2405, %v2412
      %v2415 = vunpack.c.l.s4 1934713408
      %v2416 = vunpack.c.0.s8 %v2415
      %v2417 = vlaneseq
      %v2418 = vshrl.u32 %v2417, 7
      %v2419 = vsub.s32 %v2416, %v2418
      %v2420 = vrot.slane %v2406, %v2419
      %v2421 = vcombine.low %v2365, %v2397
      %v2422 = vcombine.high %v2365, %v2397
      %v2423 = vcombine.low %v2372, %v2404
      %v2424 = vcombine.high %v2372, %v2404
      %v2425 = vcombine.low %v2381, %v2413
      %v2426 = vcombine.high %v2381, %v2413
      %v2427 = vcombine.low %v2388, %v2420
      %v2428 = vcombine.high %v2388, %v2420
      %v2429 = vcombine.low %v874, %v890
      %v2430 = vcombine.high %v874, %v890
      %v2432 = vunpack.c.l.s4 1983009808
      %v2433 = vunpack.c.0.s8 %v2432
      %v2434 = vlaneseq
      %v2435 = vshrl.u32 %v2434, 7
      %v2436 = vsub.s32 %v2433, %v2435
      %v2437 = vrot.slane %v2429, %v2436
      %v2439 = vunpack.c.l.s4 1983009808
      %v2440 = vunpack.c.0.s8 %v2439
      %v2441 = vlaneseq
      %v2442 = vshrl.u32 %v2441, 7
      %v2443 = vsub.s32 %v2440, %v2442
      %v2444 = vrot.slane %v2430, %v2443
      %v2445 = vcombine.low %v882, %v898
      %v2446 = vcombine.high %v882, %v898
      %v2448 = vunpack.c.l.s4 1983009808
      %v2449 = vunpack.c.0.s8 %v2448
      %v2450 = vlaneseq
      %v2451 = vshrl.u32 %v2450, 7
      %v2452 = vsub.s32 %v2449, %v2451
      %v2453 = vrot.slane %v2445, %v2452
      %v2455 = vunpack.c.l.s4 1983009808
      %v2456 = vunpack.c.0.s8 %v2455
      %v2457 = vlaneseq
      %v2458 = vshrl.u32 %v2457, 7
      %v2459 = vsub.s32 %v2456, %v2458
      %v2460 = vrot.slane %v2446, %v2459
      %v2461 = vcombine.low %v906, %v922
      %v2462 = vcombine.high %v906, %v922
      %v2464 = vunpack.c.l.s4 1983009808
      %v2465 = vunpack.c.0.s8 %v2464
      %v2466 = vlaneseq
      %v2467 = vshrl.u32 %v2466, 7
      %v2468 = vsub.s32 %v2465, %v2467
      %v2469 = vrot.slane %v2461, %v2468
      %v2471 = vunpack.c.l.s4 1983009808
      %v2472 = vunpack.c.0.s8 %v2471
      %v2473 = vlaneseq
      %v2474 = vshrl.u32 %v2473, 7
      %v2475 = vsub.s32 %v2472, %v2474
      %v2476 = vrot.slane %v2462, %v2475
      %v2477 = vcombine.low %v914, %v930
      %v2478 = vcombine.high %v914, %v930
      %v2480 = vunpack.c.l.s4 1983009808
      %v2481 = vunpack.c.0.s8 %v2480
      %v2482 = vlaneseq
      %v2483 = vshrl.u32 %v2482, 7
      %v2484 = vsub.s32 %v2481, %v2483
      %v2485 = vrot.slane %v2477, %v2484
      %v2487 = vunpack.c.l.s4 1983009808
      %v2488 = vunpack.c.0.s8 %v2487
      %v2489 = vlaneseq
      %v2490 = vshrl.u32 %v2489, 7
      %v2491 = vsub.s32 %v2488, %v2490
      %v2492 = vrot.slane %v2478, %v2491
      %v2493 = vcombine.low %v2437, %v2453
      %v2494 = vcombine.high %v2437, %v2453
      %v2496 = vunpack.c.l.s4 1934713408
      %v2497 = vunpack.c.0.s8 %v2496
      %v2498 = vlaneseq
      %v2499 = vshrl.u32 %v2498, 7
      %v2500 = vsub.s32 %v2497, %v2499
      %v2501 = vrot.slane %v2493, %v2500
      %v2503 = vunpack.c.l.s4 1934713408
      %v2504 = vunpack.c.0.s8 %v2503
      %v2505 = vlaneseq
      %v2506 = vshrl.u32 %v2505, 7
      %v2507 = vsub.s32 %v2504, %v2506
      %v2508 = vrot.slane %v2494, %v2507
      %v2509 = vcombine.low %v2444, %v2460
      %v2510 = vcombine.high %v2444, %v2460
      %v2512 = vunpack.c.l.s4 1934713408
      %v2513 = vunpack.c.0.s8 %v2512
      %v2514 = vlaneseq
      %v2515 = vshrl.u32 %v2514, 7
      %v2516 = vsub.s32 %v2513, %v2515
      %v2517 = vrot.slane %v2509, %v2516
      %v2519 = vunpack.c.l.s4 1934713408
      %v2520 = vunpack.c.0.s8 %v2519
      %v2521 = vlaneseq
      %v2522 = vshrl.u32 %v2521, 7
      %v2523 = vsub.s32 %v2520, %v2522
      %v2524 = vrot.slane %v2510, %v2523
      %v2525 = vcombine.low %v2469, %v2485
      %v2526 = vcombine.high %v2469, %v2485
      %v2528 = vunpack.c.l.s4 1934713408
      %v2529 = vunpack.c.0.s8 %v2528
      %v2530 = vlaneseq
      %v2531 = vshrl.u32 %v2530, 7
      %v2532 = vsub.s32 %v2529, %v2531
      %v2533 = vrot.slane %v2525, %v2532
      %v2535 = vunpack.c.l.s4 1934713408
      %v2536 = vunpack.c.0.s8 %v2535
      %v2537 = vlaneseq
      %v2538 = vshrl.u32 %v2537, 7
      %v2539 = vsub.s32 %v2536, %v2538
      %v2540 = vrot.slane %v2526, %v2539
      %v2541 = vcombine.low %v2476, %v2492
      %v2542 = vcombine.high %v2476, %v2492
      %v2544 = vunpack.c.l.s4 1934713408
      %v2545 = vunpack.c.0.s8 %v2544
      %v2546 = vlaneseq
      %v2547 = vshrl.u32 %v2546, 7
      %v2548 = vsub.s32 %v2545, %v2547
      %v2549 = vrot.slane %v2541, %v2548
      %v2551 = vunpack.c.l.s4 1934713408
      %v2552 = vunpack.c.0.s8 %v2551
      %v2553 = vlaneseq
      %v2554 = vshrl.u32 %v2553, 7
      %v2555 = vsub.s32 %v2552, %v2554
      %v2556 = vrot.slane %v2542, %v2555
      %v2557 = vcombine.low %v2501, %v2533
      %v2558 = vcombine.high %v2501, %v2533
      %v2559 = vcombine.low %v2508, %v2540
      %v2560 = vcombine.high %v2508, %v2540
      %v2561 = vcombine.low %v2517, %v2549
      %v2562 = vcombine.high %v2517, %v2549
      %v2563 = vcombine.low %v2524, %v2556
      %v2564 = vcombine.high %v2524, %v2556
      %v2565 = vpack.c.bf16 %v1197, %v1061
      %v2566 = vpack.c.bf16 %v1198, %v1062
      %v2567 = vpack.c.bf16 %v1199, %v1063
      %v2568 = vpack.c.bf16 %v1200, %v1064
      %v2569 = vpack.c.bf16 %v1201, %v1065
      %v2570 = vpack.c.bf16 %v1202, %v1066
      %v2571 = vpack.c.bf16 %v1203, %v1067
      %v2572 = vpack.c.bf16 %v1204, %v1068
      %v2573 = vpack.c.bf16 %v1469, %v1333
      %v2574 = vpack.c.bf16 %v1470, %v1334
      %v2575 = vpack.c.bf16 %v1471, %v1335
      %v2576 = vpack.c.bf16 %v1472, %v1336
      %v2577 = vpack.c.bf16 %v1473, %v1337
      %v2578 = vpack.c.bf16 %v1474, %v1338
      %v2579 = vpack.c.bf16 %v1475, %v1339
      %v2580 = vpack.c.bf16 %v1476, %v1340
      %v2581 = vpack.c.bf16 %v1741, %v1605
      %v2582 = vpack.c.bf16 %v1742, %v1606
      %v2583 = vpack.c.bf16 %v1743, %v1607
      %v2584 = vpack.c.bf16 %v1744, %v1608
      %v2585 = vpack.c.bf16 %v1745, %v1609
      %v2586 = vpack.c.bf16 %v1746, %v1610
      %v2587 = vpack.c.bf16 %v1747, %v1611
      %v2588 = vpack.c.bf16 %v1748, %v1612
      %v2589 = vpack.c.bf16 %v2013, %v1877
      %v2590 = vpack.c.bf16 %v2014, %v1878
      %v2591 = vpack.c.bf16 %v2015, %v1879
      %v2592 = vpack.c.bf16 %v2016, %v1880
      %v2593 = vpack.c.bf16 %v2017, %v1881
      %v2594 = vpack.c.bf16 %v2018, %v1882
      %v2595 = vpack.c.bf16 %v2019, %v1883
      %v2596 = vpack.c.bf16 %v2020, %v1884
      %vm2597 = vcmask 15360
      %v2599 = vsel %vm2597, %v2565, 0
      %v2602 = vsel %vm2597, %v2581, 0
      %2604 = vmatprep.subr.bf16.mxu0 0
      %2605 = vmatpush1.bf16.xpose.msra.mxu0 0
      %2606 = vmatprep.subr.bf16.mxu0 0
      %2607 = vmatpush1.bf16.xpose.msra.mxu0 0
      %2608 = vmatprep.subr.bf16.mxu0 0
      %2609 = vmatpush1.bf16.xpose.msra.mxu0 0
      %2610 = vmatprep.subr.bf16.mxu0 0
      %2611 = vmatpush1.bf16.xpose.msra.mxu0 0
      %2612 = vmatprep.subr.bf16.mxu0 0
      %2613 = vmatpush1.bf16.xpose.msra.mxu0 0
      %2614 = vmatprep.subr.bf16.mxu0 0
      %2615 = vmatpush1.bf16.xpose.msra.mxu0 0
      %2616 = vmatprep.subr.bf16.mxu0 0
      %2617 = vmatpush1.bf16.xpose.msra.mxu0 0
      %2618 = vmatprep.subr.bf16.mxu0 0
      %2619 = vmatpush1.bf16.xpose.msra.mxu0 %v2602
      %2620 = vmatprep.subr.bf16.mxu0 0
      %2621 = vmatpush2.bf16.xpose.msra.mxu0 0
      %2622 = vmatprep.subr.bf16.mxu0 0
      %2623 = vmatpush2.bf16.xpose.msra.mxu0 0
      %2624 = vmatprep.subr.bf16.mxu0 0
      %2625 = vmatpush2.bf16.xpose.msra.mxu0 0
      %2626 = vmatprep.subr.bf16.mxu0 0
      %2627 = vmatpush2.bf16.xpose.msra.mxu0 0
      %2628 = vmatprep.subr.bf16.mxu0 0
      %2629 = vmatpush2.bf16.xpose.msra.mxu0 0
      %2630 = vmatprep.subr.bf16.mxu0 0
      %2631 = vmatpush2.bf16.xpose.msra.mxu0 0
      %2632 = vmatprep.subr.bf16.mxu0 0
      %2633 = vmatpush2.bf16.xpose.msra.mxu0 0
      %2634 = vmatprep.subr.bf16.mxu0 0
      %2635 = vmatpush2.bf16.xpose.msra.mxu0 0
      %2636 = vmatprep.mubr.bf16.mxu0 0
      %2637 = vmatmul.mubr.bf16.gmra.mxu0 %v2599
      %v2638 = vpop.f32.mrf.mxu0
      %v2639 = vadd.f32 0.0, %v2638
      %v2640 = vpop.f32.mrf.mxu0
      %v2641 = vpop.f32.mrf.mxu0
      %v2642 = vadd.f32 0.0, %v2641
      %v2643 = vpop.f32.mrf.mxu0
      %2644 = vdwg.mxu0
      %v2646 = vsel %vm2597, %v2566, 0
      %v2649 = vsel %vm2597, %v2582, 0
      %2651 = vmatprep.subr.bf16.mxu0 0
      %2652 = vmatpush1.bf16.xpose.msra.mxu0 0
      %2653 = vmatprep.subr.bf16.mxu0 0
      %2654 = vmatpush1.bf16.xpose.msra.mxu0 0
      %2655 = vmatprep.subr.bf16.mxu0 0
      %2656 = vmatpush1.bf16.xpose.msra.mxu0 0
      %2657 = vmatprep.subr.bf16.mxu0 0
      %2658 = vmatpush1.bf16.xpose.msra.mxu0 0
      %2659 = vmatprep.subr.bf16.mxu0 0
      %2660 = vmatpush1.bf16.xpose.msra.mxu0 0
      %2661 = vmatprep.subr.bf16.mxu0 0
      %2662 = vmatpush1.bf16.xpose.msra.mxu0 0
      %2663 = vmatprep.subr.bf16.mxu0 0
      %2664 = vmatpush1.bf16.xpose.msra.mxu0 0
      %2665 = vmatprep.subr.bf16.mxu0 0
      %2666 = vmatpush1.bf16.xpose.msra.mxu0 %v2649
      %2667 = vmatprep.subr.bf16.mxu0 0
      %2668 = vmatpush2.bf16.xpose.msra.mxu0 0
      %2669 = vmatprep.subr.bf16.mxu0 0
      %2670 = vmatpush2.bf16.xpose.msra.mxu0 0
      %2671 = vmatprep.subr.bf16.mxu0 0
      %2672 = vmatpush2.bf16.xpose.msra.mxu0 0
      %2673 = vmatprep.subr.bf16.mxu0 0
      %2674 = vmatpush2.bf16.xpose.msra.mxu0 0
      %2675 = vmatprep.subr.bf16.mxu0 0
      %2676 = vmatpush2.bf16.xpose.msra.mxu0 0
      %2677 = vmatprep.subr.bf16.mxu0 0
      %2678 = vmatpush2.bf16.xpose.msra.mxu0 0
      %2679 = vmatprep.subr.bf16.mxu0 0
      %2680 = vmatpush2.bf16.xpose.msra.mxu0 0
      %2681 = vmatprep.subr.bf16.mxu0 0
      %2682 = vmatpush2.bf16.xpose.msra.mxu0 0
      %2683 = vmatprep.mubr.bf16.mxu0 0
      %2684 = vmatmul.mubr.bf16.gmra.mxu0 %v2646
      %v2685 = vpop.f32.mrf.mxu0
      %v2686 = vadd.f32 0.0, %v2685
      %v2687 = vpop.f32.mrf.mxu0
      %v2688 = vpop.f32.mrf.mxu0
      %v2689 = vadd.f32 0.0, %v2688
      %v2690 = vpop.f32.mrf.mxu0
      %2691 = vdwg.mxu0
      %v2693 = vsel %vm2597, %v2567, 0
      %v2696 = vsel %vm2597, %v2583, 0
      %2698 = vmatprep.subr.bf16.mxu0 0
      %2699 = vmatpush1.bf16.xpose.msra.mxu0 0
      %2700 = vmatprep.subr.bf16.mxu0 0
      %2701 = vmatpush1.bf16.xpose.msra.mxu0 0
      %2702 = vmatprep.subr.bf16.mxu0 0
      %2703 = vmatpush1.bf16.xpose.msra.mxu0 0
      %2704 = vmatprep.subr.bf16.mxu0 0
      %2705 = vmatpush1.bf16.xpose.msra.mxu0 0
      %2706 = vmatprep.subr.bf16.mxu0 0
      %2707 = vmatpush1.bf16.xpose.msra.mxu0 0
      %2708 = vmatprep.subr.bf16.mxu0 0
      %2709 = vmatpush1.bf16.xpose.msra.mxu0 0
      %2710 = vmatprep.subr.bf16.mxu0 0
      %2711 = vmatpush1.bf16.xpose.msra.mxu0 0
      %2712 = vmatprep.subr.bf16.mxu0 0
      %2713 = vmatpush1.bf16.xpose.msra.mxu0 %v2696
      %2714 = vmatprep.subr.bf16.mxu0 0
      %2715 = vmatpush2.bf16.xpose.msra.mxu0 0
      %2716 = vmatprep.subr.bf16.mxu0 0
      %2717 = vmatpush2.bf16.xpose.msra.mxu0 0
      %2718 = vmatprep.subr.bf16.mxu0 0
      %2719 = vmatpush2.bf16.xpose.msra.mxu0 0
      %2720 = vmatprep.subr.bf16.mxu0 0
      %2721 = vmatpush2.bf16.xpose.msra.mxu0 0
      %2722 = vmatprep.subr.bf16.mxu0 0
      %2723 = vmatpush2.bf16.xpose.msra.mxu0 0
      %2724 = vmatprep.subr.bf16.mxu0 0
      %2725 = vmatpush2.bf16.xpose.msra.mxu0 0
      %2726 = vmatprep.subr.bf16.mxu0 0
      %2727 = vmatpush2.bf16.xpose.msra.mxu0 0
      %2728 = vmatprep.subr.bf16.mxu0 0
      %2729 = vmatpush2.bf16.xpose.msra.mxu0 0
      %2730 = vmatprep.mubr.bf16.mxu0 0
      %2731 = vmatmul.mubr.bf16.gmra.mxu0 %v2693
      %v2732 = vpop.f32.mrf.mxu0
      %v2733 = vadd.f32 0.0, %v2732
      %v2734 = vpop.f32.mrf.mxu0
      %v2735 = vpop.f32.mrf.mxu0
      %v2736 = vadd.f32 0.0, %v2735
      %v2737 = vpop.f32.mrf.mxu0
      %2738 = vdwg.mxu0
      %v2740 = vsel %vm2597, %v2568, 0
      %v2743 = vsel %vm2597, %v2584, 0
      %2745 = vmatprep.subr.bf16.mxu0 0
      %2746 = vmatpush1.bf16.xpose.msra.mxu0 0
      %2747 = vmatprep.subr.bf16.mxu0 0
      %2748 = vmatpush1.bf16.xpose.msra.mxu0 0
      %2749 = vmatprep.subr.bf16.mxu0 0
      %2750 = vmatpush1.bf16.xpose.msra.mxu0 0
      %2751 = vmatprep.subr.bf16.mxu0 0
      %2752 = vmatpush1.bf16.xpose.msra.mxu0 0
      %2753 = vmatprep.subr.bf16.mxu0 0
      %2754 = vmatpush1.bf16.xpose.msra.mxu0 0
      %2755 = vmatprep.subr.bf16.mxu0 0
      %2756 = vmatpush1.bf16.xpose.msra.mxu0 0
      %2757 = vmatprep.subr.bf16.mxu0 0
      %2758 = vmatpush1.bf16.xpose.msra.mxu0 0
      %2759 = vmatprep.subr.bf16.mxu0 0
      %2760 = vmatpush1.bf16.xpose.msra.mxu0 %v2743
      %2761 = vmatprep.subr.bf16.mxu0 0
      %2762 = vmatpush2.bf16.xpose.msra.mxu0 0
      %2763 = vmatprep.subr.bf16.mxu0 0
      %2764 = vmatpush2.bf16.xpose.msra.mxu0 0
      %2765 = vmatprep.subr.bf16.mxu0 0
      %2766 = vmatpush2.bf16.xpose.msra.mxu0 0
      %2767 = vmatprep.subr.bf16.mxu0 0
      %2768 = vmatpush2.bf16.xpose.msra.mxu0 0
      %2769 = vmatprep.subr.bf16.mxu0 0
      %2770 = vmatpush2.bf16.xpose.msra.mxu0 0
      %2771 = vmatprep.subr.bf16.mxu0 0
      %2772 = vmatpush2.bf16.xpose.msra.mxu0 0
      %2773 = vmatprep.subr.bf16.mxu0 0
      %2774 = vmatpush2.bf16.xpose.msra.mxu0 0
      %2775 = vmatprep.subr.bf16.mxu0 0
      %2776 = vmatpush2.bf16.xpose.msra.mxu0 0
      %2777 = vmatprep.mubr.bf16.mxu0 0
      %2778 = vmatmul.mubr.bf16.gmra.mxu0 %v2740
      %v2779 = vpop.f32.mrf.mxu0
      %v2780 = vadd.f32 0.0, %v2779
      %v2781 = vpop.f32.mrf.mxu0
      %v2782 = vpop.f32.mrf.mxu0
      %v2783 = vadd.f32 0.0, %v2782
      %v2784 = vpop.f32.mrf.mxu0
      %2785 = vdwg.mxu0
      %v2787 = vsel %vm2597, %v2569, 0
      %v2790 = vsel %vm2597, %v2585, 0
      %2792 = vmatprep.subr.bf16.mxu0 0
      %2793 = vmatpush1.bf16.xpose.msra.mxu0 0
      %2794 = vmatprep.subr.bf16.mxu0 0
      %2795 = vmatpush1.bf16.xpose.msra.mxu0 0
      %2796 = vmatprep.subr.bf16.mxu0 0
      %2797 = vmatpush1.bf16.xpose.msra.mxu0 0
      %2798 = vmatprep.subr.bf16.mxu0 0
      %2799 = vmatpush1.bf16.xpose.msra.mxu0 0
      %2800 = vmatprep.subr.bf16.mxu0 0
      %2801 = vmatpush1.bf16.xpose.msra.mxu0 0
      %2802 = vmatprep.subr.bf16.mxu0 0
      %2803 = vmatpush1.bf16.xpose.msra.mxu0 0
      %2804 = vmatprep.subr.bf16.mxu0 0
      %2805 = vmatpush1.bf16.xpose.msra.mxu0 0
      %2806 = vmatprep.subr.bf16.mxu0 0
      %2807 = vmatpush1.bf16.xpose.msra.mxu0 %v2790
      %2808 = vmatprep.subr.bf16.mxu0 0
      %2809 = vmatpush2.bf16.xpose.msra.mxu0 0
      %2810 = vmatprep.subr.bf16.mxu0 0
      %2811 = vmatpush2.bf16.xpose.msra.mxu0 0
      %2812 = vmatprep.subr.bf16.mxu0 0
      %2813 = vmatpush2.bf16.xpose.msra.mxu0 0
      %2814 = vmatprep.subr.bf16.mxu0 0
      %2815 = vmatpush2.bf16.xpose.msra.mxu0 0
      %2816 = vmatprep.subr.bf16.mxu0 0
      %2817 = vmatpush2.bf16.xpose.msra.mxu0 0
      %2818 = vmatprep.subr.bf16.mxu0 0
      %2819 = vmatpush2.bf16.xpose.msra.mxu0 0
      %2820 = vmatprep.subr.bf16.mxu0 0
      %2821 = vmatpush2.bf16.xpose.msra.mxu0 0
      %2822 = vmatprep.subr.bf16.mxu0 0
      %2823 = vmatpush2.bf16.xpose.msra.mxu0 0
      %2824 = vmatprep.mubr.bf16.mxu0 0
      %2825 = vmatmul.mubr.bf16.gmra.mxu0 %v2787
      %v2826 = vpop.f32.mrf.mxu0
      %v2827 = vadd.f32 0.0, %v2826
      %v2828 = vpop.f32.mrf.mxu0
      %v2829 = vpop.f32.mrf.mxu0
      %v2830 = vadd.f32 0.0, %v2829
      %v2831 = vpop.f32.mrf.mxu0
      %2832 = vdwg.mxu0
      %v2834 = vsel %vm2597, %v2570, 0
      %v2837 = vsel %vm2597, %v2586, 0
      %2839 = vmatprep.subr.bf16.mxu0 0
      %2840 = vmatpush1.bf16.xpose.msra.mxu0 0
      %2841 = vmatprep.subr.bf16.mxu0 0
      %2842 = vmatpush1.bf16.xpose.msra.mxu0 0
      %2843 = vmatprep.subr.bf16.mxu0 0
      %2844 = vmatpush1.bf16.xpose.msra.mxu0 0
      %2845 = vmatprep.subr.bf16.mxu0 0
      %2846 = vmatpush1.bf16.xpose.msra.mxu0 0
      %2847 = vmatprep.subr.bf16.mxu0 0
      %2848 = vmatpush1.bf16.xpose.msra.mxu0 0
      %2849 = vmatprep.subr.bf16.mxu0 0
      %2850 = vmatpush1.bf16.xpose.msra.mxu0 0
      %2851 = vmatprep.subr.bf16.mxu0 0
      %2852 = vmatpush1.bf16.xpose.msra.mxu0 0
      %2853 = vmatprep.subr.bf16.mxu0 0
      %2854 = vmatpush1.bf16.xpose.msra.mxu0 %v2837
      %2855 = vmatprep.subr.bf16.mxu0 0
      %2856 = vmatpush2.bf16.xpose.msra.mxu0 0
      %2857 = vmatprep.subr.bf16.mxu0 0
      %2858 = vmatpush2.bf16.xpose.msra.mxu0 0
      %2859 = vmatprep.subr.bf16.mxu0 0
      %2860 = vmatpush2.bf16.xpose.msra.mxu0 0
      %2861 = vmatprep.subr.bf16.mxu0 0
      %2862 = vmatpush2.bf16.xpose.msra.mxu0 0
      %2863 = vmatprep.subr.bf16.mxu0 0
      %2864 = vmatpush2.bf16.xpose.msra.mxu0 0
      %2865 = vmatprep.subr.bf16.mxu0 0
      %2866 = vmatpush2.bf16.xpose.msra.mxu0 0
      %2867 = vmatprep.subr.bf16.mxu0 0
      %2868 = vmatpush2.bf16.xpose.msra.mxu0 0
      %2869 = vmatprep.subr.bf16.mxu0 0
      %2870 = vmatpush2.bf16.xpose.msra.mxu0 0
      %2871 = vmatprep.mubr.bf16.mxu0 0
      %2872 = vmatmul.mubr.bf16.gmra.mxu0 %v2834
      %v2873 = vpop.f32.mrf.mxu0
      %v2874 = vadd.f32 0.0, %v2873
      %v2875 = vpop.f32.mrf.mxu0
      %v2876 = vpop.f32.mrf.mxu0
      %v2877 = vadd.f32 0.0, %v2876
      %v2878 = vpop.f32.mrf.mxu0
      %2879 = vdwg.mxu0
      %v2881 = vsel %vm2597, %v2571, 0
      %v2884 = vsel %vm2597, %v2587, 0
      %2886 = vmatprep.subr.bf16.mxu0 0
      %2887 = vmatpush1.bf16.xpose.msra.mxu0 0
      %2888 = vmatprep.subr.bf16.mxu0 0
      %2889 = vmatpush1.bf16.xpose.msra.mxu0 0
      %2890 = vmatprep.subr.bf16.mxu0 0
      %2891 = vmatpush1.bf16.xpose.msra.mxu0 0
      %2892 = vmatprep.subr.bf16.mxu0 0
      %2893 = vmatpush1.bf16.xpose.msra.mxu0 0
      %2894 = vmatprep.subr.bf16.mxu0 0
      %2895 = vmatpush1.bf16.xpose.msra.mxu0 0
      %2896 = vmatprep.subr.bf16.mxu0 0
      %2897 = vmatpush1.bf16.xpose.msra.mxu0 0
      %2898 = vmatprep.subr.bf16.mxu0 0
      %2899 = vmatpush1.bf16.xpose.msra.mxu0 0
      %2900 = vmatprep.subr.bf16.mxu0 0
      %2901 = vmatpush1.bf16.xpose.msra.mxu0 %v2884
      %2902 = vmatprep.subr.bf16.mxu0 0
      %2903 = vmatpush2.bf16.xpose.msra.mxu0 0
      %2904 = vmatprep.subr.bf16.mxu0 0
      %2905 = vmatpush2.bf16.xpose.msra.mxu0 0
      %2906 = vmatprep.subr.bf16.mxu0 0
      %2907 = vmatpush2.bf16.xpose.msra.mxu0 0
      %2908 = vmatprep.subr.bf16.mxu0 0
      %2909 = vmatpush2.bf16.xpose.msra.mxu0 0
      %2910 = vmatprep.subr.bf16.mxu0 0
      %2911 = vmatpush2.bf16.xpose.msra.mxu0 0
      %2912 = vmatprep.subr.bf16.mxu0 0
      %2913 = vmatpush2.bf16.xpose.msra.mxu0 0
      %2914 = vmatprep.subr.bf16.mxu0 0
      %2915 = vmatpush2.bf16.xpose.msra.mxu0 0
      %2916 = vmatprep.subr.bf16.mxu0 0
      %2917 = vmatpush2.bf16.xpose.msra.mxu0 0
      %2918 = vmatprep.mubr.bf16.mxu0 0
      %2919 = vmatmul.mubr.bf16.gmra.mxu0 %v2881
      %v2920 = vpop.f32.mrf.mxu0
      %v2921 = vadd.f32 0.0, %v2920
      %v2922 = vpop.f32.mrf.mxu0
      %v2923 = vpop.f32.mrf.mxu0
      %v2924 = vadd.f32 0.0, %v2923
      %v2925 = vpop.f32.mrf.mxu0
      %2926 = vdwg.mxu0
      %v2928 = vsel %vm2597, %v2572, 0
      %v2931 = vsel %vm2597, %v2588, 0
      %2933 = vmatprep.subr.bf16.mxu0 0
      %2934 = vmatpush1.bf16.xpose.msra.mxu0 0
      %2935 = vmatprep.subr.bf16.mxu0 0
      %2936 = vmatpush1.bf16.xpose.msra.mxu0 0
      %2937 = vmatprep.subr.bf16.mxu0 0
      %2938 = vmatpush1.bf16.xpose.msra.mxu0 0
      %2939 = vmatprep.subr.bf16.mxu0 0
      %2940 = vmatpush1.bf16.xpose.msra.mxu0 0
      %2941 = vmatprep.subr.bf16.mxu0 0
      %2942 = vmatpush1.bf16.xpose.msra.mxu0 0
      %2943 = vmatprep.subr.bf16.mxu0 0
      %2944 = vmatpush1.bf16.xpose.msra.mxu0 0
      %2945 = vmatprep.subr.bf16.mxu0 0
      %2946 = vmatpush1.bf16.xpose.msra.mxu0 0
      %2947 = vmatprep.subr.bf16.mxu0 0
      %2948 = vmatpush1.bf16.xpose.msra.mxu0 %v2931
      %2949 = vmatprep.subr.bf16.mxu0 0
      %2950 = vmatpush2.bf16.xpose.msra.mxu0 0
      %2951 = vmatprep.subr.bf16.mxu0 0
      %2952 = vmatpush2.bf16.xpose.msra.mxu0 0
      %2953 = vmatprep.subr.bf16.mxu0 0
      %2954 = vmatpush2.bf16.xpose.msra.mxu0 0
      %2955 = vmatprep.subr.bf16.mxu0 0
      %2956 = vmatpush2.bf16.xpose.msra.mxu0 0
      %2957 = vmatprep.subr.bf16.mxu0 0
      %2958 = vmatpush2.bf16.xpose.msra.mxu0 0
      %2959 = vmatprep.subr.bf16.mxu0 0
      %2960 = vmatpush2.bf16.xpose.msra.mxu0 0
      %2961 = vmatprep.subr.bf16.mxu0 0
      %2962 = vmatpush2.bf16.xpose.msra.mxu0 0
      %2963 = vmatprep.subr.bf16.mxu0 0
      %2964 = vmatpush2.bf16.xpose.msra.mxu0 0
      %2965 = vmatprep.mubr.bf16.mxu0 0
      %2966 = vmatmul.mubr.bf16.gmra.mxu0 %v2928
      %v2967 = vpop.f32.mrf.mxu0
      %v2968 = vadd.f32 0.0, %v2967
      %v2969 = vpop.f32.mrf.mxu0
      %v2970 = vpop.f32.mrf.mxu0
      %v2971 = vadd.f32 0.0, %v2970
      %v2972 = vpop.f32.mrf.mxu0
      %2973 = vdwg.mxu0
      %v2975 = vsel %vm2597, %v2573, 0
      %v2978 = vsel %vm2597, %v2589, 0
      %2980 = vmatprep.subr.bf16.mxu0 0
      %2981 = vmatpush1.bf16.xpose.msra.mxu0 0
      %2982 = vmatprep.subr.bf16.mxu0 0
      %2983 = vmatpush1.bf16.xpose.msra.mxu0 0
      %2984 = vmatprep.subr.bf16.mxu0 0
      %2985 = vmatpush1.bf16.xpose.msra.mxu0 0
      %2986 = vmatprep.subr.bf16.mxu0 0
      %2987 = vmatpush1.bf16.xpose.msra.mxu0 0
      %2988 = vmatprep.subr.bf16.mxu0 0
      %2989 = vmatpush1.bf16.xpose.msra.mxu0 0
      %2990 = vmatprep.subr.bf16.mxu0 0
      %2991 = vmatpush1.bf16.xpose.msra.mxu0 0
      %2992 = vmatprep.subr.bf16.mxu0 0
      %2993 = vmatpush1.bf16.xpose.msra.mxu0 0
      %2994 = vmatprep.subr.bf16.mxu0 0
      %2995 = vmatpush1.bf16.xpose.msra.mxu0 %v2978
      %2996 = vmatprep.subr.bf16.mxu0 0
      %2997 = vmatpush2.bf16.xpose.msra.mxu0 0
      %2998 = vmatprep.subr.bf16.mxu0 0
      %2999 = vmatpush2.bf16.xpose.msra.mxu0 0
      %3000 = vmatprep.subr.bf16.mxu0 0
      %3001 = vmatpush2.bf16.xpose.msra.mxu0 0
      %3002 = vmatprep.subr.bf16.mxu0 0
      %3003 = vmatpush2.bf16.xpose.msra.mxu0 0
      %3004 = vmatprep.subr.bf16.mxu0 0
      %3005 = vmatpush2.bf16.xpose.msra.mxu0 0
      %3006 = vmatprep.subr.bf16.mxu0 0
      %3007 = vmatpush2.bf16.xpose.msra.mxu0 0
      %3008 = vmatprep.subr.bf16.mxu0 0
      %3009 = vmatpush2.bf16.xpose.msra.mxu0 0
      %3010 = vmatprep.subr.bf16.mxu0 0
      %3011 = vmatpush2.bf16.xpose.msra.mxu0 0
      %3012 = vmatprep.mubr.bf16.mxu0 0
      %3013 = vmatmul.mubr.bf16.gmra.mxu0 %v2975
      %v3014 = vpop.f32.mrf.mxu0
      %v3015 = vadd.f32 0.0, %v3014
      %v3016 = vpop.f32.mrf.mxu0
      %v3017 = vpop.f32.mrf.mxu0
      %v3018 = vadd.f32 0.0, %v3017
      %v3019 = vpop.f32.mrf.mxu0
      %3020 = vdwg.mxu0
      %v3022 = vsel %vm2597, %v2574, 0
      %v3025 = vsel %vm2597, %v2590, 0
      %3027 = vmatprep.subr.bf16.mxu0 0
      %3028 = vmatpush1.bf16.xpose.msra.mxu0 0
      %3029 = vmatprep.subr.bf16.mxu0 0
      %3030 = vmatpush1.bf16.xpose.msra.mxu0 0
      %3031 = vmatprep.subr.bf16.mxu0 0
      %3032 = vmatpush1.bf16.xpose.msra.mxu0 0
      %3033 = vmatprep.subr.bf16.mxu0 0
      %3034 = vmatpush1.bf16.xpose.msra.mxu0 0
      %3035 = vmatprep.subr.bf16.mxu0 0
      %3036 = vmatpush1.bf16.xpose.msra.mxu0 0
      %3037 = vmatprep.subr.bf16.mxu0 0
      %3038 = vmatpush1.bf16.xpose.msra.mxu0 0
      %3039 = vmatprep.subr.bf16.mxu0 0
      %3040 = vmatpush1.bf16.xpose.msra.mxu0 0
      %3041 = vmatprep.subr.bf16.mxu0 0
      %3042 = vmatpush1.bf16.xpose.msra.mxu0 %v3025
      %3043 = vmatprep.subr.bf16.mxu0 0
      %3044 = vmatpush2.bf16.xpose.msra.mxu0 0
      %3045 = vmatprep.subr.bf16.mxu0 0
      %3046 = vmatpush2.bf16.xpose.msra.mxu0 0
      %3047 = vmatprep.subr.bf16.mxu0 0
      %3048 = vmatpush2.bf16.xpose.msra.mxu0 0
      %3049 = vmatprep.subr.bf16.mxu0 0
      %3050 = vmatpush2.bf16.xpose.msra.mxu0 0
      %3051 = vmatprep.subr.bf16.mxu0 0
      %3052 = vmatpush2.bf16.xpose.msra.mxu0 0
      %3053 = vmatprep.subr.bf16.mxu0 0
      %3054 = vmatpush2.bf16.xpose.msra.mxu0 0
      %3055 = vmatprep.subr.bf16.mxu0 0
      %3056 = vmatpush2.bf16.xpose.msra.mxu0 0
      %3057 = vmatprep.subr.bf16.mxu0 0
      %3058 = vmatpush2.bf16.xpose.msra.mxu0 0
      %3059 = vmatprep.mubr.bf16.mxu0 0
      %3060 = vmatmul.mubr.bf16.gmra.mxu0 %v3022
      %v3061 = vpop.f32.mrf.mxu0
      %v3062 = vadd.f32 0.0, %v3061
      %v3063 = vpop.f32.mrf.mxu0
      %v3064 = vpop.f32.mrf.mxu0
      %v3065 = vadd.f32 0.0, %v3064
      %v3066 = vpop.f32.mrf.mxu0
      %3067 = vdwg.mxu0
      %v3069 = vsel %vm2597, %v2575, 0
      %v3072 = vsel %vm2597, %v2591, 0
      %3074 = vmatprep.subr.bf16.mxu0 0
      %3075 = vmatpush1.bf16.xpose.msra.mxu0 0
      %3076 = vmatprep.subr.bf16.mxu0 0
      %3077 = vmatpush1.bf16.xpose.msra.mxu0 0
      %3078 = vmatprep.subr.bf16.mxu0 0
      %3079 = vmatpush1.bf16.xpose.msra.mxu0 0
      %3080 = vmatprep.subr.bf16.mxu0 0
      %3081 = vmatpush1.bf16.xpose.msra.mxu0 0
      %3082 = vmatprep.subr.bf16.mxu0 0
      %3083 = vmatpush1.bf16.xpose.msra.mxu0 0
      %3084 = vmatprep.subr.bf16.mxu0 0
      %3085 = vmatpush1.bf16.xpose.msra.mxu0 0
      %3086 = vmatprep.subr.bf16.mxu0 0
      %3087 = vmatpush1.bf16.xpose.msra.mxu0 0
      %3088 = vmatprep.subr.bf16.mxu0 0
      %3089 = vmatpush1.bf16.xpose.msra.mxu0 %v3072
      %3090 = vmatprep.subr.bf16.mxu0 0
      %3091 = vmatpush2.bf16.xpose.msra.mxu0 0
      %3092 = vmatprep.subr.bf16.mxu0 0
      %3093 = vmatpush2.bf16.xpose.msra.mxu0 0
      %3094 = vmatprep.subr.bf16.mxu0 0
      %3095 = vmatpush2.bf16.xpose.msra.mxu0 0
      %3096 = vmatprep.subr.bf16.mxu0 0
      %3097 = vmatpush2.bf16.xpose.msra.mxu0 0
      %3098 = vmatprep.subr.bf16.mxu0 0
      %3099 = vmatpush2.bf16.xpose.msra.mxu0 0
      %3100 = vmatprep.subr.bf16.mxu0 0
      %3101 = vmatpush2.bf16.xpose.msra.mxu0 0
      %3102 = vmatprep.subr.bf16.mxu0 0
      %3103 = vmatpush2.bf16.xpose.msra.mxu0 0
      %3104 = vmatprep.subr.bf16.mxu0 0
      %3105 = vmatpush2.bf16.xpose.msra.mxu0 0
      %3106 = vmatprep.mubr.bf16.mxu0 0
      %3107 = vmatmul.mubr.bf16.gmra.mxu0 %v3069
      %v3108 = vpop.f32.mrf.mxu0
      %v3109 = vadd.f32 0.0, %v3108
      %v3110 = vpop.f32.mrf.mxu0
      %v3111 = vpop.f32.mrf.mxu0
      %v3112 = vadd.f32 0.0, %v3111
      %v3113 = vpop.f32.mrf.mxu0
      %3114 = vdwg.mxu0
      %v3116 = vsel %vm2597, %v2576, 0
      %v3119 = vsel %vm2597, %v2592, 0
      %3121 = vmatprep.subr.bf16.mxu0 0
      %3122 = vmatpush1.bf16.xpose.msra.mxu0 0
      %3123 = vmatprep.subr.bf16.mxu0 0
      %3124 = vmatpush1.bf16.xpose.msra.mxu0 0
      %3125 = vmatprep.subr.bf16.mxu0 0
      %3126 = vmatpush1.bf16.xpose.msra.mxu0 0
      %3127 = vmatprep.subr.bf16.mxu0 0
      %3128 = vmatpush1.bf16.xpose.msra.mxu0 0
      %3129 = vmatprep.subr.bf16.mxu0 0
      %3130 = vmatpush1.bf16.xpose.msra.mxu0 0
      %3131 = vmatprep.subr.bf16.mxu0 0
      %3132 = vmatpush1.bf16.xpose.msra.mxu0 0
      %3133 = vmatprep.subr.bf16.mxu0 0
      %3134 = vmatpush1.bf16.xpose.msra.mxu0 0
      %3135 = vmatprep.subr.bf16.mxu0 0
      %3136 = vmatpush1.bf16.xpose.msra.mxu0 %v3119
      %3137 = vmatprep.subr.bf16.mxu0 0
      %3138 = vmatpush2.bf16.xpose.msra.mxu0 0
      %3139 = vmatprep.subr.bf16.mxu0 0
      %3140 = vmatpush2.bf16.xpose.msra.mxu0 0
      %3141 = vmatprep.subr.bf16.mxu0 0
      %3142 = vmatpush2.bf16.xpose.msra.mxu0 0
      %3143 = vmatprep.subr.bf16.mxu0 0
      %3144 = vmatpush2.bf16.xpose.msra.mxu0 0
      %3145 = vmatprep.subr.bf16.mxu0 0
      %3146 = vmatpush2.bf16.xpose.msra.mxu0 0
      %3147 = vmatprep.subr.bf16.mxu0 0
      %3148 = vmatpush2.bf16.xpose.msra.mxu0 0
      %3149 = vmatprep.subr.bf16.mxu0 0
      %3150 = vmatpush2.bf16.xpose.msra.mxu0 0
      %3151 = vmatprep.subr.bf16.mxu0 0
      %3152 = vmatpush2.bf16.xpose.msra.mxu0 0
      %3153 = vmatprep.mubr.bf16.mxu0 0
      %3154 = vmatmul.mubr.bf16.gmra.mxu0 %v3116
      %v3155 = vpop.f32.mrf.mxu0
      %v3156 = vadd.f32 0.0, %v3155
      %v3157 = vpop.f32.mrf.mxu0
      %v3158 = vpop.f32.mrf.mxu0
      %v3159 = vadd.f32 0.0, %v3158
      %v3160 = vpop.f32.mrf.mxu0
      %3161 = vdwg.mxu0
      %v3163 = vsel %vm2597, %v2577, 0
      %v3166 = vsel %vm2597, %v2593, 0
      %3168 = vmatprep.subr.bf16.mxu0 0
      %3169 = vmatpush1.bf16.xpose.msra.mxu0 0
      %3170 = vmatprep.subr.bf16.mxu0 0
      %3171 = vmatpush1.bf16.xpose.msra.mxu0 0
      %3172 = vmatprep.subr.bf16.mxu0 0
      %3173 = vmatpush1.bf16.xpose.msra.mxu0 0
      %3174 = vmatprep.subr.bf16.mxu0 0
      %3175 = vmatpush1.bf16.xpose.msra.mxu0 0
      %3176 = vmatprep.subr.bf16.mxu0 0
      %3177 = vmatpush1.bf16.xpose.msra.mxu0 0
      %3178 = vmatprep.subr.bf16.mxu0 0
      %3179 = vmatpush1.bf16.xpose.msra.mxu0 0
      %3180 = vmatprep.subr.bf16.mxu0 0
      %3181 = vmatpush1.bf16.xpose.msra.mxu0 0
      %3182 = vmatprep.subr.bf16.mxu0 0
      %3183 = vmatpush1.bf16.xpose.msra.mxu0 %v3166
      %3184 = vmatprep.subr.bf16.mxu0 0
      %3185 = vmatpush2.bf16.xpose.msra.mxu0 0
      %3186 = vmatprep.subr.bf16.mxu0 0
      %3187 = vmatpush2.bf16.xpose.msra.mxu0 0
      %3188 = vmatprep.subr.bf16.mxu0 0
      %3189 = vmatpush2.bf16.xpose.msra.mxu0 0
      %3190 = vmatprep.subr.bf16.mxu0 0
      %3191 = vmatpush2.bf16.xpose.msra.mxu0 0
      %3192 = vmatprep.subr.bf16.mxu0 0
      %3193 = vmatpush2.bf16.xpose.msra.mxu0 0
      %3194 = vmatprep.subr.bf16.mxu0 0
      %3195 = vmatpush2.bf16.xpose.msra.mxu0 0
      %3196 = vmatprep.subr.bf16.mxu0 0
      %3197 = vmatpush2.bf16.xpose.msra.mxu0 0
      %3198 = vmatprep.subr.bf16.mxu0 0
      %3199 = vmatpush2.bf16.xpose.msra.mxu0 0
      %3200 = vmatprep.mubr.bf16.mxu0 0
      %3201 = vmatmul.mubr.bf16.gmra.mxu0 %v3163
      %v3202 = vpop.f32.mrf.mxu0
      %v3203 = vadd.f32 0.0, %v3202
      %v3204 = vpop.f32.mrf.mxu0
      %v3205 = vpop.f32.mrf.mxu0
      %v3206 = vadd.f32 0.0, %v3205
      %v3207 = vpop.f32.mrf.mxu0
      %3208 = vdwg.mxu0
      %v3210 = vsel %vm2597, %v2578, 0
      %v3213 = vsel %vm2597, %v2594, 0
      %3215 = vmatprep.subr.bf16.mxu0 0
      %3216 = vmatpush1.bf16.xpose.msra.mxu0 0
      %3217 = vmatprep.subr.bf16.mxu0 0
      %3218 = vmatpush1.bf16.xpose.msra.mxu0 0
      %3219 = vmatprep.subr.bf16.mxu0 0
      %3220 = vmatpush1.bf16.xpose.msra.mxu0 0
      %3221 = vmatprep.subr.bf16.mxu0 0
      %3222 = vmatpush1.bf16.xpose.msra.mxu0 0
      %3223 = vmatprep.subr.bf16.mxu0 0
      %3224 = vmatpush1.bf16.xpose.msra.mxu0 0
      %3225 = vmatprep.subr.bf16.mxu0 0
      %3226 = vmatpush1.bf16.xpose.msra.mxu0 0
      %3227 = vmatprep.subr.bf16.mxu0 0
      %3228 = vmatpush1.bf16.xpose.msra.mxu0 0
      %3229 = vmatprep.subr.bf16.mxu0 0
      %3230 = vmatpush1.bf16.xpose.msra.mxu0 %v3213
      %3231 = vmatprep.subr.bf16.mxu0 0
      %3232 = vmatpush2.bf16.xpose.msra.mxu0 0
      %3233 = vmatprep.subr.bf16.mxu0 0
      %3234 = vmatpush2.bf16.xpose.msra.mxu0 0
      %3235 = vmatprep.subr.bf16.mxu0 0
      %3236 = vmatpush2.bf16.xpose.msra.mxu0 0
      %3237 = vmatprep.subr.bf16.mxu0 0
      %3238 = vmatpush2.bf16.xpose.msra.mxu0 0
      %3239 = vmatprep.subr.bf16.mxu0 0
      %3240 = vmatpush2.bf16.xpose.msra.mxu0 0
      %3241 = vmatprep.subr.bf16.mxu0 0
      %3242 = vmatpush2.bf16.xpose.msra.mxu0 0
      %3243 = vmatprep.subr.bf16.mxu0 0
      %3244 = vmatpush2.bf16.xpose.msra.mxu0 0
      %3245 = vmatprep.subr.bf16.mxu0 0
      %3246 = vmatpush2.bf16.xpose.msra.mxu0 0
      %3247 = vmatprep.mubr.bf16.mxu0 0
      %3248 = vmatmul.mubr.bf16.gmra.mxu0 %v3210
      %v3249 = vpop.f32.mrf.mxu0
      %v3250 = vadd.f32 0.0, %v3249
      %v3251 = vpop.f32.mrf.mxu0
      %v3252 = vpop.f32.mrf.mxu0
      %v3253 = vadd.f32 0.0, %v3252
      %v3254 = vpop.f32.mrf.mxu0
      %3255 = vdwg.mxu0
      %v3257 = vsel %vm2597, %v2579, 0
      %v3260 = vsel %vm2597, %v2595, 0
      %3262 = vmatprep.subr.bf16.mxu0 0
      %3263 = vmatpush1.bf16.xpose.msra.mxu0 0
      %3264 = vmatprep.subr.bf16.mxu0 0
      %3265 = vmatpush1.bf16.xpose.msra.mxu0 0
      %3266 = vmatprep.subr.bf16.mxu0 0
      %3267 = vmatpush1.bf16.xpose.msra.mxu0 0
      %3268 = vmatprep.subr.bf16.mxu0 0
      %3269 = vmatpush1.bf16.xpose.msra.mxu0 0
      %3270 = vmatprep.subr.bf16.mxu0 0
      %3271 = vmatpush1.bf16.xpose.msra.mxu0 0
      %3272 = vmatprep.subr.bf16.mxu0 0
      %3273 = vmatpush1.bf16.xpose.msra.mxu0 0
      %3274 = vmatprep.subr.bf16.mxu0 0
      %3275 = vmatpush1.bf16.xpose.msra.mxu0 0
      %3276 = vmatprep.subr.bf16.mxu0 0
      %3277 = vmatpush1.bf16.xpose.msra.mxu0 %v3260
      %3278 = vmatprep.subr.bf16.mxu0 0
      %3279 = vmatpush2.bf16.xpose.msra.mxu0 0
      %3280 = vmatprep.subr.bf16.mxu0 0
      %3281 = vmatpush2.bf16.xpose.msra.mxu0 0
      %3282 = vmatprep.subr.bf16.mxu0 0
      %3283 = vmatpush2.bf16.xpose.msra.mxu0 0
      %3284 = vmatprep.subr.bf16.mxu0 0
      %3285 = vmatpush2.bf16.xpose.msra.mxu0 0
      %3286 = vmatprep.subr.bf16.mxu0 0
      %3287 = vmatpush2.bf16.xpose.msra.mxu0 0
      %3288 = vmatprep.subr.bf16.mxu0 0
      %3289 = vmatpush2.bf16.xpose.msra.mxu0 0
      %3290 = vmatprep.subr.bf16.mxu0 0
      %3291 = vmatpush2.bf16.xpose.msra.mxu0 0
      %3292 = vmatprep.subr.bf16.mxu0 0
      %3293 = vmatpush2.bf16.xpose.msra.mxu0 0
      %3294 = vmatprep.mubr.bf16.mxu0 0
      %3295 = vmatmul.mubr.bf16.gmra.mxu0 %v3257
      %v3296 = vpop.f32.mrf.mxu0
      %v3297 = vadd.f32 0.0, %v3296
      %v3298 = vpop.f32.mrf.mxu0
      %v3299 = vpop.f32.mrf.mxu0
      %v3300 = vadd.f32 0.0, %v3299
      %v3301 = vpop.f32.mrf.mxu0
      %3302 = vdwg.mxu0
      %v3304 = vsel %vm2597, %v2580, 0
      %v3307 = vsel %vm2597, %v2596, 0
      %3309 = vmatprep.subr.bf16.mxu0 0
      %3310 = vmatpush1.bf16.xpose.msra.mxu0 0
      %3311 = vmatprep.subr.bf16.mxu0 0
      %3312 = vmatpush1.bf16.xpose.msra.mxu0 0
      %3313 = vmatprep.subr.bf16.mxu0 0
      %3314 = vmatpush1.bf16.xpose.msra.mxu0 0
      %3315 = vmatprep.subr.bf16.mxu0 0
      %3316 = vmatpush1.bf16.xpose.msra.mxu0 0
      %3317 = vmatprep.subr.bf16.mxu0 0
      %3318 = vmatpush1.bf16.xpose.msra.mxu0 0
      %3319 = vmatprep.subr.bf16.mxu0 0
      %3320 = vmatpush1.bf16.xpose.msra.mxu0 0
      %3321 = vmatprep.subr.bf16.mxu0 0
      %3322 = vmatpush1.bf16.xpose.msra.mxu0 0
      %3323 = vmatprep.subr.bf16.mxu0 0
      %3324 = vmatpush1.bf16.xpose.msra.mxu0 %v3307
      %3325 = vmatprep.subr.bf16.mxu0 0
      %3326 = vmatpush2.bf16.xpose.msra.mxu0 0
      %3327 = vmatprep.subr.bf16.mxu0 0
      %3328 = vmatpush2.bf16.xpose.msra.mxu0 0
      %3329 = vmatprep.subr.bf16.mxu0 0
      %3330 = vmatpush2.bf16.xpose.msra.mxu0 0
      %3331 = vmatprep.subr.bf16.mxu0 0
      %3332 = vmatpush2.bf16.xpose.msra.mxu0 0
      %3333 = vmatprep.subr.bf16.mxu0 0
      %3334 = vmatpush2.bf16.xpose.msra.mxu0 0
      %3335 = vmatprep.subr.bf16.mxu0 0
      %3336 = vmatpush2.bf16.xpose.msra.mxu0 0
      %3337 = vmatprep.subr.bf16.mxu0 0
      %3338 = vmatpush2.bf16.xpose.msra.mxu0 0
      %3339 = vmatprep.subr.bf16.mxu0 0
      %3340 = vmatpush2.bf16.xpose.msra.mxu0 0
      %3341 = vmatprep.mubr.bf16.mxu0 0
      %3342 = vmatmul.mubr.bf16.gmra.mxu0 %v3304
      %v3343 = vpop.f32.mrf.mxu0
      %v3344 = vadd.f32 0.0, %v3343
      %v3345 = vpop.f32.mrf.mxu0
      %v3346 = vpop.f32.mrf.mxu0
      %v3347 = vadd.f32 0.0, %v3346
      %v3348 = vpop.f32.mrf.mxu0
      %3349 = vdwg.mxu0
      %v3350 = vpack.c.bf16 %v458, %v455
      %v3351 = vpack.c.bf16 %v466, %v463
      %v3352 = vpack.c.bf16 %v474, %v471
      %v3353 = vpack.c.bf16 %v482, %v479
      %v3354 = vpack.c.bf16 %v490, %v487
      %v3355 = vpack.c.bf16 %v498, %v495
      %v3356 = vpack.c.bf16 %v506, %v503
      %v3357 = vpack.c.bf16 %v514, %v511
      %v3358 = vpack.c.bf16 %v522, %v519
      %v3359 = vpack.c.bf16 %v530, %v527
      %v3360 = vpack.c.bf16 %v538, %v535
      %v3361 = vpack.c.bf16 %v546, %v543
      %v3362 = vpack.c.bf16 %v554, %v551
      %v3363 = vpack.c.bf16 %v562, %v559
      %v3364 = vpack.c.bf16 %v570, %v567
      %v3365 = vpack.c.bf16 %v578, %v575
      %v3366 = vpack.c.bf16 %v634, %v631
      %v3367 = vpack.c.bf16 %v642, %v639
      %v3368 = vpack.c.bf16 %v650, %v647
      %v3369 = vpack.c.bf16 %v658, %v655
      %v3370 = vpack.c.bf16 %v666, %v663
      %v3371 = vpack.c.bf16 %v674, %v671
      %v3372 = vpack.c.bf16 %v682, %v679
      %v3373 = vpack.c.bf16 %v690, %v687
      %v3374 = vpack.c.bf16 %v698, %v695
      %v3375 = vpack.c.bf16 %v706, %v703
      %v3376 = vpack.c.bf16 %v714, %v711
      %v3377 = vpack.c.bf16 %v722, %v719
      %v3378 = vpack.c.bf16 %v730, %v727
      %v3379 = vpack.c.bf16 %v738, %v735
      %v3380 = vpack.c.bf16 %v746, %v743
      %v3381 = vpack.c.bf16 %v754, %v751
      %v3383 = vsel %vm2597, %v3350, 0
      %v3386 = vsel %vm2597, %v3366, 0
      %3388 = vmatprep.subr.bf16.mxu0 0
      %3389 = vmatpush1.bf16.xpose.msra.mxu0 0
      %3390 = vmatprep.subr.bf16.mxu0 0
      %3391 = vmatpush1.bf16.xpose.msra.mxu0 0
      %3392 = vmatprep.subr.bf16.mxu0 0
      %3393 = vmatpush1.bf16.xpose.msra.mxu0 0
      %3394 = vmatprep.subr.bf16.mxu0 0
      %3395 = vmatpush1.bf16.xpose.msra.mxu0 0
      %3396 = vmatprep.subr.bf16.mxu0 0
      %3397 = vmatpush1.bf16.xpose.msra.mxu0 0
      %3398 = vmatprep.subr.bf16.mxu0 0
      %3399 = vmatpush1.bf16.xpose.msra.mxu0 0
      %3400 = vmatprep.subr.bf16.mxu0 0
      %3401 = vmatpush1.bf16.xpose.msra.mxu0 0
      %3402 = vmatprep.subr.bf16.mxu0 0
      %3403 = vmatpush1.bf16.xpose.msra.mxu0 %v3386
      %3404 = vmatprep.subr.bf16.mxu0 0
      %3405 = vmatpush2.bf16.xpose.msra.mxu0 0
      %3406 = vmatprep.subr.bf16.mxu0 0
      %3407 = vmatpush2.bf16.xpose.msra.mxu0 0
      %3408 = vmatprep.subr.bf16.mxu0 0
      %3409 = vmatpush2.bf16.xpose.msra.mxu0 0
      %3410 = vmatprep.subr.bf16.mxu0 0
      %3411 = vmatpush2.bf16.xpose.msra.mxu0 0
      %3412 = vmatprep.subr.bf16.mxu0 0
      %3413 = vmatpush2.bf16.xpose.msra.mxu0 0
      %3414 = vmatprep.subr.bf16.mxu0 0
      %3415 = vmatpush2.bf16.xpose.msra.mxu0 0
      %3416 = vmatprep.subr.bf16.mxu0 0
      %3417 = vmatpush2.bf16.xpose.msra.mxu0 0
      %3418 = vmatprep.subr.bf16.mxu0 0
      %3419 = vmatpush2.bf16.xpose.msra.mxu0 0
      %3420 = vmatprep.mubr.bf16.mxu0 0
      %3421 = vmatmul.mubr.bf16.gmra.mxu0 %v3383
      %v3422 = vpop.f32.mrf.mxu0
      %v3423 = vadd.f32 0.0, %v3422
      %v3424 = vpop.f32.mrf.mxu0
      %v3425 = vpop.f32.mrf.mxu0
      %v3426 = vadd.f32 0.0, %v3425
      %v3427 = vpop.f32.mrf.mxu0
      %3428 = vdwg.mxu0
      %v3430 = vsel %vm2597, %v3351, 0
      %v3433 = vsel %vm2597, %v3367, 0
      %3435 = vmatprep.subr.bf16.mxu0 0
      %3436 = vmatpush1.bf16.xpose.msra.mxu0 0
      %3437 = vmatprep.subr.bf16.mxu0 0
      %3438 = vmatpush1.bf16.xpose.msra.mxu0 0
      %3439 = vmatprep.subr.bf16.mxu0 0
      %3440 = vmatpush1.bf16.xpose.msra.mxu0 0
      %3441 = vmatprep.subr.bf16.mxu0 0
      %3442 = vmatpush1.bf16.xpose.msra.mxu0 0
      %3443 = vmatprep.subr.bf16.mxu0 0
      %3444 = vmatpush1.bf16.xpose.msra.mxu0 0
      %3445 = vmatprep.subr.bf16.mxu0 0
      %3446 = vmatpush1.bf16.xpose.msra.mxu0 0
      %3447 = vmatprep.subr.bf16.mxu0 0
      %3448 = vmatpush1.bf16.xpose.msra.mxu0 0
      %3449 = vmatprep.subr.bf16.mxu0 0
      %3450 = vmatpush1.bf16.xpose.msra.mxu0 %v3433
      %3451 = vmatprep.subr.bf16.mxu0 0
      %3452 = vmatpush2.bf16.xpose.msra.mxu0 0
      %3453 = vmatprep.subr.bf16.mxu0 0
      %3454 = vmatpush2.bf16.xpose.msra.mxu0 0
      %3455 = vmatprep.subr.bf16.mxu0 0
      %3456 = vmatpush2.bf16.xpose.msra.mxu0 0
      %3457 = vmatprep.subr.bf16.mxu0 0
      %3458 = vmatpush2.bf16.xpose.msra.mxu0 0
      %3459 = vmatprep.subr.bf16.mxu0 0
      %3460 = vmatpush2.bf16.xpose.msra.mxu0 0
      %3461 = vmatprep.subr.bf16.mxu0 0
      %3462 = vmatpush2.bf16.xpose.msra.mxu0 0
      %3463 = vmatprep.subr.bf16.mxu0 0
      %3464 = vmatpush2.bf16.xpose.msra.mxu0 0
      %3465 = vmatprep.subr.bf16.mxu0 0
      %3466 = vmatpush2.bf16.xpose.msra.mxu0 0
      %3467 = vmatprep.mubr.bf16.mxu0 0
      %3468 = vmatmul.mubr.bf16.gmra.mxu0 %v3430
      %v3469 = vpop.f32.mrf.mxu0
      %v3470 = vadd.f32 0.0, %v3469
      %v3471 = vpop.f32.mrf.mxu0
      %v3472 = vpop.f32.mrf.mxu0
      %v3473 = vadd.f32 0.0, %v3472
      %v3474 = vpop.f32.mrf.mxu0
      %3475 = vdwg.mxu0
      %v3477 = vsel %vm2597, %v3352, 0
      %v3480 = vsel %vm2597, %v3368, 0
      %3482 = vmatprep.subr.bf16.mxu0 0
      %3483 = vmatpush1.bf16.xpose.msra.mxu0 0
      %3484 = vmatprep.subr.bf16.mxu0 0
      %3485 = vmatpush1.bf16.xpose.msra.mxu0 0
      %3486 = vmatprep.subr.bf16.mxu0 0
      %3487 = vmatpush1.bf16.xpose.msra.mxu0 0
      %3488 = vmatprep.subr.bf16.mxu0 0
      %3489 = vmatpush1.bf16.xpose.msra.mxu0 0
      %3490 = vmatprep.subr.bf16.mxu0 0
      %3491 = vmatpush1.bf16.xpose.msra.mxu0 0
      %3492 = vmatprep.subr.bf16.mxu0 0
      %3493 = vmatpush1.bf16.xpose.msra.mxu0 0
      %3494 = vmatprep.subr.bf16.mxu0 0
      %3495 = vmatpush1.bf16.xpose.msra.mxu0 0
      %3496 = vmatprep.subr.bf16.mxu0 0
      %3497 = vmatpush1.bf16.xpose.msra.mxu0 %v3480
      %3498 = vmatprep.subr.bf16.mxu0 0
      %3499 = vmatpush2.bf16.xpose.msra.mxu0 0
      %3500 = vmatprep.subr.bf16.mxu0 0
      %3501 = vmatpush2.bf16.xpose.msra.mxu0 0
      %3502 = vmatprep.subr.bf16.mxu0 0
      %3503 = vmatpush2.bf16.xpose.msra.mxu0 0
      %3504 = vmatprep.subr.bf16.mxu0 0
      %3505 = vmatpush2.bf16.xpose.msra.mxu0 0
      %3506 = vmatprep.subr.bf16.mxu0 0
      %3507 = vmatpush2.bf16.xpose.msra.mxu0 0
      %3508 = vmatprep.subr.bf16.mxu0 0
      %3509 = vmatpush2.bf16.xpose.msra.mxu0 0
      %3510 = vmatprep.subr.bf16.mxu0 0
      %3511 = vmatpush2.bf16.xpose.msra.mxu0 0
      %3512 = vmatprep.subr.bf16.mxu0 0
      %3513 = vmatpush2.bf16.xpose.msra.mxu0 0
      %3514 = vmatprep.mubr.bf16.mxu0 0
      %3515 = vmatmul.mubr.bf16.gmra.mxu0 %v3477
      %v3516 = vpop.f32.mrf.mxu0
      %v3517 = vadd.f32 0.0, %v3516
      %v3518 = vpop.f32.mrf.mxu0
      %v3519 = vpop.f32.mrf.mxu0
      %v3520 = vadd.f32 0.0, %v3519
      %v3521 = vpop.f32.mrf.mxu0
      %3522 = vdwg.mxu0
      %v3524 = vsel %vm2597, %v3353, 0
      %v3527 = vsel %vm2597, %v3369, 0
      %3529 = vmatprep.subr.bf16.mxu0 0
      %3530 = vmatpush1.bf16.xpose.msra.mxu0 0
      %3531 = vmatprep.subr.bf16.mxu0 0
      %3532 = vmatpush1.bf16.xpose.msra.mxu0 0
      %3533 = vmatprep.subr.bf16.mxu0 0
      %3534 = vmatpush1.bf16.xpose.msra.mxu0 0
      %3535 = vmatprep.subr.bf16.mxu0 0
      %3536 = vmatpush1.bf16.xpose.msra.mxu0 0
      %3537 = vmatprep.subr.bf16.mxu0 0
      %3538 = vmatpush1.bf16.xpose.msra.mxu0 0
      %3539 = vmatprep.subr.bf16.mxu0 0
      %3540 = vmatpush1.bf16.xpose.msra.mxu0 0
      %3541 = vmatprep.subr.bf16.mxu0 0
      %3542 = vmatpush1.bf16.xpose.msra.mxu0 0
      %3543 = vmatprep.subr.bf16.mxu0 0
      %3544 = vmatpush1.bf16.xpose.msra.mxu0 %v3527
      %3545 = vmatprep.subr.bf16.mxu0 0
      %3546 = vmatpush2.bf16.xpose.msra.mxu0 0
      %3547 = vmatprep.subr.bf16.mxu0 0
      %3548 = vmatpush2.bf16.xpose.msra.mxu0 0
      %3549 = vmatprep.subr.bf16.mxu0 0
      %3550 = vmatpush2.bf16.xpose.msra.mxu0 0
      %3551 = vmatprep.subr.bf16.mxu0 0
      %3552 = vmatpush2.bf16.xpose.msra.mxu0 0
      %3553 = vmatprep.subr.bf16.mxu0 0
      %3554 = vmatpush2.bf16.xpose.msra.mxu0 0
      %3555 = vmatprep.subr.bf16.mxu0 0
      %3556 = vmatpush2.bf16.xpose.msra.mxu0 0
      %3557 = vmatprep.subr.bf16.mxu0 0
      %3558 = vmatpush2.bf16.xpose.msra.mxu0 0
      %3559 = vmatprep.subr.bf16.mxu0 0
      %3560 = vmatpush2.bf16.xpose.msra.mxu0 0
      %3561 = vmatprep.mubr.bf16.mxu0 0
      %3562 = vmatmul.mubr.bf16.gmra.mxu0 %v3524
      %v3563 = vpop.f32.mrf.mxu0
      %v3564 = vadd.f32 0.0, %v3563
      %v3565 = vpop.f32.mrf.mxu0
      %v3566 = vpop.f32.mrf.mxu0
      %v3567 = vadd.f32 0.0, %v3566
      %v3568 = vpop.f32.mrf.mxu0
      %3569 = vdwg.mxu0
      %v3571 = vsel %vm2597, %v3354, 0
      %v3574 = vsel %vm2597, %v3370, 0
      %3576 = vmatprep.subr.bf16.mxu0 0
      %3577 = vmatpush1.bf16.xpose.msra.mxu0 0
      %3578 = vmatprep.subr.bf16.mxu0 0
      %3579 = vmatpush1.bf16.xpose.msra.mxu0 0
      %3580 = vmatprep.subr.bf16.mxu0 0
      %3581 = vmatpush1.bf16.xpose.msra.mxu0 0
      %3582 = vmatprep.subr.bf16.mxu0 0
      %3583 = vmatpush1.bf16.xpose.msra.mxu0 0
      %3584 = vmatprep.subr.bf16.mxu0 0
      %3585 = vmatpush1.bf16.xpose.msra.mxu0 0
      %3586 = vmatprep.subr.bf16.mxu0 0
      %3587 = vmatpush1.bf16.xpose.msra.mxu0 0
      %3588 = vmatprep.subr.bf16.mxu0 0
      %3589 = vmatpush1.bf16.xpose.msra.mxu0 0
      %3590 = vmatprep.subr.bf16.mxu0 0
      %3591 = vmatpush1.bf16.xpose.msra.mxu0 %v3574
      %3592 = vmatprep.subr.bf16.mxu0 0
      %3593 = vmatpush2.bf16.xpose.msra.mxu0 0
      %3594 = vmatprep.subr.bf16.mxu0 0
      %3595 = vmatpush2.bf16.xpose.msra.mxu0 0
      %3596 = vmatprep.subr.bf16.mxu0 0
      %3597 = vmatpush2.bf16.xpose.msra.mxu0 0
      %3598 = vmatprep.subr.bf16.mxu0 0
      %3599 = vmatpush2.bf16.xpose.msra.mxu0 0
      %3600 = vmatprep.subr.bf16.mxu0 0
      %3601 = vmatpush2.bf16.xpose.msra.mxu0 0
      %3602 = vmatprep.subr.bf16.mxu0 0
      %3603 = vmatpush2.bf16.xpose.msra.mxu0 0
      %3604 = vmatprep.subr.bf16.mxu0 0
      %3605 = vmatpush2.bf16.xpose.msra.mxu0 0
      %3606 = vmatprep.subr.bf16.mxu0 0
      %3607 = vmatpush2.bf16.xpose.msra.mxu0 0
      %3608 = vmatprep.mubr.bf16.mxu0 0
      %3609 = vmatmul.mubr.bf16.gmra.mxu0 %v3571
      %v3610 = vpop.f32.mrf.mxu0
      %v3611 = vadd.f32 0.0, %v3610
      %v3612 = vpop.f32.mrf.mxu0
      %v3613 = vpop.f32.mrf.mxu0
      %v3614 = vadd.f32 0.0, %v3613
      %v3615 = vpop.f32.mrf.mxu0
      %3616 = vdwg.mxu0
      %v3618 = vsel %vm2597, %v3355, 0
      %v3621 = vsel %vm2597, %v3371, 0
      %3623 = vmatprep.subr.bf16.mxu0 0
      %3624 = vmatpush1.bf16.xpose.msra.mxu0 0
      %3625 = vmatprep.subr.bf16.mxu0 0
      %3626 = vmatpush1.bf16.xpose.msra.mxu0 0
      %3627 = vmatprep.subr.bf16.mxu0 0
      %3628 = vmatpush1.bf16.xpose.msra.mxu0 0
      %3629 = vmatprep.subr.bf16.mxu0 0
      %3630 = vmatpush1.bf16.xpose.msra.mxu0 0
      %3631 = vmatprep.subr.bf16.mxu0 0
      %3632 = vmatpush1.bf16.xpose.msra.mxu0 0
      %3633 = vmatprep.subr.bf16.mxu0 0
      %3634 = vmatpush1.bf16.xpose.msra.mxu0 0
      %3635 = vmatprep.subr.bf16.mxu0 0
      %3636 = vmatpush1.bf16.xpose.msra.mxu0 0
      %3637 = vmatprep.subr.bf16.mxu0 0
      %3638 = vmatpush1.bf16.xpose.msra.mxu0 %v3621
      %3639 = vmatprep.subr.bf16.mxu0 0
      %3640 = vmatpush2.bf16.xpose.msra.mxu0 0
      %3641 = vmatprep.subr.bf16.mxu0 0
      %3642 = vmatpush2.bf16.xpose.msra.mxu0 0
      %3643 = vmatprep.subr.bf16.mxu0 0
      %3644 = vmatpush2.bf16.xpose.msra.mxu0 0
      %3645 = vmatprep.subr.bf16.mxu0 0
      %3646 = vmatpush2.bf16.xpose.msra.mxu0 0
      %3647 = vmatprep.subr.bf16.mxu0 0
      %3648 = vmatpush2.bf16.xpose.msra.mxu0 0
      %3649 = vmatprep.subr.bf16.mxu0 0
      %3650 = vmatpush2.bf16.xpose.msra.mxu0 0
      %3651 = vmatprep.subr.bf16.mxu0 0
      %3652 = vmatpush2.bf16.xpose.msra.mxu0 0
      %3653 = vmatprep.subr.bf16.mxu0 0
      %3654 = vmatpush2.bf16.xpose.msra.mxu0 0
      %3655 = vmatprep.mubr.bf16.mxu0 0
      %3656 = vmatmul.mubr.bf16.gmra.mxu0 %v3618
      %v3657 = vpop.f32.mrf.mxu0
      %v3658 = vadd.f32 0.0, %v3657
      %v3659 = vpop.f32.mrf.mxu0
      %v3660 = vpop.f32.mrf.mxu0
      %v3661 = vadd.f32 0.0, %v3660
      %v3662 = vpop.f32.mrf.mxu0
      %3663 = vdwg.mxu0
      %v3665 = vsel %vm2597, %v3356, 0
      %v3668 = vsel %vm2597, %v3372, 0
      %3670 = vmatprep.subr.bf16.mxu0 0
      %3671 = vmatpush1.bf16.xpose.msra.mxu0 0
      %3672 = vmatprep.subr.bf16.mxu0 0
      %3673 = vmatpush1.bf16.xpose.msra.mxu0 0
      %3674 = vmatprep.subr.bf16.mxu0 0
      %3675 = vmatpush1.bf16.xpose.msra.mxu0 0
      %3676 = vmatprep.subr.bf16.mxu0 0
      %3677 = vmatpush1.bf16.xpose.msra.mxu0 0
      %3678 = vmatprep.subr.bf16.mxu0 0
      %3679 = vmatpush1.bf16.xpose.msra.mxu0 0
      %3680 = vmatprep.subr.bf16.mxu0 0
      %3681 = vmatpush1.bf16.xpose.msra.mxu0 0
      %3682 = vmatprep.subr.bf16.mxu0 0
      %3683 = vmatpush1.bf16.xpose.msra.mxu0 0
      %3684 = vmatprep.subr.bf16.mxu0 0
      %3685 = vmatpush1.bf16.xpose.msra.mxu0 %v3668
      %3686 = vmatprep.subr.bf16.mxu0 0
      %3687 = vmatpush2.bf16.xpose.msra.mxu0 0
      %3688 = vmatprep.subr.bf16.mxu0 0
      %3689 = vmatpush2.bf16.xpose.msra.mxu0 0
      %3690 = vmatprep.subr.bf16.mxu0 0
      %3691 = vmatpush2.bf16.xpose.msra.mxu0 0
      %3692 = vmatprep.subr.bf16.mxu0 0
      %3693 = vmatpush2.bf16.xpose.msra.mxu0 0
      %3694 = vmatprep.subr.bf16.mxu0 0
      %3695 = vmatpush2.bf16.xpose.msra.mxu0 0
      %3696 = vmatprep.subr.bf16.mxu0 0
      %3697 = vmatpush2.bf16.xpose.msra.mxu0 0
      %3698 = vmatprep.subr.bf16.mxu0 0
      %3699 = vmatpush2.bf16.xpose.msra.mxu0 0
      %3700 = vmatprep.subr.bf16.mxu0 0
      %3701 = vmatpush2.bf16.xpose.msra.mxu0 0
      %3702 = vmatprep.mubr.bf16.mxu0 0
      %3703 = vmatmul.mubr.bf16.gmra.mxu0 %v3665
      %v3704 = vpop.f32.mrf.mxu0
      %v3705 = vadd.f32 0.0, %v3704
      %v3706 = vpop.f32.mrf.mxu0
      %v3707 = vpop.f32.mrf.mxu0
      %v3708 = vadd.f32 0.0, %v3707
      %v3709 = vpop.f32.mrf.mxu0
      %3710 = vdwg.mxu0
      %v3712 = vsel %vm2597, %v3357, 0
      %v3715 = vsel %vm2597, %v3373, 0
      %3717 = vmatprep.subr.bf16.mxu0 0
      %3718 = vmatpush1.bf16.xpose.msra.mxu0 0
      %3719 = vmatprep.subr.bf16.mxu0 0
      %3720 = vmatpush1.bf16.xpose.msra.mxu0 0
      %3721 = vmatprep.subr.bf16.mxu0 0
      %3722 = vmatpush1.bf16.xpose.msra.mxu0 0
      %3723 = vmatprep.subr.bf16.mxu0 0
      %3724 = vmatpush1.bf16.xpose.msra.mxu0 0
      %3725 = vmatprep.subr.bf16.mxu0 0
      %3726 = vmatpush1.bf16.xpose.msra.mxu0 0
      %3727 = vmatprep.subr.bf16.mxu0 0
      %3728 = vmatpush1.bf16.xpose.msra.mxu0 0
      %3729 = vmatprep.subr.bf16.mxu0 0
      %3730 = vmatpush1.bf16.xpose.msra.mxu0 0
      %3731 = vmatprep.subr.bf16.mxu0 0
      %3732 = vmatpush1.bf16.xpose.msra.mxu0 %v3715
      %3733 = vmatprep.subr.bf16.mxu0 0
      %3734 = vmatpush2.bf16.xpose.msra.mxu0 0
      %3735 = vmatprep.subr.bf16.mxu0 0
      %3736 = vmatpush2.bf16.xpose.msra.mxu0 0
      %3737 = vmatprep.subr.bf16.mxu0 0
      %3738 = vmatpush2.bf16.xpose.msra.mxu0 0
      %3739 = vmatprep.subr.bf16.mxu0 0
      %3740 = vmatpush2.bf16.xpose.msra.mxu0 0
      %3741 = vmatprep.subr.bf16.mxu0 0
      %3742 = vmatpush2.bf16.xpose.msra.mxu0 0
      %3743 = vmatprep.subr.bf16.mxu0 0
      %3744 = vmatpush2.bf16.xpose.msra.mxu0 0
      %3745 = vmatprep.subr.bf16.mxu0 0
      %3746 = vmatpush2.bf16.xpose.msra.mxu0 0
      %3747 = vmatprep.subr.bf16.mxu0 0
      %3748 = vmatpush2.bf16.xpose.msra.mxu0 0
      %3749 = vmatprep.mubr.bf16.mxu0 0
      %3750 = vmatmul.mubr.bf16.gmra.mxu0 %v3712
      %v3751 = vpop.f32.mrf.mxu0
      %v3752 = vadd.f32 0.0, %v3751
      %v3753 = vpop.f32.mrf.mxu0
      %v3754 = vpop.f32.mrf.mxu0
      %v3755 = vadd.f32 0.0, %v3754
      %v3756 = vpop.f32.mrf.mxu0
      %3757 = vdwg.mxu0
      %v3759 = vsel %vm2597, %v3358, 0
      %v3762 = vsel %vm2597, %v3374, 0
      %3764 = vmatprep.subr.bf16.mxu0 0
      %3765 = vmatpush1.bf16.xpose.msra.mxu0 0
      %3766 = vmatprep.subr.bf16.mxu0 0
      %3767 = vmatpush1.bf16.xpose.msra.mxu0 0
      %3768 = vmatprep.subr.bf16.mxu0 0
      %3769 = vmatpush1.bf16.xpose.msra.mxu0 0
      %3770 = vmatprep.subr.bf16.mxu0 0
      %3771 = vmatpush1.bf16.xpose.msra.mxu0 0
      %3772 = vmatprep.subr.bf16.mxu0 0
      %3773 = vmatpush1.bf16.xpose.msra.mxu0 0
      %3774 = vmatprep.subr.bf16.mxu0 0
      %3775 = vmatpush1.bf16.xpose.msra.mxu0 0
      %3776 = vmatprep.subr.bf16.mxu0 0
      %3777 = vmatpush1.bf16.xpose.msra.mxu0 0
      %3778 = vmatprep.subr.bf16.mxu0 0
      %3779 = vmatpush1.bf16.xpose.msra.mxu0 %v3762
      %3780 = vmatprep.subr.bf16.mxu0 0
      %3781 = vmatpush2.bf16.xpose.msra.mxu0 0
      %3782 = vmatprep.subr.bf16.mxu0 0
      %3783 = vmatpush2.bf16.xpose.msra.mxu0 0
      %3784 = vmatprep.subr.bf16.mxu0 0
      %3785 = vmatpush2.bf16.xpose.msra.mxu0 0
      %3786 = vmatprep.subr.bf16.mxu0 0
      %3787 = vmatpush2.bf16.xpose.msra.mxu0 0
      %3788 = vmatprep.subr.bf16.mxu0 0
      %3789 = vmatpush2.bf16.xpose.msra.mxu0 0
      %3790 = vmatprep.subr.bf16.mxu0 0
      %3791 = vmatpush2.bf16.xpose.msra.mxu0 0
      %3792 = vmatprep.subr.bf16.mxu0 0
      %3793 = vmatpush2.bf16.xpose.msra.mxu0 0
      %3794 = vmatprep.subr.bf16.mxu0 0
      %3795 = vmatpush2.bf16.xpose.msra.mxu0 0
      %3796 = vmatprep.mubr.bf16.mxu0 0
      %3797 = vmatmul.mubr.bf16.gmra.mxu0 %v3759
      %v3798 = vpop.f32.mrf.mxu0
      %v3799 = vadd.f32 0.0, %v3798
      %v3800 = vpop.f32.mrf.mxu0
      %v3801 = vpop.f32.mrf.mxu0
      %v3802 = vadd.f32 0.0, %v3801
      %v3803 = vpop.f32.mrf.mxu0
      %3804 = vdwg.mxu0
      %v3806 = vsel %vm2597, %v3359, 0
      %v3809 = vsel %vm2597, %v3375, 0
      %3811 = vmatprep.subr.bf16.mxu0 0
      %3812 = vmatpush1.bf16.xpose.msra.mxu0 0
      %3813 = vmatprep.subr.bf16.mxu0 0
      %3814 = vmatpush1.bf16.xpose.msra.mxu0 0
      %3815 = vmatprep.subr.bf16.mxu0 0
      %3816 = vmatpush1.bf16.xpose.msra.mxu0 0
      %3817 = vmatprep.subr.bf16.mxu0 0
      %3818 = vmatpush1.bf16.xpose.msra.mxu0 0
      %3819 = vmatprep.subr.bf16.mxu0 0
      %3820 = vmatpush1.bf16.xpose.msra.mxu0 0
      %3821 = vmatprep.subr.bf16.mxu0 0
      %3822 = vmatpush1.bf16.xpose.msra.mxu0 0
      %3823 = vmatprep.subr.bf16.mxu0 0
      %3824 = vmatpush1.bf16.xpose.msra.mxu0 0
      %3825 = vmatprep.subr.bf16.mxu0 0
      %3826 = vmatpush1.bf16.xpose.msra.mxu0 %v3809
      %3827 = vmatprep.subr.bf16.mxu0 0
      %3828 = vmatpush2.bf16.xpose.msra.mxu0 0
      %3829 = vmatprep.subr.bf16.mxu0 0
      %3830 = vmatpush2.bf16.xpose.msra.mxu0 0
      %3831 = vmatprep.subr.bf16.mxu0 0
      %3832 = vmatpush2.bf16.xpose.msra.mxu0 0
      %3833 = vmatprep.subr.bf16.mxu0 0
      %3834 = vmatpush2.bf16.xpose.msra.mxu0 0
      %3835 = vmatprep.subr.bf16.mxu0 0
      %3836 = vmatpush2.bf16.xpose.msra.mxu0 0
      %3837 = vmatprep.subr.bf16.mxu0 0
      %3838 = vmatpush2.bf16.xpose.msra.mxu0 0
      %3839 = vmatprep.subr.bf16.mxu0 0
      %3840 = vmatpush2.bf16.xpose.msra.mxu0 0
      %3841 = vmatprep.subr.bf16.mxu0 0
      %3842 = vmatpush2.bf16.xpose.msra.mxu0 0
      %3843 = vmatprep.mubr.bf16.mxu0 0
      %3844 = vmatmul.mubr.bf16.gmra.mxu0 %v3806
      %v3845 = vpop.f32.mrf.mxu0
      %v3846 = vadd.f32 0.0, %v3845
      %v3847 = vpop.f32.mrf.mxu0
      %v3848 = vpop.f32.mrf.mxu0
      %v3849 = vadd.f32 0.0, %v3848
      %v3850 = vpop.f32.mrf.mxu0
      %3851 = vdwg.mxu0
      %v3853 = vsel %vm2597, %v3360, 0
      %v3856 = vsel %vm2597, %v3376, 0
      %3858 = vmatprep.subr.bf16.mxu0 0
      %3859 = vmatpush1.bf16.xpose.msra.mxu0 0
      %3860 = vmatprep.subr.bf16.mxu0 0
      %3861 = vmatpush1.bf16.xpose.msra.mxu0 0
      %3862 = vmatprep.subr.bf16.mxu0 0
      %3863 = vmatpush1.bf16.xpose.msra.mxu0 0
      %3864 = vmatprep.subr.bf16.mxu0 0
      %3865 = vmatpush1.bf16.xpose.msra.mxu0 0
      %3866 = vmatprep.subr.bf16.mxu0 0
      %3867 = vmatpush1.bf16.xpose.msra.mxu0 0
      %3868 = vmatprep.subr.bf16.mxu0 0
      %3869 = vmatpush1.bf16.xpose.msra.mxu0 0
      %3870 = vmatprep.subr.bf16.mxu0 0
      %3871 = vmatpush1.bf16.xpose.msra.mxu0 0
      %3872 = vmatprep.subr.bf16.mxu0 0
      %3873 = vmatpush1.bf16.xpose.msra.mxu0 %v3856
      %3874 = vmatprep.subr.bf16.mxu0 0
      %3875 = vmatpush2.bf16.xpose.msra.mxu0 0
      %3876 = vmatprep.subr.bf16.mxu0 0
      %3877 = vmatpush2.bf16.xpose.msra.mxu0 0
      %3878 = vmatprep.subr.bf16.mxu0 0
      %3879 = vmatpush2.bf16.xpose.msra.mxu0 0
      %3880 = vmatprep.subr.bf16.mxu0 0
      %3881 = vmatpush2.bf16.xpose.msra.mxu0 0
      %3882 = vmatprep.subr.bf16.mxu0 0
      %3883 = vmatpush2.bf16.xpose.msra.mxu0 0
      %3884 = vmatprep.subr.bf16.mxu0 0
      %3885 = vmatpush2.bf16.xpose.msra.mxu0 0
      %3886 = vmatprep.subr.bf16.mxu0 0
      %3887 = vmatpush2.bf16.xpose.msra.mxu0 0
      %3888 = vmatprep.subr.bf16.mxu0 0
      %3889 = vmatpush2.bf16.xpose.msra.mxu0 0
      %3890 = vmatprep.mubr.bf16.mxu0 0
      %3891 = vmatmul.mubr.bf16.gmra.mxu0 %v3853
      %v3892 = vpop.f32.mrf.mxu0
      %v3893 = vadd.f32 0.0, %v3892
      %v3894 = vpop.f32.mrf.mxu0
      %v3895 = vpop.f32.mrf.mxu0
      %v3896 = vadd.f32 0.0, %v3895
      %v3897 = vpop.f32.mrf.mxu0
      %3898 = vdwg.mxu0
      %v3900 = vsel %vm2597, %v3361, 0
      %v3903 = vsel %vm2597, %v3377, 0
      %3905 = vmatprep.subr.bf16.mxu0 0
      %3906 = vmatpush1.bf16.xpose.msra.mxu0 0
      %3907 = vmatprep.subr.bf16.mxu0 0
      %3908 = vmatpush1.bf16.xpose.msra.mxu0 0
      %3909 = vmatprep.subr.bf16.mxu0 0
      %3910 = vmatpush1.bf16.xpose.msra.mxu0 0
      %3911 = vmatprep.subr.bf16.mxu0 0
      %3912 = vmatpush1.bf16.xpose.msra.mxu0 0
      %3913 = vmatprep.subr.bf16.mxu0 0
      %3914 = vmatpush1.bf16.xpose.msra.mxu0 0
      %3915 = vmatprep.subr.bf16.mxu0 0
      %3916 = vmatpush1.bf16.xpose.msra.mxu0 0
      %3917 = vmatprep.subr.bf16.mxu0 0
      %3918 = vmatpush1.bf16.xpose.msra.mxu0 0
      %3919 = vmatprep.subr.bf16.mxu0 0
      %3920 = vmatpush1.bf16.xpose.msra.mxu0 %v3903
      %3921 = vmatprep.subr.bf16.mxu0 0
      %3922 = vmatpush2.bf16.xpose.msra.mxu0 0
      %3923 = vmatprep.subr.bf16.mxu0 0
      %3924 = vmatpush2.bf16.xpose.msra.mxu0 0
      %3925 = vmatprep.subr.bf16.mxu0 0
      %3926 = vmatpush2.bf16.xpose.msra.mxu0 0
      %3927 = vmatprep.subr.bf16.mxu0 0
      %3928 = vmatpush2.bf16.xpose.msra.mxu0 0
      %3929 = vmatprep.subr.bf16.mxu0 0
      %3930 = vmatpush2.bf16.xpose.msra.mxu0 0
      %3931 = vmatprep.subr.bf16.mxu0 0
      %3932 = vmatpush2.bf16.xpose.msra.mxu0 0
      %3933 = vmatprep.subr.bf16.mxu0 0
      %3934 = vmatpush2.bf16.xpose.msra.mxu0 0
      %3935 = vmatprep.subr.bf16.mxu0 0
      %3936 = vmatpush2.bf16.xpose.msra.mxu0 0
      %3937 = vmatprep.mubr.bf16.mxu0 0
      %3938 = vmatmul.mubr.bf16.gmra.mxu0 %v3900
      %v3939 = vpop.f32.mrf.mxu0
      %v3940 = vadd.f32 0.0, %v3939
      %v3941 = vpop.f32.mrf.mxu0
      %v3942 = vpop.f32.mrf.mxu0
      %v3943 = vadd.f32 0.0, %v3942
      %v3944 = vpop.f32.mrf.mxu0
      %3945 = vdwg.mxu0
      %v3947 = vsel %vm2597, %v3362, 0
      %v3950 = vsel %vm2597, %v3378, 0
      %3952 = vmatprep.subr.bf16.mxu0 0
      %3953 = vmatpush1.bf16.xpose.msra.mxu0 0
      %3954 = vmatprep.subr.bf16.mxu0 0
      %3955 = vmatpush1.bf16.xpose.msra.mxu0 0
      %3956 = vmatprep.subr.bf16.mxu0 0
      %3957 = vmatpush1.bf16.xpose.msra.mxu0 0
      %3958 = vmatprep.subr.bf16.mxu0 0
      %3959 = vmatpush1.bf16.xpose.msra.mxu0 0
      %3960 = vmatprep.subr.bf16.mxu0 0
      %3961 = vmatpush1.bf16.xpose.msra.mxu0 0
      %3962 = vmatprep.subr.bf16.mxu0 0
      %3963 = vmatpush1.bf16.xpose.msra.mxu0 0
      %3964 = vmatprep.subr.bf16.mxu0 0
      %3965 = vmatpush1.bf16.xpose.msra.mxu0 0
      %3966 = vmatprep.subr.bf16.mxu0 0
      %3967 = vmatpush1.bf16.xpose.msra.mxu0 %v3950
      %3968 = vmatprep.subr.bf16.mxu0 0
      %3969 = vmatpush2.bf16.xpose.msra.mxu0 0
      %3970 = vmatprep.subr.bf16.mxu0 0
      %3971 = vmatpush2.bf16.xpose.msra.mxu0 0
      %3972 = vmatprep.subr.bf16.mxu0 0
      %3973 = vmatpush2.bf16.xpose.msra.mxu0 0
      %3974 = vmatprep.subr.bf16.mxu0 0
      %3975 = vmatpush2.bf16.xpose.msra.mxu0 0
      %3976 = vmatprep.subr.bf16.mxu0 0
      %3977 = vmatpush2.bf16.xpose.msra.mxu0 0
      %3978 = vmatprep.subr.bf16.mxu0 0
      %3979 = vmatpush2.bf16.xpose.msra.mxu0 0
      %3980 = vmatprep.subr.bf16.mxu0 0
      %3981 = vmatpush2.bf16.xpose.msra.mxu0 0
      %3982 = vmatprep.subr.bf16.mxu0 0
      %3983 = vmatpush2.bf16.xpose.msra.mxu0 0
      %3984 = vmatprep.mubr.bf16.mxu0 0
      %3985 = vmatmul.mubr.bf16.gmra.mxu0 %v3947
      %v3986 = vpop.f32.mrf.mxu0
      %v3987 = vadd.f32 0.0, %v3986
      %v3988 = vpop.f32.mrf.mxu0
      %v3989 = vpop.f32.mrf.mxu0
      %v3990 = vadd.f32 0.0, %v3989
      %v3991 = vpop.f32.mrf.mxu0
      %3992 = vdwg.mxu0
      %v3994 = vsel %vm2597, %v3363, 0
      %v3997 = vsel %vm2597, %v3379, 0
      %3999 = vmatprep.subr.bf16.mxu0 0
      %4000 = vmatpush1.bf16.xpose.msra.mxu0 0
      %4001 = vmatprep.subr.bf16.mxu0 0
      %4002 = vmatpush1.bf16.xpose.msra.mxu0 0
      %4003 = vmatprep.subr.bf16.mxu0 0
      %4004 = vmatpush1.bf16.xpose.msra.mxu0 0
      %4005 = vmatprep.subr.bf16.mxu0 0
      %4006 = vmatpush1.bf16.xpose.msra.mxu0 0
      %4007 = vmatprep.subr.bf16.mxu0 0
      %4008 = vmatpush1.bf16.xpose.msra.mxu0 0
      %4009 = vmatprep.subr.bf16.mxu0 0
      %4010 = vmatpush1.bf16.xpose.msra.mxu0 0
      %4011 = vmatprep.subr.bf16.mxu0 0
      %4012 = vmatpush1.bf16.xpose.msra.mxu0 0
      %4013 = vmatprep.subr.bf16.mxu0 0
      %4014 = vmatpush1.bf16.xpose.msra.mxu0 %v3997
      %4015 = vmatprep.subr.bf16.mxu0 0
      %4016 = vmatpush2.bf16.xpose.msra.mxu0 0
      %4017 = vmatprep.subr.bf16.mxu0 0
      %4018 = vmatpush2.bf16.xpose.msra.mxu0 0
      %4019 = vmatprep.subr.bf16.mxu0 0
      %4020 = vmatpush2.bf16.xpose.msra.mxu0 0
      %4021 = vmatprep.subr.bf16.mxu0 0
      %4022 = vmatpush2.bf16.xpose.msra.mxu0 0
      %4023 = vmatprep.subr.bf16.mxu0 0
      %4024 = vmatpush2.bf16.xpose.msra.mxu0 0
      %4025 = vmatprep.subr.bf16.mxu0 0
      %4026 = vmatpush2.bf16.xpose.msra.mxu0 0
      %4027 = vmatprep.subr.bf16.mxu0 0
      %4028 = vmatpush2.bf16.xpose.msra.mxu0 0
      %4029 = vmatprep.subr.bf16.mxu0 0
      %4030 = vmatpush2.bf16.xpose.msra.mxu0 0
      %4031 = vmatprep.mubr.bf16.mxu0 0
      %4032 = vmatmul.mubr.bf16.gmra.mxu0 %v3994
      %v4033 = vpop.f32.mrf.mxu0
      %v4034 = vadd.f32 0.0, %v4033
      %v4035 = vpop.f32.mrf.mxu0
      %v4036 = vpop.f32.mrf.mxu0
      %v4037 = vadd.f32 0.0, %v4036
      %v4038 = vpop.f32.mrf.mxu0
      %4039 = vdwg.mxu0
      %v4041 = vsel %vm2597, %v3364, 0
      %v4044 = vsel %vm2597, %v3380, 0
      %4046 = vmatprep.subr.bf16.mxu0 0
      %4047 = vmatpush1.bf16.xpose.msra.mxu0 0
      %4048 = vmatprep.subr.bf16.mxu0 0
      %4049 = vmatpush1.bf16.xpose.msra.mxu0 0
      %4050 = vmatprep.subr.bf16.mxu0 0
      %4051 = vmatpush1.bf16.xpose.msra.mxu0 0
      %4052 = vmatprep.subr.bf16.mxu0 0
      %4053 = vmatpush1.bf16.xpose.msra.mxu0 0
      %4054 = vmatprep.subr.bf16.mxu0 0
      %4055 = vmatpush1.bf16.xpose.msra.mxu0 0
      %4056 = vmatprep.subr.bf16.mxu0 0
      %4057 = vmatpush1.bf16.xpose.msra.mxu0 0
      %4058 = vmatprep.subr.bf16.mxu0 0
      %4059 = vmatpush1.bf16.xpose.msra.mxu0 0
      %4060 = vmatprep.subr.bf16.mxu0 0
      %4061 = vmatpush1.bf16.xpose.msra.mxu0 %v4044
      %4062 = vmatprep.subr.bf16.mxu0 0
      %4063 = vmatpush2.bf16.xpose.msra.mxu0 0
      %4064 = vmatprep.subr.bf16.mxu0 0
      %4065 = vmatpush2.bf16.xpose.msra.mxu0 0
      %4066 = vmatprep.subr.bf16.mxu0 0
      %4067 = vmatpush2.bf16.xpose.msra.mxu0 0
      %4068 = vmatprep.subr.bf16.mxu0 0
      %4069 = vmatpush2.bf16.xpose.msra.mxu0 0
      %4070 = vmatprep.subr.bf16.mxu0 0
      %4071 = vmatpush2.bf16.xpose.msra.mxu0 0
      %4072 = vmatprep.subr.bf16.mxu0 0
      %4073 = vmatpush2.bf16.xpose.msra.mxu0 0
      %4074 = vmatprep.subr.bf16.mxu0 0
      %4075 = vmatpush2.bf16.xpose.msra.mxu0 0
      %4076 = vmatprep.subr.bf16.mxu0 0
      %4077 = vmatpush2.bf16.xpose.msra.mxu0 0
      %4078 = vmatprep.mubr.bf16.mxu0 0
      %4079 = vmatmul.mubr.bf16.gmra.mxu0 %v4041
      %v4080 = vpop.f32.mrf.mxu0
      %v4081 = vadd.f32 0.0, %v4080
      %v4082 = vpop.f32.mrf.mxu0
      %v4083 = vpop.f32.mrf.mxu0
      %v4084 = vadd.f32 0.0, %v4083
      %v4085 = vpop.f32.mrf.mxu0
      %4086 = vdwg.mxu0
      %v4088 = vsel %vm2597, %v3365, 0
      %v4091 = vsel %vm2597, %v3381, 0
      %4093 = vmatprep.subr.bf16.mxu0 0
      %4094 = vmatpush1.bf16.xpose.msra.mxu0 0
      %4095 = vmatprep.subr.bf16.mxu0 0
      %4096 = vmatpush1.bf16.xpose.msra.mxu0 0
      %4097 = vmatprep.subr.bf16.mxu0 0
      %4098 = vmatpush1.bf16.xpose.msra.mxu0 0
      %4099 = vmatprep.subr.bf16.mxu0 0
      %4100 = vmatpush1.bf16.xpose.msra.mxu0 0
      %4101 = vmatprep.subr.bf16.mxu0 0
      %4102 = vmatpush1.bf16.xpose.msra.mxu0 0
      %4103 = vmatprep.subr.bf16.mxu0 0
      %4104 = vmatpush1.bf16.xpose.msra.mxu0 0
      %4105 = vmatprep.subr.bf16.mxu0 0
      %4106 = vmatpush1.bf16.xpose.msra.mxu0 0
      %4107 = vmatprep.subr.bf16.mxu0 0
      %4108 = vmatpush1.bf16.xpose.msra.mxu0 %v4091
      %4109 = vmatprep.subr.bf16.mxu0 0
      %4110 = vmatpush2.bf16.xpose.msra.mxu0 0
      %4111 = vmatprep.subr.bf16.mxu0 0
      %4112 = vmatpush2.bf16.xpose.msra.mxu0 0
      %4113 = vmatprep.subr.bf16.mxu0 0
      %4114 = vmatpush2.bf16.xpose.msra.mxu0 0
      %4115 = vmatprep.subr.bf16.mxu0 0
      %4116 = vmatpush2.bf16.xpose.msra.mxu0 0
      %4117 = vmatprep.subr.bf16.mxu0 0
      %4118 = vmatpush2.bf16.xpose.msra.mxu0 0
      %4119 = vmatprep.subr.bf16.mxu0 0
      %4120 = vmatpush2.bf16.xpose.msra.mxu0 0
      %4121 = vmatprep.subr.bf16.mxu0 0
      %4122 = vmatpush2.bf16.xpose.msra.mxu0 0
      %4123 = vmatprep.subr.bf16.mxu0 0
      %4124 = vmatpush2.bf16.xpose.msra.mxu0 0
      %4125 = vmatprep.mubr.bf16.mxu0 0
      %4126 = vmatmul.mubr.bf16.gmra.mxu0 %v4088
      %v4127 = vpop.f32.mrf.mxu0
      %v4128 = vadd.f32 0.0, %v4127
      %v4129 = vpop.f32.mrf.mxu0
      %v4130 = vpop.f32.mrf.mxu0
      %v4131 = vadd.f32 0.0, %v4130
      %v4132 = vpop.f32.mrf.mxu0
      %4133 = vdwg.mxu0
      %v4134 = vlaneseq
      %v4135 = vshrl.u32 %v4134, 7
      %v4136 = vadd.s32 %v4135, 8
      %v4137 = vlaneseq
      %v4138 = vand.u32 %v4137, 127
      %vm4139 = vcmp.eq.s32.totalorder %v4135, %v4138
      %vm4140 = vcmp.eq.s32.totalorder %v4136, %v4138
      %v4141 = vsel %vm4139, -1e+30, %v2639
      %v4142 = vsel %vm4140, -1e+30, %v2642
      %v4143 = vsel %vm4139, -1e+30, %v2686
      %v4144 = vsel %vm4140, -1e+30, %v2689
      %v4145 = vsel %vm4139, -1e+30, %v2733
      %v4146 = vsel %vm4140, -1e+30, %v2736
      %v4147 = vsel %vm4139, -1e+30, %v2780
      %v4148 = vsel %vm4140, -1e+30, %v2783
      %v4149 = vsel %vm4139, -1e+30, %v2827
      %v4150 = vsel %vm4140, -1e+30, %v2830
      %v4151 = vsel %vm4139, -1e+30, %v2874
      %v4152 = vsel %vm4140, -1e+30, %v2877
      %v4153 = vsel %vm4139, -1e+30, %v2921
      %v4154 = vsel %vm4140, -1e+30, %v2924
      %v4155 = vsel %vm4139, -1e+30, %v2968
      %v4156 = vsel %vm4140, -1e+30, %v2971
      %v4157 = vsel %vm4139, -1e+30, %v3015
      %v4158 = vsel %vm4140, -1e+30, %v3018
      %v4159 = vsel %vm4139, -1e+30, %v3062
      %v4160 = vsel %vm4140, -1e+30, %v3065
      %v4161 = vsel %vm4139, -1e+30, %v3109
      %v4162 = vsel %vm4140, -1e+30, %v3112
      %v4163 = vsel %vm4139, -1e+30, %v3156
      %v4164 = vsel %vm4140, -1e+30, %v3159
      %v4165 = vsel %vm4139, -1e+30, %v3203
      %v4166 = vsel %vm4140, -1e+30, %v3206
      %v4167 = vsel %vm4139, -1e+30, %v3250
      %v4168 = vsel %vm4140, -1e+30, %v3253
      %v4169 = vsel %vm4139, -1e+30, %v3297
      %v4170 = vsel %vm4140, -1e+30, %v3300
      %v4171 = vsel %vm4139, -1e+30, %v3344
      %v4172 = vsel %vm4140, -1e+30, %v3347
      %v4173 = vsel %vm371, %v4141, -inf
      %4174 = vmax.xlane.f32.xlu0 %v4173
      %v4175 = vpop.xlane.xlu0 %4174
      %v4176 = vsel %vm371, %v4142, -inf
      %4177 = vmax.xlane.f32.xlu0 %v4176
      %v4178 = vpop.xlane.xlu0 %4177
      %v4179 = vsel %vm371, %v4143, -inf
      %4180 = vmax.xlane.f32.xlu0 %v4179
      %v4181 = vpop.xlane.xlu0 %4180
      %v4182 = vsel %vm371, %v4144, -inf
      %4183 = vmax.xlane.f32.xlu0 %v4182
      %v4184 = vpop.xlane.xlu0 %4183
      %v4185 = vsel %vm371, %v4145, -inf
      %4186 = vmax.xlane.f32.xlu0 %v4185
      %v4187 = vpop.xlane.xlu0 %4186
      %v4188 = vsel %vm371, %v4146, -inf
      %4189 = vmax.xlane.f32.xlu0 %v4188
      %v4190 = vpop.xlane.xlu0 %4189
      %v4191 = vsel %vm371, %v4147, -inf
      %4192 = vmax.xlane.f32.xlu0 %v4191
      %v4193 = vpop.xlane.xlu0 %4192
      %v4194 = vsel %vm371, %v4148, -inf
      %4195 = vmax.xlane.f32.xlu0 %v4194
      %v4196 = vpop.xlane.xlu0 %4195
      %v4197 = vsel %vm371, %v4149, -inf
      %4198 = vmax.xlane.f32.xlu0 %v4197
      %v4199 = vpop.xlane.xlu0 %4198
      %v4200 = vsel %vm371, %v4150, -inf
      %4201 = vmax.xlane.f32.xlu0 %v4200
      %v4202 = vpop.xlane.xlu0 %4201
      %v4203 = vsel %vm371, %v4151, -inf
      %4204 = vmax.xlane.f32.xlu0 %v4203
      %v4205 = vpop.xlane.xlu0 %4204
      %v4206 = vsel %vm371, %v4152, -inf
      %4207 = vmax.xlane.f32.xlu0 %v4206
      %v4208 = vpop.xlane.xlu0 %4207
      %v4209 = vsel %vm371, %v4153, -inf
      %4210 = vmax.xlane.f32.xlu0 %v4209
      %v4211 = vpop.xlane.xlu0 %4210
      %v4212 = vsel %vm371, %v4154, -inf
      %4213 = vmax.xlane.f32.xlu0 %v4212
      %v4214 = vpop.xlane.xlu0 %4213
      %v4215 = vsel %vm371, %v4155, -inf
      %4216 = vmax.xlane.f32.xlu0 %v4215
      %v4217 = vpop.xlane.xlu0 %4216
      %v4218 = vsel %vm371, %v4156, -inf
      %4219 = vmax.xlane.f32.xlu0 %v4218
      %v4220 = vpop.xlane.xlu0 %4219
      %v4221 = vsel %vm371, %v4157, -inf
      %4222 = vmax.xlane.f32.xlu0 %v4221
      %v4223 = vpop.xlane.xlu0 %4222
      %v4224 = vsel %vm371, %v4158, -inf
      %4225 = vmax.xlane.f32.xlu0 %v4224
      %v4226 = vpop.xlane.xlu0 %4225
      %v4227 = vsel %vm371, %v4159, -inf
      %4228 = vmax.xlane.f32.xlu0 %v4227
      %v4229 = vpop.xlane.xlu0 %4228
      %v4230 = vsel %vm371, %v4160, -inf
      %4231 = vmax.xlane.f32.xlu0 %v4230
      %v4232 = vpop.xlane.xlu0 %4231
      %v4233 = vsel %vm371, %v4161, -inf
      %4234 = vmax.xlane.f32.xlu0 %v4233
      %v4235 = vpop.xlane.xlu0 %4234
      %v4236 = vsel %vm371, %v4162, -inf
      %4237 = vmax.xlane.f32.xlu0 %v4236
      %v4238 = vpop.xlane.xlu0 %4237
      %v4239 = vsel %vm371, %v4163, -inf
      %4240 = vmax.xlane.f32.xlu0 %v4239
      %v4241 = vpop.xlane.xlu0 %4240
      %v4242 = vsel %vm371, %v4164, -inf
      %4243 = vmax.xlane.f32.xlu0 %v4242
      %v4244 = vpop.xlane.xlu0 %4243
      %v4245 = vsel %vm371, %v4165, -inf
      %4246 = vmax.xlane.f32.xlu0 %v4245
      %v4247 = vpop.xlane.xlu0 %4246
      %v4248 = vsel %vm371, %v4166, -inf
      %4249 = vmax.xlane.f32.xlu0 %v4248
      %v4250 = vpop.xlane.xlu0 %4249
      %v4251 = vsel %vm371, %v4167, -inf
      %4252 = vmax.xlane.f32.xlu0 %v4251
      %v4253 = vpop.xlane.xlu0 %4252
      %v4254 = vsel %vm371, %v4168, -inf
      %4255 = vmax.xlane.f32.xlu0 %v4254
      %v4256 = vpop.xlane.xlu0 %4255
      %v4257 = vsel %vm371, %v4169, -inf
      %4258 = vmax.xlane.f32.xlu0 %v4257
      %v4259 = vpop.xlane.xlu0 %4258
      %v4260 = vsel %vm371, %v4170, -inf
      %4261 = vmax.xlane.f32.xlu0 %v4260
      %v4262 = vpop.xlane.xlu0 %4261
      %v4263 = vsel %vm371, %v4171, -inf
      %4264 = vmax.xlane.f32.xlu0 %v4263
      %v4265 = vpop.xlane.xlu0 %4264
      %v4266 = vsel %vm371, %v4172, -inf
      %4267 = vmax.xlane.f32.xlu0 %v4266
      %v4268 = vpop.xlane.xlu0 %4267
      %v4269 = vsel %vm371, %v3423, -inf
      %4270 = vmax.xlane.f32.xlu0 %v4269
      %v4271 = vpop.xlane.xlu0 %4270
      %v4272 = vsel %vm371, %v3426, -inf
      %4273 = vmax.xlane.f32.xlu0 %v4272
      %v4274 = vpop.xlane.xlu0 %4273
      %v4275 = vsel %vm371, %v3470, -inf
      %4276 = vmax.xlane.f32.xlu0 %v4275
      %v4277 = vpop.xlane.xlu0 %4276
      %v4278 = vsel %vm371, %v3473, -inf
      %4279 = vmax.xlane.f32.xlu0 %v4278
      %v4280 = vpop.xlane.xlu0 %4279
      %v4281 = vsel %vm371, %v3517, -inf
      %4282 = vmax.xlane.f32.xlu0 %v4281
      %v4283 = vpop.xlane.xlu0 %4282
      %v4284 = vsel %vm371, %v3520, -inf
      %4285 = vmax.xlane.f32.xlu0 %v4284
      %v4286 = vpop.xlane.xlu0 %4285
      %v4287 = vsel %vm371, %v3564, -inf
      %4288 = vmax.xlane.f32.xlu0 %v4287
      %v4289 = vpop.xlane.xlu0 %4288
      %v4290 = vsel %vm371, %v3567, -inf
      %4291 = vmax.xlane.f32.xlu0 %v4290
      %v4292 = vpop.xlane.xlu0 %4291
      %v4293 = vsel %vm371, %v3611, -inf
      %4294 = vmax.xlane.f32.xlu0 %v4293
      %v4295 = vpop.xlane.xlu0 %4294
      %v4296 = vsel %vm371, %v3614, -inf
      %4297 = vmax.xlane.f32.xlu0 %v4296
      %v4298 = vpop.xlane.xlu0 %4297
      %v4299 = vsel %vm371, %v3658, -inf
      %4300 = vmax.xlane.f32.xlu0 %v4299
      %v4301 = vpop.xlane.xlu0 %4300
      %v4302 = vsel %vm371, %v3661, -inf
      %4303 = vmax.xlane.f32.xlu0 %v4302
      %v4304 = vpop.xlane.xlu0 %4303
      %v4305 = vsel %vm371, %v3705, -inf
      %4306 = vmax.xlane.f32.xlu0 %v4305
      %v4307 = vpop.xlane.xlu0 %4306
      %v4308 = vsel %vm371, %v3708, -inf
      %4309 = vmax.xlane.f32.xlu0 %v4308
      %v4310 = vpop.xlane.xlu0 %4309
      %v4311 = vsel %vm371, %v3752, -inf
      %4312 = vmax.xlane.f32.xlu0 %v4311
      %v4313 = vpop.xlane.xlu0 %4312
      %v4314 = vsel %vm371, %v3755, -inf
      %4315 = vmax.xlane.f32.xlu0 %v4314
      %v4316 = vpop.xlane.xlu0 %4315
      %v4317 = vsel %vm371, %v3799, -inf
      %4318 = vmax.xlane.f32.xlu0 %v4317
      %v4319 = vpop.xlane.xlu0 %4318
      %v4320 = vsel %vm371, %v3802, -inf
      %4321 = vmax.xlane.f32.xlu0 %v4320
      %v4322 = vpop.xlane.xlu0 %4321
      %v4323 = vsel %vm371, %v3846, -inf
      %4324 = vmax.xlane.f32.xlu0 %v4323
      %v4325 = vpop.xlane.xlu0 %4324
      %v4326 = vsel %vm371, %v3849, -inf
      %4327 = vmax.xlane.f32.xlu0 %v4326
      %v4328 = vpop.xlane.xlu0 %4327
      %v4329 = vsel %vm371, %v3893, -inf
      %4330 = vmax.xlane.f32.xlu0 %v4329
      %v4331 = vpop.xlane.xlu0 %4330
      %v4332 = vsel %vm371, %v3896, -inf
      %4333 = vmax.xlane.f32.xlu0 %v4332
      %v4334 = vpop.xlane.xlu0 %4333
      %v4335 = vsel %vm371, %v3940, -inf
      %4336 = vmax.xlane.f32.xlu0 %v4335
      %v4337 = vpop.xlane.xlu0 %4336
      %v4338 = vsel %vm371, %v3943, -inf
      %4339 = vmax.xlane.f32.xlu0 %v4338
      %v4340 = vpop.xlane.xlu0 %4339
      %v4341 = vsel %vm371, %v3987, -inf
      %4342 = vmax.xlane.f32.xlu0 %v4341
      %v4343 = vpop.xlane.xlu0 %4342
      %v4344 = vsel %vm371, %v3990, -inf
      %4345 = vmax.xlane.f32.xlu0 %v4344
      %v4346 = vpop.xlane.xlu0 %4345
      %v4347 = vsel %vm371, %v4034, -inf
      %4348 = vmax.xlane.f32.xlu0 %v4347
      %v4349 = vpop.xlane.xlu0 %4348
      %v4350 = vsel %vm371, %v4037, -inf
      %4351 = vmax.xlane.f32.xlu0 %v4350
      %v4352 = vpop.xlane.xlu0 %4351
      %v4353 = vsel %vm371, %v4081, -inf
      %4354 = vmax.xlane.f32.xlu0 %v4353
      %v4355 = vpop.xlane.xlu0 %4354
      %v4356 = vsel %vm371, %v4084, -inf
      %4357 = vmax.xlane.f32.xlu0 %v4356
      %v4358 = vpop.xlane.xlu0 %4357
      %v4359 = vsel %vm371, %v4128, -inf
      %4360 = vmax.xlane.f32.xlu0 %v4359
      %v4361 = vpop.xlane.xlu0 %4360
      %v4362 = vsel %vm371, %v4131, -inf
      %4363 = vmax.xlane.f32.xlu0 %v4362
      %v4364 = vpop.xlane.xlu0 %4363
      %v4397 = vlaneseq
      %v4398 = vshrl.u32 %v4397, 7
      %v4399 = vsub.s32 %v4138, %v4398
      %v4400 = vrot.slane %v4271, %v4399
      %v4401 = vadd.s32 %v4138, 4294967288
      %v4402 = vlaneseq
      %v4403 = vshrl.u32 %v4402, 7
      %v4404 = vsub.s32 %v4401, %v4403
      %v4405 = vrot.slane %v4274, %v4404
      %vm4406 = vcmask 130112
      %v4407 = vsel %vm4406, %v4405, %v4400
      %v4408 = vlaneseq
      %v4409 = vshrl.u32 %v4408, 7
      %v4410 = vsub.s32 %v4138, %v4409
      %v4411 = vrot.slane %v4277, %v4410
      %v4412 = vlaneseq
      %v4413 = vshrl.u32 %v4412, 7
      %v4414 = vsub.s32 %v4401, %v4413
      %v4415 = vrot.slane %v4280, %v4414
      %v4416 = vsel %vm4406, %v4415, %v4411
      %v4417 = vlaneseq
      %v4418 = vshrl.u32 %v4417, 7
      %v4419 = vsub.s32 %v4138, %v4418
      %v4420 = vrot.slane %v4283, %v4419
      %v4421 = vlaneseq
      %v4422 = vshrl.u32 %v4421, 7
      %v4423 = vsub.s32 %v4401, %v4422
      %v4424 = vrot.slane %v4286, %v4423
      %v4425 = vsel %vm4406, %v4424, %v4420
      %v4426 = vlaneseq
      %v4427 = vshrl.u32 %v4426, 7
      %v4428 = vsub.s32 %v4138, %v4427
      %v4429 = vrot.slane %v4289, %v4428
      %v4430 = vlaneseq
      %v4431 = vshrl.u32 %v4430, 7
      %v4432 = vsub.s32 %v4401, %v4431
      %v4433 = vrot.slane %v4292, %v4432
      %v4434 = vsel %vm4406, %v4433, %v4429
      %v4435 = vlaneseq
      %v4436 = vshrl.u32 %v4435, 7
      %v4437 = vsub.s32 %v4138, %v4436
      %v4438 = vrot.slane %v4295, %v4437
      %v4439 = vlaneseq
      %v4440 = vshrl.u32 %v4439, 7
      %v4441 = vsub.s32 %v4401, %v4440
      %v4442 = vrot.slane %v4298, %v4441
      %v4443 = vsel %vm4406, %v4442, %v4438
      %v4444 = vlaneseq
      %v4445 = vshrl.u32 %v4444, 7
      %v4446 = vsub.s32 %v4138, %v4445
      %v4447 = vrot.slane %v4301, %v4446
      %v4448 = vlaneseq
      %v4449 = vshrl.u32 %v4448, 7
      %v4450 = vsub.s32 %v4401, %v4449
      %v4451 = vrot.slane %v4304, %v4450
      %v4452 = vsel %vm4406, %v4451, %v4447
      %v4453 = vlaneseq
      %v4454 = vshrl.u32 %v4453, 7
      %v4455 = vsub.s32 %v4138, %v4454
      %v4456 = vrot.slane %v4307, %v4455
      %v4457 = vlaneseq
      %v4458 = vshrl.u32 %v4457, 7
      %v4459 = vsub.s32 %v4401, %v4458
      %v4460 = vrot.slane %v4310, %v4459
      %v4461 = vsel %vm4406, %v4460, %v4456
      %v4462 = vlaneseq
      %v4463 = vshrl.u32 %v4462, 7
      %v4464 = vsub.s32 %v4138, %v4463
      %v4465 = vrot.slane %v4313, %v4464
      %v4466 = vlaneseq
      %v4467 = vshrl.u32 %v4466, 7
      %v4468 = vsub.s32 %v4401, %v4467
      %v4469 = vrot.slane %v4316, %v4468
      %v4470 = vsel %vm4406, %v4469, %v4465
      %v4471 = vlaneseq
      %v4472 = vshrl.u32 %v4471, 7
      %v4473 = vsub.s32 %v4138, %v4472
      %v4474 = vrot.slane %v4319, %v4473
      %v4475 = vlaneseq
      %v4476 = vshrl.u32 %v4475, 7
      %v4477 = vsub.s32 %v4401, %v4476
      %v4478 = vrot.slane %v4322, %v4477
      %v4479 = vsel %vm4406, %v4478, %v4474
      %v4480 = vlaneseq
      %v4481 = vshrl.u32 %v4480, 7
      %v4482 = vsub.s32 %v4138, %v4481
      %v4483 = vrot.slane %v4325, %v4482
      %v4484 = vlaneseq
      %v4485 = vshrl.u32 %v4484, 7
      %v4486 = vsub.s32 %v4401, %v4485
      %v4487 = vrot.slane %v4328, %v4486
      %v4488 = vsel %vm4406, %v4487, %v4483
      %v4489 = vlaneseq
      %v4490 = vshrl.u32 %v4489, 7
      %v4491 = vsub.s32 %v4138, %v4490
      %v4492 = vrot.slane %v4331, %v4491
      %v4493 = vlaneseq
      %v4494 = vshrl.u32 %v4493, 7
      %v4495 = vsub.s32 %v4401, %v4494
      %v4496 = vrot.slane %v4334, %v4495
      %v4497 = vsel %vm4406, %v4496, %v4492
      %v4498 = vlaneseq
      %v4499 = vshrl.u32 %v4498, 7
      %v4500 = vsub.s32 %v4138, %v4499
      %v4501 = vrot.slane %v4337, %v4500
      %v4502 = vlaneseq
      %v4503 = vshrl.u32 %v4502, 7
      %v4504 = vsub.s32 %v4401, %v4503
      %v4505 = vrot.slane %v4340, %v4504
      %v4506 = vsel %vm4406, %v4505, %v4501
      %v4507 = vlaneseq
      %v4508 = vshrl.u32 %v4507, 7
      %v4509 = vsub.s32 %v4138, %v4508
      %v4510 = vrot.slane %v4343, %v4509
      %v4511 = vlaneseq
      %v4512 = vshrl.u32 %v4511, 7
      %v4513 = vsub.s32 %v4401, %v4512
      %v4514 = vrot.slane %v4346, %v4513
      %v4515 = vsel %vm4406, %v4514, %v4510
      %v4516 = vlaneseq
      %v4517 = vshrl.u32 %v4516, 7
      %v4518 = vsub.s32 %v4138, %v4517
      %v4519 = vrot.slane %v4349, %v4518
      %v4520 = vlaneseq
      %v4521 = vshrl.u32 %v4520, 7
      %v4522 = vsub.s32 %v4401, %v4521
      %v4523 = vrot.slane %v4352, %v4522
      %v4524 = vsel %vm4406, %v4523, %v4519
      %v4525 = vlaneseq
      %v4526 = vshrl.u32 %v4525, 7
      %v4527 = vsub.s32 %v4138, %v4526
      %v4528 = vrot.slane %v4355, %v4527
      %v4529 = vlaneseq
      %v4530 = vshrl.u32 %v4529, 7
      %v4531 = vsub.s32 %v4401, %v4530
      %v4532 = vrot.slane %v4358, %v4531
      %v4533 = vsel %vm4406, %v4532, %v4528
      %v4534 = vlaneseq
      %v4535 = vshrl.u32 %v4534, 7
      %v4536 = vsub.s32 %v4138, %v4535
      %v4537 = vrot.slane %v4361, %v4536
      %v4538 = vlaneseq
      %v4539 = vshrl.u32 %v4538, 7
      %v4540 = vsub.s32 %v4401, %v4539
      %v4541 = vrot.slane %v4364, %v4540
      %v4542 = vsel %vm4406, %v4541, %v4537
      %vm4543 = vcmask 1041409
      %v4544 = vsel %vm4543, %v4416, %v4407
      %vm4545 = vcmask 1042434
      %v4546 = vsel %vm4545, %v4425, %v4544
      %vm4547 = vcmask 1043459
      %v4548 = vsel %vm4547, %v4434, %v4546
      %vm4549 = vcmask 1044484
      %v4550 = vsel %vm4549, %v4443, %v4548
      %vm4551 = vcmask 1045509
      %v4552 = vsel %vm4551, %v4452, %v4550
      %vm4553 = vcmask 1046534
      %v4554 = vsel %vm4553, %v4461, %v4552
      %vm4555 = vcmask 1047559
      %v4556 = vsel %vm4555, %v4470, %v4554
      %v4557 = vsel %vm4543, %v4488, %v4479
      %v4558 = vsel %vm4545, %v4497, %v4557
      %v4559 = vsel %vm4547, %v4506, %v4558
      %v4560 = vsel %vm4549, %v4515, %v4559
      %v4561 = vsel %vm4551, %v4524, %v4560
      %v4562 = vsel %vm4553, %v4533, %v4561
      %v4563 = vsel %vm4555, %v4542, %v4562
      %4566 = vxpose.xlu0.b32.start [1/16] %v4556, 128
      %4567 = vxpose.xlu0.b32.cont [2/16] %v4563, 128
      %4568 = vxpose.xlu0.b32.cont [3/16] 0.0, 128
      %4569 = vxpose.xlu0.b32.cont [4/16] 0.0, 128
      %4570 = vxpose.xlu0.b32.cont [5/16] 0.0, 128
      %4571 = vxpose.xlu0.b32.cont [6/16] 0.0, 128
      %4572 = vxpose.xlu0.b32.cont [7/16] 0.0, 128
      %4573 = vxpose.xlu0.b32.cont [8/16] 0.0, 128
      %4574 = vxpose.xlu0.b32.cont [9/16] 0.0, 128
      %4575 = vxpose.xlu0.b32.cont [10/16] 0.0, 128
      %4576 = vxpose.xlu0.b32.cont [11/16] 0.0, 128
      %4577 = vxpose.xlu0.b32.cont [12/16] 0.0, 128
      %4578 = vxpose.xlu0.b32.cont [13/16] 0.0, 128
      %4579 = vxpose.xlu0.b32.cont [14/16] 0.0, 128
      %4580 = vxpose.xlu0.b32.cont [15/16] 0.0, 128
      %4581 = vxpose.xlu0.b32.end [16/16] 0.0, 128
      %v4582 = vpop.trf.xlu0
      %v4583 = vpop.trf.xlu0
      %v4584 = vpop.trf.xlu0
      %v4585 = vpop.trf.xlu0
      %v4586 = vpop.trf.xlu0
      %v4587 = vpop.trf.xlu0
      %v4588 = vpop.trf.xlu0
      %v4589 = vpop.trf.xlu0
      %v4590 = vpop.trf.xlu0
      %v4591 = vpop.trf.xlu0
      %v4592 = vpop.trf.xlu0
      %v4593 = vpop.trf.xlu0
      %v4594 = vpop.trf.xlu0
      %v4595 = vpop.trf.xlu0
      %v4596 = vpop.trf.xlu0
      %v4597 = vpop.trf.xlu0
      %v4600 = vlaneseq
      %v4601 = vshrl.u32 %v4600, 7
      %v4602 = vsub.s32 0, %v4601
      %v4603 = vrot.slane %v4582, %v4602
      %4605 = vbcast.lane.b32.xlu0 %v4603, 256
      %v4606 = vpop.permute.xlu0 %4605
      %s4608 = sor.u32 256, 8
      %4609 = vbcast.lane.b32.xlu0 %v4603, %s4608
      %v4610 = vpop.permute.xlu0 %4609
      %v4611 = vlaneseq
      %v4612 = vshrl.u32 %v4611, 7
      %v4613 = vsub.s32 1, %v4612
      %v4614 = vrot.slane %v4582, %v4613
      %4616 = vbcast.lane.b32.xlu0 %v4614, 256
      %v4617 = vpop.permute.xlu0 %4616
      %s4619 = sor.u32 256, 8
      %4620 = vbcast.lane.b32.xlu0 %v4614, %s4619
      %v4621 = vpop.permute.xlu0 %4620
      %v4622 = vlaneseq
      %v4623 = vshrl.u32 %v4622, 7
      %v4624 = vsub.s32 2, %v4623
      %v4625 = vrot.slane %v4582, %v4624
      %4627 = vbcast.lane.b32.xlu0 %v4625, 256
      %v4628 = vpop.permute.xlu0 %4627
      %s4630 = sor.u32 256, 8
      %4631 = vbcast.lane.b32.xlu0 %v4625, %s4630
      %v4632 = vpop.permute.xlu0 %4631
      %v4633 = vlaneseq
      %v4634 = vshrl.u32 %v4633, 7
      %v4635 = vsub.s32 3, %v4634
      %v4636 = vrot.slane %v4582, %v4635
      %4638 = vbcast.lane.b32.xlu0 %v4636, 256
      %v4639 = vpop.permute.xlu0 %4638
      %s4641 = sor.u32 256, 8
      %4642 = vbcast.lane.b32.xlu0 %v4636, %s4641
      %v4643 = vpop.permute.xlu0 %4642
      %v4644 = vlaneseq
      %v4645 = vshrl.u32 %v4644, 7
      %v4646 = vsub.s32 4, %v4645
      %v4647 = vrot.slane %v4582, %v4646
      %4649 = vbcast.lane.b32.xlu0 %v4647, 256
      %v4650 = vpop.permute.xlu0 %4649
      %s4652 = sor.u32 256, 8
      %4653 = vbcast.lane.b32.xlu0 %v4647, %s4652
      %v4654 = vpop.permute.xlu0 %4653
      %v4655 = vlaneseq
      %v4656 = vshrl.u32 %v4655, 7
      %v4657 = vsub.s32 5, %v4656
      %v4658 = vrot.slane %v4582, %v4657
      %4660 = vbcast.lane.b32.xlu0 %v4658, 256
      %v4661 = vpop.permute.xlu0 %4660
      %s4663 = sor.u32 256, 8
      %4664 = vbcast.lane.b32.xlu0 %v4658, %s4663
      %v4665 = vpop.permute.xlu0 %4664
      %v4666 = vlaneseq
      %v4667 = vshrl.u32 %v4666, 7
      %v4668 = vsub.s32 6, %v4667
      %v4669 = vrot.slane %v4582, %v4668
      %4671 = vbcast.lane.b32.xlu0 %v4669, 256
      %v4672 = vpop.permute.xlu0 %4671
      %s4674 = sor.u32 256, 8
      %4675 = vbcast.lane.b32.xlu0 %v4669, %s4674
      %v4676 = vpop.permute.xlu0 %4675
      %v4677 = vlaneseq
      %v4678 = vshrl.u32 %v4677, 7
      %v4679 = vsub.s32 7, %v4678
      %v4680 = vrot.slane %v4582, %v4679
      %4682 = vbcast.lane.b32.xlu0 %v4680, 256
      %v4683 = vpop.permute.xlu0 %4682
      %s4685 = sor.u32 256, 8
      %4686 = vbcast.lane.b32.xlu0 %v4680, %s4685
      %v4687 = vpop.permute.xlu0 %4686
      %v4688 = vlaneseq
      %v4689 = vshrl.u32 %v4688, 7
      %v4690 = vsub.s32 0, %v4689
      %v4691 = vrot.slane %v4583, %v4690
      %4693 = vbcast.lane.b32.xlu0 %v4691, 256
      %v4694 = vpop.permute.xlu0 %4693
      %s4696 = sor.u32 256, 8
      %4697 = vbcast.lane.b32.xlu0 %v4691, %s4696
      %v4698 = vpop.permute.xlu0 %4697
      %v4699 = vlaneseq
      %v4700 = vshrl.u32 %v4699, 7
      %v4701 = vsub.s32 1, %v4700
      %v4702 = vrot.slane %v4583, %v4701
      %4704 = vbcast.lane.b32.xlu0 %v4702, 256
      %v4705 = vpop.permute.xlu0 %4704
      %s4707 = sor.u32 256, 8
      %4708 = vbcast.lane.b32.xlu0 %v4702, %s4707
      %v4709 = vpop.permute.xlu0 %4708
      %v4710 = vlaneseq
      %v4711 = vshrl.u32 %v4710, 7
      %v4712 = vsub.s32 2, %v4711
      %v4713 = vrot.slane %v4583, %v4712
      %4715 = vbcast.lane.b32.xlu0 %v4713, 256
      %v4716 = vpop.permute.xlu0 %4715
      %s4718 = sor.u32 256, 8
      %4719 = vbcast.lane.b32.xlu0 %v4713, %s4718
      %v4720 = vpop.permute.xlu0 %4719
      %v4721 = vlaneseq
      %v4722 = vshrl.u32 %v4721, 7
      %v4723 = vsub.s32 3, %v4722
      %v4724 = vrot.slane %v4583, %v4723
      %4726 = vbcast.lane.b32.xlu0 %v4724, 256
      %v4727 = vpop.permute.xlu0 %4726
      %s4729 = sor.u32 256, 8
      %4730 = vbcast.lane.b32.xlu0 %v4724, %s4729
      %v4731 = vpop.permute.xlu0 %4730
      %v4732 = vlaneseq
      %v4733 = vshrl.u32 %v4732, 7
      %v4734 = vsub.s32 4, %v4733
      %v4735 = vrot.slane %v4583, %v4734
      %4737 = vbcast.lane.b32.xlu0 %v4735, 256
      %v4738 = vpop.permute.xlu0 %4737
      %s4740 = sor.u32 256, 8
      %4741 = vbcast.lane.b32.xlu0 %v4735, %s4740
      %v4742 = vpop.permute.xlu0 %4741
      %v4743 = vlaneseq
      %v4744 = vshrl.u32 %v4743, 7
      %v4745 = vsub.s32 5, %v4744
      %v4746 = vrot.slane %v4583, %v4745
      %4748 = vbcast.lane.b32.xlu0 %v4746, 256
      %v4749 = vpop.permute.xlu0 %4748
      %s4751 = sor.u32 256, 8
      %4752 = vbcast.lane.b32.xlu0 %v4746, %s4751
      %v4753 = vpop.permute.xlu0 %4752
      %v4754 = vlaneseq
      %v4755 = vshrl.u32 %v4754, 7
      %v4756 = vsub.s32 6, %v4755
      %v4757 = vrot.slane %v4583, %v4756
      %4759 = vbcast.lane.b32.xlu0 %v4757, 256
      %v4760 = vpop.permute.xlu0 %4759
      %s4762 = sor.u32 256, 8
      %4763 = vbcast.lane.b32.xlu0 %v4757, %s4762
      %v4764 = vpop.permute.xlu0 %4763
      %v4765 = vlaneseq
      %v4766 = vshrl.u32 %v4765, 7
      %v4767 = vsub.s32 7, %v4766
      %v4768 = vrot.slane %v4583, %v4767
      %4770 = vbcast.lane.b32.xlu0 %v4768, 256
      %v4771 = vpop.permute.xlu0 %4770
      %s4773 = sor.u32 256, 8
      %4774 = vbcast.lane.b32.xlu0 %v4768, %s4773
      %v4775 = vpop.permute.xlu0 %4774
      %v4808 = vmax.f32 %v4175, %v4606
      %v4809 = vmax.f32 %v4178, %v4610
      %v4810 = vmax.f32 %v4181, %v4617
      %v4811 = vmax.f32 %v4184, %v4621
      %v4812 = vmax.f32 %v4187, %v4628
      %v4813 = vmax.f32 %v4190, %v4632
      %v4814 = vmax.f32 %v4193, %v4639
      %v4815 = vmax.f32 %v4196, %v4643
      %v4816 = vmax.f32 %v4199, %v4650
      %v4817 = vmax.f32 %v4202, %v4654
      %v4818 = vmax.f32 %v4205, %v4661
      %v4819 = vmax.f32 %v4208, %v4665
      %v4820 = vmax.f32 %v4211, %v4672
      %v4821 = vmax.f32 %v4214, %v4676
      %v4822 = vmax.f32 %v4217, %v4683
      %v4823 = vmax.f32 %v4220, %v4687
      %v4824 = vmax.f32 %v4223, %v4694
      %v4825 = vmax.f32 %v4226, %v4698
      %v4826 = vmax.f32 %v4229, %v4705
      %v4827 = vmax.f32 %v4232, %v4709
      %v4828 = vmax.f32 %v4235, %v4716
      %v4829 = vmax.f32 %v4238, %v4720
      %v4830 = vmax.f32 %v4241, %v4727
      %v4831 = vmax.f32 %v4244, %v4731
      %v4832 = vmax.f32 %v4247, %v4738
      %v4833 = vmax.f32 %v4250, %v4742
      %v4834 = vmax.f32 %v4253, %v4749
      %v4835 = vmax.f32 %v4256, %v4753
      %v4836 = vmax.f32 %v4259, %v4760
      %v4837 = vmax.f32 %v4262, %v4764
      %v4838 = vmax.f32 %v4265, %v4771
      %v4839 = vmax.f32 %v4268, %v4775
      %4872 = vset.pattern.permute.xlu0 0
      %4873 = vperm.xlu0 %4872, %v4808
      %v4874 = vpop.permute.xlu0 %4873
      %4875 = vset.pattern.permute.xlu0 0
      %4876 = vperm.xlu0 %4875, %v4809
      %v4877 = vpop.permute.xlu0 %4876
      %4878 = vset.pattern.permute.xlu0 0
      %4879 = vperm.xlu0 %4878, %v4810
      %v4880 = vpop.permute.xlu0 %4879
      %4881 = vset.pattern.permute.xlu0 0
      %4882 = vperm.xlu0 %4881, %v4811
      %v4883 = vpop.permute.xlu0 %4882
      %4884 = vset.pattern.permute.xlu0 0
      %4885 = vperm.xlu0 %4884, %v4812
      %v4886 = vpop.permute.xlu0 %4885
      %4887 = vset.pattern.permute.xlu0 0
      %4888 = vperm.xlu0 %4887, %v4813
      %v4889 = vpop.permute.xlu0 %4888
      %4890 = vset.pattern.permute.xlu0 0
      %4891 = vperm.xlu0 %4890, %v4814
      %v4892 = vpop.permute.xlu0 %4891
      %4893 = vset.pattern.permute.xlu0 0
      %4894 = vperm.xlu0 %4893, %v4815
      %v4895 = vpop.permute.xlu0 %4894
      %4896 = vset.pattern.permute.xlu0 0
      %4897 = vperm.xlu0 %4896, %v4816
      %v4898 = vpop.permute.xlu0 %4897
      %4899 = vset.pattern.permute.xlu0 0
      %4900 = vperm.xlu0 %4899, %v4817
      %v4901 = vpop.permute.xlu0 %4900
      %4902 = vset.pattern.permute.xlu0 0
      %4903 = vperm.xlu0 %4902, %v4818
      %v4904 = vpop.permute.xlu0 %4903
      %4905 = vset.pattern.permute.xlu0 0
      %4906 = vperm.xlu0 %4905, %v4819
      %v4907 = vpop.permute.xlu0 %4906
      %4908 = vset.pattern.permute.xlu0 0
      %4909 = vperm.xlu0 %4908, %v4820
      %v4910 = vpop.permute.xlu0 %4909
      %4911 = vset.pattern.permute.xlu0 0
      %4912 = vperm.xlu0 %4911, %v4821
      %v4913 = vpop.permute.xlu0 %4912
      %4914 = vset.pattern.permute.xlu0 0
      %4915 = vperm.xlu0 %4914, %v4822
      %v4916 = vpop.permute.xlu0 %4915
      %4917 = vset.pattern.permute.xlu0 0
      %4918 = vperm.xlu0 %4917, %v4823
      %v4919 = vpop.permute.xlu0 %4918
      %4920 = vset.pattern.permute.xlu0 0
      %4921 = vperm.xlu0 %4920, %v4824
      %v4922 = vpop.permute.xlu0 %4921
      %4923 = vset.pattern.permute.xlu0 0
      %4924 = vperm.xlu0 %4923, %v4825
      %v4925 = vpop.permute.xlu0 %4924
      %4926 = vset.pattern.permute.xlu0 0
      %4927 = vperm.xlu0 %4926, %v4826
      %v4928 = vpop.permute.xlu0 %4927
      %4929 = vset.pattern.permute.xlu0 0
      %4930 = vperm.xlu0 %4929, %v4827
      %v4931 = vpop.permute.xlu0 %4930
      %4932 = vset.pattern.permute.xlu0 0
      %4933 = vperm.xlu0 %4932, %v4828
      %v4934 = vpop.permute.xlu0 %4933
      %4935 = vset.pattern.permute.xlu0 0
      %4936 = vperm.xlu0 %4935, %v4829
      %v4937 = vpop.permute.xlu0 %4936
      %4938 = vset.pattern.permute.xlu0 0
      %4939 = vperm.xlu0 %4938, %v4830
      %v4940 = vpop.permute.xlu0 %4939
      %4941 = vset.pattern.permute.xlu0 0
      %4942 = vperm.xlu0 %4941, %v4831
      %v4943 = vpop.permute.xlu0 %4942
      %4944 = vset.pattern.permute.xlu0 0
      %4945 = vperm.xlu0 %4944, %v4832
      %v4946 = vpop.permute.xlu0 %4945
      %4947 = vset.pattern.permute.xlu0 0
      %4948 = vperm.xlu0 %4947, %v4833
      %v4949 = vpop.permute.xlu0 %4948
      %4950 = vset.pattern.permute.xlu0 0
      %4951 = vperm.xlu0 %4950, %v4834
      %v4952 = vpop.permute.xlu0 %4951
      %4953 = vset.pattern.permute.xlu0 0
      %4954 = vperm.xlu0 %4953, %v4835
      %v4955 = vpop.permute.xlu0 %4954
      %4956 = vset.pattern.permute.xlu0 0
      %4957 = vperm.xlu0 %4956, %v4836
      %v4958 = vpop.permute.xlu0 %4957
      %4959 = vset.pattern.permute.xlu0 0
      %4960 = vperm.xlu0 %4959, %v4837
      %v4961 = vpop.permute.xlu0 %4960
      %4962 = vset.pattern.permute.xlu0 0
      %4963 = vperm.xlu0 %4962, %v4838
      %v4964 = vpop.permute.xlu0 %4963
      %4965 = vset.pattern.permute.xlu0 0
      %4966 = vperm.xlu0 %4965, %v4839
      %v4967 = vpop.permute.xlu0 %4966
      %v4968 = vlaneseq
      %v4969 = vshrl.u32 %v4968, 7
      %v4970 = vsub.s32 %v4138, %v4969
      %v4971 = vrot.slane %v4874, %v4970
      %v4972 = vlaneseq
      %v4973 = vshrl.u32 %v4972, 7
      %v4974 = vsub.s32 %v4401, %v4973
      %v4975 = vrot.slane %v4877, %v4974
      %v4976 = vsel %vm4406, %v4975, %v4971
      %v4977 = vlaneseq
      %v4978 = vshrl.u32 %v4977, 7
      %v4979 = vsub.s32 %v4138, %v4978
      %v4980 = vrot.slane %v4880, %v4979
      %v4981 = vlaneseq
      %v4982 = vshrl.u32 %v4981, 7
      %v4983 = vsub.s32 %v4401, %v4982
      %v4984 = vrot.slane %v4883, %v4983
      %v4985 = vsel %vm4406, %v4984, %v4980
      %v4986 = vlaneseq
      %v4987 = vshrl.u32 %v4986, 7
      %v4988 = vsub.s32 %v4138, %v4987
      %v4989 = vrot.slane %v4886, %v4988
      %v4990 = vlaneseq
      %v4991 = vshrl.u32 %v4990, 7
      %v4992 = vsub.s32 %v4401, %v4991
      %v4993 = vrot.slane %v4889, %v4992
      %v4994 = vsel %vm4406, %v4993, %v4989
      %v4995 = vlaneseq
      %v4996 = vshrl.u32 %v4995, 7
      %v4997 = vsub.s32 %v4138, %v4996
      %v4998 = vrot.slane %v4892, %v4997
      %v4999 = vlaneseq
      %v5000 = vshrl.u32 %v4999, 7
      %v5001 = vsub.s32 %v4401, %v5000
      %v5002 = vrot.slane %v4895, %v5001
      %v5003 = vsel %vm4406, %v5002, %v4998
      %v5004 = vlaneseq
      %v5005 = vshrl.u32 %v5004, 7
      %v5006 = vsub.s32 %v4138, %v5005
      %v5007 = vrot.slane %v4898, %v5006
      %v5008 = vlaneseq
      %v5009 = vshrl.u32 %v5008, 7
      %v5010 = vsub.s32 %v4401, %v5009
      %v5011 = vrot.slane %v4901, %v5010
      %v5012 = vsel %vm4406, %v5011, %v5007
      %v5013 = vlaneseq
      %v5014 = vshrl.u32 %v5013, 7
      %v5015 = vsub.s32 %v4138, %v5014
      %v5016 = vrot.slane %v4904, %v5015
      %v5017 = vlaneseq
      %v5018 = vshrl.u32 %v5017, 7
      %v5019 = vsub.s32 %v4401, %v5018
      %v5020 = vrot.slane %v4907, %v5019
      %v5021 = vsel %vm4406, %v5020, %v5016
      %v5022 = vlaneseq
      %v5023 = vshrl.u32 %v5022, 7
      %v5024 = vsub.s32 %v4138, %v5023
      %v5025 = vrot.slane %v4910, %v5024
      %v5026 = vlaneseq
      %v5027 = vshrl.u32 %v5026, 7
      %v5028 = vsub.s32 %v4401, %v5027
      %v5029 = vrot.slane %v4913, %v5028
      %v5030 = vsel %vm4406, %v5029, %v5025
      %v5031 = vlaneseq
      %v5032 = vshrl.u32 %v5031, 7
      %v5033 = vsub.s32 %v4138, %v5032
      %v5034 = vrot.slane %v4916, %v5033
      %v5035 = vlaneseq
      %v5036 = vshrl.u32 %v5035, 7
      %v5037 = vsub.s32 %v4401, %v5036
      %v5038 = vrot.slane %v4919, %v5037
      %v5039 = vsel %vm4406, %v5038, %v5034
      %v5040 = vlaneseq
      %v5041 = vshrl.u32 %v5040, 7
      %v5042 = vsub.s32 %v4138, %v5041
      %v5043 = vrot.slane %v4922, %v5042
      %v5044 = vlaneseq
      %v5045 = vshrl.u32 %v5044, 7
      %v5046 = vsub.s32 %v4401, %v5045
      %v5047 = vrot.slane %v4925, %v5046
      %v5048 = vsel %vm4406, %v5047, %v5043
      %v5049 = vlaneseq
      %v5050 = vshrl.u32 %v5049, 7
      %v5051 = vsub.s32 %v4138, %v5050
      %v5052 = vrot.slane %v4928, %v5051
      %v5053 = vlaneseq
      %v5054 = vshrl.u32 %v5053, 7
      %v5055 = vsub.s32 %v4401, %v5054
      %v5056 = vrot.slane %v4931, %v5055
      %v5057 = vsel %vm4406, %v5056, %v5052
      %v5058 = vlaneseq
      %v5059 = vshrl.u32 %v5058, 7
      %v5060 = vsub.s32 %v4138, %v5059
      %v5061 = vrot.slane %v4934, %v5060
      %v5062 = vlaneseq
      %v5063 = vshrl.u32 %v5062, 7
      %v5064 = vsub.s32 %v4401, %v5063
      %v5065 = vrot.slane %v4937, %v5064
      %v5066 = vsel %vm4406, %v5065, %v5061
      %v5067 = vlaneseq
      %v5068 = vshrl.u32 %v5067, 7
      %v5069 = vsub.s32 %v4138, %v5068
      %v5070 = vrot.slane %v4940, %v5069
      %v5071 = vlaneseq
      %v5072 = vshrl.u32 %v5071, 7
      %v5073 = vsub.s32 %v4401, %v5072
      %v5074 = vrot.slane %v4943, %v5073
      %v5075 = vsel %vm4406, %v5074, %v5070
      %v5076 = vlaneseq
      %v5077 = vshrl.u32 %v5076, 7
      %v5078 = vsub.s32 %v4138, %v5077
      %v5079 = vrot.slane %v4946, %v5078
      %v5080 = vlaneseq
      %v5081 = vshrl.u32 %v5080, 7
      %v5082 = vsub.s32 %v4401, %v5081
      %v5083 = vrot.slane %v4949, %v5082
      %v5084 = vsel %vm4406, %v5083, %v5079
      %v5085 = vlaneseq
      %v5086 = vshrl.u32 %v5085, 7
      %v5087 = vsub.s32 %v4138, %v5086
      %v5088 = vrot.slane %v4952, %v5087
      %v5089 = vlaneseq
      %v5090 = vshrl.u32 %v5089, 7
      %v5091 = vsub.s32 %v4401, %v5090
      %v5092 = vrot.slane %v4955, %v5091
      %v5093 = vsel %vm4406, %v5092, %v5088
      %v5094 = vlaneseq
      %v5095 = vshrl.u32 %v5094, 7
      %v5096 = vsub.s32 %v4138, %v5095
      %v5097 = vrot.slane %v4958, %v5096
      %v5098 = vlaneseq
      %v5099 = vshrl.u32 %v5098, 7
      %v5100 = vsub.s32 %v4401, %v5099
      %v5101 = vrot.slane %v4961, %v5100
      %v5102 = vsel %vm4406, %v5101, %v5097
      %v5103 = vlaneseq
      %v5104 = vshrl.u32 %v5103, 7
      %v5105 = vsub.s32 %v4138, %v5104
      %v5106 = vrot.slane %v4964, %v5105
      %v5107 = vlaneseq
      %v5108 = vshrl.u32 %v5107, 7
      %v5109 = vsub.s32 %v4401, %v5108
      %v5110 = vrot.slane %v4967, %v5109
      %v5111 = vsel %vm4406, %v5110, %v5106
      %v5112 = vsel %vm4543, %v4985, %v4976
      %v5113 = vsel %vm4545, %v4994, %v5112
      %v5114 = vsel %vm4547, %v5003, %v5113
      %v5115 = vsel %vm4549, %v5012, %v5114
      %v5116 = vsel %vm4551, %v5021, %v5115
      %v5117 = vsel %vm4553, %v5030, %v5116
      %v5118 = vsel %vm4555, %v5039, %v5117
      %v5119 = vsel %vm4543, %v5057, %v5048
      %v5120 = vsel %vm4545, %v5066, %v5119
      %v5121 = vsel %vm4547, %v5075, %v5120
      %v5122 = vsel %vm4549, %v5084, %v5121
      %v5123 = vsel %vm4551, %v5093, %v5122
      %v5124 = vsel %vm4553, %v5102, %v5123
      %v5125 = vsel %vm4555, %v5111, %v5124
      %5128 = vxpose.xlu0.b32.start [1/16] %v5118, 128
      %5129 = vxpose.xlu0.b32.cont [2/16] %v5125, 128
      %5130 = vxpose.xlu0.b32.cont [3/16] 0.0, 128
      %5131 = vxpose.xlu0.b32.cont [4/16] 0.0, 128
      %5132 = vxpose.xlu0.b32.cont [5/16] 0.0, 128
      %5133 = vxpose.xlu0.b32.cont [6/16] 0.0, 128
      %5134 = vxpose.xlu0.b32.cont [7/16] 0.0, 128
      %5135 = vxpose.xlu0.b32.cont [8/16] 0.0, 128
      %5136 = vxpose.xlu0.b32.cont [9/16] 0.0, 128
      %5137 = vxpose.xlu0.b32.cont [10/16] 0.0, 128
      %5138 = vxpose.xlu0.b32.cont [11/16] 0.0, 128
      %5139 = vxpose.xlu0.b32.cont [12/16] 0.0, 128
      %5140 = vxpose.xlu0.b32.cont [13/16] 0.0, 128
      %5141 = vxpose.xlu0.b32.cont [14/16] 0.0, 128
      %5142 = vxpose.xlu0.b32.cont [15/16] 0.0, 128
      %5143 = vxpose.xlu0.b32.end [16/16] 0.0, 128
      %v5144 = vpop.trf.xlu0
      %v5145 = vpop.trf.xlu0
      %v5146 = vpop.trf.xlu0
      %v5147 = vpop.trf.xlu0
      %v5148 = vpop.trf.xlu0
      %v5149 = vpop.trf.xlu0
      %v5150 = vpop.trf.xlu0
      %v5151 = vpop.trf.xlu0
      %v5152 = vpop.trf.xlu0
      %v5153 = vpop.trf.xlu0
      %v5154 = vpop.trf.xlu0
      %v5155 = vpop.trf.xlu0
      %v5156 = vpop.trf.xlu0
      %v5157 = vpop.trf.xlu0
      %v5158 = vpop.trf.xlu0
      %v5159 = vpop.trf.xlu0
      %v5192 = vsub.f32 %v4141, %v4874
      %v5193 = vsub.f32 %v4142, %v4877
      %v5194 = vsub.f32 %v4143, %v4880
      %v5195 = vsub.f32 %v4144, %v4883
      %v5196 = vsub.f32 %v4145, %v4886
      %v5197 = vsub.f32 %v4146, %v4889
      %v5198 = vsub.f32 %v4147, %v4892
      %v5199 = vsub.f32 %v4148, %v4895
      %v5200 = vsub.f32 %v4149, %v4898
      %v5201 = vsub.f32 %v4150, %v4901
      %v5202 = vsub.f32 %v4151, %v4904
      %v5203 = vsub.f32 %v4152, %v4907
      %v5204 = vsub.f32 %v4153, %v4910
      %v5205 = vsub.f32 %v4154, %v4913
      %v5206 = vsub.f32 %v4155, %v4916
      %v5207 = vsub.f32 %v4156, %v4919
      %v5208 = vsub.f32 %v4157, %v4922
      %v5209 = vsub.f32 %v4158, %v4925
      %v5210 = vsub.f32 %v4159, %v4928
      %v5211 = vsub.f32 %v4160, %v4931
      %v5212 = vsub.f32 %v4161, %v4934
      %v5213 = vsub.f32 %v4162, %v4937
      %v5214 = vsub.f32 %v4163, %v4940
      %v5215 = vsub.f32 %v4164, %v4943
      %v5216 = vsub.f32 %v4165, %v4946
      %v5217 = vsub.f32 %v4166, %v4949
      %v5218 = vsub.f32 %v4167, %v4952
      %v5219 = vsub.f32 %v4168, %v4955
      %v5220 = vsub.f32 %v4169, %v4958
      %v5221 = vsub.f32 %v4170, %v4961
      %v5222 = vsub.f32 %v4171, %v4964
      %v5223 = vsub.f32 %v4172, %v4967
      %v5224 = vmul.f32 %v5192, 1.442695
      %v5225 = vpow.pop %v5224
      %v5226 = vmul.f32 %v5193, 1.442695
      %v5227 = vpow.pop %v5226
      %v5228 = vmul.f32 %v5194, 1.442695
      %v5229 = vpow.pop %v5228
      %v5230 = vmul.f32 %v5195, 1.442695
      %v5231 = vpow.pop %v5230
      %v5232 = vmul.f32 %v5196, 1.442695
      %v5233 = vpow.pop %v5232
      %v5234 = vmul.f32 %v5197, 1.442695
      %v5235 = vpow.pop %v5234
      %v5236 = vmul.f32 %v5198, 1.442695
      %v5237 = vpow.pop %v5236
      %v5238 = vmul.f32 %v5199, 1.442695
      %v5239 = vpow.pop %v5238
      %v5240 = vmul.f32 %v5200, 1.442695
      %v5241 = vpow.pop %v5240
      %v5242 = vmul.f32 %v5201, 1.442695
      %v5243 = vpow.pop %v5242
      %v5244 = vmul.f32 %v5202, 1.442695
      %v5245 = vpow.pop %v5244
      %v5246 = vmul.f32 %v5203, 1.442695
      %v5247 = vpow.pop %v5246
      %v5248 = vmul.f32 %v5204, 1.442695
      %v5249 = vpow.pop %v5248
      %v5250 = vmul.f32 %v5205, 1.442695
      %v5251 = vpow.pop %v5250
      %v5252 = vmul.f32 %v5206, 1.442695
      %v5253 = vpow.pop %v5252
      %v5254 = vmul.f32 %v5207, 1.442695
      %v5255 = vpow.pop %v5254
      %v5256 = vmul.f32 %v5208, 1.442695
      %v5257 = vpow.pop %v5256
      %v5258 = vmul.f32 %v5209, 1.442695
      %v5259 = vpow.pop %v5258
      %v5260 = vmul.f32 %v5210, 1.442695
      %v5261 = vpow.pop %v5260
      %v5262 = vmul.f32 %v5211, 1.442695
      %v5263 = vpow.pop %v5262
      %v5264 = vmul.f32 %v5212, 1.442695
      %v5265 = vpow.pop %v5264
      %v5266 = vmul.f32 %v5213, 1.442695
      %v5267 = vpow.pop %v5266
      %v5268 = vmul.f32 %v5214, 1.442695
      %v5269 = vpow.pop %v5268
      %v5270 = vmul.f32 %v5215, 1.442695
      %v5271 = vpow.pop %v5270
      %v5272 = vmul.f32 %v5216, 1.442695
      %v5273 = vpow.pop %v5272
      %v5274 = vmul.f32 %v5217, 1.442695
      %v5275 = vpow.pop %v5274
      %v5276 = vmul.f32 %v5218, 1.442695
      %v5277 = vpow.pop %v5276
      %v5278 = vmul.f32 %v5219, 1.442695
      %v5279 = vpow.pop %v5278
      %v5280 = vmul.f32 %v5220, 1.442695
      %v5281 = vpow.pop %v5280
      %v5282 = vmul.f32 %v5221, 1.442695
      %v5283 = vpow.pop %v5282
      %v5284 = vmul.f32 %v5222, 1.442695
      %v5285 = vpow.pop %v5284
      %v5286 = vmul.f32 %v5223, 1.442695
      %v5287 = vpow.pop %v5286
      %v5288 = vlaneseq
      %v5289 = vshrl.u32 %v5288, 7
      %v5290 = vsub.s32 0, %v5289
      %v5291 = vrot.slane %v5144, %v5290
      %5293 = vbcast.lane.b32.xlu0 %v5291, 256
      %v5294 = vpop.permute.xlu0 %5293
      %s5296 = sor.u32 256, 8
      %5297 = vbcast.lane.b32.xlu0 %v5291, %s5296
      %v5298 = vpop.permute.xlu0 %5297
      %v5299 = vlaneseq
      %v5300 = vshrl.u32 %v5299, 7
      %v5301 = vsub.s32 1, %v5300
      %v5302 = vrot.slane %v5144, %v5301
      %5304 = vbcast.lane.b32.xlu0 %v5302, 256
      %v5305 = vpop.permute.xlu0 %5304
      %s5307 = sor.u32 256, 8
      %5308 = vbcast.lane.b32.xlu0 %v5302, %s5307
      %v5309 = vpop.permute.xlu0 %5308
      %v5310 = vlaneseq
      %v5311 = vshrl.u32 %v5310, 7
      %v5312 = vsub.s32 2, %v5311
      %v5313 = vrot.slane %v5144, %v5312
      %5315 = vbcast.lane.b32.xlu0 %v5313, 256
      %v5316 = vpop.permute.xlu0 %5315
      %s5318 = sor.u32 256, 8
      %5319 = vbcast.lane.b32.xlu0 %v5313, %s5318
      %v5320 = vpop.permute.xlu0 %5319
      %v5321 = vlaneseq
      %v5322 = vshrl.u32 %v5321, 7
      %v5323 = vsub.s32 3, %v5322
      %v5324 = vrot.slane %v5144, %v5323
      %5326 = vbcast.lane.b32.xlu0 %v5324, 256
      %v5327 = vpop.permute.xlu0 %5326
      %s5329 = sor.u32 256, 8
      %5330 = vbcast.lane.b32.xlu0 %v5324, %s5329
      %v5331 = vpop.permute.xlu0 %5330
      %v5332 = vlaneseq
      %v5333 = vshrl.u32 %v5332, 7
      %v5334 = vsub.s32 4, %v5333
      %v5335 = vrot.slane %v5144, %v5334
      %5337 = vbcast.lane.b32.xlu0 %v5335, 256
      %v5338 = vpop.permute.xlu0 %5337
      %s5340 = sor.u32 256, 8
      %5341 = vbcast.lane.b32.xlu0 %v5335, %s5340
      %v5342 = vpop.permute.xlu0 %5341
      %v5343 = vlaneseq
      %v5344 = vshrl.u32 %v5343, 7
      %v5345 = vsub.s32 5, %v5344
      %v5346 = vrot.slane %v5144, %v5345
      %5348 = vbcast.lane.b32.xlu0 %v5346, 256
      %v5349 = vpop.permute.xlu0 %5348
      %s5351 = sor.u32 256, 8
      %5352 = vbcast.lane.b32.xlu0 %v5346, %s5351
      %v5353 = vpop.permute.xlu0 %5352
      %v5354 = vlaneseq
      %v5355 = vshrl.u32 %v5354, 7
      %v5356 = vsub.s32 6, %v5355
      %v5357 = vrot.slane %v5144, %v5356
      %5359 = vbcast.lane.b32.xlu0 %v5357, 256
      %v5360 = vpop.permute.xlu0 %5359
      %s5362 = sor.u32 256, 8
      %5363 = vbcast.lane.b32.xlu0 %v5357, %s5362
      %v5364 = vpop.permute.xlu0 %5363
      %v5365 = vlaneseq
      %v5366 = vshrl.u32 %v5365, 7
      %v5367 = vsub.s32 7, %v5366
      %v5368 = vrot.slane %v5144, %v5367
      %5370 = vbcast.lane.b32.xlu0 %v5368, 256
      %v5371 = vpop.permute.xlu0 %5370
      %s5373 = sor.u32 256, 8
      %5374 = vbcast.lane.b32.xlu0 %v5368, %s5373
      %v5375 = vpop.permute.xlu0 %5374
      %v5376 = vlaneseq
      %v5377 = vshrl.u32 %v5376, 7
      %v5378 = vsub.s32 0, %v5377
      %v5379 = vrot.slane %v5145, %v5378
      %5381 = vbcast.lane.b32.xlu0 %v5379, 256
      %v5382 = vpop.permute.xlu0 %5381
      %s5384 = sor.u32 256, 8
      %5385 = vbcast.lane.b32.xlu0 %v5379, %s5384
      %v5386 = vpop.permute.xlu0 %5385
      %v5387 = vlaneseq
      %v5388 = vshrl.u32 %v5387, 7
      %v5389 = vsub.s32 1, %v5388
      %v5390 = vrot.slane %v5145, %v5389
      %5392 = vbcast.lane.b32.xlu0 %v5390, 256
      %v5393 = vpop.permute.xlu0 %5392
      %s5395 = sor.u32 256, 8
      %5396 = vbcast.lane.b32.xlu0 %v5390, %s5395
      %v5397 = vpop.permute.xlu0 %5396
      %v5398 = vlaneseq
      %v5399 = vshrl.u32 %v5398, 7
      %v5400 = vsub.s32 2, %v5399
      %v5401 = vrot.slane %v5145, %v5400
      %5403 = vbcast.lane.b32.xlu0 %v5401, 256
      %v5404 = vpop.permute.xlu0 %5403
      %s5406 = sor.u32 256, 8
      %5407 = vbcast.lane.b32.xlu0 %v5401, %s5406
      %v5408 = vpop.permute.xlu0 %5407
      %v5409 = vlaneseq
      %v5410 = vshrl.u32 %v5409, 7
      %v5411 = vsub.s32 3, %v5410
      %v5412 = vrot.slane %v5145, %v5411
      %5414 = vbcast.lane.b32.xlu0 %v5412, 256
      %v5415 = vpop.permute.xlu0 %5414
      %s5417 = sor.u32 256, 8
      %5418 = vbcast.lane.b32.xlu0 %v5412, %s5417
      %v5419 = vpop.permute.xlu0 %5418
      %v5420 = vlaneseq
      %v5421 = vshrl.u32 %v5420, 7
      %v5422 = vsub.s32 4, %v5421
      %v5423 = vrot.slane %v5145, %v5422
      %5425 = vbcast.lane.b32.xlu0 %v5423, 256
      %v5426 = vpop.permute.xlu0 %5425
      %s5428 = sor.u32 256, 8
      %5429 = vbcast.lane.b32.xlu0 %v5423, %s5428
      %v5430 = vpop.permute.xlu0 %5429
      %v5431 = vlaneseq
      %v5432 = vshrl.u32 %v5431, 7
      %v5433 = vsub.s32 5, %v5432
      %v5434 = vrot.slane %v5145, %v5433
      %5436 = vbcast.lane.b32.xlu0 %v5434, 256
      %v5437 = vpop.permute.xlu0 %5436
      %s5439 = sor.u32 256, 8
      %5440 = vbcast.lane.b32.xlu0 %v5434, %s5439
      %v5441 = vpop.permute.xlu0 %5440
      %v5442 = vlaneseq
      %v5443 = vshrl.u32 %v5442, 7
      %v5444 = vsub.s32 6, %v5443
      %v5445 = vrot.slane %v5145, %v5444
      %5447 = vbcast.lane.b32.xlu0 %v5445, 256
      %v5448 = vpop.permute.xlu0 %5447
      %s5450 = sor.u32 256, 8
      %5451 = vbcast.lane.b32.xlu0 %v5445, %s5450
      %v5452 = vpop.permute.xlu0 %5451
      %v5453 = vlaneseq
      %v5454 = vshrl.u32 %v5453, 7
      %v5455 = vsub.s32 7, %v5454
      %v5456 = vrot.slane %v5145, %v5455
      %5458 = vbcast.lane.b32.xlu0 %v5456, 256
      %v5459 = vpop.permute.xlu0 %5458
      %s5461 = sor.u32 256, 8
      %5462 = vbcast.lane.b32.xlu0 %v5456, %s5461
      %v5463 = vpop.permute.xlu0 %5462
      %v5464 = vsub.f32 %v3423, %v5294
      %v5465 = vsub.f32 %v3426, %v5298
      %v5466 = vsub.f32 %v3470, %v5305
      %v5467 = vsub.f32 %v3473, %v5309
      %v5468 = vsub.f32 %v3517, %v5316
      %v5469 = vsub.f32 %v3520, %v5320
      %v5470 = vsub.f32 %v3564, %v5327
      %v5471 = vsub.f32 %v3567, %v5331
      %v5472 = vsub.f32 %v3611, %v5338
      %v5473 = vsub.f32 %v3614, %v5342
      %v5474 = vsub.f32 %v3658, %v5349
      %v5475 = vsub.f32 %v3661, %v5353
      %v5476 = vsub.f32 %v3705, %v5360
      %v5477 = vsub.f32 %v3708, %v5364
      %v5478 = vsub.f32 %v3752, %v5371
      %v5479 = vsub.f32 %v3755, %v5375
      %v5480 = vsub.f32 %v3799, %v5382
      %v5481 = vsub.f32 %v3802, %v5386
      %v5482 = vsub.f32 %v3846, %v5393
      %v5483 = vsub.f32 %v3849, %v5397
      %v5484 = vsub.f32 %v3893, %v5404
      %v5485 = vsub.f32 %v3896, %v5408
      %v5486 = vsub.f32 %v3940, %v5415
      %v5487 = vsub.f32 %v3943, %v5419
      %v5488 = vsub.f32 %v3987, %v5426
      %v5489 = vsub.f32 %v3990, %v5430
      %v5490 = vsub.f32 %v4034, %v5437
      %v5491 = vsub.f32 %v4037, %v5441
      %v5492 = vsub.f32 %v4081, %v5448
      %v5493 = vsub.f32 %v4084, %v5452
      %v5494 = vsub.f32 %v4128, %v5459
      %v5495 = vsub.f32 %v4131, %v5463
      %v5496 = vmul.f32 %v5464, 1.442695
      %v5497 = vpow.pop %v5496
      %v5498 = vmul.f32 %v5465, 1.442695
      %v5499 = vpow.pop %v5498
      %v5500 = vmul.f32 %v5466, 1.442695
      %v5501 = vpow.pop %v5500
      %v5502 = vmul.f32 %v5467, 1.442695
      %v5503 = vpow.pop %v5502
      %v5504 = vmul.f32 %v5468, 1.442695
      %v5505 = vpow.pop %v5504
      %v5506 = vmul.f32 %v5469, 1.442695
      %v5507 = vpow.pop %v5506
      %v5508 = vmul.f32 %v5470, 1.442695
      %v5509 = vpow.pop %v5508
      %v5510 = vmul.f32 %v5471, 1.442695
      %v5511 = vpow.pop %v5510
      %v5512 = vmul.f32 %v5472, 1.442695
      %v5513 = vpow.pop %v5512
      %v5514 = vmul.f32 %v5473, 1.442695
      %v5515 = vpow.pop %v5514
      %v5516 = vmul.f32 %v5474, 1.442695
      %v5517 = vpow.pop %v5516
      %v5518 = vmul.f32 %v5475, 1.442695
      %v5519 = vpow.pop %v5518
      %v5520 = vmul.f32 %v5476, 1.442695
      %v5521 = vpow.pop %v5520
      %v5522 = vmul.f32 %v5477, 1.442695
      %v5523 = vpow.pop %v5522
      %v5524 = vmul.f32 %v5478, 1.442695
      %v5525 = vpow.pop %v5524
      %v5526 = vmul.f32 %v5479, 1.442695
      %v5527 = vpow.pop %v5526
      %v5528 = vmul.f32 %v5480, 1.442695
      %v5529 = vpow.pop %v5528
      %v5530 = vmul.f32 %v5481, 1.442695
      %v5531 = vpow.pop %v5530
      %v5532 = vmul.f32 %v5482, 1.442695
      %v5533 = vpow.pop %v5532
      %v5534 = vmul.f32 %v5483, 1.442695
      %v5535 = vpow.pop %v5534
      %v5536 = vmul.f32 %v5484, 1.442695
      %v5537 = vpow.pop %v5536
      %v5538 = vmul.f32 %v5485, 1.442695
      %v5539 = vpow.pop %v5538
      %v5540 = vmul.f32 %v5486, 1.442695
      %v5541 = vpow.pop %v5540
      %v5542 = vmul.f32 %v5487, 1.442695
      %v5543 = vpow.pop %v5542
      %v5544 = vmul.f32 %v5488, 1.442695
      %v5545 = vpow.pop %v5544
      %v5546 = vmul.f32 %v5489, 1.442695
      %v5547 = vpow.pop %v5546
      %v5548 = vmul.f32 %v5490, 1.442695
      %v5549 = vpow.pop %v5548
      %v5550 = vmul.f32 %v5491, 1.442695
      %v5551 = vpow.pop %v5550
      %v5552 = vmul.f32 %v5492, 1.442695
      %v5553 = vpow.pop %v5552
      %v5554 = vmul.f32 %v5493, 1.442695
      %v5555 = vpow.pop %v5554
      %v5556 = vmul.f32 %v5494, 1.442695
      %v5557 = vpow.pop %v5556
      %v5558 = vmul.f32 %v5495, 1.442695
      %v5559 = vpow.pop %v5558
      %v5560 = vsel %vm371, %v5225, 0.0
      %5561 = vadd.xlane.f32.xlu0 %v5560
      %v5562 = vpop.xlane.xlu0 %5561
      %v5563 = vsel %vm371, %v5227, 0.0
      %5564 = vadd.xlane.f32.xlu0 %v5563
      %v5565 = vpop.xlane.xlu0 %5564
      %v5566 = vsel %vm371, %v5229, 0.0
      %5567 = vadd.xlane.f32.xlu0 %v5566
      %v5568 = vpop.xlane.xlu0 %5567
      %v5569 = vsel %vm371, %v5231, 0.0
      %5570 = vadd.xlane.f32.xlu0 %v5569
      %v5571 = vpop.xlane.xlu0 %5570
      %v5572 = vsel %vm371, %v5233, 0.0
      %5573 = vadd.xlane.f32.xlu0 %v5572
      %v5574 = vpop.xlane.xlu0 %5573
      %v5575 = vsel %vm371, %v5235, 0.0
      %5576 = vadd.xlane.f32.xlu0 %v5575
      %v5577 = vpop.xlane.xlu0 %5576
      %v5578 = vsel %vm371, %v5237, 0.0
      %5579 = vadd.xlane.f32.xlu0 %v5578
      %v5580 = vpop.xlane.xlu0 %5579
      %v5581 = vsel %vm371, %v5239, 0.0
      %5582 = vadd.xlane.f32.xlu0 %v5581
      %v5583 = vpop.xlane.xlu0 %5582
      %v5584 = vsel %vm371, %v5241, 0.0
      %5585 = vadd.xlane.f32.xlu0 %v5584
      %v5586 = vpop.xlane.xlu0 %5585
      %v5587 = vsel %vm371, %v5243, 0.0
      %5588 = vadd.xlane.f32.xlu0 %v5587
      %v5589 = vpop.xlane.xlu0 %5588
      %v5590 = vsel %vm371, %v5245, 0.0
      %5591 = vadd.xlane.f32.xlu0 %v5590
      %v5592 = vpop.xlane.xlu0 %5591
      %v5593 = vsel %vm371, %v5247, 0.0
      %5594 = vadd.xlane.f32.xlu0 %v5593
      %v5595 = vpop.xlane.xlu0 %5594
      %v5596 = vsel %vm371, %v5249, 0.0
      %5597 = vadd.xlane.f32.xlu0 %v5596
      %v5598 = vpop.xlane.xlu0 %5597
      %v5599 = vsel %vm371, %v5251, 0.0
      %5600 = vadd.xlane.f32.xlu0 %v5599
      %v5601 = vpop.xlane.xlu0 %5600
      %v5602 = vsel %vm371, %v5253, 0.0
      %5603 = vadd.xlane.f32.xlu0 %v5602
      %v5604 = vpop.xlane.xlu0 %5603
      %v5605 = vsel %vm371, %v5255, 0.0
      %5606 = vadd.xlane.f32.xlu0 %v5605
      %v5607 = vpop.xlane.xlu0 %5606
      %v5608 = vsel %vm371, %v5257, 0.0
      %5609 = vadd.xlane.f32.xlu0 %v5608
      %v5610 = vpop.xlane.xlu0 %5609
      %v5611 = vsel %vm371, %v5259, 0.0
      %5612 = vadd.xlane.f32.xlu0 %v5611
      %v5613 = vpop.xlane.xlu0 %5612
      %v5614 = vsel %vm371, %v5261, 0.0
      %5615 = vadd.xlane.f32.xlu0 %v5614
      %v5616 = vpop.xlane.xlu0 %5615
      %v5617 = vsel %vm371, %v5263, 0.0
      %5618 = vadd.xlane.f32.xlu0 %v5617
      %v5619 = vpop.xlane.xlu0 %5618
      %v5620 = vsel %vm371, %v5265, 0.0
      %5621 = vadd.xlane.f32.xlu0 %v5620
      %v5622 = vpop.xlane.xlu0 %5621
      %v5623 = vsel %vm371, %v5267, 0.0
      %5624 = vadd.xlane.f32.xlu0 %v5623
      %v5625 = vpop.xlane.xlu0 %5624
      %v5626 = vsel %vm371, %v5269, 0.0
      %5627 = vadd.xlane.f32.xlu0 %v5626
      %v5628 = vpop.xlane.xlu0 %5627
      %v5629 = vsel %vm371, %v5271, 0.0
      %5630 = vadd.xlane.f32.xlu0 %v5629
      %v5631 = vpop.xlane.xlu0 %5630
      %v5632 = vsel %vm371, %v5273, 0.0
      %5633 = vadd.xlane.f32.xlu0 %v5632
      %v5634 = vpop.xlane.xlu0 %5633
      %v5635 = vsel %vm371, %v5275, 0.0
      %5636 = vadd.xlane.f32.xlu0 %v5635
      %v5637 = vpop.xlane.xlu0 %5636
      %v5638 = vsel %vm371, %v5277, 0.0
      %5639 = vadd.xlane.f32.xlu0 %v5638
      %v5640 = vpop.xlane.xlu0 %5639
      %v5641 = vsel %vm371, %v5279, 0.0
      %5642 = vadd.xlane.f32.xlu0 %v5641
      %v5643 = vpop.xlane.xlu0 %5642
      %v5644 = vsel %vm371, %v5281, 0.0
      %5645 = vadd.xlane.f32.xlu0 %v5644
      %v5646 = vpop.xlane.xlu0 %5645
      %v5647 = vsel %vm371, %v5283, 0.0
      %5648 = vadd.xlane.f32.xlu0 %v5647
      %v5649 = vpop.xlane.xlu0 %5648
      %v5650 = vsel %vm371, %v5285, 0.0
      %5651 = vadd.xlane.f32.xlu0 %v5650
      %v5652 = vpop.xlane.xlu0 %5651
      %v5653 = vsel %vm371, %v5287, 0.0
      %5654 = vadd.xlane.f32.xlu0 %v5653
      %v5655 = vpop.xlane.xlu0 %5654
      %v5656 = vsel %vm371, %v5497, 0.0
      %5657 = vadd.xlane.f32.xlu0 %v5656
      %v5658 = vpop.xlane.xlu0 %5657
      %v5659 = vsel %vm371, %v5499, 0.0
      %5660 = vadd.xlane.f32.xlu0 %v5659
      %v5661 = vpop.xlane.xlu0 %5660
      %v5662 = vsel %vm371, %v5501, 0.0
      %5663 = vadd.xlane.f32.xlu0 %v5662
      %v5664 = vpop.xlane.xlu0 %5663
      %v5665 = vsel %vm371, %v5503, 0.0
      %5666 = vadd.xlane.f32.xlu0 %v5665
      %v5667 = vpop.xlane.xlu0 %5666
      %v5668 = vsel %vm371, %v5505, 0.0
      %5669 = vadd.xlane.f32.xlu0 %v5668
      %v5670 = vpop.xlane.xlu0 %5669
      %v5671 = vsel %vm371, %v5507, 0.0
      %5672 = vadd.xlane.f32.xlu0 %v5671
      %v5673 = vpop.xlane.xlu0 %5672
      %v5674 = vsel %vm371, %v5509, 0.0
      %5675 = vadd.xlane.f32.xlu0 %v5674
      %v5676 = vpop.xlane.xlu0 %5675
      %v5677 = vsel %vm371, %v5511, 0.0
      %5678 = vadd.xlane.f32.xlu0 %v5677
      %v5679 = vpop.xlane.xlu0 %5678
      %v5680 = vsel %vm371, %v5513, 0.0
      %5681 = vadd.xlane.f32.xlu0 %v5680
      %v5682 = vpop.xlane.xlu0 %5681
      %v5683 = vsel %vm371, %v5515, 0.0
      %5684 = vadd.xlane.f32.xlu0 %v5683
      %v5685 = vpop.xlane.xlu0 %5684
      %v5686 = vsel %vm371, %v5517, 0.0
      %5687 = vadd.xlane.f32.xlu0 %v5686
      %v5688 = vpop.xlane.xlu0 %5687
      %v5689 = vsel %vm371, %v5519, 0.0
      %5690 = vadd.xlane.f32.xlu0 %v5689
      %v5691 = vpop.xlane.xlu0 %5690
      %v5692 = vsel %vm371, %v5521, 0.0
      %5693 = vadd.xlane.f32.xlu0 %v5692
      %v5694 = vpop.xlane.xlu0 %5693
      %v5695 = vsel %vm371, %v5523, 0.0
      %5696 = vadd.xlane.f32.xlu0 %v5695
      %v5697 = vpop.xlane.xlu0 %5696
      %v5698 = vsel %vm371, %v5525, 0.0
      %5699 = vadd.xlane.f32.xlu0 %v5698
      %v5700 = vpop.xlane.xlu0 %5699
      %v5701 = vsel %vm371, %v5527, 0.0
      %5702 = vadd.xlane.f32.xlu0 %v5701
      %v5703 = vpop.xlane.xlu0 %5702
      %v5704 = vsel %vm371, %v5529, 0.0
      %5705 = vadd.xlane.f32.xlu0 %v5704
      %v5706 = vpop.xlane.xlu0 %5705
      %v5707 = vsel %vm371, %v5531, 0.0
      %5708 = vadd.xlane.f32.xlu0 %v5707
      %v5709 = vpop.xlane.xlu0 %5708
      %v5710 = vsel %vm371, %v5533, 0.0
      %5711 = vadd.xlane.f32.xlu0 %v5710
      %v5712 = vpop.xlane.xlu0 %5711
      %v5713 = vsel %vm371, %v5535, 0.0
      %5714 = vadd.xlane.f32.xlu0 %v5713
      %v5715 = vpop.xlane.xlu0 %5714
      %v5716 = vsel %vm371, %v5537, 0.0
      %5717 = vadd.xlane.f32.xlu0 %v5716
      %v5718 = vpop.xlane.xlu0 %5717
      %v5719 = vsel %vm371, %v5539, 0.0
      %5720 = vadd.xlane.f32.xlu0 %v5719
      %v5721 = vpop.xlane.xlu0 %5720
      %v5722 = vsel %vm371, %v5541, 0.0
      %5723 = vadd.xlane.f32.xlu0 %v5722
      %v5724 = vpop.xlane.xlu0 %5723
      %v5725 = vsel %vm371, %v5543, 0.0
      %5726 = vadd.xlane.f32.xlu0 %v5725
      %v5727 = vpop.xlane.xlu0 %5726
      %v5728 = vsel %vm371, %v5545, 0.0
      %5729 = vadd.xlane.f32.xlu0 %v5728
      %v5730 = vpop.xlane.xlu0 %5729
      %v5731 = vsel %vm371, %v5547, 0.0
      %5732 = vadd.xlane.f32.xlu0 %v5731
      %v5733 = vpop.xlane.xlu0 %5732
      %v5734 = vsel %vm371, %v5549, 0.0
      %5735 = vadd.xlane.f32.xlu0 %v5734
      %v5736 = vpop.xlane.xlu0 %5735
      %v5737 = vsel %vm371, %v5551, 0.0
      %5738 = vadd.xlane.f32.xlu0 %v5737
      %v5739 = vpop.xlane.xlu0 %5738
      %v5740 = vsel %vm371, %v5553, 0.0
      %5741 = vadd.xlane.f32.xlu0 %v5740
      %v5742 = vpop.xlane.xlu0 %5741
      %v5743 = vsel %vm371, %v5555, 0.0
      %5744 = vadd.xlane.f32.xlu0 %v5743
      %v5745 = vpop.xlane.xlu0 %5744
      %v5746 = vsel %vm371, %v5557, 0.0
      %5747 = vadd.xlane.f32.xlu0 %v5746
      %v5748 = vpop.xlane.xlu0 %5747
      %v5749 = vsel %vm371, %v5559, 0.0
      %5750 = vadd.xlane.f32.xlu0 %v5749
      %v5751 = vpop.xlane.xlu0 %5750
      %v5784 = vlaneseq
      %v5785 = vshrl.u32 %v5784, 7
      %v5786 = vsub.s32 %v4138, %v5785
      %v5787 = vrot.slane %v5658, %v5786
      %v5788 = vlaneseq
      %v5789 = vshrl.u32 %v5788, 7
      %v5790 = vsub.s32 %v4401, %v5789
      %v5791 = vrot.slane %v5661, %v5790
      %v5792 = vsel %vm4406, %v5791, %v5787
      %v5793 = vlaneseq
      %v5794 = vshrl.u32 %v5793, 7
      %v5795 = vsub.s32 %v4138, %v5794
      %v5796 = vrot.slane %v5664, %v5795
      %v5797 = vlaneseq
      %v5798 = vshrl.u32 %v5797, 7
      %v5799 = vsub.s32 %v4401, %v5798
      %v5800 = vrot.slane %v5667, %v5799
      %v5801 = vsel %vm4406, %v5800, %v5796
      %v5802 = vlaneseq
      %v5803 = vshrl.u32 %v5802, 7
      %v5804 = vsub.s32 %v4138, %v5803
      %v5805 = vrot.slane %v5670, %v5804
      %v5806 = vlaneseq
      %v5807 = vshrl.u32 %v5806, 7
      %v5808 = vsub.s32 %v4401, %v5807
      %v5809 = vrot.slane %v5673, %v5808
      %v5810 = vsel %vm4406, %v5809, %v5805
      %v5811 = vlaneseq
      %v5812 = vshrl.u32 %v5811, 7
      %v5813 = vsub.s32 %v4138, %v5812
      %v5814 = vrot.slane %v5676, %v5813
      %v5815 = vlaneseq
      %v5816 = vshrl.u32 %v5815, 7
      %v5817 = vsub.s32 %v4401, %v5816
      %v5818 = vrot.slane %v5679, %v5817
      %v5819 = vsel %vm4406, %v5818, %v5814
      %v5820 = vlaneseq
      %v5821 = vshrl.u32 %v5820, 7
      %v5822 = vsub.s32 %v4138, %v5821
      %v5823 = vrot.slane %v5682, %v5822
      %v5824 = vlaneseq
      %v5825 = vshrl.u32 %v5824, 7
      %v5826 = vsub.s32 %v4401, %v5825
      %v5827 = vrot.slane %v5685, %v5826
      %v5828 = vsel %vm4406, %v5827, %v5823
      %v5829 = vlaneseq
      %v5830 = vshrl.u32 %v5829, 7
      %v5831 = vsub.s32 %v4138, %v5830
      %v5832 = vrot.slane %v5688, %v5831
      %v5833 = vlaneseq
      %v5834 = vshrl.u32 %v5833, 7
      %v5835 = vsub.s32 %v4401, %v5834
      %v5836 = vrot.slane %v5691, %v5835
      %v5837 = vsel %vm4406, %v5836, %v5832
      %v5838 = vlaneseq
      %v5839 = vshrl.u32 %v5838, 7
      %v5840 = vsub.s32 %v4138, %v5839
      %v5841 = vrot.slane %v5694, %v5840
      %v5842 = vlaneseq
      %v5843 = vshrl.u32 %v5842, 7
      %v5844 = vsub.s32 %v4401, %v5843
      %v5845 = vrot.slane %v5697, %v5844
      %v5846 = vsel %vm4406, %v5845, %v5841
      %v5847 = vlaneseq
      %v5848 = vshrl.u32 %v5847, 7
      %v5849 = vsub.s32 %v4138, %v5848
      %v5850 = vrot.slane %v5700, %v5849
      %v5851 = vlaneseq
      %v5852 = vshrl.u32 %v5851, 7
      %v5853 = vsub.s32 %v4401, %v5852
      %v5854 = vrot.slane %v5703, %v5853
      %v5855 = vsel %vm4406, %v5854, %v5850
      %v5856 = vlaneseq
      %v5857 = vshrl.u32 %v5856, 7
      %v5858 = vsub.s32 %v4138, %v5857
      %v5859 = vrot.slane %v5706, %v5858
      %v5860 = vlaneseq
      %v5861 = vshrl.u32 %v5860, 7
      %v5862 = vsub.s32 %v4401, %v5861
      %v5863 = vrot.slane %v5709, %v5862
      %v5864 = vsel %vm4406, %v5863, %v5859
      %v5865 = vlaneseq
      %v5866 = vshrl.u32 %v5865, 7
      %v5867 = vsub.s32 %v4138, %v5866
      %v5868 = vrot.slane %v5712, %v5867
      %v5869 = vlaneseq
      %v5870 = vshrl.u32 %v5869, 7
      %v5871 = vsub.s32 %v4401, %v5870
      %v5872 = vrot.slane %v5715, %v5871
      %v5873 = vsel %vm4406, %v5872, %v5868
      %v5874 = vlaneseq
      %v5875 = vshrl.u32 %v5874, 7
      %v5876 = vsub.s32 %v4138, %v5875
      %v5877 = vrot.slane %v5718, %v5876
      %v5878 = vlaneseq
      %v5879 = vshrl.u32 %v5878, 7
      %v5880 = vsub.s32 %v4401, %v5879
      %v5881 = vrot.slane %v5721, %v5880
      %v5882 = vsel %vm4406, %v5881, %v5877
      %v5883 = vlaneseq
      %v5884 = vshrl.u32 %v5883, 7
      %v5885 = vsub.s32 %v4138, %v5884
      %v5886 = vrot.slane %v5724, %v5885
      %v5887 = vlaneseq
      %v5888 = vshrl.u32 %v5887, 7
      %v5889 = vsub.s32 %v4401, %v5888
      %v5890 = vrot.slane %v5727, %v5889
      %v5891 = vsel %vm4406, %v5890, %v5886
      %v5892 = vlaneseq
      %v5893 = vshrl.u32 %v5892, 7
      %v5894 = vsub.s32 %v4138, %v5893
      %v5895 = vrot.slane %v5730, %v5894
      %v5896 = vlaneseq
      %v5897 = vshrl.u32 %v5896, 7
      %v5898 = vsub.s32 %v4401, %v5897
      %v5899 = vrot.slane %v5733, %v5898
      %v5900 = vsel %vm4406, %v5899, %v5895
      %v5901 = vlaneseq
      %v5902 = vshrl.u32 %v5901, 7
      %v5903 = vsub.s32 %v4138, %v5902
      %v5904 = vrot.slane %v5736, %v5903
      %v5905 = vlaneseq
      %v5906 = vshrl.u32 %v5905, 7
      %v5907 = vsub.s32 %v4401, %v5906
      %v5908 = vrot.slane %v5739, %v5907
      %v5909 = vsel %vm4406, %v5908, %v5904
      %v5910 = vlaneseq
      %v5911 = vshrl.u32 %v5910, 7
      %v5912 = vsub.s32 %v4138, %v5911
      %v5913 = vrot.slane %v5742, %v5912
      %v5914 = vlaneseq
      %v5915 = vshrl.u32 %v5914, 7
      %v5916 = vsub.s32 %v4401, %v5915
      %v5917 = vrot.slane %v5745, %v5916
      %v5918 = vsel %vm4406, %v5917, %v5913
      %v5919 = vlaneseq
      %v5920 = vshrl.u32 %v5919, 7
      %v5921 = vsub.s32 %v4138, %v5920
      %v5922 = vrot.slane %v5748, %v5921
      %v5923 = vlaneseq
      %v5924 = vshrl.u32 %v5923, 7
      %v5925 = vsub.s32 %v4401, %v5924
      %v5926 = vrot.slane %v5751, %v5925
      %v5927 = vsel %vm4406, %v5926, %v5922
      %v5928 = vsel %vm4543, %v5801, %v5792
      %v5929 = vsel %vm4545, %v5810, %v5928
      %v5930 = vsel %vm4547, %v5819, %v5929
      %v5931 = vsel %vm4549, %v5828, %v5930
      %v5932 = vsel %vm4551, %v5837, %v5931
      %v5933 = vsel %vm4553, %v5846, %v5932
      %v5934 = vsel %vm4555, %v5855, %v5933
      %v5935 = vsel %vm4543, %v5873, %v5864
      %v5936 = vsel %vm4545, %v5882, %v5935
      %v5937 = vsel %vm4547, %v5891, %v5936
      %v5938 = vsel %vm4549, %v5900, %v5937
      %v5939 = vsel %vm4551, %v5909, %v5938
      %v5940 = vsel %vm4553, %v5918, %v5939
      %v5941 = vsel %vm4555, %v5927, %v5940
      %5944 = vxpose.xlu0.b32.start [1/16] %v5934, 128
      %5945 = vxpose.xlu0.b32.cont [2/16] %v5941, 128
      %5946 = vxpose.xlu0.b32.cont [3/16] 0.0, 128
      %5947 = vxpose.xlu0.b32.cont [4/16] 0.0, 128
      %5948 = vxpose.xlu0.b32.cont [5/16] 0.0, 128
      %5949 = vxpose.xlu0.b32.cont [6/16] 0.0, 128
      %5950 = vxpose.xlu0.b32.cont [7/16] 0.0, 128
      %5951 = vxpose.xlu0.b32.cont [8/16] 0.0, 128
      %5952 = vxpose.xlu0.b32.cont [9/16] 0.0, 128
      %5953 = vxpose.xlu0.b32.cont [10/16] 0.0, 128
      %5954 = vxpose.xlu0.b32.cont [11/16] 0.0, 128
      %5955 = vxpose.xlu0.b32.cont [12/16] 0.0, 128
      %5956 = vxpose.xlu0.b32.cont [13/16] 0.0, 128
      %5957 = vxpose.xlu0.b32.cont [14/16] 0.0, 128
      %5958 = vxpose.xlu0.b32.cont [15/16] 0.0, 128
      %5959 = vxpose.xlu0.b32.end [16/16] 0.0, 128
      %v5960 = vpop.trf.xlu0
      %v5961 = vpop.trf.xlu0
      %v5962 = vpop.trf.xlu0
      %v5963 = vpop.trf.xlu0
      %v5964 = vpop.trf.xlu0
      %v5965 = vpop.trf.xlu0
      %v5966 = vpop.trf.xlu0
      %v5967 = vpop.trf.xlu0
      %v5968 = vpop.trf.xlu0
      %v5969 = vpop.trf.xlu0
      %v5970 = vpop.trf.xlu0
      %v5971 = vpop.trf.xlu0
      %v5972 = vpop.trf.xlu0
      %v5973 = vpop.trf.xlu0
      %v5974 = vpop.trf.xlu0
      %v5975 = vpop.trf.xlu0
      %v5978 = vlaneseq
      %v5979 = vshrl.u32 %v5978, 7
      %v5980 = vsub.s32 0, %v5979
      %v5981 = vrot.slane %v5960, %v5980
      %5983 = vbcast.lane.b32.xlu0 %v5981, 256
      %v5984 = vpop.permute.xlu0 %5983
      %s5986 = sor.u32 256, 8
      %5987 = vbcast.lane.b32.xlu0 %v5981, %s5986
      %v5988 = vpop.permute.xlu0 %5987
      %v5989 = vlaneseq
      %v5990 = vshrl.u32 %v5989, 7
      %v5991 = vsub.s32 1, %v5990
      %v5992 = vrot.slane %v5960, %v5991
      %5994 = vbcast.lane.b32.xlu0 %v5992, 256
      %v5995 = vpop.permute.xlu0 %5994
      %s5997 = sor.u32 256, 8
      %5998 = vbcast.lane.b32.xlu0 %v5992, %s5997
      %v5999 = vpop.permute.xlu0 %5998
      %v6000 = vlaneseq
      %v6001 = vshrl.u32 %v6000, 7
      %v6002 = vsub.s32 2, %v6001
      %v6003 = vrot.slane %v5960, %v6002
      %6005 = vbcast.lane.b32.xlu0 %v6003, 256
      %v6006 = vpop.permute.xlu0 %6005
      %s6008 = sor.u32 256, 8
      %6009 = vbcast.lane.b32.xlu0 %v6003, %s6008
      %v6010 = vpop.permute.xlu0 %6009
      %v6011 = vlaneseq
      %v6012 = vshrl.u32 %v6011, 7
      %v6013 = vsub.s32 3, %v6012
      %v6014 = vrot.slane %v5960, %v6013
      %6016 = vbcast.lane.b32.xlu0 %v6014, 256
      %v6017 = vpop.permute.xlu0 %6016
      %s6019 = sor.u32 256, 8
      %6020 = vbcast.lane.b32.xlu0 %v6014, %s6019
      %v6021 = vpop.permute.xlu0 %6020
      %v6022 = vlaneseq
      %v6023 = vshrl.u32 %v6022, 7
      %v6024 = vsub.s32 4, %v6023
      %v6025 = vrot.slane %v5960, %v6024
      %6027 = vbcast.lane.b32.xlu0 %v6025, 256
      %v6028 = vpop.permute.xlu0 %6027
      %s6030 = sor.u32 256, 8
      %6031 = vbcast.lane.b32.xlu0 %v6025, %s6030
      %v6032 = vpop.permute.xlu0 %6031
      %v6033 = vlaneseq
      %v6034 = vshrl.u32 %v6033, 7
      %v6035 = vsub.s32 5, %v6034
      %v6036 = vrot.slane %v5960, %v6035
      %6038 = vbcast.lane.b32.xlu0 %v6036, 256
      %v6039 = vpop.permute.xlu0 %6038
      %s6041 = sor.u32 256, 8
      %6042 = vbcast.lane.b32.xlu0 %v6036, %s6041
      %v6043 = vpop.permute.xlu0 %6042
      %v6044 = vlaneseq
      %v6045 = vshrl.u32 %v6044, 7
      %v6046 = vsub.s32 6, %v6045
      %v6047 = vrot.slane %v5960, %v6046
      %6049 = vbcast.lane.b32.xlu0 %v6047, 256
      %v6050 = vpop.permute.xlu0 %6049
      %s6052 = sor.u32 256, 8
      %6053 = vbcast.lane.b32.xlu0 %v6047, %s6052
      %v6054 = vpop.permute.xlu0 %6053
      %v6055 = vlaneseq
      %v6056 = vshrl.u32 %v6055, 7
      %v6057 = vsub.s32 7, %v6056
      %v6058 = vrot.slane %v5960, %v6057
      %6060 = vbcast.lane.b32.xlu0 %v6058, 256
      %v6061 = vpop.permute.xlu0 %6060
      %s6063 = sor.u32 256, 8
      %6064 = vbcast.lane.b32.xlu0 %v6058, %s6063
      %v6065 = vpop.permute.xlu0 %6064
      %v6066 = vlaneseq
      %v6067 = vshrl.u32 %v6066, 7
      %v6068 = vsub.s32 0, %v6067
      %v6069 = vrot.slane %v5961, %v6068
      %6071 = vbcast.lane.b32.xlu0 %v6069, 256
      %v6072 = vpop.permute.xlu0 %6071
      %s6074 = sor.u32 256, 8
      %6075 = vbcast.lane.b32.xlu0 %v6069, %s6074
      %v6076 = vpop.permute.xlu0 %6075
      %v6077 = vlaneseq
      %v6078 = vshrl.u32 %v6077, 7
      %v6079 = vsub.s32 1, %v6078
      %v6080 = vrot.slane %v5961, %v6079
      %6082 = vbcast.lane.b32.xlu0 %v6080, 256
      %v6083 = vpop.permute.xlu0 %6082
      %s6085 = sor.u32 256, 8
      %6086 = vbcast.lane.b32.xlu0 %v6080, %s6085
      %v6087 = vpop.permute.xlu0 %6086
      %v6088 = vlaneseq
      %v6089 = vshrl.u32 %v6088, 7
      %v6090 = vsub.s32 2, %v6089
      %v6091 = vrot.slane %v5961, %v6090
      %6093 = vbcast.lane.b32.xlu0 %v6091, 256
      %v6094 = vpop.permute.xlu0 %6093
      %s6096 = sor.u32 256, 8
      %6097 = vbcast.lane.b32.xlu0 %v6091, %s6096
      %v6098 = vpop.permute.xlu0 %6097
      %v6099 = vlaneseq
      %v6100 = vshrl.u32 %v6099, 7
      %v6101 = vsub.s32 3, %v6100
      %v6102 = vrot.slane %v5961, %v6101
      %6104 = vbcast.lane.b32.xlu0 %v6102, 256
      %v6105 = vpop.permute.xlu0 %6104
      %s6107 = sor.u32 256, 8
      %6108 = vbcast.lane.b32.xlu0 %v6102, %s6107
      %v6109 = vpop.permute.xlu0 %6108
      %v6110 = vlaneseq
      %v6111 = vshrl.u32 %v6110, 7
      %v6112 = vsub.s32 4, %v6111
      %v6113 = vrot.slane %v5961, %v6112
      %6115 = vbcast.lane.b32.xlu0 %v6113, 256
      %v6116 = vpop.permute.xlu0 %6115
      %s6118 = sor.u32 256, 8
      %6119 = vbcast.lane.b32.xlu0 %v6113, %s6118
      %v6120 = vpop.permute.xlu0 %6119
      %v6121 = vlaneseq
      %v6122 = vshrl.u32 %v6121, 7
      %v6123 = vsub.s32 5, %v6122
      %v6124 = vrot.slane %v5961, %v6123
      %6126 = vbcast.lane.b32.xlu0 %v6124, 256
      %v6127 = vpop.permute.xlu0 %6126
      %s6129 = sor.u32 256, 8
      %6130 = vbcast.lane.b32.xlu0 %v6124, %s6129
      %v6131 = vpop.permute.xlu0 %6130
      %v6132 = vlaneseq
      %v6133 = vshrl.u32 %v6132, 7
      %v6134 = vsub.s32 6, %v6133
      %v6135 = vrot.slane %v5961, %v6134
      %6137 = vbcast.lane.b32.xlu0 %v6135, 256
      %v6138 = vpop.permute.xlu0 %6137
      %s6140 = sor.u32 256, 8
      %6141 = vbcast.lane.b32.xlu0 %v6135, %s6140
      %v6142 = vpop.permute.xlu0 %6141
      %v6143 = vlaneseq
      %v6144 = vshrl.u32 %v6143, 7
      %v6145 = vsub.s32 7, %v6144
      %v6146 = vrot.slane %v5961, %v6145
      %6148 = vbcast.lane.b32.xlu0 %v6146, 256
      %v6149 = vpop.permute.xlu0 %6148
      %s6151 = sor.u32 256, 8
      %6152 = vbcast.lane.b32.xlu0 %v6146, %s6151
      %v6153 = vpop.permute.xlu0 %6152
      %v6186 = vadd.f32 %v5562, %v5984
      %v6187 = vadd.f32 %v5565, %v5988
      %v6188 = vadd.f32 %v5568, %v5995
      %v6189 = vadd.f32 %v5571, %v5999
      %v6190 = vadd.f32 %v5574, %v6006
      %v6191 = vadd.f32 %v5577, %v6010
      %v6192 = vadd.f32 %v5580, %v6017
      %v6193 = vadd.f32 %v5583, %v6021
      %v6194 = vadd.f32 %v5586, %v6028
      %v6195 = vadd.f32 %v5589, %v6032
      %v6196 = vadd.f32 %v5592, %v6039
      %v6197 = vadd.f32 %v5595, %v6043
      %v6198 = vadd.f32 %v5598, %v6050
      %v6199 = vadd.f32 %v5601, %v6054
      %v6200 = vadd.f32 %v5604, %v6061
      %v6201 = vadd.f32 %v5607, %v6065
      %v6202 = vadd.f32 %v5610, %v6072
      %v6203 = vadd.f32 %v5613, %v6076
      %v6204 = vadd.f32 %v5616, %v6083
      %v6205 = vadd.f32 %v5619, %v6087
      %v6206 = vadd.f32 %v5622, %v6094
      %v6207 = vadd.f32 %v5625, %v6098
      %v6208 = vadd.f32 %v5628, %v6105
      %v6209 = vadd.f32 %v5631, %v6109
      %v6210 = vadd.f32 %v5634, %v6116
      %v6211 = vadd.f32 %v5637, %v6120
      %v6212 = vadd.f32 %v5640, %v6127
      %v6213 = vadd.f32 %v5643, %v6131
      %v6214 = vadd.f32 %v5646, %v6138
      %v6215 = vadd.f32 %v5649, %v6142
      %v6216 = vadd.f32 %v5652, %v6149
      %v6217 = vadd.f32 %v5655, %v6153
      %v6218 = vrcp.pop %v6186
      %v6219 = vrcp.pop %v6187
      %v6220 = vrcp.pop %v6188
      %v6221 = vrcp.pop %v6189
      %v6222 = vrcp.pop %v6190
      %v6223 = vrcp.pop %v6191
      %v6224 = vrcp.pop %v6192
      %v6225 = vrcp.pop %v6193
      %v6226 = vrcp.pop %v6194
      %v6227 = vrcp.pop %v6195
      %v6228 = vrcp.pop %v6196
      %v6229 = vrcp.pop %v6197
      %v6230 = vrcp.pop %v6198
      %v6231 = vrcp.pop %v6199
      %v6232 = vrcp.pop %v6200
      %v6233 = vrcp.pop %v6201
      %v6234 = vrcp.pop %v6202
      %v6235 = vrcp.pop %v6203
      %v6236 = vrcp.pop %v6204
      %v6237 = vrcp.pop %v6205
      %v6238 = vrcp.pop %v6206
      %v6239 = vrcp.pop %v6207
      %v6240 = vrcp.pop %v6208
      %v6241 = vrcp.pop %v6209
      %v6242 = vrcp.pop %v6210
      %v6243 = vrcp.pop %v6211
      %v6244 = vrcp.pop %v6212
      %v6245 = vrcp.pop %v6213
      %v6246 = vrcp.pop %v6214
      %v6247 = vrcp.pop %v6215
      %v6248 = vrcp.pop %v6216
      %v6249 = vrcp.pop %v6217
      %6282 = vset.pattern.permute.xlu0 0
      %6283 = vperm.xlu0 %6282, %v6218
      %v6284 = vpop.permute.xlu0 %6283
      %6285 = vset.pattern.permute.xlu0 0
      %6286 = vperm.xlu0 %6285, %v6219
      %v6287 = vpop.permute.xlu0 %6286
      %6288 = vset.pattern.permute.xlu0 0
      %6289 = vperm.xlu0 %6288, %v6220
      %v6290 = vpop.permute.xlu0 %6289
      %6291 = vset.pattern.permute.xlu0 0
      %6292 = vperm.xlu0 %6291, %v6221
      %v6293 = vpop.permute.xlu0 %6292
      %6294 = vset.pattern.permute.xlu0 0
      %6295 = vperm.xlu0 %6294, %v6222
      %v6296 = vpop.permute.xlu0 %6295
      %6297 = vset.pattern.permute.xlu0 0
      %6298 = vperm.xlu0 %6297, %v6223
      %v6299 = vpop.permute.xlu0 %6298
      %6300 = vset.pattern.permute.xlu0 0
      %6301 = vperm.xlu0 %6300, %v6224
      %v6302 = vpop.permute.xlu0 %6301
      %6303 = vset.pattern.permute.xlu0 0
      %6304 = vperm.xlu0 %6303, %v6225
      %v6305 = vpop.permute.xlu0 %6304
      %6306 = vset.pattern.permute.xlu0 0
      %6307 = vperm.xlu0 %6306, %v6226
      %v6308 = vpop.permute.xlu0 %6307
      %6309 = vset.pattern.permute.xlu0 0
      %6310 = vperm.xlu0 %6309, %v6227
      %v6311 = vpop.permute.xlu0 %6310
      %6312 = vset.pattern.permute.xlu0 0
      %6313 = vperm.xlu0 %6312, %v6228
      %v6314 = vpop.permute.xlu0 %6313
      %6315 = vset.pattern.permute.xlu0 0
      %6316 = vperm.xlu0 %6315, %v6229
      %v6317 = vpop.permute.xlu0 %6316
      %6318 = vset.pattern.permute.xlu0 0
      %6319 = vperm.xlu0 %6318, %v6230
      %v6320 = vpop.permute.xlu0 %6319
      %6321 = vset.pattern.permute.xlu0 0
      %6322 = vperm.xlu0 %6321, %v6231
      %v6323 = vpop.permute.xlu0 %6322
      %6324 = vset.pattern.permute.xlu0 0
      %6325 = vperm.xlu0 %6324, %v6232
      %v6326 = vpop.permute.xlu0 %6325
      %6327 = vset.pattern.permute.xlu0 0
      %6328 = vperm.xlu0 %6327, %v6233
      %v6329 = vpop.permute.xlu0 %6328
      %6330 = vset.pattern.permute.xlu0 0
      %6331 = vperm.xlu0 %6330, %v6234
      %v6332 = vpop.permute.xlu0 %6331
      %6333 = vset.pattern.permute.xlu0 0
      %6334 = vperm.xlu0 %6333, %v6235
      %v6335 = vpop.permute.xlu0 %6334
      %6336 = vset.pattern.permute.xlu0 0
      %6337 = vperm.xlu0 %6336, %v6236
      %v6338 = vpop.permute.xlu0 %6337
      %6339 = vset.pattern.permute.xlu0 0
      %6340 = vperm.xlu0 %6339, %v6237
      %v6341 = vpop.permute.xlu0 %6340
      %6342 = vset.pattern.permute.xlu0 0
      %6343 = vperm.xlu0 %6342, %v6238
      %v6344 = vpop.permute.xlu0 %6343
      %6345 = vset.pattern.permute.xlu0 0
      %6346 = vperm.xlu0 %6345, %v6239
      %v6347 = vpop.permute.xlu0 %6346
      %6348 = vset.pattern.permute.xlu0 0
      %6349 = vperm.xlu0 %6348, %v6240
      %v6350 = vpop.permute.xlu0 %6349
      %6351 = vset.pattern.permute.xlu0 0
      %6352 = vperm.xlu0 %6351, %v6241
      %v6353 = vpop.permute.xlu0 %6352
      %6354 = vset.pattern.permute.xlu0 0
      %6355 = vperm.xlu0 %6354, %v6242
      %v6356 = vpop.permute.xlu0 %6355
      %6357 = vset.pattern.permute.xlu0 0
      %6358 = vperm.xlu0 %6357, %v6243
      %v6359 = vpop.permute.xlu0 %6358
      %6360 = vset.pattern.permute.xlu0 0
      %6361 = vperm.xlu0 %6360, %v6244
      %v6362 = vpop.permute.xlu0 %6361
      %6363 = vset.pattern.permute.xlu0 0
      %6364 = vperm.xlu0 %6363, %v6245
      %v6365 = vpop.permute.xlu0 %6364
      %6366 = vset.pattern.permute.xlu0 0
      %6367 = vperm.xlu0 %6366, %v6246
      %v6368 = vpop.permute.xlu0 %6367
      %6369 = vset.pattern.permute.xlu0 0
      %6370 = vperm.xlu0 %6369, %v6247
      %v6371 = vpop.permute.xlu0 %6370
      %6372 = vset.pattern.permute.xlu0 0
      %6373 = vperm.xlu0 %6372, %v6248
      %v6374 = vpop.permute.xlu0 %6373
      %6375 = vset.pattern.permute.xlu0 0
      %6376 = vperm.xlu0 %6375, %v6249
      %v6377 = vpop.permute.xlu0 %6376
      %v6378 = vlaneseq
      %v6379 = vshrl.u32 %v6378, 7
      %v6380 = vsub.s32 %v4138, %v6379
      %v6381 = vrot.slane %v6284, %v6380
      %v6382 = vlaneseq
      %v6383 = vshrl.u32 %v6382, 7
      %v6384 = vsub.s32 %v4401, %v6383
      %v6385 = vrot.slane %v6287, %v6384
      %v6386 = vsel %vm4406, %v6385, %v6381
      %v6387 = vlaneseq
      %v6388 = vshrl.u32 %v6387, 7
      %v6389 = vsub.s32 %v4138, %v6388
      %v6390 = vrot.slane %v6290, %v6389
      %v6391 = vlaneseq
      %v6392 = vshrl.u32 %v6391, 7
      %v6393 = vsub.s32 %v4401, %v6392
      %v6394 = vrot.slane %v6293, %v6393
      %v6395 = vsel %vm4406, %v6394, %v6390
      %v6396 = vlaneseq
      %v6397 = vshrl.u32 %v6396, 7
      %v6398 = vsub.s32 %v4138, %v6397
      %v6399 = vrot.slane %v6296, %v6398
      %v6400 = vlaneseq
      %v6401 = vshrl.u32 %v6400, 7
      %v6402 = vsub.s32 %v4401, %v6401
      %v6403 = vrot.slane %v6299, %v6402
      %v6404 = vsel %vm4406, %v6403, %v6399
      %v6405 = vlaneseq
      %v6406 = vshrl.u32 %v6405, 7
      %v6407 = vsub.s32 %v4138, %v6406
      %v6408 = vrot.slane %v6302, %v6407
      %v6409 = vlaneseq
      %v6410 = vshrl.u32 %v6409, 7
      %v6411 = vsub.s32 %v4401, %v6410
      %v6412 = vrot.slane %v6305, %v6411
      %v6413 = vsel %vm4406, %v6412, %v6408
      %v6414 = vlaneseq
      %v6415 = vshrl.u32 %v6414, 7
      %v6416 = vsub.s32 %v4138, %v6415
      %v6417 = vrot.slane %v6308, %v6416
      %v6418 = vlaneseq
      %v6419 = vshrl.u32 %v6418, 7
      %v6420 = vsub.s32 %v4401, %v6419
      %v6421 = vrot.slane %v6311, %v6420
      %v6422 = vsel %vm4406, %v6421, %v6417
      %v6423 = vlaneseq
      %v6424 = vshrl.u32 %v6423, 7
      %v6425 = vsub.s32 %v4138, %v6424
      %v6426 = vrot.slane %v6314, %v6425
      %v6427 = vlaneseq
      %v6428 = vshrl.u32 %v6427, 7
      %v6429 = vsub.s32 %v4401, %v6428
      %v6430 = vrot.slane %v6317, %v6429
      %v6431 = vsel %vm4406, %v6430, %v6426
      %v6432 = vlaneseq
      %v6433 = vshrl.u32 %v6432, 7
      %v6434 = vsub.s32 %v4138, %v6433
      %v6435 = vrot.slane %v6320, %v6434
      %v6436 = vlaneseq
      %v6437 = vshrl.u32 %v6436, 7
      %v6438 = vsub.s32 %v4401, %v6437
      %v6439 = vrot.slane %v6323, %v6438
      %v6440 = vsel %vm4406, %v6439, %v6435
      %v6441 = vlaneseq
      %v6442 = vshrl.u32 %v6441, 7
      %v6443 = vsub.s32 %v4138, %v6442
      %v6444 = vrot.slane %v6326, %v6443
      %v6445 = vlaneseq
      %v6446 = vshrl.u32 %v6445, 7
      %v6447 = vsub.s32 %v4401, %v6446
      %v6448 = vrot.slane %v6329, %v6447
      %v6449 = vsel %vm4406, %v6448, %v6444
      %v6450 = vlaneseq
      %v6451 = vshrl.u32 %v6450, 7
      %v6452 = vsub.s32 %v4138, %v6451
      %v6453 = vrot.slane %v6332, %v6452
      %v6454 = vlaneseq
      %v6455 = vshrl.u32 %v6454, 7
      %v6456 = vsub.s32 %v4401, %v6455
      %v6457 = vrot.slane %v6335, %v6456
      %v6458 = vsel %vm4406, %v6457, %v6453
      %v6459 = vlaneseq
      %v6460 = vshrl.u32 %v6459, 7
      %v6461 = vsub.s32 %v4138, %v6460
      %v6462 = vrot.slane %v6338, %v6461
      %v6463 = vlaneseq
      %v6464 = vshrl.u32 %v6463, 7
      %v6465 = vsub.s32 %v4401, %v6464
      %v6466 = vrot.slane %v6341, %v6465
      %v6467 = vsel %vm4406, %v6466, %v6462
      %v6468 = vlaneseq
      %v6469 = vshrl.u32 %v6468, 7
      %v6470 = vsub.s32 %v4138, %v6469
      %v6471 = vrot.slane %v6344, %v6470
      %v6472 = vlaneseq
      %v6473 = vshrl.u32 %v6472, 7
      %v6474 = vsub.s32 %v4401, %v6473
      %v6475 = vrot.slane %v6347, %v6474
      %v6476 = vsel %vm4406, %v6475, %v6471
      %v6477 = vlaneseq
      %v6478 = vshrl.u32 %v6477, 7
      %v6479 = vsub.s32 %v4138, %v6478
      %v6480 = vrot.slane %v6350, %v6479
      %v6481 = vlaneseq
      %v6482 = vshrl.u32 %v6481, 7
      %v6483 = vsub.s32 %v4401, %v6482
      %v6484 = vrot.slane %v6353, %v6483
      %v6485 = vsel %vm4406, %v6484, %v6480
      %v6486 = vlaneseq
      %v6487 = vshrl.u32 %v6486, 7
      %v6488 = vsub.s32 %v4138, %v6487
      %v6489 = vrot.slane %v6356, %v6488
      %v6490 = vlaneseq
      %v6491 = vshrl.u32 %v6490, 7
      %v6492 = vsub.s32 %v4401, %v6491
      %v6493 = vrot.slane %v6359, %v6492
      %v6494 = vsel %vm4406, %v6493, %v6489
      %v6495 = vlaneseq
      %v6496 = vshrl.u32 %v6495, 7
      %v6497 = vsub.s32 %v4138, %v6496
      %v6498 = vrot.slane %v6362, %v6497
      %v6499 = vlaneseq
      %v6500 = vshrl.u32 %v6499, 7
      %v6501 = vsub.s32 %v4401, %v6500
      %v6502 = vrot.slane %v6365, %v6501
      %v6503 = vsel %vm4406, %v6502, %v6498
      %v6504 = vlaneseq
      %v6505 = vshrl.u32 %v6504, 7
      %v6506 = vsub.s32 %v4138, %v6505
      %v6507 = vrot.slane %v6368, %v6506
      %v6508 = vlaneseq
      %v6509 = vshrl.u32 %v6508, 7
      %v6510 = vsub.s32 %v4401, %v6509
      %v6511 = vrot.slane %v6371, %v6510
      %v6512 = vsel %vm4406, %v6511, %v6507
      %v6513 = vlaneseq
      %v6514 = vshrl.u32 %v6513, 7
      %v6515 = vsub.s32 %v4138, %v6514
      %v6516 = vrot.slane %v6374, %v6515
      %v6517 = vlaneseq
      %v6518 = vshrl.u32 %v6517, 7
      %v6519 = vsub.s32 %v4401, %v6518
      %v6520 = vrot.slane %v6377, %v6519
      %v6521 = vsel %vm4406, %v6520, %v6516
      %v6522 = vsel %vm4543, %v6395, %v6386
      %v6523 = vsel %vm4545, %v6404, %v6522
      %v6524 = vsel %vm4547, %v6413, %v6523
      %v6525 = vsel %vm4549, %v6422, %v6524
      %v6526 = vsel %vm4551, %v6431, %v6525
      %v6527 = vsel %vm4553, %v6440, %v6526
      %v6528 = vsel %vm4555, %v6449, %v6527
      %v6529 = vsel %vm4543, %v6467, %v6458
      %v6530 = vsel %vm4545, %v6476, %v6529
      %v6531 = vsel %vm4547, %v6485, %v6530
      %v6532 = vsel %vm4549, %v6494, %v6531
      %v6533 = vsel %vm4551, %v6503, %v6532
      %v6534 = vsel %vm4553, %v6512, %v6533
      %v6535 = vsel %vm4555, %v6521, %v6534
      %6538 = vxpose.xlu0.b32.start [1/16] %v6528, 128
      %6539 = vxpose.xlu0.b32.cont [2/16] %v6535, 128
      %6540 = vxpose.xlu0.b32.cont [3/16] 0.0, 128
      %6541 = vxpose.xlu0.b32.cont [4/16] 0.0, 128
      %6542 = vxpose.xlu0.b32.cont [5/16] 0.0, 128
      %6543 = vxpose.xlu0.b32.cont [6/16] 0.0, 128
      %6544 = vxpose.xlu0.b32.cont [7/16] 0.0, 128
      %6545 = vxpose.xlu0.b32.cont [8/16] 0.0, 128
      %6546 = vxpose.xlu0.b32.cont [9/16] 0.0, 128
      %6547 = vxpose.xlu0.b32.cont [10/16] 0.0, 128
      %6548 = vxpose.xlu0.b32.cont [11/16] 0.0, 128
      %6549 = vxpose.xlu0.b32.cont [12/16] 0.0, 128
      %6550 = vxpose.xlu0.b32.cont [13/16] 0.0, 128
      %6551 = vxpose.xlu0.b32.cont [14/16] 0.0, 128
      %6552 = vxpose.xlu0.b32.cont [15/16] 0.0, 128
      %6553 = vxpose.xlu0.b32.end [16/16] 0.0, 128
      %v6554 = vpop.trf.xlu0
      %v6555 = vpop.trf.xlu0
      %v6556 = vpop.trf.xlu0
      %v6557 = vpop.trf.xlu0
      %v6558 = vpop.trf.xlu0
      %v6559 = vpop.trf.xlu0
      %v6560 = vpop.trf.xlu0
      %v6561 = vpop.trf.xlu0
      %v6562 = vpop.trf.xlu0
      %v6563 = vpop.trf.xlu0
      %v6564 = vpop.trf.xlu0
      %v6565 = vpop.trf.xlu0
      %v6566 = vpop.trf.xlu0
      %v6567 = vpop.trf.xlu0
      %v6568 = vpop.trf.xlu0
      %v6569 = vpop.trf.xlu0
      %v6570 = vpack.c.bf16 %v5227, %v5225
      %v6571 = vpack.c.bf16 %v5231, %v5229
      %v6572 = vpack.c.bf16 %v5235, %v5233
      %v6573 = vpack.c.bf16 %v5239, %v5237
      %v6574 = vpack.c.bf16 %v5243, %v5241
      %v6575 = vpack.c.bf16 %v5247, %v5245
      %v6576 = vpack.c.bf16 %v5251, %v5249
      %v6577 = vpack.c.bf16 %v5255, %v5253
      %v6578 = vpack.c.bf16 %v5259, %v5257
      %v6579 = vpack.c.bf16 %v5263, %v5261
      %v6580 = vpack.c.bf16 %v5267, %v5265
      %v6581 = vpack.c.bf16 %v5271, %v5269
      %v6582 = vpack.c.bf16 %v5275, %v5273
      %v6583 = vpack.c.bf16 %v5279, %v5277
      %v6584 = vpack.c.bf16 %v5283, %v5281
      %v6585 = vpack.c.bf16 %v5287, %v5285
      %v6586 = vpack.c.bf16 %v2285, %v2149
      %v6587 = vpack.c.bf16 %v2286, %v2150
      %v6588 = vpack.c.bf16 %v2287, %v2151
      %v6589 = vpack.c.bf16 %v2288, %v2152
      %v6590 = vpack.c.bf16 %v2289, %v2153
      %v6591 = vpack.c.bf16 %v2290, %v2154
      %v6592 = vpack.c.bf16 %v2291, %v2155
      %v6593 = vpack.c.bf16 %v2292, %v2156
      %v6594 = vpack.c.bf16 %v2557, %v2421
      %v6595 = vpack.c.bf16 %v2558, %v2422
      %v6596 = vpack.c.bf16 %v2559, %v2423
      %v6597 = vpack.c.bf16 %v2560, %v2424
      %v6598 = vpack.c.bf16 %v2561, %v2425
      %v6599 = vpack.c.bf16 %v2562, %v2426
      %v6600 = vpack.c.bf16 %v2563, %v2427
      %v6601 = vpack.c.bf16 %v2564, %v2428
      %v6603 = vsel %vm371, %v6570, 0
      %6605 = vmatprep.subr.bf16.mxu0 0
      %6606 = vmatpush1.bf16.msra.mxu0 0
      %6607 = vmatprep.subr.bf16.mxu0 0
      %6608 = vmatpush1.bf16.msra.mxu0 0
      %6609 = vmatprep.subr.bf16.mxu0 0
      %6610 = vmatpush1.bf16.msra.mxu0 0
      %6611 = vmatprep.subr.bf16.mxu0 0
      %6612 = vmatpush1.bf16.msra.mxu0 0
      %6613 = vmatprep.subr.bf16.mxu0 0
      %6614 = vmatpush1.bf16.msra.mxu0 0
      %6615 = vmatprep.subr.bf16.mxu0 0
      %6616 = vmatpush1.bf16.msra.mxu0 0
      %6617 = vmatprep.subr.bf16.mxu0 0
      %6618 = vmatpush1.bf16.msra.mxu0 0
      %6619 = vmatprep.subr.bf16.mxu0 0
      %6620 = vmatpush1.bf16.msra.mxu0 %v6586
      %6621 = vmatprep.subr.bf16.mxu0 0
      %6622 = vmatpush2.bf16.msra.mxu0 0
      %6623 = vmatprep.subr.bf16.mxu0 0
      %6624 = vmatpush2.bf16.msra.mxu0 0
      %6625 = vmatprep.subr.bf16.mxu0 0
      %6626 = vmatpush2.bf16.msra.mxu0 0
      %6627 = vmatprep.subr.bf16.mxu0 0
      %6628 = vmatpush2.bf16.msra.mxu0 0
      %6629 = vmatprep.subr.bf16.mxu0 0
      %6630 = vmatpush2.bf16.msra.mxu0 0
      %6631 = vmatprep.subr.bf16.mxu0 0
      %6632 = vmatpush2.bf16.msra.mxu0 0
      %6633 = vmatprep.subr.bf16.mxu0 0
      %6634 = vmatpush2.bf16.msra.mxu0 0
      %6635 = vmatprep.subr.bf16.mxu0 0
      %6636 = vmatpush2.bf16.msra.mxu0 0
      %6637 = vmatprep.mubr.bf16.mxu0 0
      %6638 = vmatmul.mubr.bf16.gmra.mxu0 %v6603
      %v6639 = vpop.f32.mrf.mxu0
      %v6640 = vadd.f32 0.0, %v6639
      %v6641 = vpop.f32.mrf.mxu0
      %v6642 = vpop.f32.mrf.mxu0
      %v6643 = vadd.f32 0.0, %v6642
      %v6644 = vpop.f32.mrf.mxu0
      %6645 = vdwg.mxu0
      %v6647 = vsel %vm371, %v6571, 0
      %6649 = vmatprep.subr.bf16.mxu0 0
      %6650 = vmatpush1.bf16.msra.mxu0 0
      %6651 = vmatprep.subr.bf16.mxu0 0
      %6652 = vmatpush1.bf16.msra.mxu0 0
      %6653 = vmatprep.subr.bf16.mxu0 0
      %6654 = vmatpush1.bf16.msra.mxu0 0
      %6655 = vmatprep.subr.bf16.mxu0 0
      %6656 = vmatpush1.bf16.msra.mxu0 0
      %6657 = vmatprep.subr.bf16.mxu0 0
      %6658 = vmatpush1.bf16.msra.mxu0 0
      %6659 = vmatprep.subr.bf16.mxu0 0
      %6660 = vmatpush1.bf16.msra.mxu0 0
      %6661 = vmatprep.subr.bf16.mxu0 0
      %6662 = vmatpush1.bf16.msra.mxu0 0
      %6663 = vmatprep.subr.bf16.mxu0 0
      %6664 = vmatpush1.bf16.msra.mxu0 %v6587
      %6665 = vmatprep.subr.bf16.mxu0 0
      %6666 = vmatpush2.bf16.msra.mxu0 0
      %6667 = vmatprep.subr.bf16.mxu0 0
      %6668 = vmatpush2.bf16.msra.mxu0 0
      %6669 = vmatprep.subr.bf16.mxu0 0
      %6670 = vmatpush2.bf16.msra.mxu0 0
      %6671 = vmatprep.subr.bf16.mxu0 0
      %6672 = vmatpush2.bf16.msra.mxu0 0
      %6673 = vmatprep.subr.bf16.mxu0 0
      %6674 = vmatpush2.bf16.msra.mxu0 0
      %6675 = vmatprep.subr.bf16.mxu0 0
      %6676 = vmatpush2.bf16.msra.mxu0 0
      %6677 = vmatprep.subr.bf16.mxu0 0
      %6678 = vmatpush2.bf16.msra.mxu0 0
      %6679 = vmatprep.subr.bf16.mxu0 0
      %6680 = vmatpush2.bf16.msra.mxu0 0
      %6681 = vmatprep.mubr.bf16.mxu0 0
      %6682 = vmatmul.mubr.bf16.gmra.mxu0 %v6647
      %v6683 = vpop.f32.mrf.mxu0
      %v6684 = vadd.f32 0.0, %v6683
      %v6685 = vpop.f32.mrf.mxu0
      %v6686 = vpop.f32.mrf.mxu0
      %v6687 = vadd.f32 0.0, %v6686
      %v6688 = vpop.f32.mrf.mxu0
      %6689 = vdwg.mxu0
      %v6691 = vsel %vm371, %v6572, 0
      %6693 = vmatprep.subr.bf16.mxu0 0
      %6694 = vmatpush1.bf16.msra.mxu0 0
      %6695 = vmatprep.subr.bf16.mxu0 0
      %6696 = vmatpush1.bf16.msra.mxu0 0
      %6697 = vmatprep.subr.bf16.mxu0 0
      %6698 = vmatpush1.bf16.msra.mxu0 0
      %6699 = vmatprep.subr.bf16.mxu0 0
      %6700 = vmatpush1.bf16.msra.mxu0 0
      %6701 = vmatprep.subr.bf16.mxu0 0
      %6702 = vmatpush1.bf16.msra.mxu0 0
      %6703 = vmatprep.subr.bf16.mxu0 0
      %6704 = vmatpush1.bf16.msra.mxu0 0
      %6705 = vmatprep.subr.bf16.mxu0 0
      %6706 = vmatpush1.bf16.msra.mxu0 0
      %6707 = vmatprep.subr.bf16.mxu0 0
      %6708 = vmatpush1.bf16.msra.mxu0 %v6588
      %6709 = vmatprep.subr.bf16.mxu0 0
      %6710 = vmatpush2.bf16.msra.mxu0 0
      %6711 = vmatprep.subr.bf16.mxu0 0
      %6712 = vmatpush2.bf16.msra.mxu0 0
      %6713 = vmatprep.subr.bf16.mxu0 0
      %6714 = vmatpush2.bf16.msra.mxu0 0
      %6715 = vmatprep.subr.bf16.mxu0 0
      %6716 = vmatpush2.bf16.msra.mxu0 0
      %6717 = vmatprep.subr.bf16.mxu0 0
      %6718 = vmatpush2.bf16.msra.mxu0 0
      %6719 = vmatprep.subr.bf16.mxu0 0
      %6720 = vmatpush2.bf16.msra.mxu0 0
      %6721 = vmatprep.subr.bf16.mxu0 0
      %6722 = vmatpush2.bf16.msra.mxu0 0
      %6723 = vmatprep.subr.bf16.mxu0 0
      %6724 = vmatpush2.bf16.msra.mxu0 0
      %6725 = vmatprep.mubr.bf16.mxu0 0
      %6726 = vmatmul.mubr.bf16.gmra.mxu0 %v6691
      %v6727 = vpop.f32.mrf.mxu0
      %v6728 = vadd.f32 0.0, %v6727
      %v6729 = vpop.f32.mrf.mxu0
      %v6730 = vpop.f32.mrf.mxu0
      %v6731 = vadd.f32 0.0, %v6730
      %v6732 = vpop.f32.mrf.mxu0
      %6733 = vdwg.mxu0
      %v6735 = vsel %vm371, %v6573, 0
      %6737 = vmatprep.subr.bf16.mxu0 0
      %6738 = vmatpush1.bf16.msra.mxu0 0
      %6739 = vmatprep.subr.bf16.mxu0 0
      %6740 = vmatpush1.bf16.msra.mxu0 0
      %6741 = vmatprep.subr.bf16.mxu0 0
      %6742 = vmatpush1.bf16.msra.mxu0 0
      %6743 = vmatprep.subr.bf16.mxu0 0
      %6744 = vmatpush1.bf16.msra.mxu0 0
      %6745 = vmatprep.subr.bf16.mxu0 0
      %6746 = vmatpush1.bf16.msra.mxu0 0
      %6747 = vmatprep.subr.bf16.mxu0 0
      %6748 = vmatpush1.bf16.msra.mxu0 0
      %6749 = vmatprep.subr.bf16.mxu0 0
      %6750 = vmatpush1.bf16.msra.mxu0 0
      %6751 = vmatprep.subr.bf16.mxu0 0
      %6752 = vmatpush1.bf16.msra.mxu0 %v6589
      %6753 = vmatprep.subr.bf16.mxu0 0
      %6754 = vmatpush2.bf16.msra.mxu0 0
      %6755 = vmatprep.subr.bf16.mxu0 0
      %6756 = vmatpush2.bf16.msra.mxu0 0
      %6757 = vmatprep.subr.bf16.mxu0 0
      %6758 = vmatpush2.bf16.msra.mxu0 0
      %6759 = vmatprep.subr.bf16.mxu0 0
      %6760 = vmatpush2.bf16.msra.mxu0 0
      %6761 = vmatprep.subr.bf16.mxu0 0
      %6762 = vmatpush2.bf16.msra.mxu0 0
      %6763 = vmatprep.subr.bf16.mxu0 0
      %6764 = vmatpush2.bf16.msra.mxu0 0
      %6765 = vmatprep.subr.bf16.mxu0 0
      %6766 = vmatpush2.bf16.msra.mxu0 0
      %6767 = vmatprep.subr.bf16.mxu0 0
      %6768 = vmatpush2.bf16.msra.mxu0 0
      %6769 = vmatprep.mubr.bf16.mxu0 0
      %6770 = vmatmul.mubr.bf16.gmra.mxu0 %v6735
      %v6771 = vpop.f32.mrf.mxu0
      %v6772 = vadd.f32 0.0, %v6771
      %v6773 = vpop.f32.mrf.mxu0
      %v6774 = vpop.f32.mrf.mxu0
      %v6775 = vadd.f32 0.0, %v6774
      %v6776 = vpop.f32.mrf.mxu0
      %6777 = vdwg.mxu0
      %v6779 = vsel %vm371, %v6574, 0
      %6781 = vmatprep.subr.bf16.mxu0 0
      %6782 = vmatpush1.bf16.msra.mxu0 0
      %6783 = vmatprep.subr.bf16.mxu0 0
      %6784 = vmatpush1.bf16.msra.mxu0 0
      %6785 = vmatprep.subr.bf16.mxu0 0
      %6786 = vmatpush1.bf16.msra.mxu0 0
      %6787 = vmatprep.subr.bf16.mxu0 0
      %6788 = vmatpush1.bf16.msra.mxu0 0
      %6789 = vmatprep.subr.bf16.mxu0 0
      %6790 = vmatpush1.bf16.msra.mxu0 0
      %6791 = vmatprep.subr.bf16.mxu0 0
      %6792 = vmatpush1.bf16.msra.mxu0 0
      %6793 = vmatprep.subr.bf16.mxu0 0
      %6794 = vmatpush1.bf16.msra.mxu0 0
      %6795 = vmatprep.subr.bf16.mxu0 0
      %6796 = vmatpush1.bf16.msra.mxu0 %v6590
      %6797 = vmatprep.subr.bf16.mxu0 0
      %6798 = vmatpush2.bf16.msra.mxu0 0
      %6799 = vmatprep.subr.bf16.mxu0 0
      %6800 = vmatpush2.bf16.msra.mxu0 0
      %6801 = vmatprep.subr.bf16.mxu0 0
      %6802 = vmatpush2.bf16.msra.mxu0 0
      %6803 = vmatprep.subr.bf16.mxu0 0
      %6804 = vmatpush2.bf16.msra.mxu0 0
      %6805 = vmatprep.subr.bf16.mxu0 0
      %6806 = vmatpush2.bf16.msra.mxu0 0
      %6807 = vmatprep.subr.bf16.mxu0 0
      %6808 = vmatpush2.bf16.msra.mxu0 0
      %6809 = vmatprep.subr.bf16.mxu0 0
      %6810 = vmatpush2.bf16.msra.mxu0 0
      %6811 = vmatprep.subr.bf16.mxu0 0
      %6812 = vmatpush2.bf16.msra.mxu0 0
      %6813 = vmatprep.mubr.bf16.mxu0 0
      %6814 = vmatmul.mubr.bf16.gmra.mxu0 %v6779
      %v6815 = vpop.f32.mrf.mxu0
      %v6816 = vadd.f32 0.0, %v6815
      %v6817 = vpop.f32.mrf.mxu0
      %v6818 = vpop.f32.mrf.mxu0
      %v6819 = vadd.f32 0.0, %v6818
      %v6820 = vpop.f32.mrf.mxu0
      %6821 = vdwg.mxu0
      %v6823 = vsel %vm371, %v6575, 0
      %6825 = vmatprep.subr.bf16.mxu0 0
      %6826 = vmatpush1.bf16.msra.mxu0 0
      %6827 = vmatprep.subr.bf16.mxu0 0
      %6828 = vmatpush1.bf16.msra.mxu0 0
      %6829 = vmatprep.subr.bf16.mxu0 0
      %6830 = vmatpush1.bf16.msra.mxu0 0
      %6831 = vmatprep.subr.bf16.mxu0 0
      %6832 = vmatpush1.bf16.msra.mxu0 0
      %6833 = vmatprep.subr.bf16.mxu0 0
      %6834 = vmatpush1.bf16.msra.mxu0 0
      %6835 = vmatprep.subr.bf16.mxu0 0
      %6836 = vmatpush1.bf16.msra.mxu0 0
      %6837 = vmatprep.subr.bf16.mxu0 0
      %6838 = vmatpush1.bf16.msra.mxu0 0
      %6839 = vmatprep.subr.bf16.mxu0 0
      %6840 = vmatpush1.bf16.msra.mxu0 %v6591
      %6841 = vmatprep.subr.bf16.mxu0 0
      %6842 = vmatpush2.bf16.msra.mxu0 0
      %6843 = vmatprep.subr.bf16.mxu0 0
      %6844 = vmatpush2.bf16.msra.mxu0 0
      %6845 = vmatprep.subr.bf16.mxu0 0
      %6846 = vmatpush2.bf16.msra.mxu0 0
      %6847 = vmatprep.subr.bf16.mxu0 0
      %6848 = vmatpush2.bf16.msra.mxu0 0
      %6849 = vmatprep.subr.bf16.mxu0 0
      %6850 = vmatpush2.bf16.msra.mxu0 0
      %6851 = vmatprep.subr.bf16.mxu0 0
      %6852 = vmatpush2.bf16.msra.mxu0 0
      %6853 = vmatprep.subr.bf16.mxu0 0
      %6854 = vmatpush2.bf16.msra.mxu0 0
      %6855 = vmatprep.subr.bf16.mxu0 0
      %6856 = vmatpush2.bf16.msra.mxu0 0
      %6857 = vmatprep.mubr.bf16.mxu0 0
      %6858 = vmatmul.mubr.bf16.gmra.mxu0 %v6823
      %v6859 = vpop.f32.mrf.mxu0
      %v6860 = vadd.f32 0.0, %v6859
      %v6861 = vpop.f32.mrf.mxu0
      %v6862 = vpop.f32.mrf.mxu0
      %v6863 = vadd.f32 0.0, %v6862
      %v6864 = vpop.f32.mrf.mxu0
      %6865 = vdwg.mxu0
      %v6867 = vsel %vm371, %v6576, 0
      %6869 = vmatprep.subr.bf16.mxu0 0
      %6870 = vmatpush1.bf16.msra.mxu0 0
      %6871 = vmatprep.subr.bf16.mxu0 0
      %6872 = vmatpush1.bf16.msra.mxu0 0
      %6873 = vmatprep.subr.bf16.mxu0 0
      %6874 = vmatpush1.bf16.msra.mxu0 0
      %6875 = vmatprep.subr.bf16.mxu0 0
      %6876 = vmatpush1.bf16.msra.mxu0 0
      %6877 = vmatprep.subr.bf16.mxu0 0
      %6878 = vmatpush1.bf16.msra.mxu0 0
      %6879 = vmatprep.subr.bf16.mxu0 0
      %6880 = vmatpush1.bf16.msra.mxu0 0
      %6881 = vmatprep.subr.bf16.mxu0 0
      %6882 = vmatpush1.bf16.msra.mxu0 0
      %6883 = vmatprep.subr.bf16.mxu0 0
      %6884 = vmatpush1.bf16.msra.mxu0 %v6592
      %6885 = vmatprep.subr.bf16.mxu0 0
      %6886 = vmatpush2.bf16.msra.mxu0 0
      %6887 = vmatprep.subr.bf16.mxu0 0
      %6888 = vmatpush2.bf16.msra.mxu0 0
      %6889 = vmatprep.subr.bf16.mxu0 0
      %6890 = vmatpush2.bf16.msra.mxu0 0
      %6891 = vmatprep.subr.bf16.mxu0 0
      %6892 = vmatpush2.bf16.msra.mxu0 0
      %6893 = vmatprep.subr.bf16.mxu0 0
      %6894 = vmatpush2.bf16.msra.mxu0 0
      %6895 = vmatprep.subr.bf16.mxu0 0
      %6896 = vmatpush2.bf16.msra.mxu0 0
      %6897 = vmatprep.subr.bf16.mxu0 0
      %6898 = vmatpush2.bf16.msra.mxu0 0
      %6899 = vmatprep.subr.bf16.mxu0 0
      %6900 = vmatpush2.bf16.msra.mxu0 0
      %6901 = vmatprep.mubr.bf16.mxu0 0
      %6902 = vmatmul.mubr.bf16.gmra.mxu0 %v6867
      %v6903 = vpop.f32.mrf.mxu0
      %v6904 = vadd.f32 0.0, %v6903
      %v6905 = vpop.f32.mrf.mxu0
      %v6906 = vpop.f32.mrf.mxu0
      %v6907 = vadd.f32 0.0, %v6906
      %v6908 = vpop.f32.mrf.mxu0
      %6909 = vdwg.mxu0
      %v6911 = vsel %vm371, %v6577, 0
      %6913 = vmatprep.subr.bf16.mxu0 0
      %6914 = vmatpush1.bf16.msra.mxu0 0
      %6915 = vmatprep.subr.bf16.mxu0 0
      %6916 = vmatpush1.bf16.msra.mxu0 0
      %6917 = vmatprep.subr.bf16.mxu0 0
      %6918 = vmatpush1.bf16.msra.mxu0 0
      %6919 = vmatprep.subr.bf16.mxu0 0
      %6920 = vmatpush1.bf16.msra.mxu0 0
      %6921 = vmatprep.subr.bf16.mxu0 0
      %6922 = vmatpush1.bf16.msra.mxu0 0
      %6923 = vmatprep.subr.bf16.mxu0 0
      %6924 = vmatpush1.bf16.msra.mxu0 0
      %6925 = vmatprep.subr.bf16.mxu0 0
      %6926 = vmatpush1.bf16.msra.mxu0 0
      %6927 = vmatprep.subr.bf16.mxu0 0
      %6928 = vmatpush1.bf16.msra.mxu0 %v6593
      %6929 = vmatprep.subr.bf16.mxu0 0
      %6930 = vmatpush2.bf16.msra.mxu0 0
      %6931 = vmatprep.subr.bf16.mxu0 0
      %6932 = vmatpush2.bf16.msra.mxu0 0
      %6933 = vmatprep.subr.bf16.mxu0 0
      %6934 = vmatpush2.bf16.msra.mxu0 0
      %6935 = vmatprep.subr.bf16.mxu0 0
      %6936 = vmatpush2.bf16.msra.mxu0 0
      %6937 = vmatprep.subr.bf16.mxu0 0
      %6938 = vmatpush2.bf16.msra.mxu0 0
      %6939 = vmatprep.subr.bf16.mxu0 0
      %6940 = vmatpush2.bf16.msra.mxu0 0
      %6941 = vmatprep.subr.bf16.mxu0 0
      %6942 = vmatpush2.bf16.msra.mxu0 0
      %6943 = vmatprep.subr.bf16.mxu0 0
      %6944 = vmatpush2.bf16.msra.mxu0 0
      %6945 = vmatprep.mubr.bf16.mxu0 0
      %6946 = vmatmul.mubr.bf16.gmra.mxu0 %v6911
      %v6947 = vpop.f32.mrf.mxu0
      %v6948 = vadd.f32 0.0, %v6947
      %v6949 = vpop.f32.mrf.mxu0
      %v6950 = vpop.f32.mrf.mxu0
      %v6951 = vadd.f32 0.0, %v6950
      %v6952 = vpop.f32.mrf.mxu0
      %6953 = vdwg.mxu0
      %v6955 = vsel %vm371, %v6578, 0
      %6957 = vmatprep.subr.bf16.mxu0 0
      %6958 = vmatpush1.bf16.msra.mxu0 0
      %6959 = vmatprep.subr.bf16.mxu0 0
      %6960 = vmatpush1.bf16.msra.mxu0 0
      %6961 = vmatprep.subr.bf16.mxu0 0
      %6962 = vmatpush1.bf16.msra.mxu0 0
      %6963 = vmatprep.subr.bf16.mxu0 0
      %6964 = vmatpush1.bf16.msra.mxu0 0
      %6965 = vmatprep.subr.bf16.mxu0 0
      %6966 = vmatpush1.bf16.msra.mxu0 0
      %6967 = vmatprep.subr.bf16.mxu0 0
      %6968 = vmatpush1.bf16.msra.mxu0 0
      %6969 = vmatprep.subr.bf16.mxu0 0
      %6970 = vmatpush1.bf16.msra.mxu0 0
      %6971 = vmatprep.subr.bf16.mxu0 0
      %6972 = vmatpush1.bf16.msra.mxu0 %v6594
      %6973 = vmatprep.subr.bf16.mxu0 0
      %6974 = vmatpush2.bf16.msra.mxu0 0
      %6975 = vmatprep.subr.bf16.mxu0 0
      %6976 = vmatpush2.bf16.msra.mxu0 0
      %6977 = vmatprep.subr.bf16.mxu0 0
      %6978 = vmatpush2.bf16.msra.mxu0 0
      %6979 = vmatprep.subr.bf16.mxu0 0
      %6980 = vmatpush2.bf16.msra.mxu0 0
      %6981 = vmatprep.subr.bf16.mxu0 0
      %6982 = vmatpush2.bf16.msra.mxu0 0
      %6983 = vmatprep.subr.bf16.mxu0 0
      %6984 = vmatpush2.bf16.msra.mxu0 0
      %6985 = vmatprep.subr.bf16.mxu0 0
      %6986 = vmatpush2.bf16.msra.mxu0 0
      %6987 = vmatprep.subr.bf16.mxu0 0
      %6988 = vmatpush2.bf16.msra.mxu0 0
      %6989 = vmatprep.mubr.bf16.mxu0 0
      %6990 = vmatmul.mubr.bf16.gmra.mxu0 %v6955
      %v6991 = vpop.f32.mrf.mxu0
      %v6992 = vadd.f32 0.0, %v6991
      %v6993 = vpop.f32.mrf.mxu0
      %v6994 = vpop.f32.mrf.mxu0
      %v6995 = vadd.f32 0.0, %v6994
      %v6996 = vpop.f32.mrf.mxu0
      %6997 = vdwg.mxu0
      %v6999 = vsel %vm371, %v6579, 0
      %7001 = vmatprep.subr.bf16.mxu0 0
      %7002 = vmatpush1.bf16.msra.mxu0 0
      %7003 = vmatprep.subr.bf16.mxu0 0
      %7004 = vmatpush1.bf16.msra.mxu0 0
      %7005 = vmatprep.subr.bf16.mxu0 0
      %7006 = vmatpush1.bf16.msra.mxu0 0
      %7007 = vmatprep.subr.bf16.mxu0 0
      %7008 = vmatpush1.bf16.msra.mxu0 0
      %7009 = vmatprep.subr.bf16.mxu0 0
      %7010 = vmatpush1.bf16.msra.mxu0 0
      %7011 = vmatprep.subr.bf16.mxu0 0
      %7012 = vmatpush1.bf16.msra.mxu0 0
      %7013 = vmatprep.subr.bf16.mxu0 0
      %7014 = vmatpush1.bf16.msra.mxu0 0
      %7015 = vmatprep.subr.bf16.mxu0 0
      %7016 = vmatpush1.bf16.msra.mxu0 %v6595
      %7017 = vmatprep.subr.bf16.mxu0 0
      %7018 = vmatpush2.bf16.msra.mxu0 0
      %7019 = vmatprep.subr.bf16.mxu0 0
      %7020 = vmatpush2.bf16.msra.mxu0 0
      %7021 = vmatprep.subr.bf16.mxu0 0
      %7022 = vmatpush2.bf16.msra.mxu0 0
      %7023 = vmatprep.subr.bf16.mxu0 0
      %7024 = vmatpush2.bf16.msra.mxu0 0
      %7025 = vmatprep.subr.bf16.mxu0 0
      %7026 = vmatpush2.bf16.msra.mxu0 0
      %7027 = vmatprep.subr.bf16.mxu0 0
      %7028 = vmatpush2.bf16.msra.mxu0 0
      %7029 = vmatprep.subr.bf16.mxu0 0
      %7030 = vmatpush2.bf16.msra.mxu0 0
      %7031 = vmatprep.subr.bf16.mxu0 0
      %7032 = vmatpush2.bf16.msra.mxu0 0
      %7033 = vmatprep.mubr.bf16.mxu0 0
      %7034 = vmatmul.mubr.bf16.gmra.mxu0 %v6999
      %v7035 = vpop.f32.mrf.mxu0
      %v7036 = vadd.f32 0.0, %v7035
      %v7037 = vpop.f32.mrf.mxu0
      %v7038 = vpop.f32.mrf.mxu0
      %v7039 = vadd.f32 0.0, %v7038
      %v7040 = vpop.f32.mrf.mxu0
      %7041 = vdwg.mxu0
      %v7043 = vsel %vm371, %v6580, 0
      %7045 = vmatprep.subr.bf16.mxu0 0
      %7046 = vmatpush1.bf16.msra.mxu0 0
      %7047 = vmatprep.subr.bf16.mxu0 0
      %7048 = vmatpush1.bf16.msra.mxu0 0
      %7049 = vmatprep.subr.bf16.mxu0 0
      %7050 = vmatpush1.bf16.msra.mxu0 0
      %7051 = vmatprep.subr.bf16.mxu0 0
      %7052 = vmatpush1.bf16.msra.mxu0 0
      %7053 = vmatprep.subr.bf16.mxu0 0
      %7054 = vmatpush1.bf16.msra.mxu0 0
      %7055 = vmatprep.subr.bf16.mxu0 0
      %7056 = vmatpush1.bf16.msra.mxu0 0
      %7057 = vmatprep.subr.bf16.mxu0 0
      %7058 = vmatpush1.bf16.msra.mxu0 0
      %7059 = vmatprep.subr.bf16.mxu0 0
      %7060 = vmatpush1.bf16.msra.mxu0 %v6596
      %7061 = vmatprep.subr.bf16.mxu0 0
      %7062 = vmatpush2.bf16.msra.mxu0 0
      %7063 = vmatprep.subr.bf16.mxu0 0
      %7064 = vmatpush2.bf16.msra.mxu0 0
      %7065 = vmatprep.subr.bf16.mxu0 0
      %7066 = vmatpush2.bf16.msra.mxu0 0
      %7067 = vmatprep.subr.bf16.mxu0 0
      %7068 = vmatpush2.bf16.msra.mxu0 0
      %7069 = vmatprep.subr.bf16.mxu0 0
      %7070 = vmatpush2.bf16.msra.mxu0 0
      %7071 = vmatprep.subr.bf16.mxu0 0
      %7072 = vmatpush2.bf16.msra.mxu0 0
      %7073 = vmatprep.subr.bf16.mxu0 0
      %7074 = vmatpush2.bf16.msra.mxu0 0
      %7075 = vmatprep.subr.bf16.mxu0 0
      %7076 = vmatpush2.bf16.msra.mxu0 0
      %7077 = vmatprep.mubr.bf16.mxu0 0
      %7078 = vmatmul.mubr.bf16.gmra.mxu0 %v7043
      %v7079 = vpop.f32.mrf.mxu0
      %v7080 = vadd.f32 0.0, %v7079
      %v7081 = vpop.f32.mrf.mxu0
      %v7082 = vpop.f32.mrf.mxu0
      %v7083 = vadd.f32 0.0, %v7082
      %v7084 = vpop.f32.mrf.mxu0
      %7085 = vdwg.mxu0
      %v7087 = vsel %vm371, %v6581, 0
      %7089 = vmatprep.subr.bf16.mxu0 0
      %7090 = vmatpush1.bf16.msra.mxu0 0
      %7091 = vmatprep.subr.bf16.mxu0 0
      %7092 = vmatpush1.bf16.msra.mxu0 0
      %7093 = vmatprep.subr.bf16.mxu0 0
      %7094 = vmatpush1.bf16.msra.mxu0 0
      %7095 = vmatprep.subr.bf16.mxu0 0
      %7096 = vmatpush1.bf16.msra.mxu0 0
      %7097 = vmatprep.subr.bf16.mxu0 0
      %7098 = vmatpush1.bf16.msra.mxu0 0
      %7099 = vmatprep.subr.bf16.mxu0 0
      %7100 = vmatpush1.bf16.msra.mxu0 0
      %7101 = vmatprep.subr.bf16.mxu0 0
      %7102 = vmatpush1.bf16.msra.mxu0 0
      %7103 = vmatprep.subr.bf16.mxu0 0
      %7104 = vmatpush1.bf16.msra.mxu0 %v6597
      %7105 = vmatprep.subr.bf16.mxu0 0
      %7106 = vmatpush2.bf16.msra.mxu0 0
      %7107 = vmatprep.subr.bf16.mxu0 0
      %7108 = vmatpush2.bf16.msra.mxu0 0
      %7109 = vmatprep.subr.bf16.mxu0 0
      %7110 = vmatpush2.bf16.msra.mxu0 0
      %7111 = vmatprep.subr.bf16.mxu0 0
      %7112 = vmatpush2.bf16.msra.mxu0 0
      %7113 = vmatprep.subr.bf16.mxu0 0
      %7114 = vmatpush2.bf16.msra.mxu0 0
      %7115 = vmatprep.subr.bf16.mxu0 0
      %7116 = vmatpush2.bf16.msra.mxu0 0
      %7117 = vmatprep.subr.bf16.mxu0 0
      %7118 = vmatpush2.bf16.msra.mxu0 0
      %7119 = vmatprep.subr.bf16.mxu0 0
      %7120 = vmatpush2.bf16.msra.mxu0 0
      %7121 = vmatprep.mubr.bf16.mxu0 0
      %7122 = vmatmul.mubr.bf16.gmra.mxu0 %v7087
      %v7123 = vpop.f32.mrf.mxu0
      %v7124 = vadd.f32 0.0, %v7123
      %v7125 = vpop.f32.mrf.mxu0
      %v7126 = vpop.f32.mrf.mxu0
      %v7127 = vadd.f32 0.0, %v7126
      %v7128 = vpop.f32.mrf.mxu0
      %7129 = vdwg.mxu0
      %v7131 = vsel %vm371, %v6582, 0
      %7133 = vmatprep.subr.bf16.mxu0 0
      %7134 = vmatpush1.bf16.msra.mxu0 0
      %7135 = vmatprep.subr.bf16.mxu0 0
      %7136 = vmatpush1.bf16.msra.mxu0 0
      %7137 = vmatprep.subr.bf16.mxu0 0
      %7138 = vmatpush1.bf16.msra.mxu0 0
      %7139 = vmatprep.subr.bf16.mxu0 0
      %7140 = vmatpush1.bf16.msra.mxu0 0
      %7141 = vmatprep.subr.bf16.mxu0 0
      %7142 = vmatpush1.bf16.msra.mxu0 0
      %7143 = vmatprep.subr.bf16.mxu0 0
      %7144 = vmatpush1.bf16.msra.mxu0 0
      %7145 = vmatprep.subr.bf16.mxu0 0
      %7146 = vmatpush1.bf16.msra.mxu0 0
      %7147 = vmatprep.subr.bf16.mxu0 0
      %7148 = vmatpush1.bf16.msra.mxu0 %v6598
      %7149 = vmatprep.subr.bf16.mxu0 0
      %7150 = vmatpush2.bf16.msra.mxu0 0
      %7151 = vmatprep.subr.bf16.mxu0 0
      %7152 = vmatpush2.bf16.msra.mxu0 0
      %7153 = vmatprep.subr.bf16.mxu0 0
      %7154 = vmatpush2.bf16.msra.mxu0 0
      %7155 = vmatprep.subr.bf16.mxu0 0
      %7156 = vmatpush2.bf16.msra.mxu0 0
      %7157 = vmatprep.subr.bf16.mxu0 0
      %7158 = vmatpush2.bf16.msra.mxu0 0
      %7159 = vmatprep.subr.bf16.mxu0 0
      %7160 = vmatpush2.bf16.msra.mxu0 0
      %7161 = vmatprep.subr.bf16.mxu0 0
      %7162 = vmatpush2.bf16.msra.mxu0 0
      %7163 = vmatprep.subr.bf16.mxu0 0
      %7164 = vmatpush2.bf16.msra.mxu0 0
      %7165 = vmatprep.mubr.bf16.mxu0 0
      %7166 = vmatmul.mubr.bf16.gmra.mxu0 %v7131
      %v7167 = vpop.f32.mrf.mxu0
      %v7168 = vadd.f32 0.0, %v7167
      %v7169 = vpop.f32.mrf.mxu0
      %v7170 = vpop.f32.mrf.mxu0
      %v7171 = vadd.f32 0.0, %v7170
      %v7172 = vpop.f32.mrf.mxu0
      %7173 = vdwg.mxu0
      %v7175 = vsel %vm371, %v6583, 0
      %7177 = vmatprep.subr.bf16.mxu0 0
      %7178 = vmatpush1.bf16.msra.mxu0 0
      %7179 = vmatprep.subr.bf16.mxu0 0
      %7180 = vmatpush1.bf16.msra.mxu0 0
      %7181 = vmatprep.subr.bf16.mxu0 0
      %7182 = vmatpush1.bf16.msra.mxu0 0
      %7183 = vmatprep.subr.bf16.mxu0 0
      %7184 = vmatpush1.bf16.msra.mxu0 0
      %7185 = vmatprep.subr.bf16.mxu0 0
      %7186 = vmatpush1.bf16.msra.mxu0 0
      %7187 = vmatprep.subr.bf16.mxu0 0
      %7188 = vmatpush1.bf16.msra.mxu0 0
      %7189 = vmatprep.subr.bf16.mxu0 0
      %7190 = vmatpush1.bf16.msra.mxu0 0
      %7191 = vmatprep.subr.bf16.mxu0 0
      %7192 = vmatpush1.bf16.msra.mxu0 %v6599
      %7193 = vmatprep.subr.bf16.mxu0 0
      %7194 = vmatpush2.bf16.msra.mxu0 0
      %7195 = vmatprep.subr.bf16.mxu0 0
      %7196 = vmatpush2.bf16.msra.mxu0 0
      %7197 = vmatprep.subr.bf16.mxu0 0
      %7198 = vmatpush2.bf16.msra.mxu0 0
      %7199 = vmatprep.subr.bf16.mxu0 0
      %7200 = vmatpush2.bf16.msra.mxu0 0
      %7201 = vmatprep.subr.bf16.mxu0 0
      %7202 = vmatpush2.bf16.msra.mxu0 0
      %7203 = vmatprep.subr.bf16.mxu0 0
      %7204 = vmatpush2.bf16.msra.mxu0 0
      %7205 = vmatprep.subr.bf16.mxu0 0
      %7206 = vmatpush2.bf16.msra.mxu0 0
      %7207 = vmatprep.subr.bf16.mxu0 0
      %7208 = vmatpush2.bf16.msra.mxu0 0
      %7209 = vmatprep.mubr.bf16.mxu0 0
      %7210 = vmatmul.mubr.bf16.gmra.mxu0 %v7175
      %v7211 = vpop.f32.mrf.mxu0
      %v7212 = vadd.f32 0.0, %v7211
      %v7213 = vpop.f32.mrf.mxu0
      %v7214 = vpop.f32.mrf.mxu0
      %v7215 = vadd.f32 0.0, %v7214
      %v7216 = vpop.f32.mrf.mxu0
      %7217 = vdwg.mxu0
      %v7219 = vsel %vm371, %v6584, 0
      %7221 = vmatprep.subr.bf16.mxu0 0
      %7222 = vmatpush1.bf16.msra.mxu0 0
      %7223 = vmatprep.subr.bf16.mxu0 0
      %7224 = vmatpush1.bf16.msra.mxu0 0
      %7225 = vmatprep.subr.bf16.mxu0 0
      %7226 = vmatpush1.bf16.msra.mxu0 0
      %7227 = vmatprep.subr.bf16.mxu0 0
      %7228 = vmatpush1.bf16.msra.mxu0 0
      %7229 = vmatprep.subr.bf16.mxu0 0
      %7230 = vmatpush1.bf16.msra.mxu0 0
      %7231 = vmatprep.subr.bf16.mxu0 0
      %7232 = vmatpush1.bf16.msra.mxu0 0
      %7233 = vmatprep.subr.bf16.mxu0 0
      %7234 = vmatpush1.bf16.msra.mxu0 0
      %7235 = vmatprep.subr.bf16.mxu0 0
      %7236 = vmatpush1.bf16.msra.mxu0 %v6600
      %7237 = vmatprep.subr.bf16.mxu0 0
      %7238 = vmatpush2.bf16.msra.mxu0 0
      %7239 = vmatprep.subr.bf16.mxu0 0
      %7240 = vmatpush2.bf16.msra.mxu0 0
      %7241 = vmatprep.subr.bf16.mxu0 0
      %7242 = vmatpush2.bf16.msra.mxu0 0
      %7243 = vmatprep.subr.bf16.mxu0 0
      %7244 = vmatpush2.bf16.msra.mxu0 0
      %7245 = vmatprep.subr.bf16.mxu0 0
      %7246 = vmatpush2.bf16.msra.mxu0 0
      %7247 = vmatprep.subr.bf16.mxu0 0
      %7248 = vmatpush2.bf16.msra.mxu0 0
      %7249 = vmatprep.subr.bf16.mxu0 0
      %7250 = vmatpush2.bf16.msra.mxu0 0
      %7251 = vmatprep.subr.bf16.mxu0 0
      %7252 = vmatpush2.bf16.msra.mxu0 0
      %7253 = vmatprep.mubr.bf16.mxu0 0
      %7254 = vmatmul.mubr.bf16.gmra.mxu0 %v7219
      %v7255 = vpop.f32.mrf.mxu0
      %v7256 = vadd.f32 0.0, %v7255
      %v7257 = vpop.f32.mrf.mxu0
      %v7258 = vpop.f32.mrf.mxu0
      %v7259 = vadd.f32 0.0, %v7258
      %v7260 = vpop.f32.mrf.mxu0
      %7261 = vdwg.mxu0
      %v7263 = vsel %vm371, %v6585, 0
      %7265 = vmatprep.subr.bf16.mxu0 0
      %7266 = vmatpush1.bf16.msra.mxu0 0
      %7267 = vmatprep.subr.bf16.mxu0 0
      %7268 = vmatpush1.bf16.msra.mxu0 0
      %7269 = vmatprep.subr.bf16.mxu0 0
      %7270 = vmatpush1.bf16.msra.mxu0 0
      %7271 = vmatprep.subr.bf16.mxu0 0
      %7272 = vmatpush1.bf16.msra.mxu0 0
      %7273 = vmatprep.subr.bf16.mxu0 0
      %7274 = vmatpush1.bf16.msra.mxu0 0
      %7275 = vmatprep.subr.bf16.mxu0 0
      %7276 = vmatpush1.bf16.msra.mxu0 0
      %7277 = vmatprep.subr.bf16.mxu0 0
      %7278 = vmatpush1.bf16.msra.mxu0 0
      %7279 = vmatprep.subr.bf16.mxu0 0
      %7280 = vmatpush1.bf16.msra.mxu0 %v6601
      %7281 = vmatprep.subr.bf16.mxu0 0
      %7282 = vmatpush2.bf16.msra.mxu0 0
      %7283 = vmatprep.subr.bf16.mxu0 0
      %7284 = vmatpush2.bf16.msra.mxu0 0
      %7285 = vmatprep.subr.bf16.mxu0 0
      %7286 = vmatpush2.bf16.msra.mxu0 0
      %7287 = vmatprep.subr.bf16.mxu0 0
      %7288 = vmatpush2.bf16.msra.mxu0 0
      %7289 = vmatprep.subr.bf16.mxu0 0
      %7290 = vmatpush2.bf16.msra.mxu0 0
      %7291 = vmatprep.subr.bf16.mxu0 0
      %7292 = vmatpush2.bf16.msra.mxu0 0
      %7293 = vmatprep.subr.bf16.mxu0 0
      %7294 = vmatpush2.bf16.msra.mxu0 0
      %7295 = vmatprep.subr.bf16.mxu0 0
      %7296 = vmatpush2.bf16.msra.mxu0 0
      %7297 = vmatprep.mubr.bf16.mxu0 0
      %7298 = vmatmul.mubr.bf16.gmra.mxu0 %v7263
      %v7299 = vpop.f32.mrf.mxu0
      %v7300 = vadd.f32 0.0, %v7299
      %v7301 = vpop.f32.mrf.mxu0
      %v7302 = vpop.f32.mrf.mxu0
      %v7303 = vadd.f32 0.0, %v7302
      %v7304 = vpop.f32.mrf.mxu0
      %7305 = vdwg.mxu0
      %v7306 = vpack.c.bf16 %v5499, %v5497
      %v7307 = vpack.c.bf16 %v5503, %v5501
      %v7308 = vpack.c.bf16 %v5507, %v5505
      %v7309 = vpack.c.bf16 %v5511, %v5509
      %v7310 = vpack.c.bf16 %v5515, %v5513
      %v7311 = vpack.c.bf16 %v5519, %v5517
      %v7312 = vpack.c.bf16 %v5523, %v5521
      %v7313 = vpack.c.bf16 %v5527, %v5525
      %v7314 = vpack.c.bf16 %v5531, %v5529
      %v7315 = vpack.c.bf16 %v5535, %v5533
      %v7316 = vpack.c.bf16 %v5539, %v5537
      %v7317 = vpack.c.bf16 %v5543, %v5541
      %v7318 = vpack.c.bf16 %v5547, %v5545
      %v7319 = vpack.c.bf16 %v5551, %v5549
      %v7320 = vpack.c.bf16 %v5555, %v5553
      %v7321 = vpack.c.bf16 %v5559, %v5557
      %v7322 = vpack.c.bf16 %v810, %v807
      %v7323 = vpack.c.bf16 %v818, %v815
      %v7324 = vpack.c.bf16 %v826, %v823
      %v7325 = vpack.c.bf16 %v834, %v831
      %v7326 = vpack.c.bf16 %v842, %v839
      %v7327 = vpack.c.bf16 %v850, %v847
      %v7328 = vpack.c.bf16 %v858, %v855
      %v7329 = vpack.c.bf16 %v866, %v863
      %v7330 = vpack.c.bf16 %v874, %v871
      %v7331 = vpack.c.bf16 %v882, %v879
      %v7332 = vpack.c.bf16 %v890, %v887
      %v7333 = vpack.c.bf16 %v898, %v895
      %v7334 = vpack.c.bf16 %v906, %v903
      %v7335 = vpack.c.bf16 %v914, %v911
      %v7336 = vpack.c.bf16 %v922, %v919
      %v7337 = vpack.c.bf16 %v930, %v927
      %v7339 = vsel %vm371, %v7306, 0
      %7341 = vmatprep.subr.bf16.mxu0 0
      %7342 = vmatpush1.bf16.msra.mxu0 0
      %7343 = vmatprep.subr.bf16.mxu0 0
      %7344 = vmatpush1.bf16.msra.mxu0 0
      %7345 = vmatprep.subr.bf16.mxu0 0
      %7346 = vmatpush1.bf16.msra.mxu0 0
      %7347 = vmatprep.subr.bf16.mxu0 0
      %7348 = vmatpush1.bf16.msra.mxu0 0
      %7349 = vmatprep.subr.bf16.mxu0 0
      %7350 = vmatpush1.bf16.msra.mxu0 0
      %7351 = vmatprep.subr.bf16.mxu0 0
      %7352 = vmatpush1.bf16.msra.mxu0 0
      %7353 = vmatprep.subr.bf16.mxu0 0
      %7354 = vmatpush1.bf16.msra.mxu0 0
      %7355 = vmatprep.subr.bf16.mxu0 0
      %7356 = vmatpush1.bf16.msra.mxu0 %v7322
      %7357 = vmatprep.subr.bf16.mxu0 0
      %7358 = vmatpush2.bf16.msra.mxu0 0
      %7359 = vmatprep.subr.bf16.mxu0 0
      %7360 = vmatpush2.bf16.msra.mxu0 0
      %7361 = vmatprep.subr.bf16.mxu0 0
      %7362 = vmatpush2.bf16.msra.mxu0 0
      %7363 = vmatprep.subr.bf16.mxu0 0
      %7364 = vmatpush2.bf16.msra.mxu0 0
      %7365 = vmatprep.subr.bf16.mxu0 0
      %7366 = vmatpush2.bf16.msra.mxu0 0
      %7367 = vmatprep.subr.bf16.mxu0 0
      %7368 = vmatpush2.bf16.msra.mxu0 0
      %7369 = vmatprep.subr.bf16.mxu0 0
      %7370 = vmatpush2.bf16.msra.mxu0 0
      %7371 = vmatprep.subr.bf16.mxu0 0
      %7372 = vmatpush2.bf16.msra.mxu0 0
      %7373 = vmatprep.mubr.bf16.mxu0 0
      %7374 = vmatmul.mubr.bf16.gmra.mxu0 %v7339
      %v7375 = vpop.f32.mrf.mxu0
      %v7376 = vadd.f32 0.0, %v7375
      %v7377 = vpop.f32.mrf.mxu0
      %v7378 = vpop.f32.mrf.mxu0
      %v7379 = vadd.f32 0.0, %v7378
      %v7380 = vpop.f32.mrf.mxu0
      %7381 = vdwg.mxu0
      %v7383 = vsel %vm371, %v7307, 0
      %7385 = vmatprep.subr.bf16.mxu0 0
      %7386 = vmatpush1.bf16.msra.mxu0 0
      %7387 = vmatprep.subr.bf16.mxu0 0
      %7388 = vmatpush1.bf16.msra.mxu0 0
      %7389 = vmatprep.subr.bf16.mxu0 0
      %7390 = vmatpush1.bf16.msra.mxu0 0
      %7391 = vmatprep.subr.bf16.mxu0 0
      %7392 = vmatpush1.bf16.msra.mxu0 0
      %7393 = vmatprep.subr.bf16.mxu0 0
      %7394 = vmatpush1.bf16.msra.mxu0 0
      %7395 = vmatprep.subr.bf16.mxu0 0
      %7396 = vmatpush1.bf16.msra.mxu0 0
      %7397 = vmatprep.subr.bf16.mxu0 0
      %7398 = vmatpush1.bf16.msra.mxu0 0
      %7399 = vmatprep.subr.bf16.mxu0 0
      %7400 = vmatpush1.bf16.msra.mxu0 %v7323
      %7401 = vmatprep.subr.bf16.mxu0 0
      %7402 = vmatpush2.bf16.msra.mxu0 0
      %7403 = vmatprep.subr.bf16.mxu0 0
      %7404 = vmatpush2.bf16.msra.mxu0 0
      %7405 = vmatprep.subr.bf16.mxu0 0
      %7406 = vmatpush2.bf16.msra.mxu0 0
      %7407 = vmatprep.subr.bf16.mxu0 0
      %7408 = vmatpush2.bf16.msra.mxu0 0
      %7409 = vmatprep.subr.bf16.mxu0 0
      %7410 = vmatpush2.bf16.msra.mxu0 0
      %7411 = vmatprep.subr.bf16.mxu0 0
      %7412 = vmatpush2.bf16.msra.mxu0 0
      %7413 = vmatprep.subr.bf16.mxu0 0
      %7414 = vmatpush2.bf16.msra.mxu0 0
      %7415 = vmatprep.subr.bf16.mxu0 0
      %7416 = vmatpush2.bf16.msra.mxu0 0
      %7417 = vmatprep.mubr.bf16.mxu0 0
      %7418 = vmatmul.mubr.bf16.gmra.mxu0 %v7383
      %v7419 = vpop.f32.mrf.mxu0
      %v7420 = vadd.f32 0.0, %v7419
      %v7421 = vpop.f32.mrf.mxu0
      %v7422 = vpop.f32.mrf.mxu0
      %v7423 = vadd.f32 0.0, %v7422
      %v7424 = vpop.f32.mrf.mxu0
      %7425 = vdwg.mxu0
      %v7427 = vsel %vm371, %v7308, 0
      %7429 = vmatprep.subr.bf16.mxu0 0
      %7430 = vmatpush1.bf16.msra.mxu0 0
      %7431 = vmatprep.subr.bf16.mxu0 0
      %7432 = vmatpush1.bf16.msra.mxu0 0
      %7433 = vmatprep.subr.bf16.mxu0 0
      %7434 = vmatpush1.bf16.msra.mxu0 0
      %7435 = vmatprep.subr.bf16.mxu0 0
      %7436 = vmatpush1.bf16.msra.mxu0 0
      %7437 = vmatprep.subr.bf16.mxu0 0
      %7438 = vmatpush1.bf16.msra.mxu0 0
      %7439 = vmatprep.subr.bf16.mxu0 0
      %7440 = vmatpush1.bf16.msra.mxu0 0
      %7441 = vmatprep.subr.bf16.mxu0 0
      %7442 = vmatpush1.bf16.msra.mxu0 0
      %7443 = vmatprep.subr.bf16.mxu0 0
      %7444 = vmatpush1.bf16.msra.mxu0 %v7324
      %7445 = vmatprep.subr.bf16.mxu0 0
      %7446 = vmatpush2.bf16.msra.mxu0 0
      %7447 = vmatprep.subr.bf16.mxu0 0
      %7448 = vmatpush2.bf16.msra.mxu0 0
      %7449 = vmatprep.subr.bf16.mxu0 0
      %7450 = vmatpush2.bf16.msra.mxu0 0
      %7451 = vmatprep.subr.bf16.mxu0 0
      %7452 = vmatpush2.bf16.msra.mxu0 0
      %7453 = vmatprep.subr.bf16.mxu0 0
      %7454 = vmatpush2.bf16.msra.mxu0 0
      %7455 = vmatprep.subr.bf16.mxu0 0
      %7456 = vmatpush2.bf16.msra.mxu0 0
      %7457 = vmatprep.subr.bf16.mxu0 0
      %7458 = vmatpush2.bf16.msra.mxu0 0
      %7459 = vmatprep.subr.bf16.mxu0 0
      %7460 = vmatpush2.bf16.msra.mxu0 0
      %7461 = vmatprep.mubr.bf16.mxu0 0
      %7462 = vmatmul.mubr.bf16.gmra.mxu0 %v7427
      %v7463 = vpop.f32.mrf.mxu0
      %v7464 = vadd.f32 0.0, %v7463
      %v7465 = vpop.f32.mrf.mxu0
      %v7466 = vpop.f32.mrf.mxu0
      %v7467 = vadd.f32 0.0, %v7466
      %v7468 = vpop.f32.mrf.mxu0
      %7469 = vdwg.mxu0
      %v7471 = vsel %vm371, %v7309, 0
      %7473 = vmatprep.subr.bf16.mxu0 0
      %7474 = vmatpush1.bf16.msra.mxu0 0
      %7475 = vmatprep.subr.bf16.mxu0 0
      %7476 = vmatpush1.bf16.msra.mxu0 0
      %7477 = vmatprep.subr.bf16.mxu0 0
      %7478 = vmatpush1.bf16.msra.mxu0 0
      %7479 = vmatprep.subr.bf16.mxu0 0
      %7480 = vmatpush1.bf16.msra.mxu0 0
      %7481 = vmatprep.subr.bf16.mxu0 0
      %7482 = vmatpush1.bf16.msra.mxu0 0
      %7483 = vmatprep.subr.bf16.mxu0 0
      %7484 = vmatpush1.bf16.msra.mxu0 0
      %7485 = vmatprep.subr.bf16.mxu0 0
      %7486 = vmatpush1.bf16.msra.mxu0 0
      %7487 = vmatprep.subr.bf16.mxu0 0
      %7488 = vmatpush1.bf16.msra.mxu0 %v7325
      %7489 = vmatprep.subr.bf16.mxu0 0
      %7490 = vmatpush2.bf16.msra.mxu0 0
      %7491 = vmatprep.subr.bf16.mxu0 0
      %7492 = vmatpush2.bf16.msra.mxu0 0
      %7493 = vmatprep.subr.bf16.mxu0 0
      %7494 = vmatpush2.bf16.msra.mxu0 0
      %7495 = vmatprep.subr.bf16.mxu0 0
      %7496 = vmatpush2.bf16.msra.mxu0 0
      %7497 = vmatprep.subr.bf16.mxu0 0
      %7498 = vmatpush2.bf16.msra.mxu0 0
      %7499 = vmatprep.subr.bf16.mxu0 0
      %7500 = vmatpush2.bf16.msra.mxu0 0
      %7501 = vmatprep.subr.bf16.mxu0 0
      %7502 = vmatpush2.bf16.msra.mxu0 0
      %7503 = vmatprep.subr.bf16.mxu0 0
      %7504 = vmatpush2.bf16.msra.mxu0 0
      %7505 = vmatprep.mubr.bf16.mxu0 0
      %7506 = vmatmul.mubr.bf16.gmra.mxu0 %v7471
      %v7507 = vpop.f32.mrf.mxu0
      %v7508 = vadd.f32 0.0, %v7507
      %v7509 = vpop.f32.mrf.mxu0
      %v7510 = vpop.f32.mrf.mxu0
      %v7511 = vadd.f32 0.0, %v7510
      %v7512 = vpop.f32.mrf.mxu0
      %7513 = vdwg.mxu0
      %v7515 = vsel %vm371, %v7310, 0
      %7517 = vmatprep.subr.bf16.mxu0 0
      %7518 = vmatpush1.bf16.msra.mxu0 0
      %7519 = vmatprep.subr.bf16.mxu0 0
      %7520 = vmatpush1.bf16.msra.mxu0 0
      %7521 = vmatprep.subr.bf16.mxu0 0
      %7522 = vmatpush1.bf16.msra.mxu0 0
      %7523 = vmatprep.subr.bf16.mxu0 0
      %7524 = vmatpush1.bf16.msra.mxu0 0
      %7525 = vmatprep.subr.bf16.mxu0 0
      %7526 = vmatpush1.bf16.msra.mxu0 0
      %7527 = vmatprep.subr.bf16.mxu0 0
      %7528 = vmatpush1.bf16.msra.mxu0 0
      %7529 = vmatprep.subr.bf16.mxu0 0
      %7530 = vmatpush1.bf16.msra.mxu0 0
      %7531 = vmatprep.subr.bf16.mxu0 0
      %7532 = vmatpush1.bf16.msra.mxu0 %v7326
      %7533 = vmatprep.subr.bf16.mxu0 0
      %7534 = vmatpush2.bf16.msra.mxu0 0
      %7535 = vmatprep.subr.bf16.mxu0 0
      %7536 = vmatpush2.bf16.msra.mxu0 0
      %7537 = vmatprep.subr.bf16.mxu0 0
      %7538 = vmatpush2.bf16.msra.mxu0 0
      %7539 = vmatprep.subr.bf16.mxu0 0
      %7540 = vmatpush2.bf16.msra.mxu0 0
      %7541 = vmatprep.subr.bf16.mxu0 0
      %7542 = vmatpush2.bf16.msra.mxu0 0
      %7543 = vmatprep.subr.bf16.mxu0 0
      %7544 = vmatpush2.bf16.msra.mxu0 0
      %7545 = vmatprep.subr.bf16.mxu0 0
      %7546 = vmatpush2.bf16.msra.mxu0 0
      %7547 = vmatprep.subr.bf16.mxu0 0
      %7548 = vmatpush2.bf16.msra.mxu0 0
      %7549 = vmatprep.mubr.bf16.mxu0 0
      %7550 = vmatmul.mubr.bf16.gmra.mxu0 %v7515
      %v7551 = vpop.f32.mrf.mxu0
      %v7552 = vadd.f32 0.0, %v7551
      %v7553 = vpop.f32.mrf.mxu0
      %v7554 = vpop.f32.mrf.mxu0
      %v7555 = vadd.f32 0.0, %v7554
      %v7556 = vpop.f32.mrf.mxu0
      %7557 = vdwg.mxu0
      %v7559 = vsel %vm371, %v7311, 0
      %7561 = vmatprep.subr.bf16.mxu0 0
      %7562 = vmatpush1.bf16.msra.mxu0 0
      %7563 = vmatprep.subr.bf16.mxu0 0
      %7564 = vmatpush1.bf16.msra.mxu0 0
      %7565 = vmatprep.subr.bf16.mxu0 0
      %7566 = vmatpush1.bf16.msra.mxu0 0
      %7567 = vmatprep.subr.bf16.mxu0 0
      %7568 = vmatpush1.bf16.msra.mxu0 0
      %7569 = vmatprep.subr.bf16.mxu0 0
      %7570 = vmatpush1.bf16.msra.mxu0 0
      %7571 = vmatprep.subr.bf16.mxu0 0
      %7572 = vmatpush1.bf16.msra.mxu0 0
      %7573 = vmatprep.subr.bf16.mxu0 0
      %7574 = vmatpush1.bf16.msra.mxu0 0
      %7575 = vmatprep.subr.bf16.mxu0 0
      %7576 = vmatpush1.bf16.msra.mxu0 %v7327
      %7577 = vmatprep.subr.bf16.mxu0 0
      %7578 = vmatpush2.bf16.msra.mxu0 0
      %7579 = vmatprep.subr.bf16.mxu0 0
      %7580 = vmatpush2.bf16.msra.mxu0 0
      %7581 = vmatprep.subr.bf16.mxu0 0
      %7582 = vmatpush2.bf16.msra.mxu0 0
      %7583 = vmatprep.subr.bf16.mxu0 0
      %7584 = vmatpush2.bf16.msra.mxu0 0
      %7585 = vmatprep.subr.bf16.mxu0 0
      %7586 = vmatpush2.bf16.msra.mxu0 0
      %7587 = vmatprep.subr.bf16.mxu0 0
      %7588 = vmatpush2.bf16.msra.mxu0 0
      %7589 = vmatprep.subr.bf16.mxu0 0
      %7590 = vmatpush2.bf16.msra.mxu0 0
      %7591 = vmatprep.subr.bf16.mxu0 0
      %7592 = vmatpush2.bf16.msra.mxu0 0
      %7593 = vmatprep.mubr.bf16.mxu0 0
      %7594 = vmatmul.mubr.bf16.gmra.mxu0 %v7559
      %v7595 = vpop.f32.mrf.mxu0
      %v7596 = vadd.f32 0.0, %v7595
      %v7597 = vpop.f32.mrf.mxu0
      %v7598 = vpop.f32.mrf.mxu0
      %v7599 = vadd.f32 0.0, %v7598
      %v7600 = vpop.f32.mrf.mxu0
      %7601 = vdwg.mxu0
      %v7603 = vsel %vm371, %v7312, 0
      %7605 = vmatprep.subr.bf16.mxu0 0
      %7606 = vmatpush1.bf16.msra.mxu0 0
      %7607 = vmatprep.subr.bf16.mxu0 0
      %7608 = vmatpush1.bf16.msra.mxu0 0
      %7609 = vmatprep.subr.bf16.mxu0 0
      %7610 = vmatpush1.bf16.msra.mxu0 0
      %7611 = vmatprep.subr.bf16.mxu0 0
      %7612 = vmatpush1.bf16.msra.mxu0 0
      %7613 = vmatprep.subr.bf16.mxu0 0
      %7614 = vmatpush1.bf16.msra.mxu0 0
      %7615 = vmatprep.subr.bf16.mxu0 0
      %7616 = vmatpush1.bf16.msra.mxu0 0
      %7617 = vmatprep.subr.bf16.mxu0 0
      %7618 = vmatpush1.bf16.msra.mxu0 0
      %7619 = vmatprep.subr.bf16.mxu0 0
      %7620 = vmatpush1.bf16.msra.mxu0 %v7328
      %7621 = vmatprep.subr.bf16.mxu0 0
      %7622 = vmatpush2.bf16.msra.mxu0 0
      %7623 = vmatprep.subr.bf16.mxu0 0
      %7624 = vmatpush2.bf16.msra.mxu0 0
      %7625 = vmatprep.subr.bf16.mxu0 0
      %7626 = vmatpush2.bf16.msra.mxu0 0
      %7627 = vmatprep.subr.bf16.mxu0 0
      %7628 = vmatpush2.bf16.msra.mxu0 0
      %7629 = vmatprep.subr.bf16.mxu0 0
      %7630 = vmatpush2.bf16.msra.mxu0 0
      %7631 = vmatprep.subr.bf16.mxu0 0
      %7632 = vmatpush2.bf16.msra.mxu0 0
      %7633 = vmatprep.subr.bf16.mxu0 0
      %7634 = vmatpush2.bf16.msra.mxu0 0
      %7635 = vmatprep.subr.bf16.mxu0 0
      %7636 = vmatpush2.bf16.msra.mxu0 0
      %7637 = vmatprep.mubr.bf16.mxu0 0
      %7638 = vmatmul.mubr.bf16.gmra.mxu0 %v7603
      %v7639 = vpop.f32.mrf.mxu0
      %v7640 = vadd.f32 0.0, %v7639
      %v7641 = vpop.f32.mrf.mxu0
      %v7642 = vpop.f32.mrf.mxu0
      %v7643 = vadd.f32 0.0, %v7642
      %v7644 = vpop.f32.mrf.mxu0
      %7645 = vdwg.mxu0
      %v7647 = vsel %vm371, %v7313, 0
      %7649 = vmatprep.subr.bf16.mxu0 0
      %7650 = vmatpush1.bf16.msra.mxu0 0
      %7651 = vmatprep.subr.bf16.mxu0 0
      %7652 = vmatpush1.bf16.msra.mxu0 0
      %7653 = vmatprep.subr.bf16.mxu0 0
      %7654 = vmatpush1.bf16.msra.mxu0 0
      %7655 = vmatprep.subr.bf16.mxu0 0
      %7656 = vmatpush1.bf16.msra.mxu0 0
      %7657 = vmatprep.subr.bf16.mxu0 0
      %7658 = vmatpush1.bf16.msra.mxu0 0
      %7659 = vmatprep.subr.bf16.mxu0 0
      %7660 = vmatpush1.bf16.msra.mxu0 0
      %7661 = vmatprep.subr.bf16.mxu0 0
      %7662 = vmatpush1.bf16.msra.mxu0 0
      %7663 = vmatprep.subr.bf16.mxu0 0
      %7664 = vmatpush1.bf16.msra.mxu0 %v7329
      %7665 = vmatprep.subr.bf16.mxu0 0
      %7666 = vmatpush2.bf16.msra.mxu0 0
      %7667 = vmatprep.subr.bf16.mxu0 0
      %7668 = vmatpush2.bf16.msra.mxu0 0
      %7669 = vmatprep.subr.bf16.mxu0 0
      %7670 = vmatpush2.bf16.msra.mxu0 0
      %7671 = vmatprep.subr.bf16.mxu0 0
      %7672 = vmatpush2.bf16.msra.mxu0 0
      %7673 = vmatprep.subr.bf16.mxu0 0
      %7674 = vmatpush2.bf16.msra.mxu0 0
      %7675 = vmatprep.subr.bf16.mxu0 0
      %7676 = vmatpush2.bf16.msra.mxu0 0
      %7677 = vmatprep.subr.bf16.mxu0 0
      %7678 = vmatpush2.bf16.msra.mxu0 0
      %7679 = vmatprep.subr.bf16.mxu0 0
      %7680 = vmatpush2.bf16.msra.mxu0 0
      %7681 = vmatprep.mubr.bf16.mxu0 0
      %7682 = vmatmul.mubr.bf16.gmra.mxu0 %v7647
      %v7683 = vpop.f32.mrf.mxu0
      %v7684 = vadd.f32 0.0, %v7683
      %v7685 = vpop.f32.mrf.mxu0
      %v7686 = vpop.f32.mrf.mxu0
      %v7687 = vadd.f32 0.0, %v7686
      %v7688 = vpop.f32.mrf.mxu0
      %7689 = vdwg.mxu0
      %v7691 = vsel %vm371, %v7314, 0
      %7693 = vmatprep.subr.bf16.mxu0 0
      %7694 = vmatpush1.bf16.msra.mxu0 0
      %7695 = vmatprep.subr.bf16.mxu0 0
      %7696 = vmatpush1.bf16.msra.mxu0 0
      %7697 = vmatprep.subr.bf16.mxu0 0
      %7698 = vmatpush1.bf16.msra.mxu0 0
      %7699 = vmatprep.subr.bf16.mxu0 0
      %7700 = vmatpush1.bf16.msra.mxu0 0
      %7701 = vmatprep.subr.bf16.mxu0 0
      %7702 = vmatpush1.bf16.msra.mxu0 0
      %7703 = vmatprep.subr.bf16.mxu0 0
      %7704 = vmatpush1.bf16.msra.mxu0 0
      %7705 = vmatprep.subr.bf16.mxu0 0
      %7706 = vmatpush1.bf16.msra.mxu0 0
      %7707 = vmatprep.subr.bf16.mxu0 0
      %7708 = vmatpush1.bf16.msra.mxu0 %v7330
      %7709 = vmatprep.subr.bf16.mxu0 0
      %7710 = vmatpush2.bf16.msra.mxu0 0
      %7711 = vmatprep.subr.bf16.mxu0 0
      %7712 = vmatpush2.bf16.msra.mxu0 0
      %7713 = vmatprep.subr.bf16.mxu0 0
      %7714 = vmatpush2.bf16.msra.mxu0 0
      %7715 = vmatprep.subr.bf16.mxu0 0
      %7716 = vmatpush2.bf16.msra.mxu0 0
      %7717 = vmatprep.subr.bf16.mxu0 0
      %7718 = vmatpush2.bf16.msra.mxu0 0
      %7719 = vmatprep.subr.bf16.mxu0 0
      %7720 = vmatpush2.bf16.msra.mxu0 0
      %7721 = vmatprep.subr.bf16.mxu0 0
      %7722 = vmatpush2.bf16.msra.mxu0 0
      %7723 = vmatprep.subr.bf16.mxu0 0
      %7724 = vmatpush2.bf16.msra.mxu0 0
      %7725 = vmatprep.mubr.bf16.mxu0 0
      %7726 = vmatmul.mubr.bf16.gmra.mxu0 %v7691
      %v7727 = vpop.f32.mrf.mxu0
      %v7728 = vadd.f32 0.0, %v7727
      %v7729 = vpop.f32.mrf.mxu0
      %v7730 = vpop.f32.mrf.mxu0
      %v7731 = vadd.f32 0.0, %v7730
      %v7732 = vpop.f32.mrf.mxu0
      %7733 = vdwg.mxu0
      %v7735 = vsel %vm371, %v7315, 0
      %7737 = vmatprep.subr.bf16.mxu0 0
      %7738 = vmatpush1.bf16.msra.mxu0 0
      %7739 = vmatprep.subr.bf16.mxu0 0
      %7740 = vmatpush1.bf16.msra.mxu0 0
      %7741 = vmatprep.subr.bf16.mxu0 0
      %7742 = vmatpush1.bf16.msra.mxu0 0
      %7743 = vmatprep.subr.bf16.mxu0 0
      %7744 = vmatpush1.bf16.msra.mxu0 0
      %7745 = vmatprep.subr.bf16.mxu0 0
      %7746 = vmatpush1.bf16.msra.mxu0 0
      %7747 = vmatprep.subr.bf16.mxu0 0
      %7748 = vmatpush1.bf16.msra.mxu0 0
      %7749 = vmatprep.subr.bf16.mxu0 0
      %7750 = vmatpush1.bf16.msra.mxu0 0
      %7751 = vmatprep.subr.bf16.mxu0 0
      %7752 = vmatpush1.bf16.msra.mxu0 %v7331
      %7753 = vmatprep.subr.bf16.mxu0 0
      %7754 = vmatpush2.bf16.msra.mxu0 0
      %7755 = vmatprep.subr.bf16.mxu0 0
      %7756 = vmatpush2.bf16.msra.mxu0 0
      %7757 = vmatprep.subr.bf16.mxu0 0
      %7758 = vmatpush2.bf16.msra.mxu0 0
      %7759 = vmatprep.subr.bf16.mxu0 0
      %7760 = vmatpush2.bf16.msra.mxu0 0
      %7761 = vmatprep.subr.bf16.mxu0 0
      %7762 = vmatpush2.bf16.msra.mxu0 0
      %7763 = vmatprep.subr.bf16.mxu0 0
      %7764 = vmatpush2.bf16.msra.mxu0 0
      %7765 = vmatprep.subr.bf16.mxu0 0
      %7766 = vmatpush2.bf16.msra.mxu0 0
      %7767 = vmatprep.subr.bf16.mxu0 0
      %7768 = vmatpush2.bf16.msra.mxu0 0
      %7769 = vmatprep.mubr.bf16.mxu0 0
      %7770 = vmatmul.mubr.bf16.gmra.mxu0 %v7735
      %v7771 = vpop.f32.mrf.mxu0
      %v7772 = vadd.f32 0.0, %v7771
      %v7773 = vpop.f32.mrf.mxu0
      %v7774 = vpop.f32.mrf.mxu0
      %v7775 = vadd.f32 0.0, %v7774
      %v7776 = vpop.f32.mrf.mxu0
      %7777 = vdwg.mxu0
      %v7779 = vsel %vm371, %v7316, 0
      %7781 = vmatprep.subr.bf16.mxu0 0
      %7782 = vmatpush1.bf16.msra.mxu0 0
      %7783 = vmatprep.subr.bf16.mxu0 0
      %7784 = vmatpush1.bf16.msra.mxu0 0
      %7785 = vmatprep.subr.bf16.mxu0 0
      %7786 = vmatpush1.bf16.msra.mxu0 0
      %7787 = vmatprep.subr.bf16.mxu0 0
      %7788 = vmatpush1.bf16.msra.mxu0 0
      %7789 = vmatprep.subr.bf16.mxu0 0
      %7790 = vmatpush1.bf16.msra.mxu0 0
      %7791 = vmatprep.subr.bf16.mxu0 0
      %7792 = vmatpush1.bf16.msra.mxu0 0
      %7793 = vmatprep.subr.bf16.mxu0 0
      %7794 = vmatpush1.bf16.msra.mxu0 0
      %7795 = vmatprep.subr.bf16.mxu0 0
      %7796 = vmatpush1.bf16.msra.mxu0 %v7332
      %7797 = vmatprep.subr.bf16.mxu0 0
      %7798 = vmatpush2.bf16.msra.mxu0 0
      %7799 = vmatprep.subr.bf16.mxu0 0
      %7800 = vmatpush2.bf16.msra.mxu0 0
      %7801 = vmatprep.subr.bf16.mxu0 0
      %7802 = vmatpush2.bf16.msra.mxu0 0
      %7803 = vmatprep.subr.bf16.mxu0 0
      %7804 = vmatpush2.bf16.msra.mxu0 0
      %7805 = vmatprep.subr.bf16.mxu0 0
      %7806 = vmatpush2.bf16.msra.mxu0 0
      %7807 = vmatprep.subr.bf16.mxu0 0
      %7808 = vmatpush2.bf16.msra.mxu0 0
      %7809 = vmatprep.subr.bf16.mxu0 0
      %7810 = vmatpush2.bf16.msra.mxu0 0
      %7811 = vmatprep.subr.bf16.mxu0 0
      %7812 = vmatpush2.bf16.msra.mxu0 0
      %7813 = vmatprep.mubr.bf16.mxu0 0
      %7814 = vmatmul.mubr.bf16.gmra.mxu0 %v7779
      %v7815 = vpop.f32.mrf.mxu0
      %v7816 = vadd.f32 0.0, %v7815
      %v7817 = vpop.f32.mrf.mxu0
      %v7818 = vpop.f32.mrf.mxu0
      %v7819 = vadd.f32 0.0, %v7818
      %v7820 = vpop.f32.mrf.mxu0
      %7821 = vdwg.mxu0
      %v7823 = vsel %vm371, %v7317, 0
      %7825 = vmatprep.subr.bf16.mxu0 0
      %7826 = vmatpush1.bf16.msra.mxu0 0
      %7827 = vmatprep.subr.bf16.mxu0 0
      %7828 = vmatpush1.bf16.msra.mxu0 0
      %7829 = vmatprep.subr.bf16.mxu0 0
      %7830 = vmatpush1.bf16.msra.mxu0 0
      %7831 = vmatprep.subr.bf16.mxu0 0
      %7832 = vmatpush1.bf16.msra.mxu0 0
      %7833 = vmatprep.subr.bf16.mxu0 0
      %7834 = vmatpush1.bf16.msra.mxu0 0
      %7835 = vmatprep.subr.bf16.mxu0 0
      %7836 = vmatpush1.bf16.msra.mxu0 0
      %7837 = vmatprep.subr.bf16.mxu0 0
      %7838 = vmatpush1.bf16.msra.mxu0 0
      %7839 = vmatprep.subr.bf16.mxu0 0
      %7840 = vmatpush1.bf16.msra.mxu0 %v7333
      %7841 = vmatprep.subr.bf16.mxu0 0
      %7842 = vmatpush2.bf16.msra.mxu0 0
      %7843 = vmatprep.subr.bf16.mxu0 0
      %7844 = vmatpush2.bf16.msra.mxu0 0
      %7845 = vmatprep.subr.bf16.mxu0 0
      %7846 = vmatpush2.bf16.msra.mxu0 0
      %7847 = vmatprep.subr.bf16.mxu0 0
      %7848 = vmatpush2.bf16.msra.mxu0 0
      %7849 = vmatprep.subr.bf16.mxu0 0
      %7850 = vmatpush2.bf16.msra.mxu0 0
      %7851 = vmatprep.subr.bf16.mxu0 0
      %7852 = vmatpush2.bf16.msra.mxu0 0
      %7853 = vmatprep.subr.bf16.mxu0 0
      %7854 = vmatpush2.bf16.msra.mxu0 0
      %7855 = vmatprep.subr.bf16.mxu0 0
      %7856 = vmatpush2.bf16.msra.mxu0 0
      %7857 = vmatprep.mubr.bf16.mxu0 0
      %7858 = vmatmul.mubr.bf16.gmra.mxu0 %v7823
      %v7859 = vpop.f32.mrf.mxu0
      %v7860 = vadd.f32 0.0, %v7859
      %v7861 = vpop.f32.mrf.mxu0
      %v7862 = vpop.f32.mrf.mxu0
      %v7863 = vadd.f32 0.0, %v7862
      %v7864 = vpop.f32.mrf.mxu0
      %7865 = vdwg.mxu0
      %v7867 = vsel %vm371, %v7318, 0
      %7869 = vmatprep.subr.bf16.mxu0 0
      %7870 = vmatpush1.bf16.msra.mxu0 0
      %7871 = vmatprep.subr.bf16.mxu0 0
      %7872 = vmatpush1.bf16.msra.mxu0 0
      %7873 = vmatprep.subr.bf16.mxu0 0
      %7874 = vmatpush1.bf16.msra.mxu0 0
      %7875 = vmatprep.subr.bf16.mxu0 0
      %7876 = vmatpush1.bf16.msra.mxu0 0
      %7877 = vmatprep.subr.bf16.mxu0 0
      %7878 = vmatpush1.bf16.msra.mxu0 0
      %7879 = vmatprep.subr.bf16.mxu0 0
      %7880 = vmatpush1.bf16.msra.mxu0 0
      %7881 = vmatprep.subr.bf16.mxu0 0
      %7882 = vmatpush1.bf16.msra.mxu0 0
      %7883 = vmatprep.subr.bf16.mxu0 0
      %7884 = vmatpush1.bf16.msra.mxu0 %v7334
      %7885 = vmatprep.subr.bf16.mxu0 0
      %7886 = vmatpush2.bf16.msra.mxu0 0
      %7887 = vmatprep.subr.bf16.mxu0 0
      %7888 = vmatpush2.bf16.msra.mxu0 0
      %7889 = vmatprep.subr.bf16.mxu0 0
      %7890 = vmatpush2.bf16.msra.mxu0 0
      %7891 = vmatprep.subr.bf16.mxu0 0
      %7892 = vmatpush2.bf16.msra.mxu0 0
      %7893 = vmatprep.subr.bf16.mxu0 0
      %7894 = vmatpush2.bf16.msra.mxu0 0
      %7895 = vmatprep.subr.bf16.mxu0 0
      %7896 = vmatpush2.bf16.msra.mxu0 0
      %7897 = vmatprep.subr.bf16.mxu0 0
      %7898 = vmatpush2.bf16.msra.mxu0 0
      %7899 = vmatprep.subr.bf16.mxu0 0
      %7900 = vmatpush2.bf16.msra.mxu0 0
      %7901 = vmatprep.mubr.bf16.mxu0 0
      %7902 = vmatmul.mubr.bf16.gmra.mxu0 %v7867
      %v7903 = vpop.f32.mrf.mxu0
      %v7904 = vadd.f32 0.0, %v7903
      %v7905 = vpop.f32.mrf.mxu0
      %v7906 = vpop.f32.mrf.mxu0
      %v7907 = vadd.f32 0.0, %v7906
      %v7908 = vpop.f32.mrf.mxu0
      %7909 = vdwg.mxu0
      %v7911 = vsel %vm371, %v7319, 0
      %7913 = vmatprep.subr.bf16.mxu0 0
      %7914 = vmatpush1.bf16.msra.mxu0 0
      %7915 = vmatprep.subr.bf16.mxu0 0
      %7916 = vmatpush1.bf16.msra.mxu0 0
      %7917 = vmatprep.subr.bf16.mxu0 0
      %7918 = vmatpush1.bf16.msra.mxu0 0
      %7919 = vmatprep.subr.bf16.mxu0 0
      %7920 = vmatpush1.bf16.msra.mxu0 0
      %7921 = vmatprep.subr.bf16.mxu0 0
      %7922 = vmatpush1.bf16.msra.mxu0 0
      %7923 = vmatprep.subr.bf16.mxu0 0
      %7924 = vmatpush1.bf16.msra.mxu0 0
      %7925 = vmatprep.subr.bf16.mxu0 0
      %7926 = vmatpush1.bf16.msra.mxu0 0
      %7927 = vmatprep.subr.bf16.mxu0 0
      %7928 = vmatpush1.bf16.msra.mxu0 %v7335
      %7929 = vmatprep.subr.bf16.mxu0 0
      %7930 = vmatpush2.bf16.msra.mxu0 0
      %7931 = vmatprep.subr.bf16.mxu0 0
      %7932 = vmatpush2.bf16.msra.mxu0 0
      %7933 = vmatprep.subr.bf16.mxu0 0
      %7934 = vmatpush2.bf16.msra.mxu0 0
      %7935 = vmatprep.subr.bf16.mxu0 0
      %7936 = vmatpush2.bf16.msra.mxu0 0
      %7937 = vmatprep.subr.bf16.mxu0 0
      %7938 = vmatpush2.bf16.msra.mxu0 0
      %7939 = vmatprep.subr.bf16.mxu0 0
      %7940 = vmatpush2.bf16.msra.mxu0 0
      %7941 = vmatprep.subr.bf16.mxu0 0
      %7942 = vmatpush2.bf16.msra.mxu0 0
      %7943 = vmatprep.subr.bf16.mxu0 0
      %7944 = vmatpush2.bf16.msra.mxu0 0
      %7945 = vmatprep.mubr.bf16.mxu0 0
      %7946 = vmatmul.mubr.bf16.gmra.mxu0 %v7911
      %v7947 = vpop.f32.mrf.mxu0
      %v7948 = vadd.f32 0.0, %v7947
      %v7949 = vpop.f32.mrf.mxu0
      %v7950 = vpop.f32.mrf.mxu0
      %v7951 = vadd.f32 0.0, %v7950
      %v7952 = vpop.f32.mrf.mxu0
      %7953 = vdwg.mxu0
      %v7955 = vsel %vm371, %v7320, 0
      %7957 = vmatprep.subr.bf16.mxu0 0
      %7958 = vmatpush1.bf16.msra.mxu0 0
      %7959 = vmatprep.subr.bf16.mxu0 0
      %7960 = vmatpush1.bf16.msra.mxu0 0
      %7961 = vmatprep.subr.bf16.mxu0 0
      %7962 = vmatpush1.bf16.msra.mxu0 0
      %7963 = vmatprep.subr.bf16.mxu0 0
      %7964 = vmatpush1.bf16.msra.mxu0 0
      %7965 = vmatprep.subr.bf16.mxu0 0
      %7966 = vmatpush1.bf16.msra.mxu0 0
      %7967 = vmatprep.subr.bf16.mxu0 0
      %7968 = vmatpush1.bf16.msra.mxu0 0
      %7969 = vmatprep.subr.bf16.mxu0 0
      %7970 = vmatpush1.bf16.msra.mxu0 0
      %7971 = vmatprep.subr.bf16.mxu0 0
      %7972 = vmatpush1.bf16.msra.mxu0 %v7336
      %7973 = vmatprep.subr.bf16.mxu0 0
      %7974 = vmatpush2.bf16.msra.mxu0 0
      %7975 = vmatprep.subr.bf16.mxu0 0
      %7976 = vmatpush2.bf16.msra.mxu0 0
      %7977 = vmatprep.subr.bf16.mxu0 0
      %7978 = vmatpush2.bf16.msra.mxu0 0
      %7979 = vmatprep.subr.bf16.mxu0 0
      %7980 = vmatpush2.bf16.msra.mxu0 0
      %7981 = vmatprep.subr.bf16.mxu0 0
      %7982 = vmatpush2.bf16.msra.mxu0 0
      %7983 = vmatprep.subr.bf16.mxu0 0
      %7984 = vmatpush2.bf16.msra.mxu0 0
      %7985 = vmatprep.subr.bf16.mxu0 0
      %7986 = vmatpush2.bf16.msra.mxu0 0
      %7987 = vmatprep.subr.bf16.mxu0 0
      %7988 = vmatpush2.bf16.msra.mxu0 0
      %7989 = vmatprep.mubr.bf16.mxu0 0
      %7990 = vmatmul.mubr.bf16.gmra.mxu0 %v7955
      %v7991 = vpop.f32.mrf.mxu0
      %v7992 = vadd.f32 0.0, %v7991
      %v7993 = vpop.f32.mrf.mxu0
      %v7994 = vpop.f32.mrf.mxu0
      %v7995 = vadd.f32 0.0, %v7994
      %v7996 = vpop.f32.mrf.mxu0
      %7997 = vdwg.mxu0
      %v7999 = vsel %vm371, %v7321, 0
      %8001 = vmatprep.subr.bf16.mxu0 0
      %8002 = vmatpush1.bf16.msra.mxu0 0
      %8003 = vmatprep.subr.bf16.mxu0 0
      %8004 = vmatpush1.bf16.msra.mxu0 0
      %8005 = vmatprep.subr.bf16.mxu0 0
      %8006 = vmatpush1.bf16.msra.mxu0 0
      %8007 = vmatprep.subr.bf16.mxu0 0
      %8008 = vmatpush1.bf16.msra.mxu0 0
      %8009 = vmatprep.subr.bf16.mxu0 0
      %8010 = vmatpush1.bf16.msra.mxu0 0
      %8011 = vmatprep.subr.bf16.mxu0 0
      %8012 = vmatpush1.bf16.msra.mxu0 0
      %8013 = vmatprep.subr.bf16.mxu0 0
      %8014 = vmatpush1.bf16.msra.mxu0 0
      %8015 = vmatprep.subr.bf16.mxu0 0
      %8016 = vmatpush1.bf16.msra.mxu0 %v7337
      %8017 = vmatprep.subr.bf16.mxu0 0
      %8018 = vmatpush2.bf16.msra.mxu0 0
      %8019 = vmatprep.subr.bf16.mxu0 0
      %8020 = vmatpush2.bf16.msra.mxu0 0
      %8021 = vmatprep.subr.bf16.mxu0 0
      %8022 = vmatpush2.bf16.msra.mxu0 0
      %8023 = vmatprep.subr.bf16.mxu0 0
      %8024 = vmatpush2.bf16.msra.mxu0 0
      %8025 = vmatprep.subr.bf16.mxu0 0
      %8026 = vmatpush2.bf16.msra.mxu0 0
      %8027 = vmatprep.subr.bf16.mxu0 0
      %8028 = vmatpush2.bf16.msra.mxu0 0
      %8029 = vmatprep.subr.bf16.mxu0 0
      %8030 = vmatpush2.bf16.msra.mxu0 0
      %8031 = vmatprep.subr.bf16.mxu0 0
      %8032 = vmatpush2.bf16.msra.mxu0 0
      %8033 = vmatprep.mubr.bf16.mxu0 0
      %8034 = vmatmul.mubr.bf16.gmra.mxu0 %v7999
      %v8035 = vpop.f32.mrf.mxu0
      %v8036 = vadd.f32 0.0, %v8035
      %v8037 = vpop.f32.mrf.mxu0
      %v8038 = vpop.f32.mrf.mxu0
      %v8039 = vadd.f32 0.0, %v8038
      %v8040 = vpop.f32.mrf.mxu0
      %8041 = vdwg.mxu0
      %v8074 = vmul.f32 %v6640, %v6284
      %v8075 = vmul.f32 %v6643, %v6287
      %v8076 = vmul.f32 %v6684, %v6290
      %v8077 = vmul.f32 %v6687, %v6293
      %v8078 = vmul.f32 %v6728, %v6296
      %v8079 = vmul.f32 %v6731, %v6299
      %v8080 = vmul.f32 %v6772, %v6302
      %v8081 = vmul.f32 %v6775, %v6305
      %v8082 = vmul.f32 %v6816, %v6308
      %v8083 = vmul.f32 %v6819, %v6311
      %v8084 = vmul.f32 %v6860, %v6314
      %v8085 = vmul.f32 %v6863, %v6317
      %v8086 = vmul.f32 %v6904, %v6320
      %v8087 = vmul.f32 %v6907, %v6323
      %v8088 = vmul.f32 %v6948, %v6326
      %v8089 = vmul.f32 %v6951, %v6329
      %v8090 = vmul.f32 %v6992, %v6332
      %v8091 = vmul.f32 %v6995, %v6335
      %v8092 = vmul.f32 %v7036, %v6338
      %v8093 = vmul.f32 %v7039, %v6341
      %v8094 = vmul.f32 %v7080, %v6344
      %v8095 = vmul.f32 %v7083, %v6347
      %v8096 = vmul.f32 %v7124, %v6350
      %v8097 = vmul.f32 %v7127, %v6353
      %v8098 = vmul.f32 %v7168, %v6356
      %v8099 = vmul.f32 %v7171, %v6359
      %v8100 = vmul.f32 %v7212, %v6362
      %v8101 = vmul.f32 %v7215, %v6365
      %v8102 = vmul.f32 %v7256, %v6368
      %v8103 = vmul.f32 %v7259, %v6371
      %v8104 = vmul.f32 %v7300, %v6374
      %v8105 = vmul.f32 %v7303, %v6377
      %v8106 = vcombine.low %v8074, %v8078
      %v8107 = vcombine.high %v8074, %v8078
      %v8109 = vunpack.c.l.s4 1983009808
      %v8110 = vunpack.c.0.s8 %v8109
      %v8111 = vlaneseq
      %v8112 = vshrl.u32 %v8111, 7
      %v8113 = vsub.s32 %v8110, %v8112
      %v8114 = vrot.slane %v8106, %v8113
      %v8116 = vunpack.c.l.s4 1983009808
      %v8117 = vunpack.c.0.s8 %v8116
      %v8118 = vlaneseq
      %v8119 = vshrl.u32 %v8118, 7
      %v8120 = vsub.s32 %v8117, %v8119
      %v8121 = vrot.slane %v8107, %v8120
      %v8122 = vcombine.low %v8076, %v8080
      %v8123 = vcombine.high %v8076, %v8080
      %v8125 = vunpack.c.l.s4 1983009808
      %v8126 = vunpack.c.0.s8 %v8125
      %v8127 = vlaneseq
      %v8128 = vshrl.u32 %v8127, 7
      %v8129 = vsub.s32 %v8126, %v8128
      %v8130 = vrot.slane %v8122, %v8129
      %v8132 = vunpack.c.l.s4 1983009808
      %v8133 = vunpack.c.0.s8 %v8132
      %v8134 = vlaneseq
      %v8135 = vshrl.u32 %v8134, 7
      %v8136 = vsub.s32 %v8133, %v8135
      %v8137 = vrot.slane %v8123, %v8136
      %v8138 = vcombine.low %v8082, %v8086
      %v8139 = vcombine.high %v8082, %v8086
      %v8141 = vunpack.c.l.s4 1983009808
      %v8142 = vunpack.c.0.s8 %v8141
      %v8143 = vlaneseq
      %v8144 = vshrl.u32 %v8143, 7
      %v8145 = vsub.s32 %v8142, %v8144
      %v8146 = vrot.slane %v8138, %v8145
      %v8148 = vunpack.c.l.s4 1983009808
      %v8149 = vunpack.c.0.s8 %v8148
      %v8150 = vlaneseq
      %v8151 = vshrl.u32 %v8150, 7
      %v8152 = vsub.s32 %v8149, %v8151
      %v8153 = vrot.slane %v8139, %v8152
      %v8154 = vcombine.low %v8084, %v8088
      %v8155 = vcombine.high %v8084, %v8088
      %v8157 = vunpack.c.l.s4 1983009808
      %v8158 = vunpack.c.0.s8 %v8157
      %v8159 = vlaneseq
      %v8160 = vshrl.u32 %v8159, 7
      %v8161 = vsub.s32 %v8158, %v8160
      %v8162 = vrot.slane %v8154, %v8161
      %v8164 = vunpack.c.l.s4 1983009808
      %v8165 = vunpack.c.0.s8 %v8164
      %v8166 = vlaneseq
      %v8167 = vshrl.u32 %v8166, 7
      %v8168 = vsub.s32 %v8165, %v8167
      %v8169 = vrot.slane %v8155, %v8168
      %v8170 = vcombine.low %v8114, %v8130
      %v8171 = vcombine.high %v8114, %v8130
      %v8173 = vunpack.c.l.s4 1934713408
      %v8174 = vunpack.c.0.s8 %v8173
      %v8175 = vlaneseq
      %v8176 = vshrl.u32 %v8175, 7
      %v8177 = vsub.s32 %v8174, %v8176
      %v8178 = vrot.slane %v8170, %v8177
      %v8180 = vunpack.c.l.s4 1934713408
      %v8181 = vunpack.c.0.s8 %v8180
      %v8182 = vlaneseq
      %v8183 = vshrl.u32 %v8182, 7
      %v8184 = vsub.s32 %v8181, %v8183
      %v8185 = vrot.slane %v8171, %v8184
      %v8186 = vcombine.low %v8121, %v8137
      %v8187 = vcombine.high %v8121, %v8137
      %v8189 = vunpack.c.l.s4 1934713408
      %v8190 = vunpack.c.0.s8 %v8189
      %v8191 = vlaneseq
      %v8192 = vshrl.u32 %v8191, 7
      %v8193 = vsub.s32 %v8190, %v8192
      %v8194 = vrot.slane %v8186, %v8193
      %v8196 = vunpack.c.l.s4 1934713408
      %v8197 = vunpack.c.0.s8 %v8196
      %v8198 = vlaneseq
      %v8199 = vshrl.u32 %v8198, 7
      %v8200 = vsub.s32 %v8197, %v8199
      %v8201 = vrot.slane %v8187, %v8200
      %v8202 = vcombine.low %v8146, %v8162
      %v8203 = vcombine.high %v8146, %v8162
      %v8205 = vunpack.c.l.s4 1934713408
      %v8206 = vunpack.c.0.s8 %v8205
      %v8207 = vlaneseq
      %v8208 = vshrl.u32 %v8207, 7
      %v8209 = vsub.s32 %v8206, %v8208
      %v8210 = vrot.slane %v8202, %v8209
      %v8212 = vunpack.c.l.s4 1934713408
      %v8213 = vunpack.c.0.s8 %v8212
      %v8214 = vlaneseq
      %v8215 = vshrl.u32 %v8214, 7
      %v8216 = vsub.s32 %v8213, %v8215
      %v8217 = vrot.slane %v8203, %v8216
      %v8218 = vcombine.low %v8153, %v8169
      %v8219 = vcombine.high %v8153, %v8169
      %v8221 = vunpack.c.l.s4 1934713408
      %v8222 = vunpack.c.0.s8 %v8221
      %v8223 = vlaneseq
      %v8224 = vshrl.u32 %v8223, 7
      %v8225 = vsub.s32 %v8222, %v8224
      %v8226 = vrot.slane %v8218, %v8225
      %v8228 = vunpack.c.l.s4 1934713408
      %v8229 = vunpack.c.0.s8 %v8228
      %v8230 = vlaneseq
      %v8231 = vshrl.u32 %v8230, 7
      %v8232 = vsub.s32 %v8229, %v8231
      %v8233 = vrot.slane %v8219, %v8232
      %v8234 = vcombine.low %v8178, %v8210
      %v8235 = vcombine.high %v8178, %v8210
      %v8236 = vcombine.low %v8185, %v8217
      %v8237 = vcombine.high %v8185, %v8217
      %v8238 = vcombine.low %v8194, %v8226
      %v8239 = vcombine.high %v8194, %v8226
      %v8240 = vcombine.low %v8201, %v8233
      %v8241 = vcombine.high %v8201, %v8233
      %v8242 = vcombine.low %v8090, %v8094
      %v8243 = vcombine.high %v8090, %v8094
      %v8245 = vunpack.c.l.s4 1983009808
      %v8246 = vunpack.c.0.s8 %v8245
      %v8247 = vlaneseq
      %v8248 = vshrl.u32 %v8247, 7
      %v8249 = vsub.s32 %v8246, %v8248
      %v8250 = vrot.slane %v8242, %v8249
      %v8252 = vunpack.c.l.s4 1983009808
      %v8253 = vunpack.c.0.s8 %v8252
      %v8254 = vlaneseq
      %v8255 = vshrl.u32 %v8254, 7
      %v8256 = vsub.s32 %v8253, %v8255
      %v8257 = vrot.slane %v8243, %v8256
      %v8258 = vcombine.low %v8092, %v8096
      %v8259 = vcombine.high %v8092, %v8096
      %v8261 = vunpack.c.l.s4 1983009808
      %v8262 = vunpack.c.0.s8 %v8261
      %v8263 = vlaneseq
      %v8264 = vshrl.u32 %v8263, 7
      %v8265 = vsub.s32 %v8262, %v8264
      %v8266 = vrot.slane %v8258, %v8265
      %v8268 = vunpack.c.l.s4 1983009808
      %v8269 = vunpack.c.0.s8 %v8268
      %v8270 = vlaneseq
      %v8271 = vshrl.u32 %v8270, 7
      %v8272 = vsub.s32 %v8269, %v8271
      %v8273 = vrot.slane %v8259, %v8272
      %v8274 = vcombine.low %v8098, %v8102
      %v8275 = vcombine.high %v8098, %v8102
      %v8277 = vunpack.c.l.s4 1983009808
      %v8278 = vunpack.c.0.s8 %v8277
      %v8279 = vlaneseq
      %v8280 = vshrl.u32 %v8279, 7
      %v8281 = vsub.s32 %v8278, %v8280
      %v8282 = vrot.slane %v8274, %v8281
      %v8284 = vunpack.c.l.s4 1983009808
      %v8285 = vunpack.c.0.s8 %v8284
      %v8286 = vlaneseq
      %v8287 = vshrl.u32 %v8286, 7
      %v8288 = vsub.s32 %v8285, %v8287
      %v8289 = vrot.slane %v8275, %v8288
      %v8290 = vcombine.low %v8100, %v8104
      %v8291 = vcombine.high %v8100, %v8104
      %v8293 = vunpack.c.l.s4 1983009808
      %v8294 = vunpack.c.0.s8 %v8293
      %v8295 = vlaneseq
      %v8296 = vshrl.u32 %v8295, 7
      %v8297 = vsub.s32 %v8294, %v8296
      %v8298 = vrot.slane %v8290, %v8297
      %v8300 = vunpack.c.l.s4 1983009808
      %v8301 = vunpack.c.0.s8 %v8300
      %v8302 = vlaneseq
      %v8303 = vshrl.u32 %v8302, 7
      %v8304 = vsub.s32 %v8301, %v8303
      %v8305 = vrot.slane %v8291, %v8304
      %v8306 = vcombine.low %v8250, %v8266
      %v8307 = vcombine.high %v8250, %v8266
      %v8309 = vunpack.c.l.s4 1934713408
      %v8310 = vunpack.c.0.s8 %v8309
      %v8311 = vlaneseq
      %v8312 = vshrl.u32 %v8311, 7
      %v8313 = vsub.s32 %v8310, %v8312
      %v8314 = vrot.slane %v8306, %v8313
      %v8316 = vunpack.c.l.s4 1934713408
      %v8317 = vunpack.c.0.s8 %v8316
      %v8318 = vlaneseq
      %v8319 = vshrl.u32 %v8318, 7
      %v8320 = vsub.s32 %v8317, %v8319
      %v8321 = vrot.slane %v8307, %v8320
      %v8322 = vcombine.low %v8257, %v8273
      %v8323 = vcombine.high %v8257, %v8273
      %v8325 = vunpack.c.l.s4 1934713408
      %v8326 = vunpack.c.0.s8 %v8325
      %v8327 = vlaneseq
      %v8328 = vshrl.u32 %v8327, 7
      %v8329 = vsub.s32 %v8326, %v8328
      %v8330 = vrot.slane %v8322, %v8329
      %v8332 = vunpack.c.l.s4 1934713408
      %v8333 = vunpack.c.0.s8 %v8332
      %v8334 = vlaneseq
      %v8335 = vshrl.u32 %v8334, 7
      %v8336 = vsub.s32 %v8333, %v8335
      %v8337 = vrot.slane %v8323, %v8336
      %v8338 = vcombine.low %v8282, %v8298
      %v8339 = vcombine.high %v8282, %v8298
      %v8341 = vunpack.c.l.s4 1934713408
      %v8342 = vunpack.c.0.s8 %v8341
      %v8343 = vlaneseq
      %v8344 = vshrl.u32 %v8343, 7
      %v8345 = vsub.s32 %v8342, %v8344
      %v8346 = vrot.slane %v8338, %v8345
      %v8348 = vunpack.c.l.s4 1934713408
      %v8349 = vunpack.c.0.s8 %v8348
      %v8350 = vlaneseq
      %v8351 = vshrl.u32 %v8350, 7
      %v8352 = vsub.s32 %v8349, %v8351
      %v8353 = vrot.slane %v8339, %v8352
      %v8354 = vcombine.low %v8289, %v8305
      %v8355 = vcombine.high %v8289, %v8305
      %v8357 = vunpack.c.l.s4 1934713408
      %v8358 = vunpack.c.0.s8 %v8357
      %v8359 = vlaneseq
      %v8360 = vshrl.u32 %v8359, 7
      %v8361 = vsub.s32 %v8358, %v8360
      %v8362 = vrot.slane %v8354, %v8361
      %v8364 = vunpack.c.l.s4 1934713408
      %v8365 = vunpack.c.0.s8 %v8364
      %v8366 = vlaneseq
      %v8367 = vshrl.u32 %v8366, 7
      %v8368 = vsub.s32 %v8365, %v8367
      %v8369 = vrot.slane %v8355, %v8368
      %v8370 = vcombine.low %v8314, %v8346
      %v8371 = vcombine.high %v8314, %v8346
      %v8372 = vcombine.low %v8321, %v8353
      %v8373 = vcombine.high %v8321, %v8353
      %v8374 = vcombine.low %v8330, %v8362
      %v8375 = vcombine.high %v8330, %v8362
      %v8376 = vcombine.low %v8337, %v8369
      %v8377 = vcombine.high %v8337, %v8369
      %v8378 = vcombine.low %v8075, %v8079
      %v8379 = vcombine.high %v8075, %v8079
      %v8381 = vunpack.c.l.s4 1983009808
      %v8382 = vunpack.c.0.s8 %v8381
      %v8383 = vlaneseq
      %v8384 = vshrl.u32 %v8383, 7
      %v8385 = vsub.s32 %v8382, %v8384
      %v8386 = vrot.slane %v8378, %v8385
      %v8388 = vunpack.c.l.s4 1983009808
      %v8389 = vunpack.c.0.s8 %v8388
      %v8390 = vlaneseq
      %v8391 = vshrl.u32 %v8390, 7
      %v8392 = vsub.s32 %v8389, %v8391
      %v8393 = vrot.slane %v8379, %v8392
      %v8394 = vcombine.low %v8077, %v8081
      %v8395 = vcombine.high %v8077, %v8081
      %v8397 = vunpack.c.l.s4 1983009808
      %v8398 = vunpack.c.0.s8 %v8397
      %v8399 = vlaneseq
      %v8400 = vshrl.u32 %v8399, 7
      %v8401 = vsub.s32 %v8398, %v8400
      %v8402 = vrot.slane %v8394, %v8401
      %v8404 = vunpack.c.l.s4 1983009808
      %v8405 = vunpack.c.0.s8 %v8404
      %v8406 = vlaneseq
      %v8407 = vshrl.u32 %v8406, 7
      %v8408 = vsub.s32 %v8405, %v8407
      %v8409 = vrot.slane %v8395, %v8408
      %v8410 = vcombine.low %v8083, %v8087
      %v8411 = vcombine.high %v8083, %v8087
      %v8413 = vunpack.c.l.s4 1983009808
      %v8414 = vunpack.c.0.s8 %v8413
      %v8415 = vlaneseq
      %v8416 = vshrl.u32 %v8415, 7
      %v8417 = vsub.s32 %v8414, %v8416
      %v8418 = vrot.slane %v8410, %v8417
      %v8420 = vunpack.c.l.s4 1983009808
      %v8421 = vunpack.c.0.s8 %v8420
      %v8422 = vlaneseq
      %v8423 = vshrl.u32 %v8422, 7
      %v8424 = vsub.s32 %v8421, %v8423
      %v8425 = vrot.slane %v8411, %v8424
      %v8426 = vcombine.low %v8085, %v8089
      %v8427 = vcombine.high %v8085, %v8089
      %v8429 = vunpack.c.l.s4 1983009808
      %v8430 = vunpack.c.0.s8 %v8429
      %v8431 = vlaneseq
      %v8432 = vshrl.u32 %v8431, 7
      %v8433 = vsub.s32 %v8430, %v8432
      %v8434 = vrot.slane %v8426, %v8433
      %v8436 = vunpack.c.l.s4 1983009808
      %v8437 = vunpack.c.0.s8 %v8436
      %v8438 = vlaneseq
      %v8439 = vshrl.u32 %v8438, 7
      %v8440 = vsub.s32 %v8437, %v8439
      %v8441 = vrot.slane %v8427, %v8440
      %v8442 = vcombine.low %v8386, %v8402
      %v8443 = vcombine.high %v8386, %v8402
      %v8445 = vunpack.c.l.s4 1934713408
      %v8446 = vunpack.c.0.s8 %v8445
      %v8447 = vlaneseq
      %v8448 = vshrl.u32 %v8447, 7
      %v8449 = vsub.s32 %v8446, %v8448
      %v8450 = vrot.slane %v8442, %v8449
      %v8452 = vunpack.c.l.s4 1934713408
      %v8453 = vunpack.c.0.s8 %v8452
      %v8454 = vlaneseq
      %v8455 = vshrl.u32 %v8454, 7
      %v8456 = vsub.s32 %v8453, %v8455
      %v8457 = vrot.slane %v8443, %v8456
      %v8458 = vcombine.low %v8393, %v8409
      %v8459 = vcombine.high %v8393, %v8409
      %v8461 = vunpack.c.l.s4 1934713408
      %v8462 = vunpack.c.0.s8 %v8461
      %v8463 = vlaneseq
      %v8464 = vshrl.u32 %v8463, 7
      %v8465 = vsub.s32 %v8462, %v8464
      %v8466 = vrot.slane %v8458, %v8465
      %v8468 = vunpack.c.l.s4 1934713408
      %v8469 = vunpack.c.0.s8 %v8468
      %v8470 = vlaneseq
      %v8471 = vshrl.u32 %v8470, 7
      %v8472 = vsub.s32 %v8469, %v8471
      %v8473 = vrot.slane %v8459, %v8472
      %v8474 = vcombine.low %v8418, %v8434
      %v8475 = vcombine.high %v8418, %v8434
      %v8477 = vunpack.c.l.s4 1934713408
      %v8478 = vunpack.c.0.s8 %v8477
      %v8479 = vlaneseq
      %v8480 = vshrl.u32 %v8479, 7
      %v8481 = vsub.s32 %v8478, %v8480
      %v8482 = vrot.slane %v8474, %v8481
      %v8484 = vunpack.c.l.s4 1934713408
      %v8485 = vunpack.c.0.s8 %v8484
      %v8486 = vlaneseq
      %v8487 = vshrl.u32 %v8486, 7
      %v8488 = vsub.s32 %v8485, %v8487
      %v8489 = vrot.slane %v8475, %v8488
      %v8490 = vcombine.low %v8425, %v8441
      %v8491 = vcombine.high %v8425, %v8441
      %v8493 = vunpack.c.l.s4 1934713408
      %v8494 = vunpack.c.0.s8 %v8493
      %v8495 = vlaneseq
      %v8496 = vshrl.u32 %v8495, 7
      %v8497 = vsub.s32 %v8494, %v8496
      %v8498 = vrot.slane %v8490, %v8497
      %v8500 = vunpack.c.l.s4 1934713408
      %v8501 = vunpack.c.0.s8 %v8500
      %v8502 = vlaneseq
      %v8503 = vshrl.u32 %v8502, 7
      %v8504 = vsub.s32 %v8501, %v8503
      %v8505 = vrot.slane %v8491, %v8504
      %v8506 = vcombine.low %v8450, %v8482
      %v8507 = vcombine.high %v8450, %v8482
      %v8508 = vcombine.low %v8457, %v8489
      %v8509 = vcombine.high %v8457, %v8489
      %v8510 = vcombine.low %v8466, %v8498
      %v8511 = vcombine.high %v8466, %v8498
      %v8512 = vcombine.low %v8473, %v8505
      %v8513 = vcombine.high %v8473, %v8505
      %v8514 = vcombine.low %v8091, %v8095
      %v8515 = vcombine.high %v8091, %v8095
      %v8517 = vunpack.c.l.s4 1983009808
      %v8518 = vunpack.c.0.s8 %v8517
      %v8519 = vlaneseq
      %v8520 = vshrl.u32 %v8519, 7
      %v8521 = vsub.s32 %v8518, %v8520
      %v8522 = vrot.slane %v8514, %v8521
      %v8524 = vunpack.c.l.s4 1983009808
      %v8525 = vunpack.c.0.s8 %v8524
      %v8526 = vlaneseq
      %v8527 = vshrl.u32 %v8526, 7
      %v8528 = vsub.s32 %v8525, %v8527
      %v8529 = vrot.slane %v8515, %v8528
      %v8530 = vcombine.low %v8093, %v8097
      %v8531 = vcombine.high %v8093, %v8097
      %v8533 = vunpack.c.l.s4 1983009808
      %v8534 = vunpack.c.0.s8 %v8533
      %v8535 = vlaneseq
      %v8536 = vshrl.u32 %v8535, 7
      %v8537 = vsub.s32 %v8534, %v8536
      %v8538 = vrot.slane %v8530, %v8537
      %v8540 = vunpack.c.l.s4 1983009808
      %v8541 = vunpack.c.0.s8 %v8540
      %v8542 = vlaneseq
      %v8543 = vshrl.u32 %v8542, 7
      %v8544 = vsub.s32 %v8541, %v8543
      %v8545 = vrot.slane %v8531, %v8544
      %v8546 = vcombine.low %v8099, %v8103
      %v8547 = vcombine.high %v8099, %v8103
      %v8549 = vunpack.c.l.s4 1983009808
      %v8550 = vunpack.c.0.s8 %v8549
      %v8551 = vlaneseq
      %v8552 = vshrl.u32 %v8551, 7
      %v8553 = vsub.s32 %v8550, %v8552
      %v8554 = vrot.slane %v8546, %v8553
      %v8556 = vunpack.c.l.s4 1983009808
      %v8557 = vunpack.c.0.s8 %v8556
      %v8558 = vlaneseq
      %v8559 = vshrl.u32 %v8558, 7
      %v8560 = vsub.s32 %v8557, %v8559
      %v8561 = vrot.slane %v8547, %v8560
      %v8562 = vcombine.low %v8101, %v8105
      %v8563 = vcombine.high %v8101, %v8105
      %v8565 = vunpack.c.l.s4 1983009808
      %v8566 = vunpack.c.0.s8 %v8565
      %v8567 = vlaneseq
      %v8568 = vshrl.u32 %v8567, 7
      %v8569 = vsub.s32 %v8566, %v8568
      %v8570 = vrot.slane %v8562, %v8569
      %v8572 = vunpack.c.l.s4 1983009808
      %v8573 = vunpack.c.0.s8 %v8572
      %v8574 = vlaneseq
      %v8575 = vshrl.u32 %v8574, 7
      %v8576 = vsub.s32 %v8573, %v8575
      %v8577 = vrot.slane %v8563, %v8576
      %v8578 = vcombine.low %v8522, %v8538
      %v8579 = vcombine.high %v8522, %v8538
      %v8581 = vunpack.c.l.s4 1934713408
      %v8582 = vunpack.c.0.s8 %v8581
      %v8583 = vlaneseq
      %v8584 = vshrl.u32 %v8583, 7
      %v8585 = vsub.s32 %v8582, %v8584
      %v8586 = vrot.slane %v8578, %v8585
      %v8588 = vunpack.c.l.s4 1934713408
      %v8589 = vunpack.c.0.s8 %v8588
      %v8590 = vlaneseq
      %v8591 = vshrl.u32 %v8590, 7
      %v8592 = vsub.s32 %v8589, %v8591
      %v8593 = vrot.slane %v8579, %v8592
      %v8594 = vcombine.low %v8529, %v8545
      %v8595 = vcombine.high %v8529, %v8545
      %v8597 = vunpack.c.l.s4 1934713408
      %v8598 = vunpack.c.0.s8 %v8597
      %v8599 = vlaneseq
      %v8600 = vshrl.u32 %v8599, 7
      %v8601 = vsub.s32 %v8598, %v8600
      %v8602 = vrot.slane %v8594, %v8601
      %v8604 = vunpack.c.l.s4 1934713408
      %v8605 = vunpack.c.0.s8 %v8604
      %v8606 = vlaneseq
      %v8607 = vshrl.u32 %v8606, 7
      %v8608 = vsub.s32 %v8605, %v8607
      %v8609 = vrot.slane %v8595, %v8608
      %v8610 = vcombine.low %v8554, %v8570
      %v8611 = vcombine.high %v8554, %v8570
      %v8613 = vunpack.c.l.s4 1934713408
      %v8614 = vunpack.c.0.s8 %v8613
      %v8615 = vlaneseq
      %v8616 = vshrl.u32 %v8615, 7
      %v8617 = vsub.s32 %v8614, %v8616
      %v8618 = vrot.slane %v8610, %v8617
      %v8620 = vunpack.c.l.s4 1934713408
      %v8621 = vunpack.c.0.s8 %v8620
      %v8622 = vlaneseq
      %v8623 = vshrl.u32 %v8622, 7
      %v8624 = vsub.s32 %v8621, %v8623
      %v8625 = vrot.slane %v8611, %v8624
      %v8626 = vcombine.low %v8561, %v8577
      %v8627 = vcombine.high %v8561, %v8577
      %v8629 = vunpack.c.l.s4 1934713408
      %v8630 = vunpack.c.0.s8 %v8629
      %v8631 = vlaneseq
      %v8632 = vshrl.u32 %v8631, 7
      %v8633 = vsub.s32 %v8630, %v8632
      %v8634 = vrot.slane %v8626, %v8633
      %v8636 = vunpack.c.l.s4 1934713408
      %v8637 = vunpack.c.0.s8 %v8636
      %v8638 = vlaneseq
      %v8639 = vshrl.u32 %v8638, 7
      %v8640 = vsub.s32 %v8637, %v8639
      %v8641 = vrot.slane %v8627, %v8640
      %v8642 = vcombine.low %v8586, %v8618
      %v8643 = vcombine.high %v8586, %v8618
      %v8644 = vcombine.low %v8593, %v8625
      %v8645 = vcombine.high %v8593, %v8625
      %v8646 = vcombine.low %v8602, %v8634
      %v8647 = vcombine.high %v8602, %v8634
      %v8648 = vcombine.low %v8609, %v8641
      %v8649 = vcombine.high %v8609, %v8641
      %v8650 = vlaneseq
      %v8651 = vshrl.u32 %v8650, 7
      %v8652 = vsub.s32 0, %v8651
      %v8653 = vrot.slane %v6554, %v8652
      %8655 = vbcast.lane.b32.xlu0 %v8653, 256
      %v8656 = vpop.permute.xlu0 %8655
      %s8658 = sor.u32 256, 8
      %8659 = vbcast.lane.b32.xlu0 %v8653, %s8658
      %v8660 = vpop.permute.xlu0 %8659
      %v8661 = vlaneseq
      %v8662 = vshrl.u32 %v8661, 7
      %v8663 = vsub.s32 1, %v8662
      %v8664 = vrot.slane %v6554, %v8663
      %8666 = vbcast.lane.b32.xlu0 %v8664, 256
      %v8667 = vpop.permute.xlu0 %8666
      %s8669 = sor.u32 256, 8
      %8670 = vbcast.lane.b32.xlu0 %v8664, %s8669
      %v8671 = vpop.permute.xlu0 %8670
      %v8672 = vlaneseq
      %v8673 = vshrl.u32 %v8672, 7
      %v8674 = vsub.s32 2, %v8673
      %v8675 = vrot.slane %v6554, %v8674
      %8677 = vbcast.lane.b32.xlu0 %v8675, 256
      %v8678 = vpop.permute.xlu0 %8677
      %s8680 = sor.u32 256, 8
      %8681 = vbcast.lane.b32.xlu0 %v8675, %s8680
      %v8682 = vpop.permute.xlu0 %8681
      %v8683 = vlaneseq
      %v8684 = vshrl.u32 %v8683, 7
      %v8685 = vsub.s32 3, %v8684
      %v8686 = vrot.slane %v6554, %v8685
      %8688 = vbcast.lane.b32.xlu0 %v8686, 256
      %v8689 = vpop.permute.xlu0 %8688
      %s8691 = sor.u32 256, 8
      %8692 = vbcast.lane.b32.xlu0 %v8686, %s8691
      %v8693 = vpop.permute.xlu0 %8692
      %v8694 = vlaneseq
      %v8695 = vshrl.u32 %v8694, 7
      %v8696 = vsub.s32 4, %v8695
      %v8697 = vrot.slane %v6554, %v8696
      %8699 = vbcast.lane.b32.xlu0 %v8697, 256
      %v8700 = vpop.permute.xlu0 %8699
      %s8702 = sor.u32 256, 8
      %8703 = vbcast.lane.b32.xlu0 %v8697, %s8702
      %v8704 = vpop.permute.xlu0 %8703
      %v8705 = vlaneseq
      %v8706 = vshrl.u32 %v8705, 7
      %v8707 = vsub.s32 5, %v8706
      %v8708 = vrot.slane %v6554, %v8707
      %8710 = vbcast.lane.b32.xlu0 %v8708, 256
      %v8711 = vpop.permute.xlu0 %8710
      %s8713 = sor.u32 256, 8
      %8714 = vbcast.lane.b32.xlu0 %v8708, %s8713
      %v8715 = vpop.permute.xlu0 %8714
      %v8716 = vlaneseq
      %v8717 = vshrl.u32 %v8716, 7
      %v8718 = vsub.s32 6, %v8717
      %v8719 = vrot.slane %v6554, %v8718
      %8721 = vbcast.lane.b32.xlu0 %v8719, 256
      %v8722 = vpop.permute.xlu0 %8721
      %s8724 = sor.u32 256, 8
      %8725 = vbcast.lane.b32.xlu0 %v8719, %s8724
      %v8726 = vpop.permute.xlu0 %8725
      %v8727 = vlaneseq
      %v8728 = vshrl.u32 %v8727, 7
      %v8729 = vsub.s32 7, %v8728
      %v8730 = vrot.slane %v6554, %v8729
      %8732 = vbcast.lane.b32.xlu0 %v8730, 256
      %v8733 = vpop.permute.xlu0 %8732
      %s8735 = sor.u32 256, 8
      %8736 = vbcast.lane.b32.xlu0 %v8730, %s8735
      %v8737 = vpop.permute.xlu0 %8736
      %v8738 = vlaneseq
      %v8739 = vshrl.u32 %v8738, 7
      %v8740 = vsub.s32 0, %v8739
      %v8741 = vrot.slane %v6555, %v8740
      %8743 = vbcast.lane.b32.xlu0 %v8741, 256
      %v8744 = vpop.permute.xlu0 %8743
      %s8746 = sor.u32 256, 8
      %8747 = vbcast.lane.b32.xlu0 %v8741, %s8746
      %v8748 = vpop.permute.xlu0 %8747
      %v8749 = vlaneseq
      %v8750 = vshrl.u32 %v8749, 7
      %v8751 = vsub.s32 1, %v8750
      %v8752 = vrot.slane %v6555, %v8751
      %8754 = vbcast.lane.b32.xlu0 %v8752, 256
      %v8755 = vpop.permute.xlu0 %8754
      %s8757 = sor.u32 256, 8
      %8758 = vbcast.lane.b32.xlu0 %v8752, %s8757
      %v8759 = vpop.permute.xlu0 %8758
      %v8760 = vlaneseq
      %v8761 = vshrl.u32 %v8760, 7
      %v8762 = vsub.s32 2, %v8761
      %v8763 = vrot.slane %v6555, %v8762
      %8765 = vbcast.lane.b32.xlu0 %v8763, 256
      %v8766 = vpop.permute.xlu0 %8765
      %s8768 = sor.u32 256, 8
      %8769 = vbcast.lane.b32.xlu0 %v8763, %s8768
      %v8770 = vpop.permute.xlu0 %8769
      %v8771 = vlaneseq
      %v8772 = vshrl.u32 %v8771, 7
      %v8773 = vsub.s32 3, %v8772
      %v8774 = vrot.slane %v6555, %v8773
      %8776 = vbcast.lane.b32.xlu0 %v8774, 256
      %v8777 = vpop.permute.xlu0 %8776
      %s8779 = sor.u32 256, 8
      %8780 = vbcast.lane.b32.xlu0 %v8774, %s8779
      %v8781 = vpop.permute.xlu0 %8780
      %v8782 = vlaneseq
      %v8783 = vshrl.u32 %v8782, 7
      %v8784 = vsub.s32 4, %v8783
      %v8785 = vrot.slane %v6555, %v8784
      %8787 = vbcast.lane.b32.xlu0 %v8785, 256
      %v8788 = vpop.permute.xlu0 %8787
      %s8790 = sor.u32 256, 8
      %8791 = vbcast.lane.b32.xlu0 %v8785, %s8790
      %v8792 = vpop.permute.xlu0 %8791
      %v8793 = vlaneseq
      %v8794 = vshrl.u32 %v8793, 7
      %v8795 = vsub.s32 5, %v8794
      %v8796 = vrot.slane %v6555, %v8795
      %8798 = vbcast.lane.b32.xlu0 %v8796, 256
      %v8799 = vpop.permute.xlu0 %8798
      %s8801 = sor.u32 256, 8
      %8802 = vbcast.lane.b32.xlu0 %v8796, %s8801
      %v8803 = vpop.permute.xlu0 %8802
      %v8804 = vlaneseq
      %v8805 = vshrl.u32 %v8804, 7
      %v8806 = vsub.s32 6, %v8805
      %v8807 = vrot.slane %v6555, %v8806
      %8809 = vbcast.lane.b32.xlu0 %v8807, 256
      %v8810 = vpop.permute.xlu0 %8809
      %s8812 = sor.u32 256, 8
      %8813 = vbcast.lane.b32.xlu0 %v8807, %s8812
      %v8814 = vpop.permute.xlu0 %8813
      %v8815 = vlaneseq
      %v8816 = vshrl.u32 %v8815, 7
      %v8817 = vsub.s32 7, %v8816
      %v8818 = vrot.slane %v6555, %v8817
      %8820 = vbcast.lane.b32.xlu0 %v8818, 256
      %v8821 = vpop.permute.xlu0 %8820
      %s8823 = sor.u32 256, 8
      %8824 = vbcast.lane.b32.xlu0 %v8818, %s8823
      %v8825 = vpop.permute.xlu0 %8824
      %v8826 = vmul.f32 %v7376, %v8656
      %v8827 = vmul.f32 %v7379, %v8660
      %v8828 = vmul.f32 %v7420, %v8667
      %v8829 = vmul.f32 %v7423, %v8671
      %v8830 = vmul.f32 %v7464, %v8678
      %v8831 = vmul.f32 %v7467, %v8682
      %v8832 = vmul.f32 %v7508, %v8689
      %v8833 = vmul.f32 %v7511, %v8693
      %v8834 = vmul.f32 %v7552, %v8700
      %v8835 = vmul.f32 %v7555, %v8704
      %v8836 = vmul.f32 %v7596, %v8711
      %v8837 = vmul.f32 %v7599, %v8715
      %v8838 = vmul.f32 %v7640, %v8722
      %v8839 = vmul.f32 %v7643, %v8726
      %v8840 = vmul.f32 %v7684, %v8733
      %v8841 = vmul.f32 %v7687, %v8737
      %v8842 = vmul.f32 %v7728, %v8744
      %v8843 = vmul.f32 %v7731, %v8748
      %v8844 = vmul.f32 %v7772, %v8755
      %v8845 = vmul.f32 %v7775, %v8759
      %v8846 = vmul.f32 %v7816, %v8766
      %v8847 = vmul.f32 %v7819, %v8770
      %v8848 = vmul.f32 %v7860, %v8777
      %v8849 = vmul.f32 %v7863, %v8781
      %v8850 = vmul.f32 %v7904, %v8788
      %v8851 = vmul.f32 %v7907, %v8792
      %v8852 = vmul.f32 %v7948, %v8799
      %v8853 = vmul.f32 %v7951, %v8803
      %v8854 = vmul.f32 %v7992, %v8810
      %v8855 = vmul.f32 %v7995, %v8814
      %v8856 = vmul.f32 %v8036, %v8821
      %v8857 = vmul.f32 %v8039, %v8825
      %s8858 = sld [smem:[#allocation2]]
      %v8859 = vadd.f32 %v8234, %v8826
      %v8860 = vadd.f32 %v8370, %v8827
      %v8861 = vadd.f32 %v8235, %v8828
      %v8862 = vadd.f32 %v8371, %v8829
      %v8863 = vadd.f32 %v8236, %v8830
      %v8864 = vadd.f32 %v8372, %v8831
      %v8865 = vadd.f32 %v8237, %v8832
      %v8866 = vadd.f32 %v8373, %v8833
      %v8867 = vadd.f32 %v8238, %v8834
      %v8868 = vadd.f32 %v8374, %v8835
      %v8869 = vadd.f32 %v8239, %v8836
      %v8870 = vadd.f32 %v8375, %v8837
      %v8871 = vadd.f32 %v8240, %v8838
      %v8872 = vadd.f32 %v8376, %v8839
      %v8873 = vadd.f32 %v8241, %v8840
      %v8874 = vadd.f32 %v8377, %v8841
      %v8875 = vadd.f32 %v8506, %v8842
      %v8876 = vadd.f32 %v8642, %v8843
      %v8877 = vadd.f32 %v8507, %v8844
      %v8878 = vadd.f32 %v8643, %v8845
      %v8879 = vadd.f32 %v8508, %v8846
      %v8880 = vadd.f32 %v8644, %v8847
      %v8881 = vadd.f32 %v8509, %v8848
      %v8882 = vadd.f32 %v8645, %v8849
      %v8883 = vadd.f32 %v8510, %v8850
      %v8884 = vadd.f32 %v8646, %v8851
      %v8885 = vadd.f32 %v8511, %v8852
      %v8886 = vadd.f32 %v8647, %v8853
      %v8887 = vadd.f32 %v8512, %v8854
      %v8888 = vadd.f32 %v8648, %v8855
      %v8889 = vadd.f32 %v8513, %v8856
      %v8890 = vadd.f32 %v8649, %v8857
      %v8891 = vstv %s8858
      %v8892 = vmul.f32 %v8891, %v8859
      %v8893 = vmul.f32 %v8891, %v8860
      %v8894 = vmul.f32 %v8891, %v8861
      %v8895 = vmul.f32 %v8891, %v8862
      %v8896 = vmul.f32 %v8891, %v8863
      %v8897 = vmul.f32 %v8891, %v8864
      %v8898 = vmul.f32 %v8891, %v8865
      %v8899 = vmul.f32 %v8891, %v8866
      %v8900 = vmul.f32 %v8891, %v8867
      %v8901 = vmul.f32 %v8891, %v8868
      %v8902 = vmul.f32 %v8891, %v8869
      %v8903 = vmul.f32 %v8891, %v8870
      %v8904 = vmul.f32 %v8891, %v8871
      %v8905 = vmul.f32 %v8891, %v8872
      %v8906 = vmul.f32 %v8891, %v8873
      %v8907 = vmul.f32 %v8891, %v8874
      %v8908 = vmul.f32 %v8891, %v8875
      %v8909 = vmul.f32 %v8891, %v8876
      %v8910 = vmul.f32 %v8891, %v8877
      %v8911 = vmul.f32 %v8891, %v8878
      %v8912 = vmul.f32 %v8891, %v8879
      %v8913 = vmul.f32 %v8891, %v8880
      %v8914 = vmul.f32 %v8891, %v8881
      %v8915 = vmul.f32 %v8891, %v8882
      %v8916 = vmul.f32 %v8891, %v8883
      %v8917 = vmul.f32 %v8891, %v8884
      %v8918 = vmul.f32 %v8891, %v8885
      %v8919 = vmul.f32 %v8891, %v8886
      %v8920 = vmul.f32 %v8891, %v8887
      %v8921 = vmul.f32 %v8891, %v8888
      %v8922 = vmul.f32 %v8891, %v8889
      %v8923 = vmul.f32 %v8891, %v8890
      %v8924 = vadd.f32 %v8892, %v308
      %v8925 = vadd.f32 %v8893, %v309
      %v8926 = vadd.f32 %v8894, %v310
      %v8927 = vadd.f32 %v8895, %v311
      %v8928 = vadd.f32 %v8896, %v312
      %v8929 = vadd.f32 %v8897, %v313
      %v8930 = vadd.f32 %v8898, %v314
      %v8931 = vadd.f32 %v8899, %v315
      %v8932 = vadd.f32 %v8900, %v316
      %v8933 = vadd.f32 %v8901, %v317
      %v8934 = vadd.f32 %v8902, %v318
      %v8935 = vadd.f32 %v8903, %v319
      %v8936 = vadd.f32 %v8904, %v320
      %v8937 = vadd.f32 %v8905, %v321
      %v8938 = vadd.f32 %v8906, %v322
      %v8939 = vadd.f32 %v8907, %v323
      %v8940 = vadd.f32 %v8908, %v324
      %v8941 = vadd.f32 %v8909, %v325
      %v8942 = vadd.f32 %v8910, %v326
      %v8943 = vadd.f32 %v8911, %v327
      %v8944 = vadd.f32 %v8912, %v328
      %v8945 = vadd.f32 %v8913, %v329
      %v8946 = vadd.f32 %v8914, %v330
      %v8947 = vadd.f32 %v8915, %v331
      %v8948 = vadd.f32 %v8916, %v332
      %v8949 = vadd.f32 %v8917, %v333
      %v8950 = vadd.f32 %v8918, %v334
      %v8951 = vadd.f32 %v8919, %v335
      %v8952 = vadd.f32 %v8920, %v336
      %v8953 = vadd.f32 %v8921, %v337
      %v8954 = vadd.f32 %v8922, %v338
      %v8955 = vadd.f32 %v8923, %v339
      %8956 = vst.msk [vmem:[%s306] sm:$0xff] %vm371, %v8924
      %8957 = vst.msk [vmem:[%s306 + $0x8] sm:$0xff] %vm371, %v8925
      %8958 = vst.msk [vmem:[%s306 + $0x10] sm:$0xff] %vm371, %v8926
      %8959 = vst.msk [vmem:[%s306 + $0x18] sm:$0xff] %vm371, %v8927
      %8960 = vst.msk [vmem:[%s306 + $0x20] sm:$0xff] %vm371, %v8928
      %8961 = vst.msk [vmem:[%s306 + $0x28] sm:$0xff] %vm371, %v8929
      %8962 = vst.msk [vmem:[%s306 + $0x30] sm:$0xff] %vm371, %v8930
      %8963 = vst.msk [vmem:[%s306 + $0x38] sm:$0xff] %vm371, %v8931
      %8964 = vst.msk [vmem:[%s306 + $0x40] sm:$0xff] %vm371, %v8932
      %8965 = vst.msk [vmem:[%s306 + $0x48] sm:$0xff] %vm371, %v8933
      %8966 = vst.msk [vmem:[%s306 + $0x50] sm:$0xff] %vm371, %v8934
      %8967 = vst.msk [vmem:[%s306 + $0x58] sm:$0xff] %vm371, %v8935
      %8968 = vst.msk [vmem:[%s306 + $0x60] sm:$0xff] %vm371, %v8936
      %8969 = vst.msk [vmem:[%s306 + $0x68] sm:$0xff] %vm371, %v8937
      %8970 = vst.msk [vmem:[%s306 + $0x70] sm:$0xff] %vm371, %v8938
      %8971 = vst.msk [vmem:[%s306 + $0x78] sm:$0xff] %vm371, %v8939
      %8972 = vst.msk [vmem:[%s306 + $0x80] sm:$0xff] %vm371, %v8940
      %8973 = vst.msk [vmem:[%s306 + $0x88] sm:$0xff] %vm371, %v8941
      %8974 = vst.msk [vmem:[%s306 + $0x90] sm:$0xff] %vm371, %v8942
      %8975 = vst.msk [vmem:[%s306 + $0x98] sm:$0xff] %vm371, %v8943
      %8976 = vst.msk [vmem:[%s306 + $0xa0] sm:$0xff] %vm371, %v8944
      %8977 = vst.msk [vmem:[%s306 + $0xa8] sm:$0xff] %vm371, %v8945
      %8978 = vst.msk [vmem:[%s306 + $0xb0] sm:$0xff] %vm371, %v8946
      %8979 = vst.msk [vmem:[%s306 + $0xb8] sm:$0xff] %vm371, %v8947
      %8980 = vst.msk [vmem:[%s306 + $0xc0] sm:$0xff] %vm371, %v8948
      %8981 = vst.msk [vmem:[%s306 + $0xc8] sm:$0xff] %vm371, %v8949
      %8982 = vst.msk [vmem:[%s306 + $0xd0] sm:$0xff] %vm371, %v8950
      %8983 = vst.msk [vmem:[%s306 + $0xd8] sm:$0xff] %vm371, %v8951
      %8984 = vst.msk [vmem:[%s306 + $0xe0] sm:$0xff] %vm371, %v8952
      %8985 = vst.msk [vmem:[%s306 + $0xe8] sm:$0xff] %vm371, %v8953
      %8986 = vst.msk [vmem:[%s306 + $0xf0] sm:$0xff] %vm371, %v8954
      %8987 = vst.msk [vmem:[%s306 + $0xf8] sm:$0xff] %vm371, %v8955
      %p8988 = scmp.lt.s32.totalorder %s20, 1
      %s8989 = scalar_select %p8988, %s20, 1
      %s8990 = smul.addr %s8989, 32
      %s8991 = smul.addr %s8990, 8
      %s8992 = scalar_lea.vmem %s8, %s8991
      // Predicated region
      $region53: #{criss_cross_attention.1} parent=51 // pred_check
        %p8993 = pneg %p211
      $region54: #{criss_cross_attention.1} parent=51 // pred_check_branch
        %8995 = sbr.rel (%p8993) target = $region56
      $region55: #{criss_cross_attention.1} parent=51 // pred_region
        _
      $region56: #{criss_cross_attention.1} parent=51 // pred_fallthru
        _
    $region52: #{criss_cross_attention.1} parent=5 // pred_fallthru
      _
    %p8996 = scmp.le.s32.totalorder 2, %s15
    // Predicated region
    $region57: #{criss_cross_attention.1} parent=5 // pred_check
      %p8997 = pneg %p8996
    $region58: #{criss_cross_attention.1} parent=5 // pred_check_branch
      %8999 = sbr.rel (%p8997) target = $region60
    $region59: #{criss_cross_attention.1} parent=5 // pred_region
      %s9000 = ssub.s32 %s15, 2
      // Predicated region
      $region61: #{criss_cross_attention.1} parent=59 // pred_check
        %p9001 = pneg %p217
      $region62: #{criss_cross_attention.1} parent=59 // pred_check_branch
        %9003 = sbr.rel (%p9001) target = $region64
      $region63: #{criss_cross_attention.1} parent=59 // pred_region
        %p9004 = scmp.lt.s32.totalorder %s21, 1
        %s9005 = scalar_select %p9004, %s21, 1
        %s9006 = smul.addr %s9005, 32
        %s9007 = smul.addr %s9006, 8
        %s9008 = scalar_lea.vmem %s8, %s9007
      $region64: #{criss_cross_attention.1} parent=59 // pred_fallthru
        _
    $region60: #{criss_cross_attention.1} parent=5 // pred_fallthru
      _
  $region6: #{criss_cross_attention.1} parent=0 // loop_footer
    %s19 = sadd.s32 1, %s15
  $region7: #{criss_cross_attention.1} parent=0 // loop_footer_branch
    %14 = sbr.rel target = $region3
  $region8: #{criss_cross_attention.1} parent=0 // loop_exit
    _

</llo_original>
